<compile_context>
chip_gen: v7x
topology: tpu7x:2x2x1
jax: 0.10.0
libtpu: 0.0.40
codegen_flags: <defaults>
</compile_context>

<pallas_src>
import functools

import jax
import jax.numpy as jnp
from jax.experimental import pallas as pl
from jax.experimental.pallas import tpu as pltpu


# ----------------------------- Pallas kernel ------------------------------ #

def _fused_coupling_kernel(x_ref, w3_ref, b3_ref, w1_ref, b1_ref, o_ref,
                           buf_a, buf_b, *, n3, ksize, pad, coff):
    # x_ref : (1, H, W, C)        this sample's channel-padded input (C = 128k)
    # w3_ref: (n3, K*K, C, C)     per-tap effective weights of the KxK layers
    # b3_ref: (n3, 1, C)          biases of the KxK layers
    # w1_ref: (C, C)              final 1x1 conv effective weight
    # b1_ref: (1, C)              final 1x1 conv bias
    # o_ref : (1, H, W, C)        output (only the first out_channels lanes real)
    # buf_a, buf_b: (H+2*pad, coff+W+pad ->rounded, C) ping-pong halo buffers
    _, H, W, C = x_ref.shape
    M = H * W

    # Zero both buffers: the halo (conv zero-padding) and the padded channel
    # lanes stay zero forever because only the interior window is ever written.
    buf_a[...] = jnp.zeros_like(buf_a)
    buf_b[...] = jnp.zeros_like(buf_b)
    # Place the input in the interior.  The column offset `coff` is a multiple
    # of 8, so this store is sublane-aligned and lane-dense.
    buf_a[pad:pad + H, coff:coff + W, :] = x_ref[0]

    bufs = (buf_a, buf_b)

    def conv_kxk(src, layer):
        acc = jnp.zeros((M, C), jnp.float32)
        for kh in range(ksize):
            for kw in range(ksize):
                col0 = coff - pad + kw
                tap = src[kh:kh + H, col0:col0 + W, :]          # (H, W, C)
                acc = acc + jnp.dot(tap.reshape(M, C),
                                    w3_ref[layer, kh * ksize + kw, :, :],
                                    preferred_element_type=jnp.float32)
        return acc + b3_ref[layer, :, :]                        # fused bias add

    h = None
    src_idx = 0
    for layer in range(n3):
        h = conv_kxk(bufs[src_idx], layer)
        if layer < n3 - 1:
            dst = bufs[1 - src_idx]
            dst[pad:pad + H, coff:coff + W, :] = h.reshape(H, W, C)
            src_idx = 1 - src_idx

    # Final 1x1 conv: a plain channel matmul on the last activation (kept in
    # registers, never written back to scratch).
    out = jnp.dot(h, w1_ref[...], preferred_element_type=jnp.float32) \
        + b1_ref[...]
    o_ref[0] = out.reshape(H, W, C).astype(o_ref.dtype)


# --------------------------- parameter creation ---------------------------- #

def make_convnet_coupling_params(key, in_channels, mid_channels, out_channels,
                                 num_blocks, kernel_size, init_zeros=False):
    """Deterministic synthetic parameters matching the module's layer shapes."""
    specs = [(in_channels, mid_channels, kernel_size)]
    specs += [(mid_channels, mid_channels, kernel_size)] * num_blocks
    specs += [(mid_channels, out_channels, 1)]  # final 1x1 conv
    params = []
    for i, (ci, co, k) in enumerate(specs):
        key, k_v, k_b = jax.random.split(key, 3)
        v = jax.random.normal(k_v, (co, ci, k, k), jnp.float32) * 0.1
        is_last = (i == len(specs) - 1)
        if is_last and init_zeros:
            g = jnp.zeros((co,), jnp.float32)
            b = jnp.zeros((co,), jnp.float32)
        else:
            # PyTorch weight_norm initializes g = ||v|| so effective w == v.
            g = jnp.sqrt(jnp.sum(v * v, axis=(1, 2, 3)))
            b = jax.random.normal(k_b, (co,), jnp.float32) * 0.05
        params.append({"v": v, "g": g, "b": b})
    return params


# ------------------------------ forward pass ------------------------------- #

def _effective_weight(v, g):
    """Weight norm: w = g * v / ||v||_2 (norm per output channel)."""
    norm = jnp.sqrt(jnp.sum(v * v, axis=(1, 2, 3), keepdims=True))
    return v * (g.reshape(-1, 1, 1, 1) / jnp.maximum(norm, 1e-12))


def convnet_coupling_forward(x_nchw, params, padding):
    """Equivalent of ConvNetCoupling.forward. Input/output are NCHW."""
    N, Cin, H, W = x_nchw.shape
    n_layers = len(params)
    n3 = n_layers - 1                       # number of KxK layers
    K = params[0]["v"].shape[2]
    assert 2 * padding == K - 1, "fused kernel assumes 'same' spatial padding"

    # Lane padding: round the widest channel count up to a multiple of 128.
    chans = [Cin] + [p["v"].shape[0] for p in params]
    Cp = 128 * (-(-max(chans) // 128))

    # --- effective (weight-normalized) weights, padded to (Cp, Cp) lanes ---
    w3_list, b3_list = [], []
    for p in params[:n3]:
        w = _effective_weight(p["v"], p["g"])            # (Co, Ci, K, K)
        co, ci = w.shape[0], w.shape[1]
        wt = jnp.transpose(w, (2, 3, 1, 0)).reshape(K * K, ci, co)
        wt = jnp.pad(wt, ((0, 0), (0, Cp - ci), (0, Cp - co)))
        w3_list.append(wt)
        b3_list.append(jnp.pad(p["b"], (0, Cp - co)).reshape(1, Cp))
    w3 = jnp.stack(w3_list).astype(jnp.float32)          # (n3, K*K, Cp, Cp)
    b3 = jnp.stack(b3_list).astype(jnp.float32)          # (n3, 1, Cp)

    p_last = params[-1]
    w_last = _effective_weight(p_last["v"], p_last["g"])  # (Co, Ci, 1, 1)
    co_l, ci_l = w_last.shape[0], w_last.shape[1]
    w1 = jnp.pad(w_last[:, :, 0, 0].T,
                 ((0, Cp - ci_l), (0, Cp - co_l))).astype(jnp.float32)
    b1 = jnp.pad(p_last["b"], (0, Cp - co_l)).reshape(1, Cp).astype(jnp.float32)

    # --- input: NCHW -> NHWC, channels zero-padded to Cp lanes ---
    x = jnp.transpose(x_nchw, (0, 2, 3, 1)).astype(jnp.float32)
    x = jnp.pad(x, ((0, 0), (0, 0), (0, 0), (0, Cp - Cin)))

    # --- halo-buffer geometry (column offset kept sublane-aligned) ---
    coff = 8 * ((padding + 7) // 8) if padding > 0 else 0
    rows = H + 2 * padding
    cols = 8 * ((coff + W + padding + 7) // 8)

    # advisory cost estimate for the XLA scheduler
    flops = 0
    for p in params[:n3]:
        co, ci = p["v"].shape[0], p["v"].shape[1]
        flops += 2 * N * H * W * (K * K * ci) * co
    flops += 2 * N * H * W * ci_l * co_l
    bytes_accessed = 4 * (x.size + w3.size + b3.size + w1.size + b1.size
                          + N * H * W * Cp)

    kernel = functools.partial(_fused_coupling_kernel,
                               n3=n3, ksize=K, pad=padding, coff=coff)

    out_p = pl.pallas_call(
        kernel,
        grid=(N,),
        in_specs=[
            pl.BlockSpec((1, H, W, Cp), lambda n: (n, 0, 0, 0)),
            pl.BlockSpec(w3.shape, lambda n: (0, 0, 0, 0)),
            pl.BlockSpec(b3.shape, lambda n: (0, 0, 0)),
            pl.BlockSpec(w1.shape, lambda n: (0, 0)),
            pl.BlockSpec(b1.shape, lambda n: (0, 0)),
        ],
        out_specs=pl.BlockSpec((1, H, W, Cp), lambda n: (n, 0, 0, 0)),
        out_shape=jax.ShapeDtypeStruct((N, H, W, Cp), jnp.float32),
        scratch_shapes=[
            pltpu.VMEM((rows, cols, Cp), jnp.float32),
            pltpu.VMEM((rows, cols, Cp), jnp.float32),
        ],
        compiler_params=pltpu.CompilerParams(
            dimension_semantics=("parallel",)),
        cost_estimate=pl.CostEstimate(flops=flops, transcendentals=0,
                                      bytes_accessed=bytes_accessed),
    )(x, w3, b3, w1, b1)

    out = out_p[..., :co_l]                  # strip the padded lanes
    return jnp.transpose(out, (0, 3, 1, 2))  # NHWC -> NCHW


# pure-JAX reference (XLA conv) for correctness checking
def _reference_forward(x_nchw, params, padding):
    x = x_nchw.astype(jnp.float32)
    n_layers = len(params)
    for i, p in enumerate(params):
        v, g, b = p["v"], p["g"], p["b"]
        norm = jnp.sqrt(jnp.sum(v * v, axis=(1, 2, 3), keepdims=True))
        w = v * (g.reshape(-1, 1, 1, 1) / jnp.maximum(norm, 1e-12))
        pad = padding if i < n_layers - 1 else 0
        x = jax.lax.conv_general_dilated(
            x, w, window_strides=(1, 1),
            padding=[(pad, pad), (pad, pad)],
            dimension_numbers=("NCHW", "OIHW", "NCHW"),
        ) + b.reshape(1, -1, 1, 1)
    return x


# ---------------------------------- main ----------------------------------- #

if __name__ == "__main__":
    # ConvNetCoupling(in_channels=4, mid_channels=32, out_channels=8,
    #                 num_blocks=2, kernel_size=3, padding=1, init_zeros=False)
    in_channels, mid_channels, out_channels = 4, 32, 8
    num_blocks, kernel_size, padding = 2, 3, 1

    key = jax.random.PRNGKey(0)
    k_x, k_p = jax.random.split(key)
    x = jax.random.normal(k_x, (2, in_channels, 16, 16), jnp.float32)  # NCHW

    params = make_convnet_coupling_params(
        k_p, in_channels, mid_channels, out_channels,
        num_blocks, kernel_size, init_zeros=False)

    fwd = jax.jit(functools.partial(convnet_coupling_forward, padding=padding))
    out = fwd(x, params)
    out = jax.block_until_ready(out)

    assert out.shape == (2, out_channels, 16, 16), out.shape

    ref = jax.block_until_ready(_reference_forward(x, params, padding))
    assert jnp.allclose(out, ref, rtol=1e-3, atol=1e-3), (
        float(jnp.max(jnp.abs(out - ref))))

    print("KERNEL_OK")
</pallas_src>

<mosaic_0001>
module attributes {stable_mosaic.version = 11 : i64} {
  func.func @_fused_coupling_kernel(%arg0: i32, %arg1: memref<1x16x16x128xf32, #tpu.memory_space<vmem>>, %arg2: memref<3x9x128x128xf32, #tpu.memory_space<vmem>>, %arg3: memref<3x1x128xf32, #tpu.memory_space<vmem>>, %arg4: memref<128x128xf32, #tpu.memory_space<vmem>>, %arg5: memref<1x128xf32, #tpu.memory_space<vmem>>, %arg6: memref<1x16x16x128xf32, #tpu.memory_space<vmem>>, %arg7: memref<18x32x128xf32, #tpu.memory_space<vmem>>, %arg8: memref<18x32x128xf32, #tpu.memory_space<vmem>>) attributes {dimension_semantics = [#tpu.dimension_semantics<parallel>], iteration_bounds = array<i64: 2>, scalar_prefetch = 0 : i64, scratch_operands = 2 : i64, tpu.core_type = #tpu.core_type<tc>, window_params = [{transform_indices = @transform_0, window_bounds = array<i64: 1, 16, 16, 128>}, {pipeline_mode = #tpu.pipeline_mode<synchronous>, transform_indices = @transform_1, window_bounds = array<i64: 3, 9, 128, 128>}, {pipeline_mode = #tpu.pipeline_mode<synchronous>, transform_indices = @transform_2, window_bounds = array<i64: 3, 1, 128>}, {pipeline_mode = #tpu.pipeline_mode<synchronous>, transform_indices = @transform_3, window_bounds = array<i64: 128, 128>}, {pipeline_mode = #tpu.pipeline_mode<synchronous>, transform_indices = @transform_4, window_bounds = array<i64: 1, 128>}, {transform_indices = @transform_5, window_bounds = array<i64: 1, 16, 16, 128>}]} {
    %cst = arith.constant 0.000000e+00 : f32
    %0 = vector.broadcast %cst : f32 to vector<18x32x128xf32>
    %c0 = arith.constant 0 : index
    %c0_0 = arith.constant 0 : index
    %c0_1 = arith.constant 0 : index
    %1 = vector.load %arg7[%c0, %c0_0, %c0_1] : memref<18x32x128xf32, #tpu.memory_space<vmem>>, vector<18x32x128xf32>
    tpu.vector_store %arg7[%c0, %c0_0, %c0_1], %0 {strides = array<i32>} : memref<18x32x128xf32, #tpu.memory_space<vmem>>, vector<18x32x128xf32>,
    %cst_2 = arith.constant 0.000000e+00 : f32
    %2 = vector.broadcast %cst_2 : f32 to vector<18x32x128xf32>
    %c0_3 = arith.constant 0 : index
    %c0_4 = arith.constant 0 : index
    %c0_5 = arith.constant 0 : index
    %3 = vector.load %arg8[%c0_3, %c0_4, %c0_5] : memref<18x32x128xf32, #tpu.memory_space<vmem>>, vector<18x32x128xf32>
    tpu.vector_store %arg8[%c0_3, %c0_4, %c0_5], %2 {strides = array<i32>} : memref<18x32x128xf32, #tpu.memory_space<vmem>>, vector<18x32x128xf32>,
    %c0_6 = arith.constant 0 : index
    %c0_7 = arith.constant 0 : index
    %c0_8 = arith.constant 0 : index
    %c0_9 = arith.constant 0 : index
    %4 = vector.load %arg1[%c0_6, %c0_7, %c0_8, %c0_9] : memref<1x16x16x128xf32, #tpu.memory_space<vmem>>, vector<1x16x16x128xf32>
    %5 = vector.shape_cast %4 : vector<1x16x16x128xf32> to vector<16x16x128xf32>
    %c1 = arith.constant 1 : index
    %c8 = arith.constant 8 : index
    %c0_10 = arith.constant 0 : index
    %6 = vector.load %arg7[%c1, %c8, %c0_10] : memref<18x32x128xf32, #tpu.memory_space<vmem>>, vector<16x16x128xf32>
    tpu.vector_store %arg7[%c1, %c8, %c0_10], %5 {strides = array<i32>} : memref<18x32x128xf32, #tpu.memory_space<vmem>>, vector<16x16x128xf32>,
    %cst_11 = arith.constant 0.000000e+00 : f32
    %7 = vector.broadcast %cst_11 : f32 to vector<256x128xf32>
    %c0_12 = arith.constant 0 : index
    %c7 = arith.constant 7 : index
    %c0_13 = arith.constant 0 : index
    %8 = vector.load %arg7[%c0_12, %c7, %c0_13] : memref<18x32x128xf32, #tpu.memory_space<vmem>>, vector<16x16x128xf32>
    %9 = vector.shape_cast %8 : vector<16x16x128xf32> to vector<256x128xf32>
    %c0_14 = arith.constant 0 : index
    %c0_15 = arith.constant 0 : index
    %c0_16 = arith.constant 0 : index
    %c0_17 = arith.constant 0 : index
    %10 = vector.load %arg2[%c0_14, %c0_15, %c0_16, %c0_17] : memref<3x9x128x128xf32, #tpu.memory_space<vmem>>, vector<1x1x128x128xf32>
    %11 = vector.shape_cast %10 : vector<1x1x128x128xf32> to vector<128x128xf32>
    %cst_18 = arith.constant dense<0.000000e+00> : vector<256x128xf32>
    %12 = tpu.matmul %9, %11, %cst_18 {dimension_numbers = #tpu.dot_dimension_numbers<[1], [0], [0], [1], [0, 0, 1, 1], [], []>} : vector<256x128xf32>, vector<128x128xf32>, vector<256x128xf32> -> vector<256x128xf32>
    %13 = arith.addf %7, %12 : vector<256x128xf32>
    %c0_19 = arith.constant 0 : index
    %c8_20 = arith.constant 8 : index
    %c0_21 = arith.constant 0 : index
    %14 = vector.load %arg7[%c0_19, %c8_20, %c0_21] : memref<18x32x128xf32, #tpu.memory_space<vmem>>, vector<16x16x128xf32>
    %15 = vector.shape_cast %14 : vector<16x16x128xf32> to vector<256x128xf32>
    %c0_22 = arith.constant 0 : index
    %c1_23 = arith.constant 1 : index
    %c0_24 = arith.constant 0 : index
    %c0_25 = arith.constant 0 : index
    %16 = vector.load %arg2[%c0_22, %c1_23, %c0_24, %c0_25] : memref<3x9x128x128xf32, #tpu.memory_space<vmem>>, vector<1x1x128x128xf32>
    %17 = vector.shape_cast %16 : vector<1x1x128x128xf32> to vector<128x128xf32>
    %cst_26 = arith.constant dense<0.000000e+00> : vector<256x128xf32>
    %18 = tpu.matmul %15, %17, %cst_26 {dimension_numbers = #tpu.dot_dimension_numbers<[1], [0], [0], [1], [0, 0, 1, 1], [], []>} : vector<256x128xf32>, vector<128x128xf32>, vector<256x128xf32> -> vector<256x128xf32>
    %19 = arith.addf %13, %18 : vector<256x128xf32>
    %c0_27 = arith.constant 0 : index
    %c9 = arith.constant 9 : index
    %c0_28 = arith.constant 0 : index
    %20 = vector.load %arg7[%c0_27, %c9, %c0_28] : memref<18x32x128xf32, #tpu.memory_space<vmem>>, vector<16x16x128xf32>
    %21 = vector.shape_cast %20 : vector<16x16x128xf32> to vector<256x128xf32>
    %c0_29 = arith.constant 0 : index
    %c2 = arith.constant 2 : index
    %c0_30 = arith.constant 0 : index
    %c0_31 = arith.constant 0 : index
    %22 = vector.load %arg2[%c0_29, %c2, %c0_30, %c0_31] : memref<3x9x128x128xf32, #tpu.memory_space<vmem>>, vector<1x1x128x128xf32>
    %23 = vector.shape_cast %22 : vector<1x1x128x128xf32> to vector<128x128xf32>
    %cst_32 = arith.constant dense<0.000000e+00> : vector<256x128xf32>
    %24 = tpu.matmul %21, %23, %cst_32 {dimension_numbers = #tpu.dot_dimension_numbers<[1], [0], [0], [1], [0, 0, 1, 1], [], []>} : vector<256x128xf32>, vector<128x128xf32>, vector<256x128xf32> -> vector<256x128xf32>
    %25 = arith.addf %19, %24 : vector<256x128xf32>
    %c1_33 = arith.constant 1 : index
    %c7_34 = arith.constant 7 : index
    %c0_35 = arith.constant 0 : index
    %26 = vector.load %arg7[%c1_33, %c7_34, %c0_35] : memref<18x32x128xf32, #tpu.memory_space<vmem>>, vector<16x16x128xf32>
    %27 = vector.shape_cast %26 : vector<16x16x128xf32> to vector<256x128xf32>
    %c0_36 = arith.constant 0 : index
    %c3 = arith.constant 3 : index
    %c0_37 = arith.constant 0 : index
    %c0_38 = arith.constant 0 : index
    %28 = vector.load %arg2[%c0_36, %c3, %c0_37, %c0_38] : memref<3x9x128x128xf32, #tpu.memory_space<vmem>>, vector<1x1x128x128xf32>
    %29 = vector.shape_cast %28 : vector<1x1x128x128xf32> to vector<128x128xf32>
    %cst_39 = arith.constant dense<0.000000e+00> : vector<256x128xf32>
    %30 = tpu.matmul %27, %29, %cst_39 {dimension_numbers = #tpu.dot_dimension_numbers<[1], [0], [0], [1], [0, 0, 1, 1], [], []>} : vector<256x128xf32>, vector<128x128xf32>, vector<256x128xf32> -> vector<256x128xf32>
    %31 = arith.addf %25, %30 : vector<256x128xf32>
    %c1_40 = arith.constant 1 : index
    %c8_41 = arith.constant 8 : index
    %c0_42 = arith.constant 0 : index
    %32 = vector.load %arg7[%c1_40, %c8_41, %c0_42] : memref<18x32x128xf32, #tpu.memory_space<vmem>>, vector<16x16x128xf32>
    %33 = vector.shape_cast %32 : vector<16x16x128xf32> to vector<256x128xf32>
    %c0_43 = arith.constant 0 : index
    %c4 = arith.constant 4 : index
    %c0_44 = arith.constant 0 : index
    %c0_45 = arith.constant 0 : index
    %34 = vector.load %arg2[%c0_43, %c4, %c0_44, %c0_45] : memref<3x9x128x128xf32, #tpu.memory_space<vmem>>, vector<1x1x128x128xf32>
    %35 = vector.shape_cast %34 : vector<1x1x128x128xf32> to vector<128x128xf32>
    %cst_46 = arith.constant dense<0.000000e+00> : vector<256x128xf32>
    %36 = tpu.matmul %33, %35, %cst_46 {dimension_numbers = #tpu.dot_dimension_numbers<[1], [0], [0], [1], [0, 0, 1, 1], [], []>} : vector<256x128xf32>, vector<128x128xf32>, vector<256x128xf32> -> vector<256x128xf32>
    %37 = arith.addf %31, %36 : vector<256x128xf32>
    %c1_47 = arith.constant 1 : index
    %c9_48 = arith.constant 9 : index
    %c0_49 = arith.constant 0 : index
    %38 = vector.load %arg7[%c1_47, %c9_48, %c0_49] : memref<18x32x128xf32, #tpu.memory_space<vmem>>, vector<16x16x128xf32>
    %39 = vector.shape_cast %38 : vector<16x16x128xf32> to vector<256x128xf32>
    %c0_50 = arith.constant 0 : index
    %c5 = arith.constant 5 : index
    %c0_51 = arith.constant 0 : index
    %c0_52 = arith.constant 0 : index
    %40 = vector.load %arg2[%c0_50, %c5, %c0_51, %c0_52] : memref<3x9x128x128xf32, #tpu.memory_space<vmem>>, vector<1x1x128x128xf32>
    %41 = vector.shape_cast %40 : vector<1x1x128x128xf32> to vector<128x128xf32>
    %cst_53 = arith.constant dense<0.000000e+00> : vector<256x128xf32>
    %42 = tpu.matmul %39, %41, %cst_53 {dimension_numbers = #tpu.dot_dimension_numbers<[1], [0], [0], [1], [0, 0, 1, 1], [], []>} : vector<256x128xf32>, vector<128x128xf32>, vector<256x128xf32> -> vector<256x128xf32>
    %43 = arith.addf %37, %42 : vector<256x128xf32>
    %c2_54 = arith.constant 2 : index
    %c7_55 = arith.constant 7 : index
    %c0_56 = arith.constant 0 : index
    %44 = vector.load %arg7[%c2_54, %c7_55, %c0_56] : memref<18x32x128xf32, #tpu.memory_space<vmem>>, vector<16x16x128xf32>
    %45 = vector.shape_cast %44 : vector<16x16x128xf32> to vector<256x128xf32>
    %c0_57 = arith.constant 0 : index
    %c6 = arith.constant 6 : index
    %c0_58 = arith.constant 0 : index
    %c0_59 = arith.constant 0 : index
    %46 = vector.load %arg2[%c0_57, %c6, %c0_58, %c0_59] : memref<3x9x128x128xf32, #tpu.memory_space<vmem>>, vector<1x1x128x128xf32>
    %47 = vector.shape_cast %46 : vector<1x1x128x128xf32> to vector<128x128xf32>
    %cst_60 = arith.constant dense<0.000000e+00> : vector<256x128xf32>
    %48 = tpu.matmul %45, %47, %cst_60 {dimension_numbers = #tpu.dot_dimension_numbers<[1], [0], [0], [1], [0, 0, 1, 1], [], []>} : vector<256x128xf32>, vector<128x128xf32>, vector<256x128xf32> -> vector<256x128xf32>
    %49 = arith.addf %43, %48 : vector<256x128xf32>
    %c2_61 = arith.constant 2 : index
    %c8_62 = arith.constant 8 : index
    %c0_63 = arith.constant 0 : index
    %50 = vector.load %arg7[%c2_61, %c8_62, %c0_63] : memref<18x32x128xf32, #tpu.memory_space<vmem>>, vector<16x16x128xf32>
    %51 = vector.shape_cast %50 : vector<16x16x128xf32> to vector<256x128xf32>
    %c0_64 = arith.constant 0 : index
    %c7_65 = arith.constant 7 : index
    %c0_66 = arith.constant 0 : index
    %c0_67 = arith.constant 0 : index
    %52 = vector.load %arg2[%c0_64, %c7_65, %c0_66, %c0_67] : memref<3x9x128x128xf32, #tpu.memory_space<vmem>>, vector<1x1x128x128xf32>
    %53 = vector.shape_cast %52 : vector<1x1x128x128xf32> to vector<128x128xf32>
    %cst_68 = arith.constant dense<0.000000e+00> : vector<256x128xf32>
    %54 = tpu.matmul %51, %53, %cst_68 {dimension_numbers = #tpu.dot_dimension_numbers<[1], [0], [0], [1], [0, 0, 1, 1], [], []>} : vector<256x128xf32>, vector<128x128xf32>, vector<256x128xf32> -> vector<256x128xf32>
    %55 = arith.addf %49, %54 : vector<256x128xf32>
    %c2_69 = arith.constant 2 : index
    %c9_70 = arith.constant 9 : index
    %c0_71 = arith.constant 0 : index
    %56 = vector.load %arg7[%c2_69, %c9_70, %c0_71] : memref<18x32x128xf32, #tpu.memory_space<vmem>>, vector<16x16x128xf32>
    %57 = vector.shape_cast %56 : vector<16x16x128xf32> to vector<256x128xf32>
    %c0_72 = arith.constant 0 : index
    %c8_73 = arith.constant 8 : index
    %c0_74 = arith.constant 0 : index
    %c0_75 = arith.constant 0 : index
    %58 = vector.load %arg2[%c0_72, %c8_73, %c0_74, %c0_75] : memref<3x9x128x128xf32, #tpu.memory_space<vmem>>, vector<1x1x128x128xf32>
    %59 = vector.shape_cast %58 : vector<1x1x128x128xf32> to vector<128x128xf32>
    %cst_76 = arith.constant dense<0.000000e+00> : vector<256x128xf32>
    %60 = tpu.matmul %57, %59, %cst_76 {dimension_numbers = #tpu.dot_dimension_numbers<[1], [0], [0], [1], [0, 0, 1, 1], [], []>} : vector<256x128xf32>, vector<128x128xf32>, vector<256x128xf32> -> vector<256x128xf32>
    %61 = arith.addf %55, %60 : vector<256x128xf32>
    %c0_77 = arith.constant 0 : index
    %c0_78 = arith.constant 0 : index
    %c0_79 = arith.constant 0 : index
    %62 = vector.load %arg3[%c0_77, %c0_78, %c0_79] : memref<3x1x128xf32, #tpu.memory_space<vmem>>, vector<1x1x128xf32>
    %63 = vector.shape_cast %62 : vector<1x1x128xf32> to vector<1x128xf32>
    %64 = vector.broadcast %63 : vector<1x128xf32> to vector<256x128xf32>
    %65 = arith.addf %61, %64 : vector<256x128xf32>
    %66 = vector.shape_cast %65 : vector<256x128xf32> to vector<16x16x128xf32>
    %c1_80 = arith.constant 1 : index
    %c8_81 = arith.constant 8 : index
    %c0_82 = arith.constant 0 : index
    %67 = vector.load %arg8[%c1_80, %c8_81, %c0_82] : memref<18x32x128xf32, #tpu.memory_space<vmem>>, vector<16x16x128xf32>
    tpu.vector_store %arg8[%c1_80, %c8_81, %c0_82], %66 {strides = array<i32>} : memref<18x32x128xf32, #tpu.memory_space<vmem>>, vector<16x16x128xf32>,
    %cst_83 = arith.constant 0.000000e+00 : f32
    %68 = vector.broadcast %cst_83 : f32 to vector<256x128xf32>
    %c0_84 = arith.constant 0 : index
    %c7_85 = arith.constant 7 : index
    %c0_86 = arith.constant 0 : index
    %69 = vector.load %arg8[%c0_84, %c7_85, %c0_86] : memref<18x32x128xf32, #tpu.memory_space<vmem>>, vector<16x16x128xf32>
    %70 = vector.shape_cast %69 : vector<16x16x128xf32> to vector<256x128xf32>
    %c1_87 = arith.constant 1 : index
    %c0_88 = arith.constant 0 : index
    %c0_89 = arith.constant 0 : index
    %c0_90 = arith.constant 0 : index
    %71 = vector.load %arg2[%c1_87, %c0_88, %c0_89, %c0_90] : memref<3x9x128x128xf32, #tpu.memory_space<vmem>>, vector<1x1x128x128xf32>
    %72 = vector.shape_cast %71 : vector<1x1x128x128xf32> to vector<128x128xf32>
    %cst_91 = arith.constant dense<0.000000e+00> : vector<256x128xf32>
    %73 = tpu.matmul %70, %72, %cst_91 {dimension_numbers = #tpu.dot_dimension_numbers<[1], [0], [0], [1], [0, 0, 1, 1], [], []>} : vector<256x128xf32>, vector<128x128xf32>, vector<256x128xf32> -> vector<256x128xf32>
    %74 = arith.addf %68, %73 : vector<256x128xf32>
    %c0_92 = arith.constant 0 : index
    %c8_93 = arith.constant 8 : index
    %c0_94 = arith.constant 0 : index
    %75 = vector.load %arg8[%c0_92, %c8_93, %c0_94] : memref<18x32x128xf32, #tpu.memory_space<vmem>>, vector<16x16x128xf32>
    %76 = vector.shape_cast %75 : vector<16x16x128xf32> to vector<256x128xf32>
    %c1_95 = arith.constant 1 : index
    %c1_96 = arith.constant 1 : index
    %c0_97 = arith.constant 0 : index
    %c0_98 = arith.constant 0 : index
    %77 = vector.load %arg2[%c1_95, %c1_96, %c0_97, %c0_98] : memref<3x9x128x128xf32, #tpu.memory_space<vmem>>, vector<1x1x128x128xf32>
    %78 = vector.shape_cast %77 : vector<1x1x128x128xf32> to vector<128x128xf32>
    %cst_99 = arith.constant dense<0.000000e+00> : vector<256x128xf32>
    %79 = tpu.matmul %76, %78, %cst_99 {dimension_numbers = #tpu.dot_dimension_numbers<[1], [0], [0], [1], [0, 0, 1, 1], [], []>} : vector<256x128xf32>, vector<128x128xf32>, vector<256x128xf32> -> vector<256x128xf32>
    %80 = arith.addf %74, %79 : vector<256x128xf32>
    %c0_100 = arith.constant 0 : index
    %c9_101 = arith.constant 9 : index
    %c0_102 = arith.constant 0 : index
    %81 = vector.load %arg8[%c0_100, %c9_101, %c0_102] : memref<18x32x128xf32, #tpu.memory_space<vmem>>, vector<16x16x128xf32>
    %82 = vector.shape_cast %81 : vector<16x16x128xf32> to vector<256x128xf32>
    %c1_103 = arith.constant 1 : index
    %c2_104 = arith.constant 2 : index
    %c0_105 = arith.constant 0 : index
    %c0_106 = arith.constant 0 : index
    %83 = vector.load %arg2[%c1_103, %c2_104, %c0_105, %c0_106] : memref<3x9x128x128xf32, #tpu.memory_space<vmem>>, vector<1x1x128x128xf32>
    %84 = vector.shape_cast %83 : vector<1x1x128x128xf32> to vector<128x128xf32>
    %cst_107 = arith.constant dense<0.000000e+00> : vector<256x128xf32>
    %85 = tpu.matmul %82, %84, %cst_107 {dimension_numbers = #tpu.dot_dimension_numbers<[1], [0], [0], [1], [0, 0, 1, 1], [], []>} : vector<256x128xf32>, vector<128x128xf32>, vector<256x128xf32> -> vector<256x128xf32>
    %86 = arith.addf %80, %85 : vector<256x128xf32>
    %c1_108 = arith.constant 1 : index
    %c7_109 = arith.constant 7 : index
    %c0_110 = arith.constant 0 : index
    %87 = vector.load %arg8[%c1_108, %c7_109, %c0_110] : memref<18x32x128xf32, #tpu.memory_space<vmem>>, vector<16x16x128xf32>
    %88 = vector.shape_cast %87 : vector<16x16x128xf32> to vector<256x128xf32>
    %c1_111 = arith.constant 1 : index
    %c3_112 = arith.constant 3 : index
    %c0_113 = arith.constant 0 : index
    %c0_114 = arith.constant 0 : index
    %89 = vector.load %arg2[%c1_111, %c3_112, %c0_113, %c0_114] : memref<3x9x128x128xf32, #tpu.memory_space<vmem>>, vector<1x1x128x128xf32>
    %90 = vector.shape_cast %89 : vector<1x1x128x128xf32> to vector<128x128xf32>
    %cst_115 = arith.constant dense<0.000000e+00> : vector<256x128xf32>
    %91 = tpu.matmul %88, %90, %cst_115 {dimension_numbers = #tpu.dot_dimension_numbers<[1], [0], [0], [1], [0, 0, 1, 1], [], []>} : vector<256x128xf32>, vector<128x128xf32>, vector<256x128xf32> -> vector<256x128xf32>
    %92 = arith.addf %86, %91 : vector<256x128xf32>
    %c1_116 = arith.constant 1 : index
    %c8_117 = arith.constant 8 : index
    %c0_118 = arith.constant 0 : index
    %93 = vector.load %arg8[%c1_116, %c8_117, %c0_118] : memref<18x32x128xf32, #tpu.memory_space<vmem>>, vector<16x16x128xf32>
    %94 = vector.shape_cast %93 : vector<16x16x128xf32> to vector<256x128xf32>
    %c1_119 = arith.constant 1 : index
    %c4_120 = arith.constant 4 : index
    %c0_121 = arith.constant 0 : index
    %c0_122 = arith.constant 0 : index
    %95 = vector.load %arg2[%c1_119, %c4_120, %c0_121, %c0_122] : memref<3x9x128x128xf32, #tpu.memory_space<vmem>>, vector<1x1x128x128xf32>
    %96 = vector.shape_cast %95 : vector<1x1x128x128xf32> to vector<128x128xf32>
    %cst_123 = arith.constant dense<0.000000e+00> : vector<256x128xf32>
    %97 = tpu.matmul %94, %96, %cst_123 {dimension_numbers = #tpu.dot_dimension_numbers<[1], [0], [0], [1], [0, 0, 1, 1], [], []>} : vector<256x128xf32>, vector<128x128xf32>, vector<256x128xf32> -> vector<256x128xf32>
    %98 = arith.addf %92, %97 : vector<256x128xf32>
    %c1_124 = arith.constant 1 : index
    %c9_125 = arith.constant 9 : index
    %c0_126 = arith.constant 0 : index
    %99 = vector.load %arg8[%c1_124, %c9_125, %c0_126] : memref<18x32x128xf32, #tpu.memory_space<vmem>>, vector<16x16x128xf32>
    %100 = vector.shape_cast %99 : vector<16x16x128xf32> to vector<256x128xf32>
    %c1_127 = arith.constant 1 : index
    %c5_128 = arith.constant 5 : index
    %c0_129 = arith.constant 0 : index
    %c0_130 = arith.constant 0 : index
    %101 = vector.load %arg2[%c1_127, %c5_128, %c0_129, %c0_130] : memref<3x9x128x128xf32, #tpu.memory_space<vmem>>, vector<1x1x128x128xf32>
    %102 = vector.shape_cast %101 : vector<1x1x128x128xf32> to vector<128x128xf32>
    %cst_131 = arith.constant dense<0.000000e+00> : vector<256x128xf32>
    %103 = tpu.matmul %100, %102, %cst_131 {dimension_numbers = #tpu.dot_dimension_numbers<[1], [0], [0], [1], [0, 0, 1, 1], [], []>} : vector<256x128xf32>, vector<128x128xf32>, vector<256x128xf32> -> vector<256x128xf32>
    %104 = arith.addf %98, %103 : vector<256x128xf32>
    %c2_132 = arith.constant 2 : index
    %c7_133 = arith.constant 7 : index
    %c0_134 = arith.constant 0 : index
    %105 = vector.load %arg8[%c2_132, %c7_133, %c0_134] : memref<18x32x128xf32, #tpu.memory_space<vmem>>, vector<16x16x128xf32>
    %106 = vector.shape_cast %105 : vector<16x16x128xf32> to vector<256x128xf32>
    %c1_135 = arith.constant 1 : index
    %c6_136 = arith.constant 6 : index
    %c0_137 = arith.constant 0 : index
    %c0_138 = arith.constant 0 : index
    %107 = vector.load %arg2[%c1_135, %c6_136, %c0_137, %c0_138] : memref<3x9x128x128xf32, #tpu.memory_space<vmem>>, vector<1x1x128x128xf32>
    %108 = vector.shape_cast %107 : vector<1x1x128x128xf32> to vector<128x128xf32>
    %cst_139 = arith.constant dense<0.000000e+00> : vector<256x128xf32>
    %109 = tpu.matmul %106, %108, %cst_139 {dimension_numbers = #tpu.dot_dimension_numbers<[1], [0], [0], [1], [0, 0, 1, 1], [], []>} : vector<256x128xf32>, vector<128x128xf32>, vector<256x128xf32> -> vector<256x128xf32>
    %110 = arith.addf %104, %109 : vector<256x128xf32>
    %c2_140 = arith.constant 2 : index
    %c8_141 = arith.constant 8 : index
    %c0_142 = arith.constant 0 : index
    %111 = vector.load %arg8[%c2_140, %c8_141, %c0_142] : memref<18x32x128xf32, #tpu.memory_space<vmem>>, vector<16x16x128xf32>
    %112 = vector.shape_cast %111 : vector<16x16x128xf32> to vector<256x128xf32>
    %c1_143 = arith.constant 1 : index
    %c7_144 = arith.constant 7 : index
    %c0_145 = arith.constant 0 : index
    %c0_146 = arith.constant 0 : index
    %113 = vector.load %arg2[%c1_143, %c7_144, %c0_145, %c0_146] : memref<3x9x128x128xf32, #tpu.memory_space<vmem>>, vector<1x1x128x128xf32>
    %114 = vector.shape_cast %113 : vector<1x1x128x128xf32> to vector<128x128xf32>
    %cst_147 = arith.constant dense<0.000000e+00> : vector<256x128xf32>
    %115 = tpu.matmul %112, %114, %cst_147 {dimension_numbers = #tpu.dot_dimension_numbers<[1], [0], [0], [1], [0, 0, 1, 1], [], []>} : vector<256x128xf32>, vector<128x128xf32>, vector<256x128xf32> -> vector<256x128xf32>
    %116 = arith.addf %110, %115 : vector<256x128xf32>
    %c2_148 = arith.constant 2 : index
    %c9_149 = arith.constant 9 : index
    %c0_150 = arith.constant 0 : index
    %117 = vector.load %arg8[%c2_148, %c9_149, %c0_150] : memref<18x32x128xf32, #tpu.memory_space<vmem>>, vector<16x16x128xf32>
    %118 = vector.shape_cast %117 : vector<16x16x128xf32> to vector<256x128xf32>
    %c1_151 = arith.constant 1 : index
    %c8_152 = arith.constant 8 : index
    %c0_153 = arith.constant 0 : index
    %c0_154 = arith.constant 0 : index
    %119 = vector.load %arg2[%c1_151, %c8_152, %c0_153, %c0_154] : memref<3x9x128x128xf32, #tpu.memory_space<vmem>>, vector<1x1x128x128xf32>
    %120 = vector.shape_cast %119 : vector<1x1x128x128xf32> to vector<128x128xf32>
    %cst_155 = arith.constant dense<0.000000e+00> : vector<256x128xf32>
    %121 = tpu.matmul %118, %120, %cst_155 {dimension_numbers = #tpu.dot_dimension_numbers<[1], [0], [0], [1], [0, 0, 1, 1], [], []>} : vector<256x128xf32>, vector<128x128xf32>, vector<256x128xf32> -> vector<256x128xf32>
    %122 = arith.addf %116, %121 : vector<256x128xf32>
    %c1_156 = arith.constant 1 : index
    %c0_157 = arith.constant 0 : index
    %c0_158 = arith.constant 0 : index
    %123 = vector.load %arg3[%c1_156, %c0_157, %c0_158] : memref<3x1x128xf32, #tpu.memory_space<vmem>>, vector<1x1x128xf32>
    %124 = vector.shape_cast %123 : vector<1x1x128xf32> to vector<1x128xf32>
    %125 = vector.broadcast %124 : vector<1x128xf32> to vector<256x128xf32>
    %126 = arith.addf %122, %125 : vector<256x128xf32>
    %127 = vector.shape_cast %126 : vector<256x128xf32> to vector<16x16x128xf32>
    %c1_159 = arith.constant 1 : index
    %c8_160 = arith.constant 8 : index
    %c0_161 = arith.constant 0 : index
    %128 = vector.load %arg7[%c1_159, %c8_160, %c0_161] : memref<18x32x128xf32, #tpu.memory_space<vmem>>, vector<16x16x128xf32>
    tpu.vector_store %arg7[%c1_159, %c8_160, %c0_161], %127 {strides = array<i32>} : memref<18x32x128xf32, #tpu.memory_space<vmem>>, vector<16x16x128xf32>,
    %cst_162 = arith.constant 0.000000e+00 : f32
    %129 = vector.broadcast %cst_162 : f32 to vector<256x128xf32>
    %c0_163 = arith.constant 0 : index
    %c7_164 = arith.constant 7 : index
    %c0_165 = arith.constant 0 : index
    %130 = vector.load %arg7[%c0_163, %c7_164, %c0_165] : memref<18x32x128xf32, #tpu.memory_space<vmem>>, vector<16x16x128xf32>
    %131 = vector.shape_cast %130 : vector<16x16x128xf32> to vector<256x128xf32>
    %c2_166 = arith.constant 2 : index
    %c0_167 = arith.constant 0 : index
    %c0_168 = arith.constant 0 : index
    %c0_169 = arith.constant 0 : index
    %132 = vector.load %arg2[%c2_166, %c0_167, %c0_168, %c0_169] : memref<3x9x128x128xf32, #tpu.memory_space<vmem>>, vector<1x1x128x128xf32>
    %133 = vector.shape_cast %132 : vector<1x1x128x128xf32> to vector<128x128xf32>
    %cst_170 = arith.constant dense<0.000000e+00> : vector<256x128xf32>
    %134 = tpu.matmul %131, %133, %cst_170 {dimension_numbers = #tpu.dot_dimension_numbers<[1], [0], [0], [1], [0, 0, 1, 1], [], []>} : vector<256x128xf32>, vector<128x128xf32>, vector<256x128xf32> -> vector<256x128xf32>
    %135 = arith.addf %129, %134 : vector<256x128xf32>
    %c0_171 = arith.constant 0 : index
    %c8_172 = arith.constant 8 : index
    %c0_173 = arith.constant 0 : index
    %136 = vector.load %arg7[%c0_171, %c8_172, %c0_173] : memref<18x32x128xf32, #tpu.memory_space<vmem>>, vector<16x16x128xf32>
    %137 = vector.shape_cast %136 : vector<16x16x128xf32> to vector<256x128xf32>
    %c2_174 = arith.constant 2 : index
    %c1_175 = arith.constant 1 : index
    %c0_176 = arith.constant 0 : index
    %c0_177 = arith.constant 0 : index
    %138 = vector.load %arg2[%c2_174, %c1_175, %c0_176, %c0_177] : memref<3x9x128x128xf32, #tpu.memory_space<vmem>>, vector<1x1x128x128xf32>
    %139 = vector.shape_cast %138 : vector<1x1x128x128xf32> to vector<128x128xf32>
    %cst_178 = arith.constant dense<0.000000e+00> : vector<256x128xf32>
    %140 = tpu.matmul %137, %139, %cst_178 {dimension_numbers = #tpu.dot_dimension_numbers<[1], [0], [0], [1], [0, 0, 1, 1], [], []>} : vector<256x128xf32>, vector<128x128xf32>, vector<256x128xf32> -> vector<256x128xf32>
    %141 = arith.addf %135, %140 : vector<256x128xf32>
    %c0_179 = arith.constant 0 : index
    %c9_180 = arith.constant 9 : index
    %c0_181 = arith.constant 0 : index
    %142 = vector.load %arg7[%c0_179, %c9_180, %c0_181] : memref<18x32x128xf32, #tpu.memory_space<vmem>>, vector<16x16x128xf32>
    %143 = vector.shape_cast %142 : vector<16x16x128xf32> to vector<256x128xf32>
    %c2_182 = arith.constant 2 : index
    %c2_183 = arith.constant 2 : index
    %c0_184 = arith.constant 0 : index
    %c0_185 = arith.constant 0 : index
    %144 = vector.load %arg2[%c2_182, %c2_183, %c0_184, %c0_185] : memref<3x9x128x128xf32, #tpu.memory_space<vmem>>, vector<1x1x128x128xf32>
    %145 = vector.shape_cast %144 : vector<1x1x128x128xf32> to vector<128x128xf32>
    %cst_186 = arith.constant dense<0.000000e+00> : vector<256x128xf32>
    %146 = tpu.matmul %143, %145, %cst_186 {dimension_numbers = #tpu.dot_dimension_numbers<[1], [0], [0], [1], [0, 0, 1, 1], [], []>} : vector<256x128xf32>, vector<128x128xf32>, vector<256x128xf32> -> vector<256x128xf32>
    %147 = arith.addf %141, %146 : vector<256x128xf32>
    %c1_187 = arith.constant 1 : index
    %c7_188 = arith.constant 7 : index
    %c0_189 = arith.constant 0 : index
    %148 = vector.load %arg7[%c1_187, %c7_188, %c0_189] : memref<18x32x128xf32, #tpu.memory_space<vmem>>, vector<16x16x128xf32>
    %149 = vector.shape_cast %148 : vector<16x16x128xf32> to vector<256x128xf32>
    %c2_190 = arith.constant 2 : index
    %c3_191 = arith.constant 3 : index
    %c0_192 = arith.constant 0 : index
    %c0_193 = arith.constant 0 : index
    %150 = vector.load %arg2[%c2_190, %c3_191, %c0_192, %c0_193] : memref<3x9x128x128xf32, #tpu.memory_space<vmem>>, vector<1x1x128x128xf32>
    %151 = vector.shape_cast %150 : vector<1x1x128x128xf32> to vector<128x128xf32>
    %cst_194 = arith.constant dense<0.000000e+00> : vector<256x128xf32>
    %152 = tpu.matmul %149, %151, %cst_194 {dimension_numbers = #tpu.dot_dimension_numbers<[1], [0], [0], [1], [0, 0, 1, 1], [], []>} : vector<256x128xf32>, vector<128x128xf32>, vector<256x128xf32> -> vector<256x128xf32>
    %153 = arith.addf %147, %152 : vector<256x128xf32>
    %c1_195 = arith.constant 1 : index
    %c8_196 = arith.constant 8 : index
    %c0_197 = arith.constant 0 : index
    %154 = vector.load %arg7[%c1_195, %c8_196, %c0_197] : memref<18x32x128xf32, #tpu.memory_space<vmem>>, vector<16x16x128xf32>
    %155 = vector.shape_cast %154 : vector<16x16x128xf32> to vector<256x128xf32>
    %c2_198 = arith.constant 2 : index
    %c4_199 = arith.constant 4 : index
    %c0_200 = arith.constant 0 : index
    %c0_201 = arith.constant 0 : index
    %156 = vector.load %arg2[%c2_198, %c4_199, %c0_200, %c0_201] : memref<3x9x128x128xf32, #tpu.memory_space<vmem>>, vector<1x1x128x128xf32>
    %157 = vector.shape_cast %156 : vector<1x1x128x128xf32> to vector<128x128xf32>
    %cst_202 = arith.constant dense<0.000000e+00> : vector<256x128xf32>
    %158 = tpu.matmul %155, %157, %cst_202 {dimension_numbers = #tpu.dot_dimension_numbers<[1], [0], [0], [1], [0, 0, 1, 1], [], []>} : vector<256x128xf32>, vector<128x128xf32>, vector<256x128xf32> -> vector<256x128xf32>
    %159 = arith.addf %153, %158 : vector<256x128xf32>
    %c1_203 = arith.constant 1 : index
    %c9_204 = arith.constant 9 : index
    %c0_205 = arith.constant 0 : index
    %160 = vector.load %arg7[%c1_203, %c9_204, %c0_205] : memref<18x32x128xf32, #tpu.memory_space<vmem>>, vector<16x16x128xf32>
    %161 = vector.shape_cast %160 : vector<16x16x128xf32> to vector<256x128xf32>
    %c2_206 = arith.constant 2 : index
    %c5_207 = arith.constant 5 : index
    %c0_208 = arith.constant 0 : index
    %c0_209 = arith.constant 0 : index
    %162 = vector.load %arg2[%c2_206, %c5_207, %c0_208, %c0_209] : memref<3x9x128x128xf32, #tpu.memory_space<vmem>>, vector<1x1x128x128xf32>
    %163 = vector.shape_cast %162 : vector<1x1x128x128xf32> to vector<128x128xf32>
    %cst_210 = arith.constant dense<0.000000e+00> : vector<256x128xf32>
    %164 = tpu.matmul %161, %163, %cst_210 {dimension_numbers = #tpu.dot_dimension_numbers<[1], [0], [0], [1], [0, 0, 1, 1], [], []>} : vector<256x128xf32>, vector<128x128xf32>, vector<256x128xf32> -> vector<256x128xf32>
    %165 = arith.addf %159, %164 : vector<256x128xf32>
    %c2_211 = arith.constant 2 : index
    %c7_212 = arith.constant 7 : index
    %c0_213 = arith.constant 0 : index
    %166 = vector.load %arg7[%c2_211, %c7_212, %c0_213] : memref<18x32x128xf32, #tpu.memory_space<vmem>>, vector<16x16x128xf32>
    %167 = vector.shape_cast %166 : vector<16x16x128xf32> to vector<256x128xf32>
    %c2_214 = arith.constant 2 : index
    %c6_215 = arith.constant 6 : index
    %c0_216 = arith.constant 0 : index
    %c0_217 = arith.constant 0 : index
    %168 = vector.load %arg2[%c2_214, %c6_215, %c0_216, %c0_217] : memref<3x9x128x128xf32, #tpu.memory_space<vmem>>, vector<1x1x128x128xf32>
    %169 = vector.shape_cast %168 : vector<1x1x128x128xf32> to vector<128x128xf32>
    %cst_218 = arith.constant dense<0.000000e+00> : vector<256x128xf32>
    %170 = tpu.matmul %167, %169, %cst_218 {dimension_numbers = #tpu.dot_dimension_numbers<[1], [0], [0], [1], [0, 0, 1, 1], [], []>} : vector<256x128xf32>, vector<128x128xf32>, vector<256x128xf32> -> vector<256x128xf32>
    %171 = arith.addf %165, %170 : vector<256x128xf32>
    %c2_219 = arith.constant 2 : index
    %c8_220 = arith.constant 8 : index
    %c0_221 = arith.constant 0 : index
    %172 = vector.load %arg7[%c2_219, %c8_220, %c0_221] : memref<18x32x128xf32, #tpu.memory_space<vmem>>, vector<16x16x128xf32>
    %173 = vector.shape_cast %172 : vector<16x16x128xf32> to vector<256x128xf32>
    %c2_222 = arith.constant 2 : index
    %c7_223 = arith.constant 7 : index
    %c0_224 = arith.constant 0 : index
    %c0_225 = arith.constant 0 : index
    %174 = vector.load %arg2[%c2_222, %c7_223, %c0_224, %c0_225] : memref<3x9x128x128xf32, #tpu.memory_space<vmem>>, vector<1x1x128x128xf32>
    %175 = vector.shape_cast %174 : vector<1x1x128x128xf32> to vector<128x128xf32>
    %cst_226 = arith.constant dense<0.000000e+00> : vector<256x128xf32>
    %176 = tpu.matmul %173, %175, %cst_226 {dimension_numbers = #tpu.dot_dimension_numbers<[1], [0], [0], [1], [0, 0, 1, 1], [], []>} : vector<256x128xf32>, vector<128x128xf32>, vector<256x128xf32> -> vector<256x128xf32>
    %177 = arith.addf %171, %176 : vector<256x128xf32>
    %c2_227 = arith.constant 2 : index
    %c9_228 = arith.constant 9 : index
    %c0_229 = arith.constant 0 : index
    %178 = vector.load %arg7[%c2_227, %c9_228, %c0_229] : memref<18x32x128xf32, #tpu.memory_space<vmem>>, vector<16x16x128xf32>
    %179 = vector.shape_cast %178 : vector<16x16x128xf32> to vector<256x128xf32>
    %c2_230 = arith.constant 2 : index
    %c8_231 = arith.constant 8 : index
    %c0_232 = arith.constant 0 : index
    %c0_233 = arith.constant 0 : index
    %180 = vector.load %arg2[%c2_230, %c8_231, %c0_232, %c0_233] : memref<3x9x128x128xf32, #tpu.memory_space<vmem>>, vector<1x1x128x128xf32>
    %181 = vector.shape_cast %180 : vector<1x1x128x128xf32> to vector<128x128xf32>
    %cst_234 = arith.constant dense<0.000000e+00> : vector<256x128xf32>
    %182 = tpu.matmul %179, %181, %cst_234 {dimension_numbers = #tpu.dot_dimension_numbers<[1], [0], [0], [1], [0, 0, 1, 1], [], []>} : vector<256x128xf32>, vector<128x128xf32>, vector<256x128xf32> -> vector<256x128xf32>
    %183 = arith.addf %177, %182 : vector<256x128xf32>
    %c2_235 = arith.constant 2 : index
    %c0_236 = arith.constant 0 : index
    %c0_237 = arith.constant 0 : index
    %184 = vector.load %arg3[%c2_235, %c0_236, %c0_237] : memref<3x1x128xf32, #tpu.memory_space<vmem>>, vector<1x1x128xf32>
    %185 = vector.shape_cast %184 : vector<1x1x128xf32> to vector<1x128xf32>
    %186 = vector.broadcast %185 : vector<1x128xf32> to vector<256x128xf32>
    %187 = arith.addf %183, %186 : vector<256x128xf32>
    %c0_238 = arith.constant 0 : index
    %c0_239 = arith.constant 0 : index
    %188 = vector.load %arg4[%c0_238, %c0_239] : memref<128x128xf32, #tpu.memory_space<vmem>>, vector<128x128xf32>
    %cst_240 = arith.constant dense<0.000000e+00> : vector<256x128xf32>
    %189 = tpu.matmul %187, %188, %cst_240 {dimension_numbers = #tpu.dot_dimension_numbers<[1], [0], [0], [1], [0, 0, 1, 1], [], []>} : vector<256x128xf32>, vector<128x128xf32>, vector<256x128xf32> -> vector<256x128xf32>
    %c0_241 = arith.constant 0 : index
    %c0_242 = arith.constant 0 : index
    %190 = vector.load %arg5[%c0_241, %c0_242] : memref<1x128xf32, #tpu.memory_space<vmem>>, vector<1x128xf32>
    %191 = vector.broadcast %190 : vector<1x128xf32> to vector<256x128xf32>
    %192 = arith.addf %189, %191 : vector<256x128xf32>
    %193 = vector.shape_cast %192 : vector<256x128xf32> to vector<16x16x128xf32>
    %c0_243 = arith.constant 0 : index
    %c0_244 = arith.constant 0 : index
    %c0_245 = arith.constant 0 : index
    %c0_246 = arith.constant 0 : index
    %194 = vector.load %arg6[%c0_243, %c0_244, %c0_245, %c0_246] : memref<1x16x16x128xf32, #tpu.memory_space<vmem>>, vector<1x16x16x128xf32>
    %195 = vector.shape_cast %194 : vector<1x16x16x128xf32> to vector<16x16x128xf32>
    %196 = vector.shape_cast %193 : vector<16x16x128xf32> to vector<1x16x16x128xf32>
    tpu.vector_store %arg6[%c0_243, %c0_244, %c0_245, %c0_246], %196 {strides = array<i32>} : memref<1x16x16x128xf32, #tpu.memory_space<vmem>>, vector<1x16x16x128xf32>,
    return
  }
  func.func @transform_0(%arg0: i32) -> (i32, i32, i32, i32) {
    %c0_i32 = arith.constant 0 : i32
    %c0_i32_0 = arith.constant 0 : i32
    %c0_i32_1 = arith.constant 0 : i32
    %c0_i32_2 = arith.constant 0 : i32
    return %arg0, %c0_i32, %c0_i32_0, %c0_i32_1 : i32, i32, i32, i32
  }
  func.func @transform_1(%arg0: i32) -> (i32, i32, i32, i32) {
    %c0_i32 = arith.constant 0 : i32
    %c0_i32_0 = arith.constant 0 : i32
    %c0_i32_1 = arith.constant 0 : i32
    %c0_i32_2 = arith.constant 0 : i32
    %c0_i32_3 = arith.constant 0 : i32
    return %c0_i32, %c0_i32_0, %c0_i32_1, %c0_i32_2 : i32, i32, i32, i32
  }
  func.func @transform_2(%arg0: i32) -> (i32, i32, i32) {
    %c0_i32 = arith.constant 0 : i32
    %c0_i32_0 = arith.constant 0 : i32
    %c0_i32_1 = arith.constant 0 : i32
    %c0_i32_2 = arith.constant 0 : i32
    return %c0_i32, %c0_i32_0, %c0_i32_1 : i32, i32, i32
  }
  func.func @transform_3(%arg0: i32) -> (i32, i32) {
    %c0_i32 = arith.constant 0 : i32
    %c0_i32_0 = arith.constant 0 : i32
    %c0_i32_1 = arith.constant 0 : i32
    return %c0_i32, %c0_i32_0 : i32, i32
  }
  func.func @transform_4(%arg0: i32) -> (i32, i32) {
    %c0_i32 = arith.constant 0 : i32
    %c0_i32_0 = arith.constant 0 : i32
    %c0_i32_1 = arith.constant 0 : i32
    return %c0_i32, %c0_i32_0 : i32, i32
  }
  func.func @transform_5(%arg0: i32) -> (i32, i32, i32, i32) {
    %c0_i32 = arith.constant 0 : i32
    %c0_i32_0 = arith.constant 0 : i32
    %c0_i32_1 = arith.constant 0 : i32
    %c0_i32_2 = arith.constant 0 : i32
    return %arg0, %c0_i32, %c0_i32_0, %c0_i32_1 : i32, i32, i32, i32
  }
}

</mosaic_0001>

<llo_original>
// kernel: convnet_coupling_forward.1
$region0: #{convnet_coupling_forward.1}
  #allocation0 [shape = 'u32[]', space=smem, size = 0x4, offset = 0x4, fixed_abs, tag = 'smem constant byte address 0x4 - core index']
  #allocation1 [shape = 'u32[144,128]{1,0:T(1,128)}', space=vmem, size = 0x12000, scoped, tag = 'internal scratch']
  #allocation2 [shape = 'f32[18,32,128]{2,1,0:T(8,128)}', space=vmem, size = 0x48000, scoped, tag = 'scratch operand']
  #allocation3 [shape = 'f32[18,32,128]{2,1,0:T(8,128)}', space=vmem, size = 0x48000, scoped, tag = 'scratch operand']
  %s0 = inlined_call_operand.vmem [shape: f32[2,16,16,128], index: 0, kind: input, shape index: {}]
  %s1 = inlined_call_operand.vmem [shape: f32[3,9,128,128], index: 1, kind: input, shape index: {}]
  %s2 = inlined_call_operand.vmem [shape: f32[3,1,128], index: 2, kind: input, shape index: {}]
  %s3 = inlined_call_operand.vmem [shape: f32[128,128], index: 3, kind: input, shape index: {}]
  %s4 = inlined_call_operand.vmem [shape: f32[1,128], index: 4, kind: input, shape index: {}]
  %s5 = inlined_call_operand.vmem [shape: f32[2,16,16,128], index: 5, kind: output, shape index: {}]
  %s6 = sld [smem:[#allocation0]]
  $region53: #{convnet_coupling_forward.1} parent=0
    _
  %s8 = ssub.s32 1, %s6
  %s9 = scalar_select 0, %s8, %s6
  loop: start=0, step=1, limit=4
  $region2: #{convnet_coupling_forward.1} parent=0 // loop_pre_header
    _
  $region3: #{convnet_coupling_forward.1} parent=0 // loop_header
    %s11 = sphi 0, %s15
    %p12 = scmp.ge.s32.totalorder %s11, 4
    %s21 = sphi 0, %s23
    %s24 = sphi 0, %s21
    %s25 = sphi 0, %s24
    %s41 = sphi 0, %s25
    %s45 = sphi 0, %s45
    %s47 = sphi 0, %s45
    %s48 = sphi 0, %s47
    %s62 = sphi 0, %s48
    %s66 = sphi 0, %s66
    %s68 = sphi 0, %s66
    %s69 = sphi 0, %s68
    %s83 = sphi 0, %s69
    %s87 = sphi 0, %s87
    %s89 = sphi 0, %s87
    %s90 = sphi 0, %s89
    %s104 = sphi 0, %s90
    %s108 = sphi 0, %s108
    %s110 = sphi 0, %s108
    %s111 = sphi 0, %s110
    %s125 = sphi 0, %s111
    %s131 = sphi 0, %s133
    %s134 = sphi 0, %s131
    %s135 = sphi 0, %s134
    %s151 = sphi 0, %s135
  $region4: #{convnet_coupling_forward.1} parent=0 // loop_header_branch
    %14 = sbr.rel (%p12) target = $region8
  $region5: #{convnet_coupling_forward.1} parent=0 // loop_body
    %s16 = ssub.s32 %s11, 1
    %s17 = ssub.s32 %s11, 2
    %s18 = sadd.s32 %s11, 1
    %s19 = ssub.s32 %s11, %s18
    %p20 = scmp.eq.s32.totalorder %s19, 0
    %s22 = sadd.s32 %s21, 1
    %s23 = scalar_select %p20, %s21, %s22
    %p26 = pneg %p20
    %p27 = scmp.eq.s32.totalorder %s11, 1
    %p28 = por %p26, %p27
    %p29 = scmp.ne.s32.totalorder %s21, %s24
    %p30 = scmp.eq.s32.totalorder %s11, 0
    %p31 = por %p29, %p30
    %p32 = scmp.ne.s32.totalorder %s21, %s24
    %p33 = scmp.eq.s32.totalorder %s16, 1
    %p34 = por %p32, %p33
    %p35 = scmp.ne.s32.totalorder %s24, %s25
    %p36 = scmp.eq.s32.totalorder %s16, 0
    %p37 = por %p35, %p36
    %p38 = scmp.ne.s32.totalorder %s24, %s25
    %p39 = scmp.eq.s32.totalorder %s17, 1
    %p40 = por %p38, %p39
    %p42 = scmp.ne.s32.totalorder %s25, %s41
    %p43 = scmp.eq.s32.totalorder %s17, 0
    %p44 = por %p42, %p43
    %s46 = sadd.s32 %s45, 1
    %p49 = scmp.eq.s32.totalorder %s11, 1
    %p50 = scmp.ne.s32.totalorder %s45, %s47
    %p51 = scmp.eq.s32.totalorder %s11, 0
    %p52 = por %p50, %p51
    %p53 = scmp.ne.s32.totalorder %s45, %s47
    %p54 = scmp.eq.s32.totalorder %s16, 1
    %p55 = por %p53, %p54
    %p56 = scmp.ne.s32.totalorder %s47, %s48
    %p57 = scmp.eq.s32.totalorder %s16, 0
    %p58 = por %p56, %p57
    %p59 = scmp.ne.s32.totalorder %s47, %s48
    %p60 = scmp.eq.s32.totalorder %s17, 1
    %p61 = por %p59, %p60
    %p63 = scmp.ne.s32.totalorder %s48, %s62
    %p64 = scmp.eq.s32.totalorder %s17, 0
    %p65 = por %p63, %p64
    %s67 = sadd.s32 %s66, 1
    %p70 = scmp.eq.s32.totalorder %s11, 1
    %p71 = scmp.ne.s32.totalorder %s66, %s68
    %p72 = scmp.eq.s32.totalorder %s11, 0
    %p73 = por %p71, %p72
    %p74 = scmp.ne.s32.totalorder %s66, %s68
    %p75 = scmp.eq.s32.totalorder %s16, 1
    %p76 = por %p74, %p75
    %p77 = scmp.ne.s32.totalorder %s68, %s69
    %p78 = scmp.eq.s32.totalorder %s16, 0
    %p79 = por %p77, %p78
    %p80 = scmp.ne.s32.totalorder %s68, %s69
    %p81 = scmp.eq.s32.totalorder %s17, 1
    %p82 = por %p80, %p81
    %p84 = scmp.ne.s32.totalorder %s69, %s83
    %p85 = scmp.eq.s32.totalorder %s17, 0
    %p86 = por %p84, %p85
    %s88 = sadd.s32 %s87, 1
    %p91 = scmp.eq.s32.totalorder %s11, 1
    %p92 = scmp.ne.s32.totalorder %s87, %s89
    %p93 = scmp.eq.s32.totalorder %s11, 0
    %p94 = por %p92, %p93
    %p95 = scmp.ne.s32.totalorder %s87, %s89
    %p96 = scmp.eq.s32.totalorder %s16, 1
    %p97 = por %p95, %p96
    %p98 = scmp.ne.s32.totalorder %s89, %s90
    %p99 = scmp.eq.s32.totalorder %s16, 0
    %p100 = por %p98, %p99
    %p101 = scmp.ne.s32.totalorder %s89, %s90
    %p102 = scmp.eq.s32.totalorder %s17, 1
    %p103 = por %p101, %p102
    %p105 = scmp.ne.s32.totalorder %s90, %s104
    %p106 = scmp.eq.s32.totalorder %s17, 0
    %p107 = por %p105, %p106
    %s109 = sadd.s32 %s108, 1
    %p112 = scmp.eq.s32.totalorder %s11, 1
    %p113 = scmp.ne.s32.totalorder %s108, %s110
    %p114 = scmp.eq.s32.totalorder %s11, 0
    %p115 = por %p113, %p114
    %p116 = scmp.ne.s32.totalorder %s108, %s110
    %p117 = scmp.eq.s32.totalorder %s16, 1
    %p118 = por %p116, %p117
    %p119 = scmp.ne.s32.totalorder %s110, %s111
    %p120 = scmp.eq.s32.totalorder %s16, 0
    %p121 = por %p119, %p120
    %p122 = scmp.ne.s32.totalorder %s110, %s111
    %p123 = scmp.eq.s32.totalorder %s17, 1
    %p124 = por %p122, %p123
    %p126 = scmp.ne.s32.totalorder %s111, %s125
    %p127 = scmp.eq.s32.totalorder %s17, 0
    %p128 = por %p126, %p127
    %s129 = ssub.s32 %s11, %s18
    %p130 = scmp.eq.s32.totalorder %s129, 0
    %s132 = sadd.s32 %s131, 1
    %s133 = scalar_select %p130, %s131, %s132
    %p136 = pneg %p130
    %p137 = scmp.eq.s32.totalorder %s11, 1
    %p138 = por %p136, %p137
    %p139 = scmp.ne.s32.totalorder %s131, %s134
    %p140 = scmp.eq.s32.totalorder %s11, 0
    %p141 = por %p139, %p140
    %p142 = scmp.ne.s32.totalorder %s131, %s134
    %p143 = scmp.eq.s32.totalorder %s16, 1
    %p144 = por %p142, %p143
    %p145 = scmp.ne.s32.totalorder %s134, %s135
    %p146 = scmp.eq.s32.totalorder %s16, 0
    %p147 = por %p145, %p146
    %p148 = scmp.ne.s32.totalorder %s134, %s135
    %p149 = scmp.eq.s32.totalorder %s17, 1
    %p150 = por %p148, %p149
    %p152 = scmp.ne.s32.totalorder %s135, %s151
    %p153 = scmp.eq.s32.totalorder %s17, 0
    %p154 = por %p152, %p153
    %p155 = scmp.le.s32.totalorder 1, %s11
    %p156 = scmp.lt.s32.totalorder %s11, 3
    %p157 = pnand %p155, %p156
    %p158 = pneg %p157
    // Predicated region
    $region9: #{convnet_coupling_forward.1} parent=5 // pred_check
      _
    $region10: #{convnet_coupling_forward.1} parent=5 // pred_check_branch
      %160 = sbr.rel (%p157) target = $region12
    $region11: #{convnet_coupling_forward.1} parent=5 // pred_region
      %s161 = ssub.s32 %s11, 1
      // Predicated region
      $region13: #{convnet_coupling_forward.1} parent=11 // pred_check
        %p162 = pneg %p58
      $region14: #{convnet_coupling_forward.1} parent=11 // pred_check_branch
        %164 = sbr.rel (%p162) target = $region16
      $region15: #{convnet_coupling_forward.1} parent=11 // pred_region
        _
      $region16: #{convnet_coupling_forward.1} parent=11 // pred_fallthru
        _
      // Predicated region
      $region17: #{convnet_coupling_forward.1} parent=11 // pred_check
        %p165 = pneg %p79
      $region18: #{convnet_coupling_forward.1} parent=11 // pred_check_branch
        %167 = sbr.rel (%p165) target = $region20
      $region19: #{convnet_coupling_forward.1} parent=11 // pred_region
        _
      $region20: #{convnet_coupling_forward.1} parent=11 // pred_fallthru
        _
      // Predicated region
      $region21: #{convnet_coupling_forward.1} parent=11 // pred_check
        %p168 = pneg %p100
      $region22: #{convnet_coupling_forward.1} parent=11 // pred_check_branch
        %170 = sbr.rel (%p168) target = $region24
      $region23: #{convnet_coupling_forward.1} parent=11 // pred_region
        _
      $region24: #{convnet_coupling_forward.1} parent=11 // pred_fallthru
        _
      // Predicated region
      $region25: #{convnet_coupling_forward.1} parent=11 // pred_check
        %p171 = pneg %p121
      $region26: #{convnet_coupling_forward.1} parent=11 // pred_check_branch
        %173 = sbr.rel (%p171) target = $region28
      $region27: #{convnet_coupling_forward.1} parent=11 // pred_region
        _
      $region28: #{convnet_coupling_forward.1} parent=11 // pred_fallthru
        _
    $region12: #{convnet_coupling_forward.1} parent=5 // pred_fallthru
      _
    %p174 = scmp.lt.s32.totalorder %s11, 2
    // Predicated region
    $region29: #{convnet_coupling_forward.1} parent=5 // pred_check
      %p175 = pneg %p174
    $region30: #{convnet_coupling_forward.1} parent=5 // pred_check_branch
      %177 = sbr.rel (%p175) target = $region32
    $region31: #{convnet_coupling_forward.1} parent=5 // pred_region
      // Predicated region
      $region33: #{convnet_coupling_forward.1} parent=31 // pred_check
        %p178 = pneg %p31
      $region34: #{convnet_coupling_forward.1} parent=31 // pred_check_branch
        %180 = sbr.rel (%p178) target = $region36
      $region35: #{convnet_coupling_forward.1} parent=31 // pred_region
        %p181 = scmp.lt.s32.totalorder %s11, 1
        %s182 = scalar_select %p181, %s11, 1
        %s183 = smul.addr %s182, 32
        %s184 = smul.addr %s183, 8
        %s185 = scalar_lea.vmem %s0, %s184
      $region36: #{convnet_coupling_forward.1} parent=31 // pred_fallthru
        _
    $region32: #{convnet_coupling_forward.1} parent=5 // pred_fallthru
      _
    %p186 = scmp.le.s32.totalorder 1, %s11
    %p187 = scmp.lt.s32.totalorder %s11, 3
    %p188 = pnand %p186, %p187
    %p189 = pneg %p188
    // Predicated region
    $region37: #{convnet_coupling_forward.1} parent=5 // pred_check
      _
    $region38: #{convnet_coupling_forward.1} parent=5 // pred_check_branch
      %191 = sbr.rel (%p188) target = $region40
    $region39: #{convnet_coupling_forward.1} parent=5 // pred_region
      %s192 = ssub.s32 %s11, 1
      %p193 = scmp.lt.s32.totalorder %s16, 1
      %s194 = scalar_select %p193, %s16, 1
      %s195 = smul.addr %s194, 32
      %s196 = smul.addr %s195, 8
      %s197 = scalar_lea.vmem %s0, %s196
      %p198 = pneg %p37
      %p199 = pneg %p34
      %p200 = pneg %p58
      %p201 = pneg %p55
      %p202 = pneg %p79
      %p203 = pneg %p76
      %p204 = pneg %p100
      %p205 = pneg %p97
      %p206 = pneg %p121
      %p207 = pneg %p118
      %p208 = pneg %p147
      %p209 = pneg %p144
      %p210 = scmp.lt.s32.totalorder %s16, 1
      %s211 = scalar_select %p210, %s16, 1
      %s212 = smul.addr %s211, 32
      %s213 = smul.addr %s212, 8
      %s214 = scalar_lea.vmem %s5, %s213
      %p215 = scmp.lt.s32.totalorder %s16, 1
      %s216 = scalar_select %p215, %s16, 1
      %s217 = smul.addr %s216, 32
      %s218 = smul.addr %s217, 8
      %s219 = scalar_lea.vmem %s0, %s218
      %p220 = scmp.lt.s32.totalorder %s16, 1
      %s221 = scalar_select %p220, %s16, 1
      %s222 = smul.addr %s221, 32
      %s223 = smul.addr %s222, 8
      %s224 = scalar_lea.vmem %s5, %s223
      %225 = vst [vmem:[#allocation2] sm:$0xff] 0.0
      %226 = vst [vmem:[#allocation2 + $0x8] sm:$0xff] 0.0
      %227 = vst [vmem:[#allocation2 + $0x10] sm:$0xff] 0.0
      %228 = vst [vmem:[#allocation2 + $0x18] sm:$0xff] 0.0
      %229 = vst [vmem:[#allocation2 + $0x20] sm:$0xff] 0.0
      %230 = vst [vmem:[#allocation2 + $0x28] sm:$0xff] 0.0
      %231 = vst [vmem:[#allocation2 + $0x30] sm:$0xff] 0.0
      %232 = vst [vmem:[#allocation2 + $0x38] sm:$0xff] 0.0
      %233 = vst [vmem:[#allocation2 + $0x40] sm:$0xff] 0.0
      %234 = vst [vmem:[#allocation2 + $0x48] sm:$0xff] 0.0
      %235 = vst [vmem:[#allocation2 + $0x50] sm:$0xff] 0.0
      %236 = vst [vmem:[#allocation2 + $0x58] sm:$0xff] 0.0
      %237 = vst [vmem:[#allocation2 + $0x60] sm:$0xff] 0.0
      %238 = vst [vmem:[#allocation2 + $0x68] sm:$0xff] 0.0
      %239 = vst [vmem:[#allocation2 + $0x70] sm:$0xff] 0.0
      %240 = vst [vmem:[#allocation2 + $0x78] sm:$0xff] 0.0
      %241 = vst [vmem:[#allocation2 + $0x80] sm:$0xff] 0.0
      %242 = vst [vmem:[#allocation2 + $0x88] sm:$0xff] 0.0
      %243 = vst [vmem:[#allocation2 + $0x90] sm:$0xff] 0.0
      %244 = vst [vmem:[#allocation2 + $0x98] sm:$0xff] 0.0
      %245 = vst [vmem:[#allocation2 + $0xa0] sm:$0xff] 0.0
      %246 = vst [vmem:[#allocation2 + $0xa8] sm:$0xff] 0.0
      %247 = vst [vmem:[#allocation2 + $0xb0] sm:$0xff] 0.0
      %248 = vst [vmem:[#allocation2 + $0xb8] sm:$0xff] 0.0
      %249 = vst [vmem:[#allocation2 + $0xc0] sm:$0xff] 0.0
      %250 = vst [vmem:[#allocation2 + $0xc8] sm:$0xff] 0.0
      %251 = vst [vmem:[#allocation2 + $0xd0] sm:$0xff] 0.0
      %252 = vst [vmem:[#allocation2 + $0xd8] sm:$0xff] 0.0
      %253 = vst [vmem:[#allocation2 + $0xe0] sm:$0xff] 0.0
      %254 = vst [vmem:[#allocation2 + $0xe8] sm:$0xff] 0.0
      %255 = vst [vmem:[#allocation2 + $0xf0] sm:$0xff] 0.0
      %256 = vst [vmem:[#allocation2 + $0xf8] sm:$0xff] 0.0
      %257 = vst [vmem:[#allocation2 + $0x100] sm:$0xff] 0.0
      %258 = vst [vmem:[#allocation2 + $0x108] sm:$0xff] 0.0
      %259 = vst [vmem:[#allocation2 + $0x110] sm:$0xff] 0.0
      %260 = vst [vmem:[#allocation2 + $0x118] sm:$0xff] 0.0
      %261 = vst [vmem:[#allocation2 + $0x120] sm:$0xff] 0.0
      %262 = vst [vmem:[#allocation2 + $0x128] sm:$0xff] 0.0
      %263 = vst [vmem:[#allocation2 + $0x130] sm:$0xff] 0.0
      %264 = vst [vmem:[#allocation2 + $0x138] sm:$0xff] 0.0
      %265 = vst [vmem:[#allocation2 + $0x140] sm:$0xff] 0.0
      %266 = vst [vmem:[#allocation2 + $0x148] sm:$0xff] 0.0
      %267 = vst [vmem:[#allocation2 + $0x150] sm:$0xff] 0.0
      %268 = vst [vmem:[#allocation2 + $0x158] sm:$0xff] 0.0
      %269 = vst [vmem:[#allocation2 + $0x160] sm:$0xff] 0.0
      %270 = vst [vmem:[#allocation2 + $0x168] sm:$0xff] 0.0
      %271 = vst [vmem:[#allocation2 + $0x170] sm:$0xff] 0.0
      %272 = vst [vmem:[#allocation2 + $0x178] sm:$0xff] 0.0
      %273 = vst [vmem:[#allocation2 + $0x180] sm:$0xff] 0.0
      %274 = vst [vmem:[#allocation2 + $0x188] sm:$0xff] 0.0
      %275 = vst [vmem:[#allocation2 + $0x190] sm:$0xff] 0.0
      %276 = vst [vmem:[#allocation2 + $0x198] sm:$0xff] 0.0
      %277 = vst [vmem:[#allocation2 + $0x1a0] sm:$0xff] 0.0
      %278 = vst [vmem:[#allocation2 + $0x1a8] sm:$0xff] 0.0
      %279 = vst [vmem:[#allocation2 + $0x1b0] sm:$0xff] 0.0
      %280 = vst [vmem:[#allocation2 + $0x1b8] sm:$0xff] 0.0
      %281 = vst [vmem:[#allocation2 + $0x1c0] sm:$0xff] 0.0
      %282 = vst [vmem:[#allocation2 + $0x1c8] sm:$0xff] 0.0
      %283 = vst [vmem:[#allocation2 + $0x1d0] sm:$0xff] 0.0
      %284 = vst [vmem:[#allocation2 + $0x1d8] sm:$0xff] 0.0
      %285 = vst [vmem:[#allocation2 + $0x1e0] sm:$0xff] 0.0
      %286 = vst [vmem:[#allocation2 + $0x1e8] sm:$0xff] 0.0
      %287 = vst [vmem:[#allocation2 + $0x1f0] sm:$0xff] 0.0
      %288 = vst [vmem:[#allocation2 + $0x1f8] sm:$0xff] 0.0
      %289 = vst [vmem:[#allocation2 + $0x200] sm:$0xff] 0.0
      %290 = vst [vmem:[#allocation2 + $0x208] sm:$0xff] 0.0
      %291 = vst [vmem:[#allocation2 + $0x210] sm:$0xff] 0.0
      %292 = vst [vmem:[#allocation2 + $0x218] sm:$0xff] 0.0
      %293 = vst [vmem:[#allocation2 + $0x220] sm:$0xff] 0.0
      %294 = vst [vmem:[#allocation2 + $0x228] sm:$0xff] 0.0
      %295 = vst [vmem:[#allocation2 + $0x230] sm:$0xff] 0.0
      %296 = vst [vmem:[#allocation2 + $0x238] sm:$0xff] 0.0
      %297 = vst [vmem:[#allocation3] sm:$0xff] 0.0
      %298 = vst [vmem:[#allocation3 + $0x8] sm:$0xff] 0.0
      %299 = vst [vmem:[#allocation3 + $0x10] sm:$0xff] 0.0
      %300 = vst [vmem:[#allocation3 + $0x18] sm:$0xff] 0.0
      %301 = vst [vmem:[#allocation3 + $0x20] sm:$0xff] 0.0
      %302 = vst [vmem:[#allocation3 + $0x28] sm:$0xff] 0.0
      %303 = vst [vmem:[#allocation3 + $0x30] sm:$0xff] 0.0
      %304 = vst [vmem:[#allocation3 + $0x38] sm:$0xff] 0.0
      %305 = vst [vmem:[#allocation3 + $0x40] sm:$0xff] 0.0
      %306 = vst [vmem:[#allocation3 + $0x48] sm:$0xff] 0.0
      %307 = vst [vmem:[#allocation3 + $0x50] sm:$0xff] 0.0
      %308 = vst [vmem:[#allocation3 + $0x58] sm:$0xff] 0.0
      %309 = vst [vmem:[#allocation3 + $0x60] sm:$0xff] 0.0
      %310 = vst [vmem:[#allocation3 + $0x68] sm:$0xff] 0.0
      %311 = vst [vmem:[#allocation3 + $0x70] sm:$0xff] 0.0
      %312 = vst [vmem:[#allocation3 + $0x78] sm:$0xff] 0.0
      %313 = vst [vmem:[#allocation3 + $0x80] sm:$0xff] 0.0
      %314 = vst [vmem:[#allocation3 + $0x88] sm:$0xff] 0.0
      %315 = vst [vmem:[#allocation3 + $0x90] sm:$0xff] 0.0
      %316 = vst [vmem:[#allocation3 + $0x98] sm:$0xff] 0.0
      %317 = vst [vmem:[#allocation3 + $0xa0] sm:$0xff] 0.0
      %318 = vst [vmem:[#allocation3 + $0xa8] sm:$0xff] 0.0
      %319 = vst [vmem:[#allocation3 + $0xb0] sm:$0xff] 0.0
      %320 = vst [vmem:[#allocation3 + $0xb8] sm:$0xff] 0.0
      %321 = vst [vmem:[#allocation3 + $0xc0] sm:$0xff] 0.0
      %322 = vst [vmem:[#allocation3 + $0xc8] sm:$0xff] 0.0
      %323 = vst [vmem:[#allocation3 + $0xd0] sm:$0xff] 0.0
      %324 = vst [vmem:[#allocation3 + $0xd8] sm:$0xff] 0.0
      %325 = vst [vmem:[#allocation3 + $0xe0] sm:$0xff] 0.0
      %326 = vst [vmem:[#allocation3 + $0xe8] sm:$0xff] 0.0
      %327 = vst [vmem:[#allocation3 + $0xf0] sm:$0xff] 0.0
      %328 = vst [vmem:[#allocation3 + $0xf8] sm:$0xff] 0.0
      %329 = vst [vmem:[#allocation3 + $0x100] sm:$0xff] 0.0
      %330 = vst [vmem:[#allocation3 + $0x108] sm:$0xff] 0.0
      %331 = vst [vmem:[#allocation3 + $0x110] sm:$0xff] 0.0
      %332 = vst [vmem:[#allocation3 + $0x118] sm:$0xff] 0.0
      %333 = vst [vmem:[#allocation3 + $0x120] sm:$0xff] 0.0
      %334 = vst [vmem:[#allocation3 + $0x128] sm:$0xff] 0.0
      %335 = vst [vmem:[#allocation3 + $0x130] sm:$0xff] 0.0
      %336 = vst [vmem:[#allocation3 + $0x138] sm:$0xff] 0.0
      %337 = vst [vmem:[#allocation3 + $0x140] sm:$0xff] 0.0
      %338 = vst [vmem:[#allocation3 + $0x148] sm:$0xff] 0.0
      %339 = vst [vmem:[#allocation3 + $0x150] sm:$0xff] 0.0
      %340 = vst [vmem:[#allocation3 + $0x158] sm:$0xff] 0.0
      %341 = vst [vmem:[#allocation3 + $0x160] sm:$0xff] 0.0
      %342 = vst [vmem:[#allocation3 + $0x168] sm:$0xff] 0.0
      %343 = vst [vmem:[#allocation3 + $0x170] sm:$0xff] 0.0
      %344 = vst [vmem:[#allocation3 + $0x178] sm:$0xff] 0.0
      %345 = vst [vmem:[#allocation3 + $0x180] sm:$0xff] 0.0
      %346 = vst [vmem:[#allocation3 + $0x188] sm:$0xff] 0.0
      %347 = vst [vmem:[#allocation3 + $0x190] sm:$0xff] 0.0
      %348 = vst [vmem:[#allocation3 + $0x198] sm:$0xff] 0.0
      %349 = vst [vmem:[#allocation3 + $0x1a0] sm:$0xff] 0.0
      %350 = vst [vmem:[#allocation3 + $0x1a8] sm:$0xff] 0.0
      %351 = vst [vmem:[#allocation3 + $0x1b0] sm:$0xff] 0.0
      %352 = vst [vmem:[#allocation3 + $0x1b8] sm:$0xff] 0.0
      %353 = vst [vmem:[#allocation3 + $0x1c0] sm:$0xff] 0.0
      %354 = vst [vmem:[#allocation3 + $0x1c8] sm:$0xff] 0.0
      %355 = vst [vmem:[#allocation3 + $0x1d0] sm:$0xff] 0.0
      %356 = vst [vmem:[#allocation3 + $0x1d8] sm:$0xff] 0.0
      %357 = vst [vmem:[#allocation3 + $0x1e0] sm:$0xff] 0.0
      %358 = vst [vmem:[#allocation3 + $0x1e8] sm:$0xff] 0.0
      %359 = vst [vmem:[#allocation3 + $0x1f0] sm:$0xff] 0.0
      %360 = vst [vmem:[#allocation3 + $0x1f8] sm:$0xff] 0.0
      %361 = vst [vmem:[#allocation3 + $0x200] sm:$0xff] 0.0
      %362 = vst [vmem:[#allocation3 + $0x208] sm:$0xff] 0.0
      %363 = vst [vmem:[#allocation3 + $0x210] sm:$0xff] 0.0
      %364 = vst [vmem:[#allocation3 + $0x218] sm:$0xff] 0.0
      %365 = vst [vmem:[#allocation3 + $0x220] sm:$0xff] 0.0
      %366 = vst [vmem:[#allocation3 + $0x228] sm:$0xff] 0.0
      %367 = vst [vmem:[#allocation3 + $0x230] sm:$0xff] 0.0
      %368 = vst [vmem:[#allocation3 + $0x238] sm:$0xff] 0.0
      %v369 = vld [vmem:[%s219] sm:$0xff]
      %v370 = vld [vmem:[%s219 + $0x8] sm:$0xff]
      %v371 = vld [vmem:[%s219 + $0x10] sm:$0xff]
      %v372 = vld [vmem:[%s219 + $0x18] sm:$0xff]
      %v373 = vld [vmem:[%s219 + $0x20] sm:$0xff]
      %v374 = vld [vmem:[%s219 + $0x28] sm:$0xff]
      %v375 = vld [vmem:[%s219 + $0x30] sm:$0xff]
      %v376 = vld [vmem:[%s219 + $0x38] sm:$0xff]
      %v377 = vld [vmem:[%s219 + $0x40] sm:$0xff]
      %v378 = vld [vmem:[%s219 + $0x48] sm:$0xff]
      %v379 = vld [vmem:[%s219 + $0x50] sm:$0xff]
      %v380 = vld [vmem:[%s219 + $0x58] sm:$0xff]
      %v381 = vld [vmem:[%s219 + $0x60] sm:$0xff]
      %v382 = vld [vmem:[%s219 + $0x68] sm:$0xff]
      %v383 = vld [vmem:[%s219 + $0x70] sm:$0xff]
      %v384 = vld [vmem:[%s219 + $0x78] sm:$0xff]
      %v385 = vld [vmem:[%s219 + $0x80] sm:$0xff]
      %v386 = vld [vmem:[%s219 + $0x88] sm:$0xff]
      %v387 = vld [vmem:[%s219 + $0x90] sm:$0xff]
      %v388 = vld [vmem:[%s219 + $0x98] sm:$0xff]
      %v389 = vld [vmem:[%s219 + $0xa0] sm:$0xff]
      %v390 = vld [vmem:[%s219 + $0xa8] sm:$0xff]
      %v391 = vld [vmem:[%s219 + $0xb0] sm:$0xff]
      %v392 = vld [vmem:[%s219 + $0xb8] sm:$0xff]
      %v393 = vld [vmem:[%s219 + $0xc0] sm:$0xff]
      %v394 = vld [vmem:[%s219 + $0xc8] sm:$0xff]
      %v395 = vld [vmem:[%s219 + $0xd0] sm:$0xff]
      %v396 = vld [vmem:[%s219 + $0xd8] sm:$0xff]
      %v397 = vld [vmem:[%s219 + $0xe0] sm:$0xff]
      %v398 = vld [vmem:[%s219 + $0xe8] sm:$0xff]
      %v399 = vld [vmem:[%s219 + $0xf0] sm:$0xff]
      %v400 = vld [vmem:[%s219 + $0xf8] sm:$0xff]
      %s401 = scalar_lea.vmem [#allocation2], 32
      %402 = vst [vmem:[%s401 + $0x8] sm:$0xff] %v369
      %403 = vst [vmem:[%s401 + $0x10] sm:$0xff] %v370
      %404 = vst [vmem:[%s401 + $0x28] sm:$0xff] %v371
      %405 = vst [vmem:[%s401 + $0x30] sm:$0xff] %v372
      %406 = vst [vmem:[%s401 + $0x48] sm:$0xff] %v373
      %407 = vst [vmem:[%s401 + $0x50] sm:$0xff] %v374
      %408 = vst [vmem:[%s401 + $0x68] sm:$0xff] %v375
      %409 = vst [vmem:[%s401 + $0x70] sm:$0xff] %v376
      %410 = vst [vmem:[%s401 + $0x88] sm:$0xff] %v377
      %411 = vst [vmem:[%s401 + $0x90] sm:$0xff] %v378
      %412 = vst [vmem:[%s401 + $0xa8] sm:$0xff] %v379
      %413 = vst [vmem:[%s401 + $0xb0] sm:$0xff] %v380
      %414 = vst [vmem:[%s401 + $0xc8] sm:$0xff] %v381
      %415 = vst [vmem:[%s401 + $0xd0] sm:$0xff] %v382
      %416 = vst [vmem:[%s401 + $0xe8] sm:$0xff] %v383
      %417 = vst [vmem:[%s401 + $0xf0] sm:$0xff] %v384
      %418 = vst [vmem:[%s401 + $0x108] sm:$0xff] %v385
      %419 = vst [vmem:[%s401 + $0x110] sm:$0xff] %v386
      %420 = vst [vmem:[%s401 + $0x128] sm:$0xff] %v387
      %421 = vst [vmem:[%s401 + $0x130] sm:$0xff] %v388
      %422 = vst [vmem:[%s401 + $0x148] sm:$0xff] %v389
      %423 = vst [vmem:[%s401 + $0x150] sm:$0xff] %v390
      %424 = vst [vmem:[%s401 + $0x168] sm:$0xff] %v391
      %425 = vst [vmem:[%s401 + $0x170] sm:$0xff] %v392
      %426 = vst [vmem:[%s401 + $0x188] sm:$0xff] %v393
      %427 = vst [vmem:[%s401 + $0x190] sm:$0xff] %v394
      %428 = vst [vmem:[%s401 + $0x1a8] sm:$0xff] %v395
      %429 = vst [vmem:[%s401 + $0x1b0] sm:$0xff] %v396
      %430 = vst [vmem:[%s401 + $0x1c8] sm:$0xff] %v397
      %431 = vst [vmem:[%s401 + $0x1d0] sm:$0xff] %v398
      %432 = vst [vmem:[%s401 + $0x1e8] sm:$0xff] %v399
      %433 = vst [vmem:[%s401 + $0x1f0] sm:$0xff] %v400
      %v434 = vld [vmem:[#allocation2 + $0x7] sm:$0xff]
      %v435 = vld [vmem:[#allocation2 + $0xf] sm:$0xff]
      %v436 = vld [vmem:[#allocation2 + $0x27] sm:$0xff]
      %v437 = vld [vmem:[#allocation2 + $0x2f] sm:$0xff]
      %v438 = vld [vmem:[#allocation2 + $0x47] sm:$0xff]
      %v439 = vld [vmem:[#allocation2 + $0x4f] sm:$0xff]
      %v440 = vld [vmem:[#allocation2 + $0x67] sm:$0xff]
      %v441 = vld [vmem:[#allocation2 + $0x6f] sm:$0xff]
      %v442 = vld [vmem:[#allocation2 + $0x87] sm:$0xff]
      %v443 = vld [vmem:[#allocation2 + $0x8f] sm:$0xff]
      %v444 = vld [vmem:[#allocation2 + $0xa7] sm:$0xff]
      %v445 = vld [vmem:[#allocation2 + $0xaf] sm:$0xff]
      %v446 = vld [vmem:[#allocation2 + $0xc7] sm:$0xff]
      %v447 = vld [vmem:[#allocation2 + $0xcf] sm:$0xff]
      %v448 = vld [vmem:[#allocation2 + $0xe7] sm:$0xff]
      %v449 = vld [vmem:[#allocation2 + $0xef] sm:$0xff]
      %v450 = vld [vmem:[#allocation2 + $0x107] sm:$0xff]
      %v451 = vld [vmem:[#allocation2 + $0x10f] sm:$0xff]
      %v452 = vld [vmem:[#allocation2 + $0x127] sm:$0xff]
      %v453 = vld [vmem:[#allocation2 + $0x12f] sm:$0xff]
      %v454 = vld [vmem:[#allocation2 + $0x147] sm:$0xff]
      %v455 = vld [vmem:[#allocation2 + $0x14f] sm:$0xff]
      %v456 = vld [vmem:[#allocation2 + $0x167] sm:$0xff]
      %v457 = vld [vmem:[#allocation2 + $0x16f] sm:$0xff]
      %v458 = vld [vmem:[#allocation2 + $0x187] sm:$0xff]
      %v459 = vld [vmem:[#allocation2 + $0x18f] sm:$0xff]
      %v460 = vld [vmem:[#allocation2 + $0x1a7] sm:$0xff]
      %v461 = vld [vmem:[#allocation2 + $0x1af] sm:$0xff]
      %v462 = vld [vmem:[#allocation2 + $0x1c7] sm:$0xff]
      %v463 = vld [vmem:[#allocation2 + $0x1cf] sm:$0xff]
      %v464 = vld [vmem:[#allocation2 + $0x1e7] sm:$0xff]
      %v465 = vld [vmem:[#allocation2 + $0x1ef] sm:$0xff]
      %v466 = vld [vmem:[%s1] sm:$0xff]
      %v467 = vld [vmem:[%s1 + $0x8] sm:$0xff]
      %v468 = vld [vmem:[%s1 + $0x10] sm:$0xff]
      %v469 = vld [vmem:[%s1 + $0x18] sm:$0xff]
      %v470 = vld [vmem:[%s1 + $0x20] sm:$0xff]
      %v471 = vld [vmem:[%s1 + $0x28] sm:$0xff]
      %v472 = vld [vmem:[%s1 + $0x30] sm:$0xff]
      %v473 = vld [vmem:[%s1 + $0x38] sm:$0xff]
      %v474 = vld [vmem:[%s1 + $0x40] sm:$0xff]
      %v475 = vld [vmem:[%s1 + $0x48] sm:$0xff]
      %v476 = vld [vmem:[%s1 + $0x50] sm:$0xff]
      %v477 = vld [vmem:[%s1 + $0x58] sm:$0xff]
      %v478 = vld [vmem:[%s1 + $0x60] sm:$0xff]
      %v479 = vld [vmem:[%s1 + $0x68] sm:$0xff]
      %v480 = vld [vmem:[%s1 + $0x70] sm:$0xff]
      %v481 = vld [vmem:[%s1 + $0x78] sm:$0xff]
      %v482 = vld [vmem:[#allocation2 + $0x8] sm:$0xff]
      %v483 = vld [vmem:[#allocation2 + $0x10] sm:$0xff]
      %v484 = vld [vmem:[#allocation2 + $0x28] sm:$0xff]
      %v485 = vld [vmem:[#allocation2 + $0x30] sm:$0xff]
      %v486 = vld [vmem:[#allocation2 + $0x48] sm:$0xff]
      %v487 = vld [vmem:[#allocation2 + $0x50] sm:$0xff]
      %v488 = vld [vmem:[#allocation2 + $0x68] sm:$0xff]
      %v489 = vld [vmem:[#allocation2 + $0x70] sm:$0xff]
      %v490 = vld [vmem:[#allocation2 + $0x88] sm:$0xff]
      %v491 = vld [vmem:[#allocation2 + $0x90] sm:$0xff]
      %v492 = vld [vmem:[#allocation2 + $0xa8] sm:$0xff]
      %v493 = vld [vmem:[#allocation2 + $0xb0] sm:$0xff]
      %v494 = vld [vmem:[#allocation2 + $0xc8] sm:$0xff]
      %v495 = vld [vmem:[#allocation2 + $0xd0] sm:$0xff]
      %v496 = vld [vmem:[#allocation2 + $0xe8] sm:$0xff]
      %v497 = vld [vmem:[#allocation2 + $0xf0] sm:$0xff]
      %v498 = vld [vmem:[#allocation2 + $0x108] sm:$0xff]
      %v499 = vld [vmem:[#allocation2 + $0x110] sm:$0xff]
      %v500 = vld [vmem:[#allocation2 + $0x128] sm:$0xff]
      %v501 = vld [vmem:[#allocation2 + $0x130] sm:$0xff]
      %v502 = vld [vmem:[#allocation2 + $0x148] sm:$0xff]
      %v503 = vld [vmem:[#allocation2 + $0x150] sm:$0xff]
      %v504 = vld [vmem:[#allocation2 + $0x168] sm:$0xff]
      %v505 = vld [vmem:[#allocation2 + $0x170] sm:$0xff]
      %v506 = vld [vmem:[#allocation2 + $0x188] sm:$0xff]
      %v507 = vld [vmem:[#allocation2 + $0x190] sm:$0xff]
      %v508 = vld [vmem:[#allocation2 + $0x1a8] sm:$0xff]
      %v509 = vld [vmem:[#allocation2 + $0x1b0] sm:$0xff]
      %v510 = vld [vmem:[#allocation2 + $0x1c8] sm:$0xff]
      %v511 = vld [vmem:[#allocation2 + $0x1d0] sm:$0xff]
      %v512 = vld [vmem:[#allocation2 + $0x1e8] sm:$0xff]
      %v513 = vld [vmem:[#allocation2 + $0x1f0] sm:$0xff]
      %s514 = scalar_lea.vmem %s1, 128
      %v515 = vld [vmem:[%s514] sm:$0xff]
      %v516 = vld [vmem:[%s514 + $0x8] sm:$0xff]
      %v517 = vld [vmem:[%s514 + $0x10] sm:$0xff]
      %v518 = vld [vmem:[%s514 + $0x18] sm:$0xff]
      %v519 = vld [vmem:[%s514 + $0x20] sm:$0xff]
      %v520 = vld [vmem:[%s514 + $0x28] sm:$0xff]
      %v521 = vld [vmem:[%s514 + $0x30] sm:$0xff]
      %v522 = vld [vmem:[%s514 + $0x38] sm:$0xff]
      %v523 = vld [vmem:[%s514 + $0x40] sm:$0xff]
      %v524 = vld [vmem:[%s514 + $0x48] sm:$0xff]
      %v525 = vld [vmem:[%s514 + $0x50] sm:$0xff]
      %v526 = vld [vmem:[%s514 + $0x58] sm:$0xff]
      %v527 = vld [vmem:[%s514 + $0x60] sm:$0xff]
      %v528 = vld [vmem:[%s514 + $0x68] sm:$0xff]
      %v529 = vld [vmem:[%s514 + $0x70] sm:$0xff]
      %v530 = vld [vmem:[%s514 + $0x78] sm:$0xff]
      %531 = vmatprep.subr.mxu0 0.0
      %532 = vmatpush1.msra.mxu0 %v515
      %533 = vmatprep.subr.mxu0 0.0
      %534 = vmatpush1.msra.mxu0 %v516
      %535 = vmatprep.subr.mxu0 0.0
      %536 = vmatpush1.msra.mxu0 %v517
      %537 = vmatprep.subr.mxu0 0.0
      %538 = vmatpush1.msra.mxu0 %v518
      %539 = vmatprep.subr.mxu0 0.0
      %540 = vmatpush1.msra.mxu0 %v519
      %541 = vmatprep.subr.mxu0 0.0
      %542 = vmatpush1.msra.mxu0 %v520
      %543 = vmatprep.subr.mxu0 0.0
      %544 = vmatpush1.msra.mxu0 %v521
      %545 = vmatprep.subr.mxu0 0.0
      %546 = vmatpush1.msra.mxu0 %v522
      %547 = vmatprep.subr.mxu0 0.0
      %548 = vmatpush1.msra.mxu0 %v523
      %549 = vmatprep.subr.mxu0 0.0
      %550 = vmatpush1.msra.mxu0 %v524
      %551 = vmatprep.subr.mxu0 0.0
      %552 = vmatpush1.msra.mxu0 %v525
      %553 = vmatprep.subr.mxu0 0.0
      %554 = vmatpush1.msra.mxu0 %v526
      %555 = vmatprep.subr.mxu0 0.0
      %556 = vmatpush1.msra.mxu0 %v527
      %557 = vmatprep.subr.mxu0 0.0
      %558 = vmatpush1.msra.mxu0 %v528
      %559 = vmatprep.subr.mxu0 0.0
      %560 = vmatpush1.msra.mxu0 %v529
      %561 = vmatprep.subr.mxu0 0.0
      %562 = vmatpush1.msra.mxu0 %v530
      %563 = vmatprep.subr.mxu0 0.0
      %564 = vmatpush1.msra.mxu0 0.0
      %565 = vmatprep.subr.mxu0 0.0
      %566 = vmatpush1.msra.mxu0 0.0
      %567 = vmatprep.subr.mxu0 0.0
      %568 = vmatpush1.msra.mxu0 0.0
      %569 = vmatprep.subr.mxu0 0.0
      %570 = vmatpush1.msra.mxu0 0.0
      %571 = vmatprep.subr.mxu0 0.0
      %572 = vmatpush1.msra.mxu0 0.0
      %573 = vmatprep.subr.mxu0 0.0
      %574 = vmatpush1.msra.mxu0 0.0
      %575 = vmatprep.subr.mxu0 0.0
      %576 = vmatpush1.msra.mxu0 0.0
      %577 = vmatprep.subr.mxu0 0.0
      %578 = vmatpush1.msra.mxu0 0.0
      %579 = vmatprep.subr.mxu0 0.0
      %580 = vmatpush1.msra.mxu0 0.0
      %581 = vmatprep.subr.mxu0 0.0
      %582 = vmatpush1.msra.mxu0 0.0
      %583 = vmatprep.subr.mxu0 0.0
      %584 = vmatpush1.msra.mxu0 0.0
      %585 = vmatprep.subr.mxu0 0.0
      %586 = vmatpush1.msra.mxu0 0.0
      %587 = vmatprep.subr.mxu0 0.0
      %588 = vmatpush1.msra.mxu0 0.0
      %589 = vmatprep.subr.mxu0 0.0
      %590 = vmatpush1.msra.mxu0 0.0
      %591 = vmatprep.subr.mxu0 0.0
      %592 = vmatpush1.msra.mxu0 0.0
      %593 = vmatprep.subr.mxu0 0.0
      %594 = vmatpush1.msra.mxu0 0.0
      %595 = vmatprep.mubr.f32.mxu0 0.0
      %596 = vmatmul.mubr.f32.gmra.mrb[0].mxu0 %v482
      %v597 = vpop.f32.mrb[0].mxu0
      %v598 = vadd.f32 0.0, %v597
      %v599 = vpop.f32.mrb[0].mxu0
      %600 = vmatprep.mubr.f32.mxu0 0.0
      %601 = vmatmul.mubr.f32.gmra.mrb[0].mxu0 %v483
      %v602 = vpop.f32.mrb[0].mxu0
      %v603 = vadd.f32 0.0, %v602
      %v604 = vpop.f32.mrb[0].mxu0
      %605 = vmatprep.mubr.f32.mxu0 0.0
      %606 = vmatmul.mubr.f32.gmra.mrb[0].mxu0 %v484
      %v607 = vpop.f32.mrb[0].mxu0
      %v608 = vadd.f32 0.0, %v607
      %v609 = vpop.f32.mrb[0].mxu0
      %610 = vmatprep.mubr.f32.mxu0 0.0
      %611 = vmatmul.mubr.f32.gmra.mrb[0].mxu0 %v485
      %v612 = vpop.f32.mrb[0].mxu0
      %v613 = vadd.f32 0.0, %v612
      %v614 = vpop.f32.mrb[0].mxu0
      %615 = vmatprep.mubr.f32.mxu0 0.0
      %616 = vmatmul.mubr.f32.gmra.mrb[0].mxu0 %v486
      %v617 = vpop.f32.mrb[0].mxu0
      %v618 = vadd.f32 0.0, %v617
      %v619 = vpop.f32.mrb[0].mxu0
      %620 = vmatprep.mubr.f32.mxu0 0.0
      %621 = vmatmul.mubr.f32.gmra.mrb[0].mxu0 %v487
      %v622 = vpop.f32.mrb[0].mxu0
      %v623 = vadd.f32 0.0, %v622
      %v624 = vpop.f32.mrb[0].mxu0
      %625 = vmatprep.mubr.f32.mxu0 0.0
      %626 = vmatmul.mubr.f32.gmra.mrb[0].mxu0 %v488
      %v627 = vpop.f32.mrb[0].mxu0
      %v628 = vadd.f32 0.0, %v627
      %v629 = vpop.f32.mrb[0].mxu0
      %630 = vmatprep.mubr.f32.mxu0 0.0
      %631 = vmatmul.mubr.f32.gmra.mrb[0].mxu0 %v489
      %v632 = vpop.f32.mrb[0].mxu0
      %v633 = vadd.f32 0.0, %v632
      %v634 = vpop.f32.mrb[0].mxu0
      %635 = vmatprep.mubr.f32.mxu0 0.0
      %636 = vmatmul.mubr.f32.gmra.mrb[0].mxu0 %v490
      %v637 = vpop.f32.mrb[0].mxu0
      %v638 = vadd.f32 0.0, %v637
      %v639 = vpop.f32.mrb[0].mxu0
      %640 = vmatprep.mubr.f32.mxu0 0.0
      %641 = vmatmul.mubr.f32.gmra.mrb[0].mxu0 %v491
      %v642 = vpop.f32.mrb[0].mxu0
      %v643 = vadd.f32 0.0, %v642
      %v644 = vpop.f32.mrb[0].mxu0
      %645 = vmatprep.mubr.f32.mxu0 0.0
      %646 = vmatmul.mubr.f32.gmra.mrb[0].mxu0 %v492
      %v647 = vpop.f32.mrb[0].mxu0
      %v648 = vadd.f32 0.0, %v647
      %v649 = vpop.f32.mrb[0].mxu0
      %650 = vmatprep.mubr.f32.mxu0 0.0
      %651 = vmatmul.mubr.f32.gmra.mrb[0].mxu0 %v493
      %v652 = vpop.f32.mrb[0].mxu0
      %v653 = vadd.f32 0.0, %v652
      %v654 = vpop.f32.mrb[0].mxu0
      %655 = vmatprep.mubr.f32.mxu0 0.0
      %656 = vmatmul.mubr.f32.gmra.mrb[0].mxu0 %v494
      %v657 = vpop.f32.mrb[0].mxu0
      %v658 = vadd.f32 0.0, %v657
      %v659 = vpop.f32.mrb[0].mxu0
      %660 = vmatprep.mubr.f32.mxu0 0.0
      %661 = vmatmul.mubr.f32.gmra.mrb[0].mxu0 %v495
      %v662 = vpop.f32.mrb[0].mxu0
      %v663 = vadd.f32 0.0, %v662
      %v664 = vpop.f32.mrb[0].mxu0
      %665 = vmatprep.mubr.f32.mxu0 0.0
      %666 = vmatmul.mubr.f32.gmra.mrb[0].mxu0 %v496
      %v667 = vpop.f32.mrb[0].mxu0
      %v668 = vadd.f32 0.0, %v667
      %v669 = vpop.f32.mrb[0].mxu0
      %670 = vmatprep.mubr.f32.mxu0 0.0
      %671 = vmatmul.mubr.f32.gmra.mrb[0].mxu0 %v497
      %v672 = vpop.f32.mrb[0].mxu0
      %v673 = vadd.f32 0.0, %v672
      %v674 = vpop.f32.mrb[0].mxu0
      %675 = vmatprep.mubr.f32.mxu0 0.0
      %676 = vmatmul.mubr.f32.gmra.mrb[0].mxu0 %v498
      %v677 = vpop.f32.mrb[0].mxu0
      %v678 = vadd.f32 0.0, %v677
      %v679 = vpop.f32.mrb[0].mxu0
      %680 = vmatprep.mubr.f32.mxu0 0.0
      %681 = vmatmul.mubr.f32.gmra.mrb[0].mxu0 %v499
      %v682 = vpop.f32.mrb[0].mxu0
      %v683 = vadd.f32 0.0, %v682
      %v684 = vpop.f32.mrb[0].mxu0
      %685 = vmatprep.mubr.f32.mxu0 0.0
      %686 = vmatmul.mubr.f32.gmra.mrb[0].mxu0 %v500
      %v687 = vpop.f32.mrb[0].mxu0
      %v688 = vadd.f32 0.0, %v687
      %v689 = vpop.f32.mrb[0].mxu0
      %690 = vmatprep.mubr.f32.mxu0 0.0
      %691 = vmatmul.mubr.f32.gmra.mrb[0].mxu0 %v501
      %v692 = vpop.f32.mrb[0].mxu0
      %v693 = vadd.f32 0.0, %v692
      %v694 = vpop.f32.mrb[0].mxu0
      %695 = vmatprep.mubr.f32.mxu0 0.0
      %696 = vmatmul.mubr.f32.gmra.mrb[0].mxu0 %v502
      %v697 = vpop.f32.mrb[0].mxu0
      %v698 = vadd.f32 0.0, %v697
      %v699 = vpop.f32.mrb[0].mxu0
      %700 = vmatprep.mubr.f32.mxu0 0.0
      %701 = vmatmul.mubr.f32.gmra.mrb[0].mxu0 %v503
      %v702 = vpop.f32.mrb[0].mxu0
      %v703 = vadd.f32 0.0, %v702
      %v704 = vpop.f32.mrb[0].mxu0
      %705 = vmatprep.mubr.f32.mxu0 0.0
      %706 = vmatmul.mubr.f32.gmra.mrb[0].mxu0 %v504
      %v707 = vpop.f32.mrb[0].mxu0
      %v708 = vadd.f32 0.0, %v707
      %v709 = vpop.f32.mrb[0].mxu0
      %710 = vmatprep.mubr.f32.mxu0 0.0
      %711 = vmatmul.mubr.f32.gmra.mrb[0].mxu0 %v505
      %v712 = vpop.f32.mrb[0].mxu0
      %v713 = vadd.f32 0.0, %v712
      %v714 = vpop.f32.mrb[0].mxu0
      %715 = vmatprep.mubr.f32.mxu0 0.0
      %716 = vmatmul.mubr.f32.gmra.mrb[0].mxu0 %v506
      %v717 = vpop.f32.mrb[0].mxu0
      %v718 = vadd.f32 0.0, %v717
      %v719 = vpop.f32.mrb[0].mxu0
      %720 = vmatprep.mubr.f32.mxu0 0.0
      %721 = vmatmul.mubr.f32.gmra.mrb[0].mxu0 %v507
      %v722 = vpop.f32.mrb[0].mxu0
      %v723 = vadd.f32 0.0, %v722
      %v724 = vpop.f32.mrb[0].mxu0
      %725 = vmatprep.mubr.f32.mxu0 0.0
      %726 = vmatmul.mubr.f32.gmra.mrb[0].mxu0 %v508
      %v727 = vpop.f32.mrb[0].mxu0
      %v728 = vadd.f32 0.0, %v727
      %v729 = vpop.f32.mrb[0].mxu0
      %730 = vmatprep.mubr.f32.mxu0 0.0
      %731 = vmatmul.mubr.f32.gmra.mrb[0].mxu0 %v509
      %v732 = vpop.f32.mrb[0].mxu0
      %v733 = vadd.f32 0.0, %v732
      %v734 = vpop.f32.mrb[0].mxu0
      %735 = vmatprep.mubr.f32.mxu0 0.0
      %736 = vmatmul.mubr.f32.gmra.mrb[0].mxu0 %v510
      %v737 = vpop.f32.mrb[0].mxu0
      %v738 = vadd.f32 0.0, %v737
      %v739 = vpop.f32.mrb[0].mxu0
      %740 = vmatprep.mubr.f32.mxu0 0.0
      %741 = vmatmul.mubr.f32.gmra.mrb[0].mxu0 %v511
      %v742 = vpop.f32.mrb[0].mxu0
      %v743 = vadd.f32 0.0, %v742
      %v744 = vpop.f32.mrb[0].mxu0
      %745 = vmatprep.mubr.f32.mxu0 0.0
      %746 = vmatmul.mubr.f32.gmra.mrb[0].mxu0 %v512
      %v747 = vpop.f32.mrb[0].mxu0
      %v748 = vadd.f32 0.0, %v747
      %v749 = vpop.f32.mrb[0].mxu0
      %750 = vmatprep.mubr.f32.mxu0 0.0
      %751 = vmatmul.mubr.f32.gmra.mrb[0].mxu0 %v513
      %v752 = vpop.f32.mrb[0].mxu0
      %v753 = vadd.f32 0.0, %v752
      %v754 = vpop.f32.mrb[0].mxu0
      %755 = vdwg.mxu0
      %756 = vmatprep.subr.mxu0 0.0
      %757 = vmatpush1.msra.mxu0 %v466
      %758 = vmatprep.subr.mxu0 0.0
      %759 = vmatpush1.msra.mxu0 %v467
      %760 = vmatprep.subr.mxu0 0.0
      %761 = vmatpush1.msra.mxu0 %v468
      %762 = vmatprep.subr.mxu0 0.0
      %763 = vmatpush1.msra.mxu0 %v469
      %764 = vmatprep.subr.mxu0 0.0
      %765 = vmatpush1.msra.mxu0 %v470
      %766 = vmatprep.subr.mxu0 0.0
      %767 = vmatpush1.msra.mxu0 %v471
      %768 = vmatprep.subr.mxu0 0.0
      %769 = vmatpush1.msra.mxu0 %v472
      %770 = vmatprep.subr.mxu0 0.0
      %771 = vmatpush1.msra.mxu0 %v473
      %772 = vmatprep.subr.mxu0 0.0
      %773 = vmatpush1.msra.mxu0 %v474
      %774 = vmatprep.subr.mxu0 0.0
      %775 = vmatpush1.msra.mxu0 %v475
      %776 = vmatprep.subr.mxu0 0.0
      %777 = vmatpush1.msra.mxu0 %v476
      %778 = vmatprep.subr.mxu0 0.0
      %779 = vmatpush1.msra.mxu0 %v477
      %780 = vmatprep.subr.mxu0 0.0
      %781 = vmatpush1.msra.mxu0 %v478
      %782 = vmatprep.subr.mxu0 0.0
      %783 = vmatpush1.msra.mxu0 %v479
      %784 = vmatprep.subr.mxu0 0.0
      %785 = vmatpush1.msra.mxu0 %v480
      %786 = vmatprep.subr.mxu0 0.0
      %787 = vmatpush1.msra.mxu0 %v481
      %788 = vmatprep.subr.mxu0 0.0
      %789 = vmatpush1.msra.mxu0 0.0
      %790 = vmatprep.subr.mxu0 0.0
      %791 = vmatpush1.msra.mxu0 0.0
      %792 = vmatprep.subr.mxu0 0.0
      %793 = vmatpush1.msra.mxu0 0.0
      %794 = vmatprep.subr.mxu0 0.0
      %795 = vmatpush1.msra.mxu0 0.0
      %796 = vmatprep.subr.mxu0 0.0
      %797 = vmatpush1.msra.mxu0 0.0
      %798 = vmatprep.subr.mxu0 0.0
      %799 = vmatpush1.msra.mxu0 0.0
      %800 = vmatprep.subr.mxu0 0.0
      %801 = vmatpush1.msra.mxu0 0.0
      %802 = vmatprep.subr.mxu0 0.0
      %803 = vmatpush1.msra.mxu0 0.0
      %804 = vmatprep.subr.mxu0 0.0
      %805 = vmatpush1.msra.mxu0 0.0
      %806 = vmatprep.subr.mxu0 0.0
      %807 = vmatpush1.msra.mxu0 0.0
      %808 = vmatprep.subr.mxu0 0.0
      %809 = vmatpush1.msra.mxu0 0.0
      %810 = vmatprep.subr.mxu0 0.0
      %811 = vmatpush1.msra.mxu0 0.0
      %812 = vmatprep.subr.mxu0 0.0
      %813 = vmatpush1.msra.mxu0 0.0
      %814 = vmatprep.subr.mxu0 0.0
      %815 = vmatpush1.msra.mxu0 0.0
      %816 = vmatprep.subr.mxu0 0.0
      %817 = vmatpush1.msra.mxu0 0.0
      %818 = vmatprep.subr.mxu0 0.0
      %819 = vmatpush1.msra.mxu0 0.0
      %820 = vmatprep.mubr.f32.mxu0 0.0
      %821 = vmatmul.mubr.f32.gmra.mrb[0].mxu0 %v434
      %v822 = vpop.f32.mrb[0].mxu0
      %v823 = vadd.f32 %v598, %v822
      %v824 = vpop.f32.mrb[0].mxu0
      %825 = vmatprep.mubr.f32.mxu0 0.0
      %826 = vmatmul.mubr.f32.gmra.mrb[0].mxu0 %v435
      %v827 = vpop.f32.mrb[0].mxu0
      %v828 = vadd.f32 %v603, %v827
      %v829 = vpop.f32.mrb[0].mxu0
      %830 = vmatprep.mubr.f32.mxu0 0.0
      %831 = vmatmul.mubr.f32.gmra.mrb[0].mxu0 %v436
      %v832 = vpop.f32.mrb[0].mxu0
      %v833 = vadd.f32 %v608, %v832
      %v834 = vpop.f32.mrb[0].mxu0
      %835 = vmatprep.mubr.f32.mxu0 0.0
      %836 = vmatmul.mubr.f32.gmra.mrb[0].mxu0 %v437
      %v837 = vpop.f32.mrb[0].mxu0
      %v838 = vadd.f32 %v613, %v837
      %v839 = vpop.f32.mrb[0].mxu0
      %840 = vmatprep.mubr.f32.mxu0 0.0
      %841 = vmatmul.mubr.f32.gmra.mrb[0].mxu0 %v438
      %v842 = vpop.f32.mrb[0].mxu0
      %v843 = vadd.f32 %v618, %v842
      %v844 = vpop.f32.mrb[0].mxu0
      %845 = vmatprep.mubr.f32.mxu0 0.0
      %846 = vmatmul.mubr.f32.gmra.mrb[0].mxu0 %v439
      %v847 = vpop.f32.mrb[0].mxu0
      %v848 = vadd.f32 %v623, %v847
      %v849 = vpop.f32.mrb[0].mxu0
      %850 = vmatprep.mubr.f32.mxu0 0.0
      %851 = vmatmul.mubr.f32.gmra.mrb[0].mxu0 %v440
      %v852 = vpop.f32.mrb[0].mxu0
      %v853 = vadd.f32 %v628, %v852
      %v854 = vpop.f32.mrb[0].mxu0
      %855 = vmatprep.mubr.f32.mxu0 0.0
      %856 = vmatmul.mubr.f32.gmra.mrb[0].mxu0 %v441
      %v857 = vpop.f32.mrb[0].mxu0
      %v858 = vadd.f32 %v633, %v857
      %v859 = vpop.f32.mrb[0].mxu0
      %860 = vmatprep.mubr.f32.mxu0 0.0
      %861 = vmatmul.mubr.f32.gmra.mrb[0].mxu0 %v442
      %v862 = vpop.f32.mrb[0].mxu0
      %v863 = vadd.f32 %v638, %v862
      %v864 = vpop.f32.mrb[0].mxu0
      %865 = vmatprep.mubr.f32.mxu0 0.0
      %866 = vmatmul.mubr.f32.gmra.mrb[0].mxu0 %v443
      %v867 = vpop.f32.mrb[0].mxu0
      %v868 = vadd.f32 %v643, %v867
      %v869 = vpop.f32.mrb[0].mxu0
      %870 = vmatprep.mubr.f32.mxu0 0.0
      %871 = vmatmul.mubr.f32.gmra.mrb[0].mxu0 %v444
      %v872 = vpop.f32.mrb[0].mxu0
      %v873 = vadd.f32 %v648, %v872
      %v874 = vpop.f32.mrb[0].mxu0
      %875 = vmatprep.mubr.f32.mxu0 0.0
      %876 = vmatmul.mubr.f32.gmra.mrb[0].mxu0 %v445
      %v877 = vpop.f32.mrb[0].mxu0
      %v878 = vadd.f32 %v653, %v877
      %v879 = vpop.f32.mrb[0].mxu0
      %880 = vmatprep.mubr.f32.mxu0 0.0
      %881 = vmatmul.mubr.f32.gmra.mrb[0].mxu0 %v446
      %v882 = vpop.f32.mrb[0].mxu0
      %v883 = vadd.f32 %v658, %v882
      %v884 = vpop.f32.mrb[0].mxu0
      %885 = vmatprep.mubr.f32.mxu0 0.0
      %886 = vmatmul.mubr.f32.gmra.mrb[0].mxu0 %v447
      %v887 = vpop.f32.mrb[0].mxu0
      %v888 = vadd.f32 %v663, %v887
      %v889 = vpop.f32.mrb[0].mxu0
      %890 = vmatprep.mubr.f32.mxu0 0.0
      %891 = vmatmul.mubr.f32.gmra.mrb[0].mxu0 %v448
      %v892 = vpop.f32.mrb[0].mxu0
      %v893 = vadd.f32 %v668, %v892
      %v894 = vpop.f32.mrb[0].mxu0
      %895 = vmatprep.mubr.f32.mxu0 0.0
      %896 = vmatmul.mubr.f32.gmra.mrb[0].mxu0 %v449
      %v897 = vpop.f32.mrb[0].mxu0
      %v898 = vadd.f32 %v673, %v897
      %v899 = vpop.f32.mrb[0].mxu0
      %900 = vmatprep.mubr.f32.mxu0 0.0
      %901 = vmatmul.mubr.f32.gmra.mrb[0].mxu0 %v450
      %v902 = vpop.f32.mrb[0].mxu0
      %v903 = vadd.f32 %v678, %v902
      %v904 = vpop.f32.mrb[0].mxu0
      %905 = vmatprep.mubr.f32.mxu0 0.0
      %906 = vmatmul.mubr.f32.gmra.mrb[0].mxu0 %v451
      %v907 = vpop.f32.mrb[0].mxu0
      %v908 = vadd.f32 %v683, %v907
      %v909 = vpop.f32.mrb[0].mxu0
      %910 = vmatprep.mubr.f32.mxu0 0.0
      %911 = vmatmul.mubr.f32.gmra.mrb[0].mxu0 %v452
      %v912 = vpop.f32.mrb[0].mxu0
      %v913 = vadd.f32 %v688, %v912
      %v914 = vpop.f32.mrb[0].mxu0
      %915 = vmatprep.mubr.f32.mxu0 0.0
      %916 = vmatmul.mubr.f32.gmra.mrb[0].mxu0 %v453
      %v917 = vpop.f32.mrb[0].mxu0
      %v918 = vadd.f32 %v693, %v917
      %v919 = vpop.f32.mrb[0].mxu0
      %920 = vmatprep.mubr.f32.mxu0 0.0
      %921 = vmatmul.mubr.f32.gmra.mrb[0].mxu0 %v454
      %v922 = vpop.f32.mrb[0].mxu0
      %v923 = vadd.f32 %v698, %v922
      %v924 = vpop.f32.mrb[0].mxu0
      %925 = vmatprep.mubr.f32.mxu0 0.0
      %926 = vmatmul.mubr.f32.gmra.mrb[0].mxu0 %v455
      %v927 = vpop.f32.mrb[0].mxu0
      %v928 = vadd.f32 %v703, %v927
      %v929 = vpop.f32.mrb[0].mxu0
      %930 = vmatprep.mubr.f32.mxu0 0.0
      %931 = vmatmul.mubr.f32.gmra.mrb[0].mxu0 %v456
      %v932 = vpop.f32.mrb[0].mxu0
      %v933 = vadd.f32 %v708, %v932
      %v934 = vpop.f32.mrb[0].mxu0
      %935 = vmatprep.mubr.f32.mxu0 0.0
      %936 = vmatmul.mubr.f32.gmra.mrb[0].mxu0 %v457
      %v937 = vpop.f32.mrb[0].mxu0
      %v938 = vadd.f32 %v713, %v937
      %v939 = vpop.f32.mrb[0].mxu0
      %940 = vmatprep.mubr.f32.mxu0 0.0
      %941 = vmatmul.mubr.f32.gmra.mrb[0].mxu0 %v458
      %v942 = vpop.f32.mrb[0].mxu0
      %v943 = vadd.f32 %v718, %v942
      %v944 = vpop.f32.mrb[0].mxu0
      %945 = vmatprep.mubr.f32.mxu0 0.0
      %946 = vmatmul.mubr.f32.gmra.mrb[0].mxu0 %v459
      %v947 = vpop.f32.mrb[0].mxu0
      %v948 = vadd.f32 %v723, %v947
      %v949 = vpop.f32.mrb[0].mxu0
      %950 = vmatprep.mubr.f32.mxu0 0.0
      %951 = vmatmul.mubr.f32.gmra.mrb[0].mxu0 %v460
      %v952 = vpop.f32.mrb[0].mxu0
      %v953 = vadd.f32 %v728, %v952
      %v954 = vpop.f32.mrb[0].mxu0
      %955 = vmatprep.mubr.f32.mxu0 0.0
      %956 = vmatmul.mubr.f32.gmra.mrb[0].mxu0 %v461
      %v957 = vpop.f32.mrb[0].mxu0
      %v958 = vadd.f32 %v733, %v957
      %v959 = vpop.f32.mrb[0].mxu0
      %960 = vmatprep.mubr.f32.mxu0 0.0
      %961 = vmatmul.mubr.f32.gmra.mrb[0].mxu0 %v462
      %v962 = vpop.f32.mrb[0].mxu0
      %v963 = vadd.f32 %v738, %v962
      %v964 = vpop.f32.mrb[0].mxu0
      %965 = vmatprep.mubr.f32.mxu0 0.0
      %966 = vmatmul.mubr.f32.gmra.mrb[0].mxu0 %v463
      %v967 = vpop.f32.mrb[0].mxu0
      %v968 = vadd.f32 %v743, %v967
      %v969 = vpop.f32.mrb[0].mxu0
      %970 = vmatprep.mubr.f32.mxu0 0.0
      %971 = vmatmul.mubr.f32.gmra.mrb[0].mxu0 %v464
      %v972 = vpop.f32.mrb[0].mxu0
      %v973 = vadd.f32 %v748, %v972
      %v974 = vpop.f32.mrb[0].mxu0
      %975 = vmatprep.mubr.f32.mxu0 0.0
      %976 = vmatmul.mubr.f32.gmra.mrb[0].mxu0 %v465
      %v977 = vpop.f32.mrb[0].mxu0
      %v978 = vadd.f32 %v753, %v977
      %v979 = vpop.f32.mrb[0].mxu0
      %980 = vdwg.mxu0
      %v981 = vld [vmem:[#allocation2 + $0x9] sm:$0xff]
      %v982 = vld [vmem:[#allocation2 + $0x11] sm:$0xff]
      %v983 = vld [vmem:[#allocation2 + $0x29] sm:$0xff]
      %v984 = vld [vmem:[#allocation2 + $0x31] sm:$0xff]
      %v985 = vld [vmem:[#allocation2 + $0x49] sm:$0xff]
      %v986 = vld [vmem:[#allocation2 + $0x51] sm:$0xff]
      %v987 = vld [vmem:[#allocation2 + $0x69] sm:$0xff]
      %v988 = vld [vmem:[#allocation2 + $0x71] sm:$0xff]
      %v989 = vld [vmem:[#allocation2 + $0x89] sm:$0xff]
      %v990 = vld [vmem:[#allocation2 + $0x91] sm:$0xff]
      %v991 = vld [vmem:[#allocation2 + $0xa9] sm:$0xff]
      %v992 = vld [vmem:[#allocation2 + $0xb1] sm:$0xff]
      %v993 = vld [vmem:[#allocation2 + $0xc9] sm:$0xff]
      %v994 = vld [vmem:[#allocation2 + $0xd1] sm:$0xff]
      %v995 = vld [vmem:[#allocation2 + $0xe9] sm:$0xff]
      %v996 = vld [vmem:[#allocation2 + $0xf1] sm:$0xff]
      %v997 = vld [vmem:[#allocation2 + $0x109] sm:$0xff]
      %v998 = vld [vmem:[#allocation2 + $0x111] sm:$0xff]
      %v999 = vld [vmem:[#allocation2 + $0x129] sm:$0xff]
      %v1000 = vld [vmem:[#allocation2 + $0x131] sm:$0xff]
      %v1001 = vld [vmem:[#allocation2 + $0x149] sm:$0xff]
      %v1002 = vld [vmem:[#allocation2 + $0x151] sm:$0xff]
      %v1003 = vld [vmem:[#allocation2 + $0x169] sm:$0xff]
      %v1004 = vld [vmem:[#allocation2 + $0x171] sm:$0xff]
      %v1005 = vld [vmem:[#allocation2 + $0x189] sm:$0xff]
      %v1006 = vld [vmem:[#allocation2 + $0x191] sm:$0xff]
      %v1007 = vld [vmem:[#allocation2 + $0x1a9] sm:$0xff]
      %v1008 = vld [vmem:[#allocation2 + $0x1b1] sm:$0xff]
      %v1009 = vld [vmem:[#allocation2 + $0x1c9] sm:$0xff]
      %v1010 = vld [vmem:[#allocation2 + $0x1d1] sm:$0xff]
      %v1011 = vld [vmem:[#allocation2 + $0x1e9] sm:$0xff]
      %v1012 = vld [vmem:[#allocation2 + $0x1f1] sm:$0xff]
      %s1013 = scalar_lea.vmem %s1, 256
      %v1014 = vld [vmem:[%s1013] sm:$0xff]
      %v1015 = vld [vmem:[%s1013 + $0x8] sm:$0xff]
      %v1016 = vld [vmem:[%s1013 + $0x10] sm:$0xff]
      %v1017 = vld [vmem:[%s1013 + $0x18] sm:$0xff]
      %v1018 = vld [vmem:[%s1013 + $0x20] sm:$0xff]
      %v1019 = vld [vmem:[%s1013 + $0x28] sm:$0xff]
      %v1020 = vld [vmem:[%s1013 + $0x30] sm:$0xff]
      %v1021 = vld [vmem:[%s1013 + $0x38] sm:$0xff]
      %v1022 = vld [vmem:[%s1013 + $0x40] sm:$0xff]
      %v1023 = vld [vmem:[%s1013 + $0x48] sm:$0xff]
      %v1024 = vld [vmem:[%s1013 + $0x50] sm:$0xff]
      %v1025 = vld [vmem:[%s1013 + $0x58] sm:$0xff]
      %v1026 = vld [vmem:[%s1013 + $0x60] sm:$0xff]
      %v1027 = vld [vmem:[%s1013 + $0x68] sm:$0xff]
      %v1028 = vld [vmem:[%s1013 + $0x70] sm:$0xff]
      %v1029 = vld [vmem:[%s1013 + $0x78] sm:$0xff]
      %1030 = vmatprep.subr.mxu0 0.0
      %1031 = vmatpush1.msra.mxu0 %v1014
      %1032 = vmatprep.subr.mxu0 0.0
      %1033 = vmatpush1.msra.mxu0 %v1015
      %1034 = vmatprep.subr.mxu0 0.0
      %1035 = vmatpush1.msra.mxu0 %v1016
      %1036 = vmatprep.subr.mxu0 0.0
      %1037 = vmatpush1.msra.mxu0 %v1017
      %1038 = vmatprep.subr.mxu0 0.0
      %1039 = vmatpush1.msra.mxu0 %v1018
      %1040 = vmatprep.subr.mxu0 0.0
      %1041 = vmatpush1.msra.mxu0 %v1019
      %1042 = vmatprep.subr.mxu0 0.0
      %1043 = vmatpush1.msra.mxu0 %v1020
      %1044 = vmatprep.subr.mxu0 0.0
      %1045 = vmatpush1.msra.mxu0 %v1021
      %1046 = vmatprep.subr.mxu0 0.0
      %1047 = vmatpush1.msra.mxu0 %v1022
      %1048 = vmatprep.subr.mxu0 0.0
      %1049 = vmatpush1.msra.mxu0 %v1023
      %1050 = vmatprep.subr.mxu0 0.0
      %1051 = vmatpush1.msra.mxu0 %v1024
      %1052 = vmatprep.subr.mxu0 0.0
      %1053 = vmatpush1.msra.mxu0 %v1025
      %1054 = vmatprep.subr.mxu0 0.0
      %1055 = vmatpush1.msra.mxu0 %v1026
      %1056 = vmatprep.subr.mxu0 0.0
      %1057 = vmatpush1.msra.mxu0 %v1027
      %1058 = vmatprep.subr.mxu0 0.0
      %1059 = vmatpush1.msra.mxu0 %v1028
      %1060 = vmatprep.subr.mxu0 0.0
      %1061 = vmatpush1.msra.mxu0 %v1029
      %1062 = vmatprep.subr.mxu0 0.0
      %1063 = vmatpush1.msra.mxu0 0.0
      %1064 = vmatprep.subr.mxu0 0.0
      %1065 = vmatpush1.msra.mxu0 0.0
      %1066 = vmatprep.subr.mxu0 0.0
      %1067 = vmatpush1.msra.mxu0 0.0
      %1068 = vmatprep.subr.mxu0 0.0
      %1069 = vmatpush1.msra.mxu0 0.0
      %1070 = vmatprep.subr.mxu0 0.0
      %1071 = vmatpush1.msra.mxu0 0.0
      %1072 = vmatprep.subr.mxu0 0.0
      %1073 = vmatpush1.msra.mxu0 0.0
      %1074 = vmatprep.subr.mxu0 0.0
      %1075 = vmatpush1.msra.mxu0 0.0
      %1076 = vmatprep.subr.mxu0 0.0
      %1077 = vmatpush1.msra.mxu0 0.0
      %1078 = vmatprep.subr.mxu0 0.0
      %1079 = vmatpush1.msra.mxu0 0.0
      %1080 = vmatprep.subr.mxu0 0.0
      %1081 = vmatpush1.msra.mxu0 0.0
      %1082 = vmatprep.subr.mxu0 0.0
      %1083 = vmatpush1.msra.mxu0 0.0
      %1084 = vmatprep.subr.mxu0 0.0
      %1085 = vmatpush1.msra.mxu0 0.0
      %1086 = vmatprep.subr.mxu0 0.0
      %1087 = vmatpush1.msra.mxu0 0.0
      %1088 = vmatprep.subr.mxu0 0.0
      %1089 = vmatpush1.msra.mxu0 0.0
      %1090 = vmatprep.subr.mxu0 0.0
      %1091 = vmatpush1.msra.mxu0 0.0
      %1092 = vmatprep.subr.mxu0 0.0
      %1093 = vmatpush1.msra.mxu0 0.0
      %1094 = vmatprep.mubr.f32.mxu0 0.0
      %1095 = vmatmul.mubr.f32.gmra.mrb[0].mxu0 %v981
      %v1096 = vpop.f32.mrb[0].mxu0
      %v1097 = vadd.f32 0.0, %v1096
      %v1098 = vpop.f32.mrb[0].mxu0
      %1099 = vmatprep.mubr.f32.mxu0 0.0
      %1100 = vmatmul.mubr.f32.gmra.mrb[0].mxu0 %v982
      %v1101 = vpop.f32.mrb[0].mxu0
      %v1102 = vadd.f32 0.0, %v1101
      %v1103 = vpop.f32.mrb[0].mxu0
      %1104 = vmatprep.mubr.f32.mxu0 0.0
      %1105 = vmatmul.mubr.f32.gmra.mrb[0].mxu0 %v983
      %v1106 = vpop.f32.mrb[0].mxu0
      %v1107 = vadd.f32 0.0, %v1106
      %v1108 = vpop.f32.mrb[0].mxu0
      %1109 = vmatprep.mubr.f32.mxu0 0.0
      %1110 = vmatmul.mubr.f32.gmra.mrb[0].mxu0 %v984
      %v1111 = vpop.f32.mrb[0].mxu0
      %v1112 = vadd.f32 0.0, %v1111
      %v1113 = vpop.f32.mrb[0].mxu0
      %1114 = vmatprep.mubr.f32.mxu0 0.0
      %1115 = vmatmul.mubr.f32.gmra.mrb[0].mxu0 %v985
      %v1116 = vpop.f32.mrb[0].mxu0
      %v1117 = vadd.f32 0.0, %v1116
      %v1118 = vpop.f32.mrb[0].mxu0
      %1119 = vmatprep.mubr.f32.mxu0 0.0
      %1120 = vmatmul.mubr.f32.gmra.mrb[0].mxu0 %v986
      %v1121 = vpop.f32.mrb[0].mxu0
      %v1122 = vadd.f32 0.0, %v1121
      %v1123 = vpop.f32.mrb[0].mxu0
      %1124 = vmatprep.mubr.f32.mxu0 0.0
      %1125 = vmatmul.mubr.f32.gmra.mrb[0].mxu0 %v987
      %v1126 = vpop.f32.mrb[0].mxu0
      %v1127 = vadd.f32 0.0, %v1126
      %v1128 = vpop.f32.mrb[0].mxu0
      %1129 = vmatprep.mubr.f32.mxu0 0.0
      %1130 = vmatmul.mubr.f32.gmra.mrb[0].mxu0 %v988
      %v1131 = vpop.f32.mrb[0].mxu0
      %v1132 = vadd.f32 0.0, %v1131
      %v1133 = vpop.f32.mrb[0].mxu0
      %1134 = vmatprep.mubr.f32.mxu0 0.0
      %1135 = vmatmul.mubr.f32.gmra.mrb[0].mxu0 %v989
      %v1136 = vpop.f32.mrb[0].mxu0
      %v1137 = vadd.f32 0.0, %v1136
      %v1138 = vpop.f32.mrb[0].mxu0
      %1139 = vmatprep.mubr.f32.mxu0 0.0
      %1140 = vmatmul.mubr.f32.gmra.mrb[0].mxu0 %v990
      %v1141 = vpop.f32.mrb[0].mxu0
      %v1142 = vadd.f32 0.0, %v1141
      %v1143 = vpop.f32.mrb[0].mxu0
      %1144 = vmatprep.mubr.f32.mxu0 0.0
      %1145 = vmatmul.mubr.f32.gmra.mrb[0].mxu0 %v991
      %v1146 = vpop.f32.mrb[0].mxu0
      %v1147 = vadd.f32 0.0, %v1146
      %v1148 = vpop.f32.mrb[0].mxu0
      %1149 = vmatprep.mubr.f32.mxu0 0.0
      %1150 = vmatmul.mubr.f32.gmra.mrb[0].mxu0 %v992
      %v1151 = vpop.f32.mrb[0].mxu0
      %v1152 = vadd.f32 0.0, %v1151
      %v1153 = vpop.f32.mrb[0].mxu0
      %1154 = vmatprep.mubr.f32.mxu0 0.0
      %1155 = vmatmul.mubr.f32.gmra.mrb[0].mxu0 %v993
      %v1156 = vpop.f32.mrb[0].mxu0
      %v1157 = vadd.f32 0.0, %v1156
      %v1158 = vpop.f32.mrb[0].mxu0
      %1159 = vmatprep.mubr.f32.mxu0 0.0
      %1160 = vmatmul.mubr.f32.gmra.mrb[0].mxu0 %v994
      %v1161 = vpop.f32.mrb[0].mxu0
      %v1162 = vadd.f32 0.0, %v1161
      %v1163 = vpop.f32.mrb[0].mxu0
      %1164 = vmatprep.mubr.f32.mxu0 0.0
      %1165 = vmatmul.mubr.f32.gmra.mrb[0].mxu0 %v995
      %v1166 = vpop.f32.mrb[0].mxu0
      %v1167 = vadd.f32 0.0, %v1166
      %v1168 = vpop.f32.mrb[0].mxu0
      %1169 = vmatprep.mubr.f32.mxu0 0.0
      %1170 = vmatmul.mubr.f32.gmra.mrb[0].mxu0 %v996
      %v1171 = vpop.f32.mrb[0].mxu0
      %v1172 = vadd.f32 0.0, %v1171
      %v1173 = vpop.f32.mrb[0].mxu0
      %1174 = vmatprep.mubr.f32.mxu0 0.0
      %1175 = vmatmul.mubr.f32.gmra.mrb[0].mxu0 %v997
      %v1176 = vpop.f32.mrb[0].mxu0
      %v1177 = vadd.f32 0.0, %v1176
      %v1178 = vpop.f32.mrb[0].mxu0
      %1179 = vmatprep.mubr.f32.mxu0 0.0
      %1180 = vmatmul.mubr.f32.gmra.mrb[0].mxu0 %v998
      %v1181 = vpop.f32.mrb[0].mxu0
      %v1182 = vadd.f32 0.0, %v1181
      %v1183 = vpop.f32.mrb[0].mxu0
      %1184 = vmatprep.mubr.f32.mxu0 0.0
      %1185 = vmatmul.mubr.f32.gmra.mrb[0].mxu0 %v999
      %v1186 = vpop.f32.mrb[0].mxu0
      %v1187 = vadd.f32 0.0, %v1186
      %v1188 = vpop.f32.mrb[0].mxu0
      %1189 = vmatprep.mubr.f32.mxu0 0.0
      %1190 = vmatmul.mubr.f32.gmra.mrb[0].mxu0 %v1000
      %v1191 = vpop.f32.mrb[0].mxu0
      %v1192 = vadd.f32 0.0, %v1191
      %v1193 = vpop.f32.mrb[0].mxu0
      %1194 = vmatprep.mubr.f32.mxu0 0.0
      %1195 = vmatmul.mubr.f32.gmra.mrb[0].mxu0 %v1001
      %v1196 = vpop.f32.mrb[0].mxu0
      %v1197 = vadd.f32 0.0, %v1196
      %v1198 = vpop.f32.mrb[0].mxu0
      %1199 = vmatprep.mubr.f32.mxu0 0.0
      %1200 = vmatmul.mubr.f32.gmra.mrb[0].mxu0 %v1002
      %v1201 = vpop.f32.mrb[0].mxu0
      %v1202 = vadd.f32 0.0, %v1201
      %v1203 = vpop.f32.mrb[0].mxu0
      %1204 = vmatprep.mubr.f32.mxu0 0.0
      %1205 = vmatmul.mubr.f32.gmra.mrb[0].mxu0 %v1003
      %v1206 = vpop.f32.mrb[0].mxu0
      %v1207 = vadd.f32 0.0, %v1206
      %v1208 = vpop.f32.mrb[0].mxu0
      %1209 = vmatprep.mubr.f32.mxu0 0.0
      %1210 = vmatmul.mubr.f32.gmra.mrb[0].mxu0 %v1004
      %v1211 = vpop.f32.mrb[0].mxu0
      %v1212 = vadd.f32 0.0, %v1211
      %v1213 = vpop.f32.mrb[0].mxu0
      %1214 = vmatprep.mubr.f32.mxu0 0.0
      %1215 = vmatmul.mubr.f32.gmra.mrb[0].mxu0 %v1005
      %v1216 = vpop.f32.mrb[0].mxu0
      %v1217 = vadd.f32 0.0, %v1216
      %v1218 = vpop.f32.mrb[0].mxu0
      %1219 = vmatprep.mubr.f32.mxu0 0.0
      %1220 = vmatmul.mubr.f32.gmra.mrb[0].mxu0 %v1006
      %v1221 = vpop.f32.mrb[0].mxu0
      %v1222 = vadd.f32 0.0, %v1221
      %v1223 = vpop.f32.mrb[0].mxu0
      %1224 = vmatprep.mubr.f32.mxu0 0.0
      %1225 = vmatmul.mubr.f32.gmra.mrb[0].mxu0 %v1007
      %v1226 = vpop.f32.mrb[0].mxu0
      %v1227 = vadd.f32 0.0, %v1226
      %v1228 = vpop.f32.mrb[0].mxu0
      %1229 = vmatprep.mubr.f32.mxu0 0.0
      %1230 = vmatmul.mubr.f32.gmra.mrb[0].mxu0 %v1008
      %v1231 = vpop.f32.mrb[0].mxu0
      %v1232 = vadd.f32 0.0, %v1231
      %v1233 = vpop.f32.mrb[0].mxu0
      %1234 = vmatprep.mubr.f32.mxu0 0.0
      %1235 = vmatmul.mubr.f32.gmra.mrb[0].mxu0 %v1009
      %v1236 = vpop.f32.mrb[0].mxu0
      %v1237 = vadd.f32 0.0, %v1236
      %v1238 = vpop.f32.mrb[0].mxu0
      %1239 = vmatprep.mubr.f32.mxu0 0.0
      %1240 = vmatmul.mubr.f32.gmra.mrb[0].mxu0 %v1010
      %v1241 = vpop.f32.mrb[0].mxu0
      %v1242 = vadd.f32 0.0, %v1241
      %v1243 = vpop.f32.mrb[0].mxu0
      %1244 = vmatprep.mubr.f32.mxu0 0.0
      %1245 = vmatmul.mubr.f32.gmra.mrb[0].mxu0 %v1011
      %v1246 = vpop.f32.mrb[0].mxu0
      %v1247 = vadd.f32 0.0, %v1246
      %v1248 = vpop.f32.mrb[0].mxu0
      %1249 = vmatprep.mubr.f32.mxu0 0.0
      %1250 = vmatmul.mubr.f32.gmra.mrb[0].mxu0 %v1012
      %v1251 = vpop.f32.mrb[0].mxu0
      %v1252 = vadd.f32 0.0, %v1251
      %v1253 = vpop.f32.mrb[0].mxu0
      %1254 = vdwg.mxu0
      %v1255 = vadd.f32 %v823, %v1097
      %v1256 = vadd.f32 %v828, %v1102
      %v1257 = vadd.f32 %v833, %v1107
      %v1258 = vadd.f32 %v838, %v1112
      %v1259 = vadd.f32 %v843, %v1117
      %v1260 = vadd.f32 %v848, %v1122
      %v1261 = vadd.f32 %v853, %v1127
      %v1262 = vadd.f32 %v858, %v1132
      %v1263 = vadd.f32 %v863, %v1137
      %v1264 = vadd.f32 %v868, %v1142
      %v1265 = vadd.f32 %v873, %v1147
      %v1266 = vadd.f32 %v878, %v1152
      %v1267 = vadd.f32 %v883, %v1157
      %v1268 = vadd.f32 %v888, %v1162
      %v1269 = vadd.f32 %v893, %v1167
      %v1270 = vadd.f32 %v898, %v1172
      %v1271 = vadd.f32 %v903, %v1177
      %v1272 = vadd.f32 %v908, %v1182
      %v1273 = vadd.f32 %v913, %v1187
      %v1274 = vadd.f32 %v918, %v1192
      %v1275 = vadd.f32 %v923, %v1197
      %v1276 = vadd.f32 %v928, %v1202
      %v1277 = vadd.f32 %v933, %v1207
      %v1278 = vadd.f32 %v938, %v1212
      %v1279 = vadd.f32 %v943, %v1217
      %v1280 = vadd.f32 %v948, %v1222
      %v1281 = vadd.f32 %v953, %v1227
      %v1282 = vadd.f32 %v958, %v1232
      %v1283 = vadd.f32 %v963, %v1237
      %v1284 = vadd.f32 %v968, %v1242
      %v1285 = vadd.f32 %v973, %v1247
      %v1286 = vadd.f32 %v978, %v1252
      %v1287 = vld [vmem:[%s401 + $0x7] sm:$0xff]
      %v1288 = vld [vmem:[%s401 + $0xf] sm:$0xff]
      %v1289 = vld [vmem:[%s401 + $0x27] sm:$0xff]
      %v1290 = vld [vmem:[%s401 + $0x2f] sm:$0xff]
      %v1291 = vld [vmem:[%s401 + $0x47] sm:$0xff]
      %v1292 = vld [vmem:[%s401 + $0x4f] sm:$0xff]
      %v1293 = vld [vmem:[%s401 + $0x67] sm:$0xff]
      %v1294 = vld [vmem:[%s401 + $0x6f] sm:$0xff]
      %v1295 = vld [vmem:[%s401 + $0x87] sm:$0xff]
      %v1296 = vld [vmem:[%s401 + $0x8f] sm:$0xff]
      %v1297 = vld [vmem:[%s401 + $0xa7] sm:$0xff]
      %v1298 = vld [vmem:[%s401 + $0xaf] sm:$0xff]
      %v1299 = vld [vmem:[%s401 + $0xc7] sm:$0xff]
      %v1300 = vld [vmem:[%s401 + $0xcf] sm:$0xff]
      %v1301 = vld [vmem:[%s401 + $0xe7] sm:$0xff]
      %v1302 = vld [vmem:[%s401 + $0xef] sm:$0xff]
      %v1303 = vld [vmem:[%s401 + $0x107] sm:$0xff]
      %v1304 = vld [vmem:[%s401 + $0x10f] sm:$0xff]
      %v1305 = vld [vmem:[%s401 + $0x127] sm:$0xff]
      %v1306 = vld [vmem:[%s401 + $0x12f] sm:$0xff]
      %v1307 = vld [vmem:[%s401 + $0x147] sm:$0xff]
      %v1308 = vld [vmem:[%s401 + $0x14f] sm:$0xff]
      %v1309 = vld [vmem:[%s401 + $0x167] sm:$0xff]
      %v1310 = vld [vmem:[%s401 + $0x16f] sm:$0xff]
      %v1311 = vld [vmem:[%s401 + $0x187] sm:$0xff]
      %v1312 = vld [vmem:[%s401 + $0x18f] sm:$0xff]
      %v1313 = vld [vmem:[%s401 + $0x1a7] sm:$0xff]
      %v1314 = vld [vmem:[%s401 + $0x1af] sm:$0xff]
      %v1315 = vld [vmem:[%s401 + $0x1c7] sm:$0xff]
      %v1316 = vld [vmem:[%s401 + $0x1cf] sm:$0xff]
      %v1317 = vld [vmem:[%s401 + $0x1e7] sm:$0xff]
      %v1318 = vld [vmem:[%s401 + $0x1ef] sm:$0xff]
      %s1319 = scalar_lea.vmem %s1, 384
      %v1320 = vld [vmem:[%s1319] sm:$0xff]
      %v1321 = vld [vmem:[%s1319 + $0x8] sm:$0xff]
      %v1322 = vld [vmem:[%s1319 + $0x10] sm:$0xff]
      %v1323 = vld [vmem:[%s1319 + $0x18] sm:$0xff]
      %v1324 = vld [vmem:[%s1319 + $0x20] sm:$0xff]
      %v1325 = vld [vmem:[%s1319 + $0x28] sm:$0xff]
      %v1326 = vld [vmem:[%s1319 + $0x30] sm:$0xff]
      %v1327 = vld [vmem:[%s1319 + $0x38] sm:$0xff]
      %v1328 = vld [vmem:[%s1319 + $0x40] sm:$0xff]
      %v1329 = vld [vmem:[%s1319 + $0x48] sm:$0xff]
      %v1330 = vld [vmem:[%s1319 + $0x50] sm:$0xff]
      %v1331 = vld [vmem:[%s1319 + $0x58] sm:$0xff]
      %v1332 = vld [vmem:[%s1319 + $0x60] sm:$0xff]
      %v1333 = vld [vmem:[%s1319 + $0x68] sm:$0xff]
      %v1334 = vld [vmem:[%s1319 + $0x70] sm:$0xff]
      %v1335 = vld [vmem:[%s1319 + $0x78] sm:$0xff]
      %1336 = vmatprep.subr.mxu0 0.0
      %1337 = vmatpush1.msra.mxu0 %v1320
      %1338 = vmatprep.subr.mxu0 0.0
      %1339 = vmatpush1.msra.mxu0 %v1321
      %1340 = vmatprep.subr.mxu0 0.0
      %1341 = vmatpush1.msra.mxu0 %v1322
      %1342 = vmatprep.subr.mxu0 0.0
      %1343 = vmatpush1.msra.mxu0 %v1323
      %1344 = vmatprep.subr.mxu0 0.0
      %1345 = vmatpush1.msra.mxu0 %v1324
      %1346 = vmatprep.subr.mxu0 0.0
      %1347 = vmatpush1.msra.mxu0 %v1325
      %1348 = vmatprep.subr.mxu0 0.0
      %1349 = vmatpush1.msra.mxu0 %v1326
      %1350 = vmatprep.subr.mxu0 0.0
      %1351 = vmatpush1.msra.mxu0 %v1327
      %1352 = vmatprep.subr.mxu0 0.0
      %1353 = vmatpush1.msra.mxu0 %v1328
      %1354 = vmatprep.subr.mxu0 0.0
      %1355 = vmatpush1.msra.mxu0 %v1329
      %1356 = vmatprep.subr.mxu0 0.0
      %1357 = vmatpush1.msra.mxu0 %v1330
      %1358 = vmatprep.subr.mxu0 0.0
      %1359 = vmatpush1.msra.mxu0 %v1331
      %1360 = vmatprep.subr.mxu0 0.0
      %1361 = vmatpush1.msra.mxu0 %v1332
      %1362 = vmatprep.subr.mxu0 0.0
      %1363 = vmatpush1.msra.mxu0 %v1333
      %1364 = vmatprep.subr.mxu0 0.0
      %1365 = vmatpush1.msra.mxu0 %v1334
      %1366 = vmatprep.subr.mxu0 0.0
      %1367 = vmatpush1.msra.mxu0 %v1335
      %1368 = vmatprep.subr.mxu0 0.0
      %1369 = vmatpush1.msra.mxu0 0.0
      %1370 = vmatprep.subr.mxu0 0.0
      %1371 = vmatpush1.msra.mxu0 0.0
      %1372 = vmatprep.subr.mxu0 0.0
      %1373 = vmatpush1.msra.mxu0 0.0
      %1374 = vmatprep.subr.mxu0 0.0
      %1375 = vmatpush1.msra.mxu0 0.0
      %1376 = vmatprep.subr.mxu0 0.0
      %1377 = vmatpush1.msra.mxu0 0.0
      %1378 = vmatprep.subr.mxu0 0.0
      %1379 = vmatpush1.msra.mxu0 0.0
      %1380 = vmatprep.subr.mxu0 0.0
      %1381 = vmatpush1.msra.mxu0 0.0
      %1382 = vmatprep.subr.mxu0 0.0
      %1383 = vmatpush1.msra.mxu0 0.0
      %1384 = vmatprep.subr.mxu0 0.0
      %1385 = vmatpush1.msra.mxu0 0.0
      %1386 = vmatprep.subr.mxu0 0.0
      %1387 = vmatpush1.msra.mxu0 0.0
      %1388 = vmatprep.subr.mxu0 0.0
      %1389 = vmatpush1.msra.mxu0 0.0
      %1390 = vmatprep.subr.mxu0 0.0
      %1391 = vmatpush1.msra.mxu0 0.0
      %1392 = vmatprep.subr.mxu0 0.0
      %1393 = vmatpush1.msra.mxu0 0.0
      %1394 = vmatprep.subr.mxu0 0.0
      %1395 = vmatpush1.msra.mxu0 0.0
      %1396 = vmatprep.subr.mxu0 0.0
      %1397 = vmatpush1.msra.mxu0 0.0
      %1398 = vmatprep.subr.mxu0 0.0
      %1399 = vmatpush1.msra.mxu0 0.0
      %1400 = vmatprep.mubr.f32.mxu0 0.0
      %1401 = vmatmul.mubr.f32.gmra.mrb[0].mxu0 %v1287
      %v1402 = vpop.f32.mrb[0].mxu0
      %v1403 = vadd.f32 0.0, %v1402
      %v1404 = vpop.f32.mrb[0].mxu0
      %1405 = vmatprep.mubr.f32.mxu0 0.0
      %1406 = vmatmul.mubr.f32.gmra.mrb[0].mxu0 %v1288
      %v1407 = vpop.f32.mrb[0].mxu0
      %v1408 = vadd.f32 0.0, %v1407
      %v1409 = vpop.f32.mrb[0].mxu0
      %1410 = vmatprep.mubr.f32.mxu0 0.0
      %1411 = vmatmul.mubr.f32.gmra.mrb[0].mxu0 %v1289
      %v1412 = vpop.f32.mrb[0].mxu0
      %v1413 = vadd.f32 0.0, %v1412
      %v1414 = vpop.f32.mrb[0].mxu0
      %1415 = vmatprep.mubr.f32.mxu0 0.0
      %1416 = vmatmul.mubr.f32.gmra.mrb[0].mxu0 %v1290
      %v1417 = vpop.f32.mrb[0].mxu0
      %v1418 = vadd.f32 0.0, %v1417
      %v1419 = vpop.f32.mrb[0].mxu0
      %1420 = vmatprep.mubr.f32.mxu0 0.0
      %1421 = vmatmul.mubr.f32.gmra.mrb[0].mxu0 %v1291
      %v1422 = vpop.f32.mrb[0].mxu0
      %v1423 = vadd.f32 0.0, %v1422
      %v1424 = vpop.f32.mrb[0].mxu0
      %1425 = vmatprep.mubr.f32.mxu0 0.0
      %1426 = vmatmul.mubr.f32.gmra.mrb[0].mxu0 %v1292
      %v1427 = vpop.f32.mrb[0].mxu0
      %v1428 = vadd.f32 0.0, %v1427
      %v1429 = vpop.f32.mrb[0].mxu0
      %1430 = vmatprep.mubr.f32.mxu0 0.0
      %1431 = vmatmul.mubr.f32.gmra.mrb[0].mxu0 %v1293
      %v1432 = vpop.f32.mrb[0].mxu0
      %v1433 = vadd.f32 0.0, %v1432
      %v1434 = vpop.f32.mrb[0].mxu0
      %1435 = vmatprep.mubr.f32.mxu0 0.0
      %1436 = vmatmul.mubr.f32.gmra.mrb[0].mxu0 %v1294
      %v1437 = vpop.f32.mrb[0].mxu0
      %v1438 = vadd.f32 0.0, %v1437
      %v1439 = vpop.f32.mrb[0].mxu0
      %1440 = vmatprep.mubr.f32.mxu0 0.0
      %1441 = vmatmul.mubr.f32.gmra.mrb[0].mxu0 %v1295
      %v1442 = vpop.f32.mrb[0].mxu0
      %v1443 = vadd.f32 0.0, %v1442
      %v1444 = vpop.f32.mrb[0].mxu0
      %1445 = vmatprep.mubr.f32.mxu0 0.0
      %1446 = vmatmul.mubr.f32.gmra.mrb[0].mxu0 %v1296
      %v1447 = vpop.f32.mrb[0].mxu0
      %v1448 = vadd.f32 0.0, %v1447
      %v1449 = vpop.f32.mrb[0].mxu0
      %1450 = vmatprep.mubr.f32.mxu0 0.0
      %1451 = vmatmul.mubr.f32.gmra.mrb[0].mxu0 %v1297
      %v1452 = vpop.f32.mrb[0].mxu0
      %v1453 = vadd.f32 0.0, %v1452
      %v1454 = vpop.f32.mrb[0].mxu0
      %1455 = vmatprep.mubr.f32.mxu0 0.0
      %1456 = vmatmul.mubr.f32.gmra.mrb[0].mxu0 %v1298
      %v1457 = vpop.f32.mrb[0].mxu0
      %v1458 = vadd.f32 0.0, %v1457
      %v1459 = vpop.f32.mrb[0].mxu0
      %1460 = vmatprep.mubr.f32.mxu0 0.0
      %1461 = vmatmul.mubr.f32.gmra.mrb[0].mxu0 %v1299
      %v1462 = vpop.f32.mrb[0].mxu0
      %v1463 = vadd.f32 0.0, %v1462
      %v1464 = vpop.f32.mrb[0].mxu0
      %1465 = vmatprep.mubr.f32.mxu0 0.0
      %1466 = vmatmul.mubr.f32.gmra.mrb[0].mxu0 %v1300
      %v1467 = vpop.f32.mrb[0].mxu0
      %v1468 = vadd.f32 0.0, %v1467
      %v1469 = vpop.f32.mrb[0].mxu0
      %1470 = vmatprep.mubr.f32.mxu0 0.0
      %1471 = vmatmul.mubr.f32.gmra.mrb[0].mxu0 %v1301
      %v1472 = vpop.f32.mrb[0].mxu0
      %v1473 = vadd.f32 0.0, %v1472
      %v1474 = vpop.f32.mrb[0].mxu0
      %1475 = vmatprep.mubr.f32.mxu0 0.0
      %1476 = vmatmul.mubr.f32.gmra.mrb[0].mxu0 %v1302
      %v1477 = vpop.f32.mrb[0].mxu0
      %v1478 = vadd.f32 0.0, %v1477
      %v1479 = vpop.f32.mrb[0].mxu0
      %1480 = vmatprep.mubr.f32.mxu0 0.0
      %1481 = vmatmul.mubr.f32.gmra.mrb[0].mxu0 %v1303
      %v1482 = vpop.f32.mrb[0].mxu0
      %v1483 = vadd.f32 0.0, %v1482
      %v1484 = vpop.f32.mrb[0].mxu0
      %1485 = vmatprep.mubr.f32.mxu0 0.0
      %1486 = vmatmul.mubr.f32.gmra.mrb[0].mxu0 %v1304
      %v1487 = vpop.f32.mrb[0].mxu0
      %v1488 = vadd.f32 0.0, %v1487
      %v1489 = vpop.f32.mrb[0].mxu0
      %1490 = vmatprep.mubr.f32.mxu0 0.0
      %1491 = vmatmul.mubr.f32.gmra.mrb[0].mxu0 %v1305
      %v1492 = vpop.f32.mrb[0].mxu0
      %v1493 = vadd.f32 0.0, %v1492
      %v1494 = vpop.f32.mrb[0].mxu0
      %1495 = vmatprep.mubr.f32.mxu0 0.0
      %1496 = vmatmul.mubr.f32.gmra.mrb[0].mxu0 %v1306
      %v1497 = vpop.f32.mrb[0].mxu0
      %v1498 = vadd.f32 0.0, %v1497
      %v1499 = vpop.f32.mrb[0].mxu0
      %1500 = vmatprep.mubr.f32.mxu0 0.0
      %1501 = vmatmul.mubr.f32.gmra.mrb[0].mxu0 %v1307
      %v1502 = vpop.f32.mrb[0].mxu0
      %v1503 = vadd.f32 0.0, %v1502
      %v1504 = vpop.f32.mrb[0].mxu0
      %1505 = vmatprep.mubr.f32.mxu0 0.0
      %1506 = vmatmul.mubr.f32.gmra.mrb[0].mxu0 %v1308
      %v1507 = vpop.f32.mrb[0].mxu0
      %v1508 = vadd.f32 0.0, %v1507
      %v1509 = vpop.f32.mrb[0].mxu0
      %1510 = vmatprep.mubr.f32.mxu0 0.0
      %1511 = vmatmul.mubr.f32.gmra.mrb[0].mxu0 %v1309
      %v1512 = vpop.f32.mrb[0].mxu0
      %v1513 = vadd.f32 0.0, %v1512
      %v1514 = vpop.f32.mrb[0].mxu0
      %1515 = vmatprep.mubr.f32.mxu0 0.0
      %1516 = vmatmul.mubr.f32.gmra.mrb[0].mxu0 %v1310
      %v1517 = vpop.f32.mrb[0].mxu0
      %v1518 = vadd.f32 0.0, %v1517
      %v1519 = vpop.f32.mrb[0].mxu0
      %1520 = vmatprep.mubr.f32.mxu0 0.0
      %1521 = vmatmul.mubr.f32.gmra.mrb[0].mxu0 %v1311
      %v1522 = vpop.f32.mrb[0].mxu0
      %v1523 = vadd.f32 0.0, %v1522
      %v1524 = vpop.f32.mrb[0].mxu0
      %1525 = vmatprep.mubr.f32.mxu0 0.0
      %1526 = vmatmul.mubr.f32.gmra.mrb[0].mxu0 %v1312
      %v1527 = vpop.f32.mrb[0].mxu0
      %v1528 = vadd.f32 0.0, %v1527
      %v1529 = vpop.f32.mrb[0].mxu0
      %1530 = vmatprep.mubr.f32.mxu0 0.0
      %1531 = vmatmul.mubr.f32.gmra.mrb[0].mxu0 %v1313
      %v1532 = vpop.f32.mrb[0].mxu0
      %v1533 = vadd.f32 0.0, %v1532
      %v1534 = vpop.f32.mrb[0].mxu0
      %1535 = vmatprep.mubr.f32.mxu0 0.0
      %1536 = vmatmul.mubr.f32.gmra.mrb[0].mxu0 %v1314
      %v1537 = vpop.f32.mrb[0].mxu0
      %v1538 = vadd.f32 0.0, %v1537
      %v1539 = vpop.f32.mrb[0].mxu0
      %1540 = vmatprep.mubr.f32.mxu0 0.0
      %1541 = vmatmul.mubr.f32.gmra.mrb[0].mxu0 %v1315
      %v1542 = vpop.f32.mrb[0].mxu0
      %v1543 = vadd.f32 0.0, %v1542
      %v1544 = vpop.f32.mrb[0].mxu0
      %1545 = vmatprep.mubr.f32.mxu0 0.0
      %1546 = vmatmul.mubr.f32.gmra.mrb[0].mxu0 %v1316
      %v1547 = vpop.f32.mrb[0].mxu0
      %v1548 = vadd.f32 0.0, %v1547
      %v1549 = vpop.f32.mrb[0].mxu0
      %1550 = vmatprep.mubr.f32.mxu0 0.0
      %1551 = vmatmul.mubr.f32.gmra.mrb[0].mxu0 %v1317
      %v1552 = vpop.f32.mrb[0].mxu0
      %v1553 = vadd.f32 0.0, %v1552
      %v1554 = vpop.f32.mrb[0].mxu0
      %1555 = vmatprep.mubr.f32.mxu0 0.0
      %1556 = vmatmul.mubr.f32.gmra.mrb[0].mxu0 %v1318
      %v1557 = vpop.f32.mrb[0].mxu0
      %v1558 = vadd.f32 0.0, %v1557
      %v1559 = vpop.f32.mrb[0].mxu0
      %1560 = vdwg.mxu0
      %v1561 = vadd.f32 %v1255, %v1403
      %v1562 = vadd.f32 %v1256, %v1408
      %v1563 = vadd.f32 %v1257, %v1413
      %v1564 = vadd.f32 %v1258, %v1418
      %v1565 = vadd.f32 %v1259, %v1423
      %v1566 = vadd.f32 %v1260, %v1428
      %v1567 = vadd.f32 %v1261, %v1433
      %v1568 = vadd.f32 %v1262, %v1438
      %v1569 = vadd.f32 %v1263, %v1443
      %v1570 = vadd.f32 %v1264, %v1448
      %v1571 = vadd.f32 %v1265, %v1453
      %v1572 = vadd.f32 %v1266, %v1458
      %v1573 = vadd.f32 %v1267, %v1463
      %v1574 = vadd.f32 %v1268, %v1468
      %v1575 = vadd.f32 %v1269, %v1473
      %v1576 = vadd.f32 %v1270, %v1478
      %v1577 = vadd.f32 %v1271, %v1483
      %v1578 = vadd.f32 %v1272, %v1488
      %v1579 = vadd.f32 %v1273, %v1493
      %v1580 = vadd.f32 %v1274, %v1498
      %v1581 = vadd.f32 %v1275, %v1503
      %v1582 = vadd.f32 %v1276, %v1508
      %v1583 = vadd.f32 %v1277, %v1513
      %v1584 = vadd.f32 %v1278, %v1518
      %v1585 = vadd.f32 %v1279, %v1523
      %v1586 = vadd.f32 %v1280, %v1528
      %v1587 = vadd.f32 %v1281, %v1533
      %v1588 = vadd.f32 %v1282, %v1538
      %v1589 = vadd.f32 %v1283, %v1543
      %v1590 = vadd.f32 %v1284, %v1548
      %v1591 = vadd.f32 %v1285, %v1553
      %v1592 = vadd.f32 %v1286, %v1558
      %v1593 = vld [vmem:[%s401 + $0x8] sm:$0xff]
      %v1594 = vld [vmem:[%s401 + $0x10] sm:$0xff]
      %v1595 = vld [vmem:[%s401 + $0x28] sm:$0xff]
      %v1596 = vld [vmem:[%s401 + $0x30] sm:$0xff]
      %v1597 = vld [vmem:[%s401 + $0x48] sm:$0xff]
      %v1598 = vld [vmem:[%s401 + $0x50] sm:$0xff]
      %v1599 = vld [vmem:[%s401 + $0x68] sm:$0xff]
      %v1600 = vld [vmem:[%s401 + $0x70] sm:$0xff]
      %v1601 = vld [vmem:[%s401 + $0x88] sm:$0xff]
      %v1602 = vld [vmem:[%s401 + $0x90] sm:$0xff]
      %v1603 = vld [vmem:[%s401 + $0xa8] sm:$0xff]
      %v1604 = vld [vmem:[%s401 + $0xb0] sm:$0xff]
      %v1605 = vld [vmem:[%s401 + $0xc8] sm:$0xff]
      %v1606 = vld [vmem:[%s401 + $0xd0] sm:$0xff]
      %v1607 = vld [vmem:[%s401 + $0xe8] sm:$0xff]
      %v1608 = vld [vmem:[%s401 + $0xf0] sm:$0xff]
      %v1609 = vld [vmem:[%s401 + $0x108] sm:$0xff]
      %v1610 = vld [vmem:[%s401 + $0x110] sm:$0xff]
      %v1611 = vld [vmem:[%s401 + $0x128] sm:$0xff]
      %v1612 = vld [vmem:[%s401 + $0x130] sm:$0xff]
      %v1613 = vld [vmem:[%s401 + $0x148] sm:$0xff]
      %v1614 = vld [vmem:[%s401 + $0x150] sm:$0xff]
      %v1615 = vld [vmem:[%s401 + $0x168] sm:$0xff]
      %v1616 = vld [vmem:[%s401 + $0x170] sm:$0xff]
      %v1617 = vld [vmem:[%s401 + $0x188] sm:$0xff]
      %v1618 = vld [vmem:[%s401 + $0x190] sm:$0xff]
      %v1619 = vld [vmem:[%s401 + $0x1a8] sm:$0xff]
      %v1620 = vld [vmem:[%s401 + $0x1b0] sm:$0xff]
      %v1621 = vld [vmem:[%s401 + $0x1c8] sm:$0xff]
      %v1622 = vld [vmem:[%s401 + $0x1d0] sm:$0xff]
      %v1623 = vld [vmem:[%s401 + $0x1e8] sm:$0xff]
      %v1624 = vld [vmem:[%s401 + $0x1f0] sm:$0xff]
      %s1625 = scalar_lea.vmem %s1, 512
      %v1626 = vld [vmem:[%s1625] sm:$0xff]
      %v1627 = vld [vmem:[%s1625 + $0x8] sm:$0xff]
      %v1628 = vld [vmem:[%s1625 + $0x10] sm:$0xff]
      %v1629 = vld [vmem:[%s1625 + $0x18] sm:$0xff]
      %v1630 = vld [vmem:[%s1625 + $0x20] sm:$0xff]
      %v1631 = vld [vmem:[%s1625 + $0x28] sm:$0xff]
      %v1632 = vld [vmem:[%s1625 + $0x30] sm:$0xff]
      %v1633 = vld [vmem:[%s1625 + $0x38] sm:$0xff]
      %v1634 = vld [vmem:[%s1625 + $0x40] sm:$0xff]
      %v1635 = vld [vmem:[%s1625 + $0x48] sm:$0xff]
      %v1636 = vld [vmem:[%s1625 + $0x50] sm:$0xff]
      %v1637 = vld [vmem:[%s1625 + $0x58] sm:$0xff]
      %v1638 = vld [vmem:[%s1625 + $0x60] sm:$0xff]
      %v1639 = vld [vmem:[%s1625 + $0x68] sm:$0xff]
      %v1640 = vld [vmem:[%s1625 + $0x70] sm:$0xff]
      %v1641 = vld [vmem:[%s1625 + $0x78] sm:$0xff]
      %1642 = vmatprep.subr.mxu0 0.0
      %1643 = vmatpush1.msra.mxu0 %v1626
      %1644 = vmatprep.subr.mxu0 0.0
      %1645 = vmatpush1.msra.mxu0 %v1627
      %1646 = vmatprep.subr.mxu0 0.0
      %1647 = vmatpush1.msra.mxu0 %v1628
      %1648 = vmatprep.subr.mxu0 0.0
      %1649 = vmatpush1.msra.mxu0 %v1629
      %1650 = vmatprep.subr.mxu0 0.0
      %1651 = vmatpush1.msra.mxu0 %v1630
      %1652 = vmatprep.subr.mxu0 0.0
      %1653 = vmatpush1.msra.mxu0 %v1631
      %1654 = vmatprep.subr.mxu0 0.0
      %1655 = vmatpush1.msra.mxu0 %v1632
      %1656 = vmatprep.subr.mxu0 0.0
      %1657 = vmatpush1.msra.mxu0 %v1633
      %1658 = vmatprep.subr.mxu0 0.0
      %1659 = vmatpush1.msra.mxu0 %v1634
      %1660 = vmatprep.subr.mxu0 0.0
      %1661 = vmatpush1.msra.mxu0 %v1635
      %1662 = vmatprep.subr.mxu0 0.0
      %1663 = vmatpush1.msra.mxu0 %v1636
      %1664 = vmatprep.subr.mxu0 0.0
      %1665 = vmatpush1.msra.mxu0 %v1637
      %1666 = vmatprep.subr.mxu0 0.0
      %1667 = vmatpush1.msra.mxu0 %v1638
      %1668 = vmatprep.subr.mxu0 0.0
      %1669 = vmatpush1.msra.mxu0 %v1639
      %1670 = vmatprep.subr.mxu0 0.0
      %1671 = vmatpush1.msra.mxu0 %v1640
      %1672 = vmatprep.subr.mxu0 0.0
      %1673 = vmatpush1.msra.mxu0 %v1641
      %1674 = vmatprep.subr.mxu0 0.0
      %1675 = vmatpush1.msra.mxu0 0.0
      %1676 = vmatprep.subr.mxu0 0.0
      %1677 = vmatpush1.msra.mxu0 0.0
      %1678 = vmatprep.subr.mxu0 0.0
      %1679 = vmatpush1.msra.mxu0 0.0
      %1680 = vmatprep.subr.mxu0 0.0
      %1681 = vmatpush1.msra.mxu0 0.0
      %1682 = vmatprep.subr.mxu0 0.0
      %1683 = vmatpush1.msra.mxu0 0.0
      %1684 = vmatprep.subr.mxu0 0.0
      %1685 = vmatpush1.msra.mxu0 0.0
      %1686 = vmatprep.subr.mxu0 0.0
      %1687 = vmatpush1.msra.mxu0 0.0
      %1688 = vmatprep.subr.mxu0 0.0
      %1689 = vmatpush1.msra.mxu0 0.0
      %1690 = vmatprep.subr.mxu0 0.0
      %1691 = vmatpush1.msra.mxu0 0.0
      %1692 = vmatprep.subr.mxu0 0.0
      %1693 = vmatpush1.msra.mxu0 0.0
      %1694 = vmatprep.subr.mxu0 0.0
      %1695 = vmatpush1.msra.mxu0 0.0
      %1696 = vmatprep.subr.mxu0 0.0
      %1697 = vmatpush1.msra.mxu0 0.0
      %1698 = vmatprep.subr.mxu0 0.0
      %1699 = vmatpush1.msra.mxu0 0.0
      %1700 = vmatprep.subr.mxu0 0.0
      %1701 = vmatpush1.msra.mxu0 0.0
      %1702 = vmatprep.subr.mxu0 0.0
      %1703 = vmatpush1.msra.mxu0 0.0
      %1704 = vmatprep.subr.mxu0 0.0
      %1705 = vmatpush1.msra.mxu0 0.0
      %1706 = vmatprep.mubr.f32.mxu0 0.0
      %1707 = vmatmul.mubr.f32.gmra.mrb[0].mxu0 %v1593
      %v1708 = vpop.f32.mrb[0].mxu0
      %v1709 = vadd.f32 0.0, %v1708
      %v1710 = vpop.f32.mrb[0].mxu0
      %1711 = vmatprep.mubr.f32.mxu0 0.0
      %1712 = vmatmul.mubr.f32.gmra.mrb[0].mxu0 %v1594
      %v1713 = vpop.f32.mrb[0].mxu0
      %v1714 = vadd.f32 0.0, %v1713
      %v1715 = vpop.f32.mrb[0].mxu0
      %1716 = vmatprep.mubr.f32.mxu0 0.0
      %1717 = vmatmul.mubr.f32.gmra.mrb[0].mxu0 %v1595
      %v1718 = vpop.f32.mrb[0].mxu0
      %v1719 = vadd.f32 0.0, %v1718
      %v1720 = vpop.f32.mrb[0].mxu0
      %1721 = vmatprep.mubr.f32.mxu0 0.0
      %1722 = vmatmul.mubr.f32.gmra.mrb[0].mxu0 %v1596
      %v1723 = vpop.f32.mrb[0].mxu0
      %v1724 = vadd.f32 0.0, %v1723
      %v1725 = vpop.f32.mrb[0].mxu0
      %1726 = vmatprep.mubr.f32.mxu0 0.0
      %1727 = vmatmul.mubr.f32.gmra.mrb[0].mxu0 %v1597
      %v1728 = vpop.f32.mrb[0].mxu0
      %v1729 = vadd.f32 0.0, %v1728
      %v1730 = vpop.f32.mrb[0].mxu0
      %1731 = vmatprep.mubr.f32.mxu0 0.0
      %1732 = vmatmul.mubr.f32.gmra.mrb[0].mxu0 %v1598
      %v1733 = vpop.f32.mrb[0].mxu0
      %v1734 = vadd.f32 0.0, %v1733
      %v1735 = vpop.f32.mrb[0].mxu0
      %1736 = vmatprep.mubr.f32.mxu0 0.0
      %1737 = vmatmul.mubr.f32.gmra.mrb[0].mxu0 %v1599
      %v1738 = vpop.f32.mrb[0].mxu0
      %v1739 = vadd.f32 0.0, %v1738
      %v1740 = vpop.f32.mrb[0].mxu0
      %1741 = vmatprep.mubr.f32.mxu0 0.0
      %1742 = vmatmul.mubr.f32.gmra.mrb[0].mxu0 %v1600
      %v1743 = vpop.f32.mrb[0].mxu0
      %v1744 = vadd.f32 0.0, %v1743
      %v1745 = vpop.f32.mrb[0].mxu0
      %1746 = vmatprep.mubr.f32.mxu0 0.0
      %1747 = vmatmul.mubr.f32.gmra.mrb[0].mxu0 %v1601
      %v1748 = vpop.f32.mrb[0].mxu0
      %v1749 = vadd.f32 0.0, %v1748
      %v1750 = vpop.f32.mrb[0].mxu0
      %1751 = vmatprep.mubr.f32.mxu0 0.0
      %1752 = vmatmul.mubr.f32.gmra.mrb[0].mxu0 %v1602
      %v1753 = vpop.f32.mrb[0].mxu0
      %v1754 = vadd.f32 0.0, %v1753
      %v1755 = vpop.f32.mrb[0].mxu0
      %1756 = vmatprep.mubr.f32.mxu0 0.0
      %1757 = vmatmul.mubr.f32.gmra.mrb[0].mxu0 %v1603
      %v1758 = vpop.f32.mrb[0].mxu0
      %v1759 = vadd.f32 0.0, %v1758
      %v1760 = vpop.f32.mrb[0].mxu0
      %1761 = vmatprep.mubr.f32.mxu0 0.0
      %1762 = vmatmul.mubr.f32.gmra.mrb[0].mxu0 %v1604
      %v1763 = vpop.f32.mrb[0].mxu0
      %v1764 = vadd.f32 0.0, %v1763
      %v1765 = vpop.f32.mrb[0].mxu0
      %1766 = vmatprep.mubr.f32.mxu0 0.0
      %1767 = vmatmul.mubr.f32.gmra.mrb[0].mxu0 %v1605
      %v1768 = vpop.f32.mrb[0].mxu0
      %v1769 = vadd.f32 0.0, %v1768
      %v1770 = vpop.f32.mrb[0].mxu0
      %1771 = vmatprep.mubr.f32.mxu0 0.0
      %1772 = vmatmul.mubr.f32.gmra.mrb[0].mxu0 %v1606
      %v1773 = vpop.f32.mrb[0].mxu0
      %v1774 = vadd.f32 0.0, %v1773
      %v1775 = vpop.f32.mrb[0].mxu0
      %1776 = vmatprep.mubr.f32.mxu0 0.0
      %1777 = vmatmul.mubr.f32.gmra.mrb[0].mxu0 %v1607
      %v1778 = vpop.f32.mrb[0].mxu0
      %v1779 = vadd.f32 0.0, %v1778
      %v1780 = vpop.f32.mrb[0].mxu0
      %1781 = vmatprep.mubr.f32.mxu0 0.0
      %1782 = vmatmul.mubr.f32.gmra.mrb[0].mxu0 %v1608
      %v1783 = vpop.f32.mrb[0].mxu0
      %v1784 = vadd.f32 0.0, %v1783
      %v1785 = vpop.f32.mrb[0].mxu0
      %1786 = vmatprep.mubr.f32.mxu0 0.0
      %1787 = vmatmul.mubr.f32.gmra.mrb[0].mxu0 %v1609
      %v1788 = vpop.f32.mrb[0].mxu0
      %v1789 = vadd.f32 0.0, %v1788
      %v1790 = vpop.f32.mrb[0].mxu0
      %1791 = vmatprep.mubr.f32.mxu0 0.0
      %1792 = vmatmul.mubr.f32.gmra.mrb[0].mxu0 %v1610
      %v1793 = vpop.f32.mrb[0].mxu0
      %v1794 = vadd.f32 0.0, %v1793
      %v1795 = vpop.f32.mrb[0].mxu0
      %1796 = vmatprep.mubr.f32.mxu0 0.0
      %1797 = vmatmul.mubr.f32.gmra.mrb[0].mxu0 %v1611
      %v1798 = vpop.f32.mrb[0].mxu0
      %v1799 = vadd.f32 0.0, %v1798
      %v1800 = vpop.f32.mrb[0].mxu0
      %1801 = vmatprep.mubr.f32.mxu0 0.0
      %1802 = vmatmul.mubr.f32.gmra.mrb[0].mxu0 %v1612
      %v1803 = vpop.f32.mrb[0].mxu0
      %v1804 = vadd.f32 0.0, %v1803
      %v1805 = vpop.f32.mrb[0].mxu0
      %1806 = vmatprep.mubr.f32.mxu0 0.0
      %1807 = vmatmul.mubr.f32.gmra.mrb[0].mxu0 %v1613
      %v1808 = vpop.f32.mrb[0].mxu0
      %v1809 = vadd.f32 0.0, %v1808
      %v1810 = vpop.f32.mrb[0].mxu0
      %1811 = vmatprep.mubr.f32.mxu0 0.0
      %1812 = vmatmul.mubr.f32.gmra.mrb[0].mxu0 %v1614
      %v1813 = vpop.f32.mrb[0].mxu0
      %v1814 = vadd.f32 0.0, %v1813
      %v1815 = vpop.f32.mrb[0].mxu0
      %1816 = vmatprep.mubr.f32.mxu0 0.0
      %1817 = vmatmul.mubr.f32.gmra.mrb[0].mxu0 %v1615
      %v1818 = vpop.f32.mrb[0].mxu0
      %v1819 = vadd.f32 0.0, %v1818
      %v1820 = vpop.f32.mrb[0].mxu0
      %1821 = vmatprep.mubr.f32.mxu0 0.0
      %1822 = vmatmul.mubr.f32.gmra.mrb[0].mxu0 %v1616
      %v1823 = vpop.f32.mrb[0].mxu0
      %v1824 = vadd.f32 0.0, %v1823
      %v1825 = vpop.f32.mrb[0].mxu0
      %1826 = vmatprep.mubr.f32.mxu0 0.0
      %1827 = vmatmul.mubr.f32.gmra.mrb[0].mxu0 %v1617
      %v1828 = vpop.f32.mrb[0].mxu0
      %v1829 = vadd.f32 0.0, %v1828
      %v1830 = vpop.f32.mrb[0].mxu0
      %1831 = vmatprep.mubr.f32.mxu0 0.0
      %1832 = vmatmul.mubr.f32.gmra.mrb[0].mxu0 %v1618
      %v1833 = vpop.f32.mrb[0].mxu0
      %v1834 = vadd.f32 0.0, %v1833
      %v1835 = vpop.f32.mrb[0].mxu0
      %1836 = vmatprep.mubr.f32.mxu0 0.0
      %1837 = vmatmul.mubr.f32.gmra.mrb[0].mxu0 %v1619
      %v1838 = vpop.f32.mrb[0].mxu0
      %v1839 = vadd.f32 0.0, %v1838
      %v1840 = vpop.f32.mrb[0].mxu0
      %1841 = vmatprep.mubr.f32.mxu0 0.0
      %1842 = vmatmul.mubr.f32.gmra.mrb[0].mxu0 %v1620
      %v1843 = vpop.f32.mrb[0].mxu0
      %v1844 = vadd.f32 0.0, %v1843
      %v1845 = vpop.f32.mrb[0].mxu0
      %1846 = vmatprep.mubr.f32.mxu0 0.0
      %1847 = vmatmul.mubr.f32.gmra.mrb[0].mxu0 %v1621
      %v1848 = vpop.f32.mrb[0].mxu0
      %v1849 = vadd.f32 0.0, %v1848
      %v1850 = vpop.f32.mrb[0].mxu0
      %1851 = vmatprep.mubr.f32.mxu0 0.0
      %1852 = vmatmul.mubr.f32.gmra.mrb[0].mxu0 %v1622
      %v1853 = vpop.f32.mrb[0].mxu0
      %v1854 = vadd.f32 0.0, %v1853
      %v1855 = vpop.f32.mrb[0].mxu0
      %1856 = vmatprep.mubr.f32.mxu0 0.0
      %1857 = vmatmul.mubr.f32.gmra.mrb[0].mxu0 %v1623
      %v1858 = vpop.f32.mrb[0].mxu0
      %v1859 = vadd.f32 0.0, %v1858
      %v1860 = vpop.f32.mrb[0].mxu0
      %1861 = vmatprep.mubr.f32.mxu0 0.0
      %1862 = vmatmul.mubr.f32.gmra.mrb[0].mxu0 %v1624
      %v1863 = vpop.f32.mrb[0].mxu0
      %v1864 = vadd.f32 0.0, %v1863
      %v1865 = vpop.f32.mrb[0].mxu0
      %1866 = vdwg.mxu0
      %v1867 = vadd.f32 %v1561, %v1709
      %v1868 = vadd.f32 %v1562, %v1714
      %v1869 = vadd.f32 %v1563, %v1719
      %v1870 = vadd.f32 %v1564, %v1724
      %v1871 = vadd.f32 %v1565, %v1729
      %v1872 = vadd.f32 %v1566, %v1734
      %v1873 = vadd.f32 %v1567, %v1739
      %v1874 = vadd.f32 %v1568, %v1744
      %v1875 = vadd.f32 %v1569, %v1749
      %v1876 = vadd.f32 %v1570, %v1754
      %v1877 = vadd.f32 %v1571, %v1759
      %v1878 = vadd.f32 %v1572, %v1764
      %v1879 = vadd.f32 %v1573, %v1769
      %v1880 = vadd.f32 %v1574, %v1774
      %v1881 = vadd.f32 %v1575, %v1779
      %v1882 = vadd.f32 %v1576, %v1784
      %v1883 = vadd.f32 %v1577, %v1789
      %v1884 = vadd.f32 %v1578, %v1794
      %v1885 = vadd.f32 %v1579, %v1799
      %v1886 = vadd.f32 %v1580, %v1804
      %v1887 = vadd.f32 %v1581, %v1809
      %v1888 = vadd.f32 %v1582, %v1814
      %v1889 = vadd.f32 %v1583, %v1819
      %v1890 = vadd.f32 %v1584, %v1824
      %v1891 = vadd.f32 %v1585, %v1829
      %v1892 = vadd.f32 %v1586, %v1834
      %v1893 = vadd.f32 %v1587, %v1839
      %v1894 = vadd.f32 %v1588, %v1844
      %v1895 = vadd.f32 %v1589, %v1849
      %v1896 = vadd.f32 %v1590, %v1854
      %v1897 = vadd.f32 %v1591, %v1859
      %v1898 = vadd.f32 %v1592, %v1864
      %v1899 = vld [vmem:[%s401 + $0x9] sm:$0xff]
      %v1900 = vld [vmem:[%s401 + $0x11] sm:$0xff]
      %v1901 = vld [vmem:[%s401 + $0x29] sm:$0xff]
      %v1902 = vld [vmem:[%s401 + $0x31] sm:$0xff]
      %v1903 = vld [vmem:[%s401 + $0x49] sm:$0xff]
      %v1904 = vld [vmem:[%s401 + $0x51] sm:$0xff]
      %v1905 = vld [vmem:[%s401 + $0x69] sm:$0xff]
      %v1906 = vld [vmem:[%s401 + $0x71] sm:$0xff]
      %v1907 = vld [vmem:[%s401 + $0x89] sm:$0xff]
      %v1908 = vld [vmem:[%s401 + $0x91] sm:$0xff]
      %v1909 = vld [vmem:[%s401 + $0xa9] sm:$0xff]
      %v1910 = vld [vmem:[%s401 + $0xb1] sm:$0xff]
      %v1911 = vld [vmem:[%s401 + $0xc9] sm:$0xff]
      %v1912 = vld [vmem:[%s401 + $0xd1] sm:$0xff]
      %v1913 = vld [vmem:[%s401 + $0xe9] sm:$0xff]
      %v1914 = vld [vmem:[%s401 + $0xf1] sm:$0xff]
      %v1915 = vld [vmem:[%s401 + $0x109] sm:$0xff]
      %v1916 = vld [vmem:[%s401 + $0x111] sm:$0xff]
      %v1917 = vld [vmem:[%s401 + $0x129] sm:$0xff]
      %v1918 = vld [vmem:[%s401 + $0x131] sm:$0xff]
      %v1919 = vld [vmem:[%s401 + $0x149] sm:$0xff]
      %v1920 = vld [vmem:[%s401 + $0x151] sm:$0xff]
      %v1921 = vld [vmem:[%s401 + $0x169] sm:$0xff]
      %v1922 = vld [vmem:[%s401 + $0x171] sm:$0xff]
      %v1923 = vld [vmem:[%s401 + $0x189] sm:$0xff]
      %v1924 = vld [vmem:[%s401 + $0x191] sm:$0xff]
      %v1925 = vld [vmem:[%s401 + $0x1a9] sm:$0xff]
      %v1926 = vld [vmem:[%s401 + $0x1b1] sm:$0xff]
      %v1927 = vld [vmem:[%s401 + $0x1c9] sm:$0xff]
      %v1928 = vld [vmem:[%s401 + $0x1d1] sm:$0xff]
      %v1929 = vld [vmem:[%s401 + $0x1e9] sm:$0xff]
      %v1930 = vld [vmem:[%s401 + $0x1f1] sm:$0xff]
      %s1931 = scalar_lea.vmem %s1, 640
      %v1932 = vld [vmem:[%s1931] sm:$0xff]
      %v1933 = vld [vmem:[%s1931 + $0x8] sm:$0xff]
      %v1934 = vld [vmem:[%s1931 + $0x10] sm:$0xff]
      %v1935 = vld [vmem:[%s1931 + $0x18] sm:$0xff]
      %v1936 = vld [vmem:[%s1931 + $0x20] sm:$0xff]
      %v1937 = vld [vmem:[%s1931 + $0x28] sm:$0xff]
      %v1938 = vld [vmem:[%s1931 + $0x30] sm:$0xff]
      %v1939 = vld [vmem:[%s1931 + $0x38] sm:$0xff]
      %v1940 = vld [vmem:[%s1931 + $0x40] sm:$0xff]
      %v1941 = vld [vmem:[%s1931 + $0x48] sm:$0xff]
      %v1942 = vld [vmem:[%s1931 + $0x50] sm:$0xff]
      %v1943 = vld [vmem:[%s1931 + $0x58] sm:$0xff]
      %v1944 = vld [vmem:[%s1931 + $0x60] sm:$0xff]
      %v1945 = vld [vmem:[%s1931 + $0x68] sm:$0xff]
      %v1946 = vld [vmem:[%s1931 + $0x70] sm:$0xff]
      %v1947 = vld [vmem:[%s1931 + $0x78] sm:$0xff]
      %1948 = vmatprep.subr.mxu0 0.0
      %1949 = vmatpush1.msra.mxu0 %v1932
      %1950 = vmatprep.subr.mxu0 0.0
      %1951 = vmatpush1.msra.mxu0 %v1933
      %1952 = vmatprep.subr.mxu0 0.0
      %1953 = vmatpush1.msra.mxu0 %v1934
      %1954 = vmatprep.subr.mxu0 0.0
      %1955 = vmatpush1.msra.mxu0 %v1935
      %1956 = vmatprep.subr.mxu0 0.0
      %1957 = vmatpush1.msra.mxu0 %v1936
      %1958 = vmatprep.subr.mxu0 0.0
      %1959 = vmatpush1.msra.mxu0 %v1937
      %1960 = vmatprep.subr.mxu0 0.0
      %1961 = vmatpush1.msra.mxu0 %v1938
      %1962 = vmatprep.subr.mxu0 0.0
      %1963 = vmatpush1.msra.mxu0 %v1939
      %1964 = vmatprep.subr.mxu0 0.0
      %1965 = vmatpush1.msra.mxu0 %v1940
      %1966 = vmatprep.subr.mxu0 0.0
      %1967 = vmatpush1.msra.mxu0 %v1941
      %1968 = vmatprep.subr.mxu0 0.0
      %1969 = vmatpush1.msra.mxu0 %v1942
      %1970 = vmatprep.subr.mxu0 0.0
      %1971 = vmatpush1.msra.mxu0 %v1943
      %1972 = vmatprep.subr.mxu0 0.0
      %1973 = vmatpush1.msra.mxu0 %v1944
      %1974 = vmatprep.subr.mxu0 0.0
      %1975 = vmatpush1.msra.mxu0 %v1945
      %1976 = vmatprep.subr.mxu0 0.0
      %1977 = vmatpush1.msra.mxu0 %v1946
      %1978 = vmatprep.subr.mxu0 0.0
      %1979 = vmatpush1.msra.mxu0 %v1947
      %1980 = vmatprep.subr.mxu0 0.0
      %1981 = vmatpush1.msra.mxu0 0.0
      %1982 = vmatprep.subr.mxu0 0.0
      %1983 = vmatpush1.msra.mxu0 0.0
      %1984 = vmatprep.subr.mxu0 0.0
      %1985 = vmatpush1.msra.mxu0 0.0
      %1986 = vmatprep.subr.mxu0 0.0
      %1987 = vmatpush1.msra.mxu0 0.0
      %1988 = vmatprep.subr.mxu0 0.0
      %1989 = vmatpush1.msra.mxu0 0.0
      %1990 = vmatprep.subr.mxu0 0.0
      %1991 = vmatpush1.msra.mxu0 0.0
      %1992 = vmatprep.subr.mxu0 0.0
      %1993 = vmatpush1.msra.mxu0 0.0
      %1994 = vmatprep.subr.mxu0 0.0
      %1995 = vmatpush1.msra.mxu0 0.0
      %1996 = vmatprep.subr.mxu0 0.0
      %1997 = vmatpush1.msra.mxu0 0.0
      %1998 = vmatprep.subr.mxu0 0.0
      %1999 = vmatpush1.msra.mxu0 0.0
      %2000 = vmatprep.subr.mxu0 0.0
      %2001 = vmatpush1.msra.mxu0 0.0
      %2002 = vmatprep.subr.mxu0 0.0
      %2003 = vmatpush1.msra.mxu0 0.0
      %2004 = vmatprep.subr.mxu0 0.0
      %2005 = vmatpush1.msra.mxu0 0.0
      %2006 = vmatprep.subr.mxu0 0.0
      %2007 = vmatpush1.msra.mxu0 0.0
      %2008 = vmatprep.subr.mxu0 0.0
      %2009 = vmatpush1.msra.mxu0 0.0
      %2010 = vmatprep.subr.mxu0 0.0
      %2011 = vmatpush1.msra.mxu0 0.0
      %2012 = vmatprep.mubr.f32.mxu0 0.0
      %2013 = vmatmul.mubr.f32.gmra.mrb[0].mxu0 %v1899
      %v2014 = vpop.f32.mrb[0].mxu0
      %v2015 = vadd.f32 0.0, %v2014
      %v2016 = vpop.f32.mrb[0].mxu0
      %2017 = vmatprep.mubr.f32.mxu0 0.0
      %2018 = vmatmul.mubr.f32.gmra.mrb[0].mxu0 %v1900
      %v2019 = vpop.f32.mrb[0].mxu0
      %v2020 = vadd.f32 0.0, %v2019
      %v2021 = vpop.f32.mrb[0].mxu0
      %2022 = vmatprep.mubr.f32.mxu0 0.0
      %2023 = vmatmul.mubr.f32.gmra.mrb[0].mxu0 %v1901
      %v2024 = vpop.f32.mrb[0].mxu0
      %v2025 = vadd.f32 0.0, %v2024
      %v2026 = vpop.f32.mrb[0].mxu0
      %2027 = vmatprep.mubr.f32.mxu0 0.0
      %2028 = vmatmul.mubr.f32.gmra.mrb[0].mxu0 %v1902
      %v2029 = vpop.f32.mrb[0].mxu0
      %v2030 = vadd.f32 0.0, %v2029
      %v2031 = vpop.f32.mrb[0].mxu0
      %2032 = vmatprep.mubr.f32.mxu0 0.0
      %2033 = vmatmul.mubr.f32.gmra.mrb[0].mxu0 %v1903
      %v2034 = vpop.f32.mrb[0].mxu0
      %v2035 = vadd.f32 0.0, %v2034
      %v2036 = vpop.f32.mrb[0].mxu0
      %2037 = vmatprep.mubr.f32.mxu0 0.0
      %2038 = vmatmul.mubr.f32.gmra.mrb[0].mxu0 %v1904
      %v2039 = vpop.f32.mrb[0].mxu0
      %v2040 = vadd.f32 0.0, %v2039
      %v2041 = vpop.f32.mrb[0].mxu0
      %2042 = vmatprep.mubr.f32.mxu0 0.0
      %2043 = vmatmul.mubr.f32.gmra.mrb[0].mxu0 %v1905
      %v2044 = vpop.f32.mrb[0].mxu0
      %v2045 = vadd.f32 0.0, %v2044
      %v2046 = vpop.f32.mrb[0].mxu0
      %2047 = vmatprep.mubr.f32.mxu0 0.0
      %2048 = vmatmul.mubr.f32.gmra.mrb[0].mxu0 %v1906
      %v2049 = vpop.f32.mrb[0].mxu0
      %v2050 = vadd.f32 0.0, %v2049
      %v2051 = vpop.f32.mrb[0].mxu0
      %2052 = vmatprep.mubr.f32.mxu0 0.0
      %2053 = vmatmul.mubr.f32.gmra.mrb[0].mxu0 %v1907
      %v2054 = vpop.f32.mrb[0].mxu0
      %v2055 = vadd.f32 0.0, %v2054
      %v2056 = vpop.f32.mrb[0].mxu0
      %2057 = vmatprep.mubr.f32.mxu0 0.0
      %2058 = vmatmul.mubr.f32.gmra.mrb[0].mxu0 %v1908
      %v2059 = vpop.f32.mrb[0].mxu0
      %v2060 = vadd.f32 0.0, %v2059
      %v2061 = vpop.f32.mrb[0].mxu0
      %2062 = vmatprep.mubr.f32.mxu0 0.0
      %2063 = vmatmul.mubr.f32.gmra.mrb[0].mxu0 %v1909
      %v2064 = vpop.f32.mrb[0].mxu0
      %v2065 = vadd.f32 0.0, %v2064
      %v2066 = vpop.f32.mrb[0].mxu0
      %2067 = vmatprep.mubr.f32.mxu0 0.0
      %2068 = vmatmul.mubr.f32.gmra.mrb[0].mxu0 %v1910
      %v2069 = vpop.f32.mrb[0].mxu0
      %v2070 = vadd.f32 0.0, %v2069
      %v2071 = vpop.f32.mrb[0].mxu0
      %2072 = vmatprep.mubr.f32.mxu0 0.0
      %2073 = vmatmul.mubr.f32.gmra.mrb[0].mxu0 %v1911
      %v2074 = vpop.f32.mrb[0].mxu0
      %v2075 = vadd.f32 0.0, %v2074
      %v2076 = vpop.f32.mrb[0].mxu0
      %2077 = vmatprep.mubr.f32.mxu0 0.0
      %2078 = vmatmul.mubr.f32.gmra.mrb[0].mxu0 %v1912
      %v2079 = vpop.f32.mrb[0].mxu0
      %v2080 = vadd.f32 0.0, %v2079
      %v2081 = vpop.f32.mrb[0].mxu0
      %2082 = vmatprep.mubr.f32.mxu0 0.0
      %2083 = vmatmul.mubr.f32.gmra.mrb[0].mxu0 %v1913
      %v2084 = vpop.f32.mrb[0].mxu0
      %v2085 = vadd.f32 0.0, %v2084
      %v2086 = vpop.f32.mrb[0].mxu0
      %2087 = vmatprep.mubr.f32.mxu0 0.0
      %2088 = vmatmul.mubr.f32.gmra.mrb[0].mxu0 %v1914
      %v2089 = vpop.f32.mrb[0].mxu0
      %v2090 = vadd.f32 0.0, %v2089
      %v2091 = vpop.f32.mrb[0].mxu0
      %2092 = vmatprep.mubr.f32.mxu0 0.0
      %2093 = vmatmul.mubr.f32.gmra.mrb[0].mxu0 %v1915
      %v2094 = vpop.f32.mrb[0].mxu0
      %v2095 = vadd.f32 0.0, %v2094
      %v2096 = vpop.f32.mrb[0].mxu0
      %2097 = vmatprep.mubr.f32.mxu0 0.0
      %2098 = vmatmul.mubr.f32.gmra.mrb[0].mxu0 %v1916
      %v2099 = vpop.f32.mrb[0].mxu0
      %v2100 = vadd.f32 0.0, %v2099
      %v2101 = vpop.f32.mrb[0].mxu0
      %2102 = vmatprep.mubr.f32.mxu0 0.0
      %2103 = vmatmul.mubr.f32.gmra.mrb[0].mxu0 %v1917
      %v2104 = vpop.f32.mrb[0].mxu0
      %v2105 = vadd.f32 0.0, %v2104
      %v2106 = vpop.f32.mrb[0].mxu0
      %2107 = vmatprep.mubr.f32.mxu0 0.0
      %2108 = vmatmul.mubr.f32.gmra.mrb[0].mxu0 %v1918
      %v2109 = vpop.f32.mrb[0].mxu0
      %v2110 = vadd.f32 0.0, %v2109
      %v2111 = vpop.f32.mrb[0].mxu0
      %2112 = vmatprep.mubr.f32.mxu0 0.0
      %2113 = vmatmul.mubr.f32.gmra.mrb[0].mxu0 %v1919
      %v2114 = vpop.f32.mrb[0].mxu0
      %v2115 = vadd.f32 0.0, %v2114
      %v2116 = vpop.f32.mrb[0].mxu0
      %2117 = vmatprep.mubr.f32.mxu0 0.0
      %2118 = vmatmul.mubr.f32.gmra.mrb[0].mxu0 %v1920
      %v2119 = vpop.f32.mrb[0].mxu0
      %v2120 = vadd.f32 0.0, %v2119
      %v2121 = vpop.f32.mrb[0].mxu0
      %2122 = vmatprep.mubr.f32.mxu0 0.0
      %2123 = vmatmul.mubr.f32.gmra.mrb[0].mxu0 %v1921
      %v2124 = vpop.f32.mrb[0].mxu0
      %v2125 = vadd.f32 0.0, %v2124
      %v2126 = vpop.f32.mrb[0].mxu0
      %2127 = vmatprep.mubr.f32.mxu0 0.0
      %2128 = vmatmul.mubr.f32.gmra.mrb[0].mxu0 %v1922
      %v2129 = vpop.f32.mrb[0].mxu0
      %v2130 = vadd.f32 0.0, %v2129
      %v2131 = vpop.f32.mrb[0].mxu0
      %2132 = vmatprep.mubr.f32.mxu0 0.0
      %2133 = vmatmul.mubr.f32.gmra.mrb[0].mxu0 %v1923
      %v2134 = vpop.f32.mrb[0].mxu0
      %v2135 = vadd.f32 0.0, %v2134
      %v2136 = vpop.f32.mrb[0].mxu0
      %2137 = vmatprep.mubr.f32.mxu0 0.0
      %2138 = vmatmul.mubr.f32.gmra.mrb[0].mxu0 %v1924
      %v2139 = vpop.f32.mrb[0].mxu0
      %v2140 = vadd.f32 0.0, %v2139
      %v2141 = vpop.f32.mrb[0].mxu0
      %2142 = vmatprep.mubr.f32.mxu0 0.0
      %2143 = vmatmul.mubr.f32.gmra.mrb[0].mxu0 %v1925
      %v2144 = vpop.f32.mrb[0].mxu0
      %v2145 = vadd.f32 0.0, %v2144
      %v2146 = vpop.f32.mrb[0].mxu0
      %2147 = vmatprep.mubr.f32.mxu0 0.0
      %2148 = vmatmul.mubr.f32.gmra.mrb[0].mxu0 %v1926
      %v2149 = vpop.f32.mrb[0].mxu0
      %v2150 = vadd.f32 0.0, %v2149
      %v2151 = vpop.f32.mrb[0].mxu0
      %2152 = vmatprep.mubr.f32.mxu0 0.0
      %2153 = vmatmul.mubr.f32.gmra.mrb[0].mxu0 %v1927
      %v2154 = vpop.f32.mrb[0].mxu0
      %v2155 = vadd.f32 0.0, %v2154
      %v2156 = vpop.f32.mrb[0].mxu0
      %2157 = vmatprep.mubr.f32.mxu0 0.0
      %2158 = vmatmul.mubr.f32.gmra.mrb[0].mxu0 %v1928
      %v2159 = vpop.f32.mrb[0].mxu0
      %v2160 = vadd.f32 0.0, %v2159
      %v2161 = vpop.f32.mrb[0].mxu0
      %2162 = vmatprep.mubr.f32.mxu0 0.0
      %2163 = vmatmul.mubr.f32.gmra.mrb[0].mxu0 %v1929
      %v2164 = vpop.f32.mrb[0].mxu0
      %v2165 = vadd.f32 0.0, %v2164
      %v2166 = vpop.f32.mrb[0].mxu0
      %2167 = vmatprep.mubr.f32.mxu0 0.0
      %2168 = vmatmul.mubr.f32.gmra.mrb[0].mxu0 %v1930
      %v2169 = vpop.f32.mrb[0].mxu0
      %v2170 = vadd.f32 0.0, %v2169
      %v2171 = vpop.f32.mrb[0].mxu0
      %2172 = vdwg.mxu0
      %v2173 = vadd.f32 %v1867, %v2015
      %v2174 = vadd.f32 %v1868, %v2020
      %v2175 = vadd.f32 %v1869, %v2025
      %v2176 = vadd.f32 %v1870, %v2030
      %v2177 = vadd.f32 %v1871, %v2035
      %v2178 = vadd.f32 %v1872, %v2040
      %v2179 = vadd.f32 %v1873, %v2045
      %v2180 = vadd.f32 %v1874, %v2050
      %v2181 = vadd.f32 %v1875, %v2055
      %v2182 = vadd.f32 %v1876, %v2060
      %v2183 = vadd.f32 %v1877, %v2065
      %v2184 = vadd.f32 %v1878, %v2070
      %v2185 = vadd.f32 %v1879, %v2075
      %v2186 = vadd.f32 %v1880, %v2080
      %v2187 = vadd.f32 %v1881, %v2085
      %v2188 = vadd.f32 %v1882, %v2090
      %v2189 = vadd.f32 %v1883, %v2095
      %v2190 = vadd.f32 %v1884, %v2100
      %v2191 = vadd.f32 %v1885, %v2105
      %v2192 = vadd.f32 %v1886, %v2110
      %v2193 = vadd.f32 %v1887, %v2115
      %v2194 = vadd.f32 %v1888, %v2120
      %v2195 = vadd.f32 %v1889, %v2125
      %v2196 = vadd.f32 %v1890, %v2130
      %v2197 = vadd.f32 %v1891, %v2135
      %v2198 = vadd.f32 %v1892, %v2140
      %v2199 = vadd.f32 %v1893, %v2145
      %v2200 = vadd.f32 %v1894, %v2150
      %v2201 = vadd.f32 %v1895, %v2155
      %v2202 = vadd.f32 %v1896, %v2160
      %v2203 = vadd.f32 %v1897, %v2165
      %v2204 = vadd.f32 %v1898, %v2170
      %s2205 = scalar_lea.vmem [#allocation2], 64
      %v2206 = vld [vmem:[%s2205 + $0x7] sm:$0xff]
      %v2207 = vld [vmem:[%s2205 + $0xf] sm:$0xff]
      %v2208 = vld [vmem:[%s2205 + $0x27] sm:$0xff]
      %v2209 = vld [vmem:[%s2205 + $0x2f] sm:$0xff]
      %v2210 = vld [vmem:[%s2205 + $0x47] sm:$0xff]
      %v2211 = vld [vmem:[%s2205 + $0x4f] sm:$0xff]
      %v2212 = vld [vmem:[%s2205 + $0x67] sm:$0xff]
      %v2213 = vld [vmem:[%s2205 + $0x6f] sm:$0xff]
      %v2214 = vld [vmem:[%s2205 + $0x87] sm:$0xff]
      %v2215 = vld [vmem:[%s2205 + $0x8f] sm:$0xff]
      %v2216 = vld [vmem:[%s2205 + $0xa7] sm:$0xff]
      %v2217 = vld [vmem:[%s2205 + $0xaf] sm:$0xff]
      %v2218 = vld [vmem:[%s2205 + $0xc7] sm:$0xff]
      %v2219 = vld [vmem:[%s2205 + $0xcf] sm:$0xff]
      %v2220 = vld [vmem:[%s2205 + $0xe7] sm:$0xff]
      %v2221 = vld [vmem:[%s2205 + $0xef] sm:$0xff]
      %v2222 = vld [vmem:[%s2205 + $0x107] sm:$0xff]
      %v2223 = vld [vmem:[%s2205 + $0x10f] sm:$0xff]
      %v2224 = vld [vmem:[%s2205 + $0x127] sm:$0xff]
      %v2225 = vld [vmem:[%s2205 + $0x12f] sm:$0xff]
      %v2226 = vld [vmem:[%s2205 + $0x147] sm:$0xff]
      %v2227 = vld [vmem:[%s2205 + $0x14f] sm:$0xff]
      %v2228 = vld [vmem:[%s2205 + $0x167] sm:$0xff]
      %v2229 = vld [vmem:[%s2205 + $0x16f] sm:$0xff]
      %v2230 = vld [vmem:[%s2205 + $0x187] sm:$0xff]
      %v2231 = vld [vmem:[%s2205 + $0x18f] sm:$0xff]
      %v2232 = vld [vmem:[%s2205 + $0x1a7] sm:$0xff]
      %v2233 = vld [vmem:[%s2205 + $0x1af] sm:$0xff]
      %v2234 = vld [vmem:[%s2205 + $0x1c7] sm:$0xff]
      %v2235 = vld [vmem:[%s2205 + $0x1cf] sm:$0xff]
      %v2236 = vld [vmem:[%s2205 + $0x1e7] sm:$0xff]
      %v2237 = vld [vmem:[%s2205 + $0x1ef] sm:$0xff]
      %s2238 = scalar_lea.vmem %s1, 768
      %v2239 = vld [vmem:[%s2238] sm:$0xff]
      %v2240 = vld [vmem:[%s2238 + $0x8] sm:$0xff]
      %v2241 = vld [vmem:[%s2238 + $0x10] sm:$0xff]
      %v2242 = vld [vmem:[%s2238 + $0x18] sm:$0xff]
      %v2243 = vld [vmem:[%s2238 + $0x20] sm:$0xff]
      %v2244 = vld [vmem:[%s2238 + $0x28] sm:$0xff]
      %v2245 = vld [vmem:[%s2238 + $0x30] sm:$0xff]
      %v2246 = vld [vmem:[%s2238 + $0x38] sm:$0xff]
      %v2247 = vld [vmem:[%s2238 + $0x40] sm:$0xff]
      %v2248 = vld [vmem:[%s2238 + $0x48] sm:$0xff]
      %v2249 = vld [vmem:[%s2238 + $0x50] sm:$0xff]
      %v2250 = vld [vmem:[%s2238 + $0x58] sm:$0xff]
      %v2251 = vld [vmem:[%s2238 + $0x60] sm:$0xff]
      %v2252 = vld [vmem:[%s2238 + $0x68] sm:$0xff]
      %v2253 = vld [vmem:[%s2238 + $0x70] sm:$0xff]
      %v2254 = vld [vmem:[%s2238 + $0x78] sm:$0xff]
      %2255 = vmatprep.subr.mxu0 0.0
      %2256 = vmatpush1.msra.mxu0 %v2239
      %2257 = vmatprep.subr.mxu0 0.0
      %2258 = vmatpush1.msra.mxu0 %v2240
      %2259 = vmatprep.subr.mxu0 0.0
      %2260 = vmatpush1.msra.mxu0 %v2241
      %2261 = vmatprep.subr.mxu0 0.0
      %2262 = vmatpush1.msra.mxu0 %v2242
      %2263 = vmatprep.subr.mxu0 0.0
      %2264 = vmatpush1.msra.mxu0 %v2243
      %2265 = vmatprep.subr.mxu0 0.0
      %2266 = vmatpush1.msra.mxu0 %v2244
      %2267 = vmatprep.subr.mxu0 0.0
      %2268 = vmatpush1.msra.mxu0 %v2245
      %2269 = vmatprep.subr.mxu0 0.0
      %2270 = vmatpush1.msra.mxu0 %v2246
      %2271 = vmatprep.subr.mxu0 0.0
      %2272 = vmatpush1.msra.mxu0 %v2247
      %2273 = vmatprep.subr.mxu0 0.0
      %2274 = vmatpush1.msra.mxu0 %v2248
      %2275 = vmatprep.subr.mxu0 0.0
      %2276 = vmatpush1.msra.mxu0 %v2249
      %2277 = vmatprep.subr.mxu0 0.0
      %2278 = vmatpush1.msra.mxu0 %v2250
      %2279 = vmatprep.subr.mxu0 0.0
      %2280 = vmatpush1.msra.mxu0 %v2251
      %2281 = vmatprep.subr.mxu0 0.0
      %2282 = vmatpush1.msra.mxu0 %v2252
      %2283 = vmatprep.subr.mxu0 0.0
      %2284 = vmatpush1.msra.mxu0 %v2253
      %2285 = vmatprep.subr.mxu0 0.0
      %2286 = vmatpush1.msra.mxu0 %v2254
      %2287 = vmatprep.subr.mxu0 0.0
      %2288 = vmatpush1.msra.mxu0 0.0
      %2289 = vmatprep.subr.mxu0 0.0
      %2290 = vmatpush1.msra.mxu0 0.0
      %2291 = vmatprep.subr.mxu0 0.0
      %2292 = vmatpush1.msra.mxu0 0.0
      %2293 = vmatprep.subr.mxu0 0.0
      %2294 = vmatpush1.msra.mxu0 0.0
      %2295 = vmatprep.subr.mxu0 0.0
      %2296 = vmatpush1.msra.mxu0 0.0
      %2297 = vmatprep.subr.mxu0 0.0
      %2298 = vmatpush1.msra.mxu0 0.0
      %2299 = vmatprep.subr.mxu0 0.0
      %2300 = vmatpush1.msra.mxu0 0.0
      %2301 = vmatprep.subr.mxu0 0.0
      %2302 = vmatpush1.msra.mxu0 0.0
      %2303 = vmatprep.subr.mxu0 0.0
      %2304 = vmatpush1.msra.mxu0 0.0
      %2305 = vmatprep.subr.mxu0 0.0
      %2306 = vmatpush1.msra.mxu0 0.0
      %2307 = vmatprep.subr.mxu0 0.0
      %2308 = vmatpush1.msra.mxu0 0.0
      %2309 = vmatprep.subr.mxu0 0.0
      %2310 = vmatpush1.msra.mxu0 0.0
      %2311 = vmatprep.subr.mxu0 0.0
      %2312 = vmatpush1.msra.mxu0 0.0
      %2313 = vmatprep.subr.mxu0 0.0
      %2314 = vmatpush1.msra.mxu0 0.0
      %2315 = vmatprep.subr.mxu0 0.0
      %2316 = vmatpush1.msra.mxu0 0.0
      %2317 = vmatprep.subr.mxu0 0.0
      %2318 = vmatpush1.msra.mxu0 0.0
      %2319 = vmatprep.mubr.f32.mxu0 0.0
      %2320 = vmatmul.mubr.f32.gmra.mrb[0].mxu0 %v2206
      %v2321 = vpop.f32.mrb[0].mxu0
      %v2322 = vadd.f32 0.0, %v2321
      %v2323 = vpop.f32.mrb[0].mxu0
      %2324 = vmatprep.mubr.f32.mxu0 0.0
      %2325 = vmatmul.mubr.f32.gmra.mrb[0].mxu0 %v2207
      %v2326 = vpop.f32.mrb[0].mxu0
      %v2327 = vadd.f32 0.0, %v2326
      %v2328 = vpop.f32.mrb[0].mxu0
      %2329 = vmatprep.mubr.f32.mxu0 0.0
      %2330 = vmatmul.mubr.f32.gmra.mrb[0].mxu0 %v2208
      %v2331 = vpop.f32.mrb[0].mxu0
      %v2332 = vadd.f32 0.0, %v2331
      %v2333 = vpop.f32.mrb[0].mxu0
      %2334 = vmatprep.mubr.f32.mxu0 0.0
      %2335 = vmatmul.mubr.f32.gmra.mrb[0].mxu0 %v2209
      %v2336 = vpop.f32.mrb[0].mxu0
      %v2337 = vadd.f32 0.0, %v2336
      %v2338 = vpop.f32.mrb[0].mxu0
      %2339 = vmatprep.mubr.f32.mxu0 0.0
      %2340 = vmatmul.mubr.f32.gmra.mrb[0].mxu0 %v2210
      %v2341 = vpop.f32.mrb[0].mxu0
      %v2342 = vadd.f32 0.0, %v2341
      %v2343 = vpop.f32.mrb[0].mxu0
      %2344 = vmatprep.mubr.f32.mxu0 0.0
      %2345 = vmatmul.mubr.f32.gmra.mrb[0].mxu0 %v2211
      %v2346 = vpop.f32.mrb[0].mxu0
      %v2347 = vadd.f32 0.0, %v2346
      %v2348 = vpop.f32.mrb[0].mxu0
      %2349 = vmatprep.mubr.f32.mxu0 0.0
      %2350 = vmatmul.mubr.f32.gmra.mrb[0].mxu0 %v2212
      %v2351 = vpop.f32.mrb[0].mxu0
      %v2352 = vadd.f32 0.0, %v2351
      %v2353 = vpop.f32.mrb[0].mxu0
      %2354 = vmatprep.mubr.f32.mxu0 0.0
      %2355 = vmatmul.mubr.f32.gmra.mrb[0].mxu0 %v2213
      %v2356 = vpop.f32.mrb[0].mxu0
      %v2357 = vadd.f32 0.0, %v2356
      %v2358 = vpop.f32.mrb[0].mxu0
      %2359 = vmatprep.mubr.f32.mxu0 0.0
      %2360 = vmatmul.mubr.f32.gmra.mrb[0].mxu0 %v2214
      %v2361 = vpop.f32.mrb[0].mxu0
      %v2362 = vadd.f32 0.0, %v2361
      %v2363 = vpop.f32.mrb[0].mxu0
      %2364 = vmatprep.mubr.f32.mxu0 0.0
      %2365 = vmatmul.mubr.f32.gmra.mrb[0].mxu0 %v2215
      %v2366 = vpop.f32.mrb[0].mxu0
      %v2367 = vadd.f32 0.0, %v2366
      %v2368 = vpop.f32.mrb[0].mxu0
      %2369 = vmatprep.mubr.f32.mxu0 0.0
      %2370 = vmatmul.mubr.f32.gmra.mrb[0].mxu0 %v2216
      %v2371 = vpop.f32.mrb[0].mxu0
      %v2372 = vadd.f32 0.0, %v2371
      %v2373 = vpop.f32.mrb[0].mxu0
      %2374 = vmatprep.mubr.f32.mxu0 0.0
      %2375 = vmatmul.mubr.f32.gmra.mrb[0].mxu0 %v2217
      %v2376 = vpop.f32.mrb[0].mxu0
      %v2377 = vadd.f32 0.0, %v2376
      %v2378 = vpop.f32.mrb[0].mxu0
      %2379 = vmatprep.mubr.f32.mxu0 0.0
      %2380 = vmatmul.mubr.f32.gmra.mrb[0].mxu0 %v2218
      %v2381 = vpop.f32.mrb[0].mxu0
      %v2382 = vadd.f32 0.0, %v2381
      %v2383 = vpop.f32.mrb[0].mxu0
      %2384 = vmatprep.mubr.f32.mxu0 0.0
      %2385 = vmatmul.mubr.f32.gmra.mrb[0].mxu0 %v2219
      %v2386 = vpop.f32.mrb[0].mxu0
      %v2387 = vadd.f32 0.0, %v2386
      %v2388 = vpop.f32.mrb[0].mxu0
      %2389 = vmatprep.mubr.f32.mxu0 0.0
      %2390 = vmatmul.mubr.f32.gmra.mrb[0].mxu0 %v2220
      %v2391 = vpop.f32.mrb[0].mxu0
      %v2392 = vadd.f32 0.0, %v2391
      %v2393 = vpop.f32.mrb[0].mxu0
      %2394 = vmatprep.mubr.f32.mxu0 0.0
      %2395 = vmatmul.mubr.f32.gmra.mrb[0].mxu0 %v2221
      %v2396 = vpop.f32.mrb[0].mxu0
      %v2397 = vadd.f32 0.0, %v2396
      %v2398 = vpop.f32.mrb[0].mxu0
      %2399 = vmatprep.mubr.f32.mxu0 0.0
      %2400 = vmatmul.mubr.f32.gmra.mrb[0].mxu0 %v2222
      %v2401 = vpop.f32.mrb[0].mxu0
      %v2402 = vadd.f32 0.0, %v2401
      %v2403 = vpop.f32.mrb[0].mxu0
      %2404 = vmatprep.mubr.f32.mxu0 0.0
      %2405 = vmatmul.mubr.f32.gmra.mrb[0].mxu0 %v2223
      %v2406 = vpop.f32.mrb[0].mxu0
      %v2407 = vadd.f32 0.0, %v2406
      %v2408 = vpop.f32.mrb[0].mxu0
      %2409 = vmatprep.mubr.f32.mxu0 0.0
      %2410 = vmatmul.mubr.f32.gmra.mrb[0].mxu0 %v2224
      %v2411 = vpop.f32.mrb[0].mxu0
      %v2412 = vadd.f32 0.0, %v2411
      %v2413 = vpop.f32.mrb[0].mxu0
      %2414 = vmatprep.mubr.f32.mxu0 0.0
      %2415 = vmatmul.mubr.f32.gmra.mrb[0].mxu0 %v2225
      %v2416 = vpop.f32.mrb[0].mxu0
      %v2417 = vadd.f32 0.0, %v2416
      %v2418 = vpop.f32.mrb[0].mxu0
      %2419 = vmatprep.mubr.f32.mxu0 0.0
      %2420 = vmatmul.mubr.f32.gmra.mrb[0].mxu0 %v2226
      %v2421 = vpop.f32.mrb[0].mxu0
      %v2422 = vadd.f32 0.0, %v2421
      %v2423 = vpop.f32.mrb[0].mxu0
      %2424 = vmatprep.mubr.f32.mxu0 0.0
      %2425 = vmatmul.mubr.f32.gmra.mrb[0].mxu0 %v2227
      %v2426 = vpop.f32.mrb[0].mxu0
      %v2427 = vadd.f32 0.0, %v2426
      %v2428 = vpop.f32.mrb[0].mxu0
      %2429 = vmatprep.mubr.f32.mxu0 0.0
      %2430 = vmatmul.mubr.f32.gmra.mrb[0].mxu0 %v2228
      %v2431 = vpop.f32.mrb[0].mxu0
      %v2432 = vadd.f32 0.0, %v2431
      %v2433 = vpop.f32.mrb[0].mxu0
      %2434 = vmatprep.mubr.f32.mxu0 0.0
      %2435 = vmatmul.mubr.f32.gmra.mrb[0].mxu0 %v2229
      %v2436 = vpop.f32.mrb[0].mxu0
      %v2437 = vadd.f32 0.0, %v2436
      %v2438 = vpop.f32.mrb[0].mxu0
      %2439 = vmatprep.mubr.f32.mxu0 0.0
      %2440 = vmatmul.mubr.f32.gmra.mrb[0].mxu0 %v2230
      %v2441 = vpop.f32.mrb[0].mxu0
      %v2442 = vadd.f32 0.0, %v2441
      %v2443 = vpop.f32.mrb[0].mxu0
      %2444 = vmatprep.mubr.f32.mxu0 0.0
      %2445 = vmatmul.mubr.f32.gmra.mrb[0].mxu0 %v2231
      %v2446 = vpop.f32.mrb[0].mxu0
      %v2447 = vadd.f32 0.0, %v2446
      %v2448 = vpop.f32.mrb[0].mxu0
      %2449 = vmatprep.mubr.f32.mxu0 0.0
      %2450 = vmatmul.mubr.f32.gmra.mrb[0].mxu0 %v2232
      %v2451 = vpop.f32.mrb[0].mxu0
      %v2452 = vadd.f32 0.0, %v2451
      %v2453 = vpop.f32.mrb[0].mxu0
      %2454 = vmatprep.mubr.f32.mxu0 0.0
      %2455 = vmatmul.mubr.f32.gmra.mrb[0].mxu0 %v2233
      %v2456 = vpop.f32.mrb[0].mxu0
      %v2457 = vadd.f32 0.0, %v2456
      %v2458 = vpop.f32.mrb[0].mxu0
      %2459 = vmatprep.mubr.f32.mxu0 0.0
      %2460 = vmatmul.mubr.f32.gmra.mrb[0].mxu0 %v2234
      %v2461 = vpop.f32.mrb[0].mxu0
      %v2462 = vadd.f32 0.0, %v2461
      %v2463 = vpop.f32.mrb[0].mxu0
      %2464 = vmatprep.mubr.f32.mxu0 0.0
      %2465 = vmatmul.mubr.f32.gmra.mrb[0].mxu0 %v2235
      %v2466 = vpop.f32.mrb[0].mxu0
      %v2467 = vadd.f32 0.0, %v2466
      %v2468 = vpop.f32.mrb[0].mxu0
      %2469 = vmatprep.mubr.f32.mxu0 0.0
      %2470 = vmatmul.mubr.f32.gmra.mrb[0].mxu0 %v2236
      %v2471 = vpop.f32.mrb[0].mxu0
      %v2472 = vadd.f32 0.0, %v2471
      %v2473 = vpop.f32.mrb[0].mxu0
      %2474 = vmatprep.mubr.f32.mxu0 0.0
      %2475 = vmatmul.mubr.f32.gmra.mrb[0].mxu0 %v2237
      %v2476 = vpop.f32.mrb[0].mxu0
      %v2477 = vadd.f32 0.0, %v2476
      %v2478 = vpop.f32.mrb[0].mxu0
      %2479 = vdwg.mxu0
      %v2480 = vadd.f32 %v2173, %v2322
      %v2481 = vadd.f32 %v2174, %v2327
      %v2482 = vadd.f32 %v2175, %v2332
      %v2483 = vadd.f32 %v2176, %v2337
      %v2484 = vadd.f32 %v2177, %v2342
      %v2485 = vadd.f32 %v2178, %v2347
      %v2486 = vadd.f32 %v2179, %v2352
      %v2487 = vadd.f32 %v2180, %v2357
      %v2488 = vadd.f32 %v2181, %v2362
      %v2489 = vadd.f32 %v2182, %v2367
      %v2490 = vadd.f32 %v2183, %v2372
      %v2491 = vadd.f32 %v2184, %v2377
      %v2492 = vadd.f32 %v2185, %v2382
      %v2493 = vadd.f32 %v2186, %v2387
      %v2494 = vadd.f32 %v2187, %v2392
      %v2495 = vadd.f32 %v2188, %v2397
      %v2496 = vadd.f32 %v2189, %v2402
      %v2497 = vadd.f32 %v2190, %v2407
      %v2498 = vadd.f32 %v2191, %v2412
      %v2499 = vadd.f32 %v2192, %v2417
      %v2500 = vadd.f32 %v2193, %v2422
      %v2501 = vadd.f32 %v2194, %v2427
      %v2502 = vadd.f32 %v2195, %v2432
      %v2503 = vadd.f32 %v2196, %v2437
      %v2504 = vadd.f32 %v2197, %v2442
      %v2505 = vadd.f32 %v2198, %v2447
      %v2506 = vadd.f32 %v2199, %v2452
      %v2507 = vadd.f32 %v2200, %v2457
      %v2508 = vadd.f32 %v2201, %v2462
      %v2509 = vadd.f32 %v2202, %v2467
      %v2510 = vadd.f32 %v2203, %v2472
      %v2511 = vadd.f32 %v2204, %v2477
      %v2512 = vld [vmem:[%s2205 + $0x8] sm:$0xff]
      %v2513 = vld [vmem:[%s2205 + $0x10] sm:$0xff]
      %v2514 = vld [vmem:[%s2205 + $0x28] sm:$0xff]
      %v2515 = vld [vmem:[%s2205 + $0x30] sm:$0xff]
      %v2516 = vld [vmem:[%s2205 + $0x48] sm:$0xff]
      %v2517 = vld [vmem:[%s2205 + $0x50] sm:$0xff]
      %v2518 = vld [vmem:[%s2205 + $0x68] sm:$0xff]
      %v2519 = vld [vmem:[%s2205 + $0x70] sm:$0xff]
      %v2520 = vld [vmem:[%s2205 + $0x88] sm:$0xff]
      %v2521 = vld [vmem:[%s2205 + $0x90] sm:$0xff]
      %v2522 = vld [vmem:[%s2205 + $0xa8] sm:$0xff]
      %v2523 = vld [vmem:[%s2205 + $0xb0] sm:$0xff]
      %v2524 = vld [vmem:[%s2205 + $0xc8] sm:$0xff]
      %v2525 = vld [vmem:[%s2205 + $0xd0] sm:$0xff]
      %v2526 = vld [vmem:[%s2205 + $0xe8] sm:$0xff]
      %v2527 = vld [vmem:[%s2205 + $0xf0] sm:$0xff]
      %v2528 = vld [vmem:[%s2205 + $0x108] sm:$0xff]
      %v2529 = vld [vmem:[%s2205 + $0x110] sm:$0xff]
      %v2530 = vld [vmem:[%s2205 + $0x128] sm:$0xff]
      %v2531 = vld [vmem:[%s2205 + $0x130] sm:$0xff]
      %v2532 = vld [vmem:[%s2205 + $0x148] sm:$0xff]
      %v2533 = vld [vmem:[%s2205 + $0x150] sm:$0xff]
      %v2534 = vld [vmem:[%s2205 + $0x168] sm:$0xff]
      %v2535 = vld [vmem:[%s2205 + $0x170] sm:$0xff]
      %v2536 = vld [vmem:[%s2205 + $0x188] sm:$0xff]
      %v2537 = vld [vmem:[%s2205 + $0x190] sm:$0xff]
      %v2538 = vld [vmem:[%s2205 + $0x1a8] sm:$0xff]
      %v2539 = vld [vmem:[%s2205 + $0x1b0] sm:$0xff]
      %v2540 = vld [vmem:[%s2205 + $0x1c8] sm:$0xff]
      %v2541 = vld [vmem:[%s2205 + $0x1d0] sm:$0xff]
      %v2542 = vld [vmem:[%s2205 + $0x1e8] sm:$0xff]
      %v2543 = vld [vmem:[%s2205 + $0x1f0] sm:$0xff]
      %s2544 = scalar_lea.vmem %s1, 896
      %v2545 = vld [vmem:[%s2544] sm:$0xff]
      %v2546 = vld [vmem:[%s2544 + $0x8] sm:$0xff]
      %v2547 = vld [vmem:[%s2544 + $0x10] sm:$0xff]
      %v2548 = vld [vmem:[%s2544 + $0x18] sm:$0xff]
      %v2549 = vld [vmem:[%s2544 + $0x20] sm:$0xff]
      %v2550 = vld [vmem:[%s2544 + $0x28] sm:$0xff]
      %v2551 = vld [vmem:[%s2544 + $0x30] sm:$0xff]
      %v2552 = vld [vmem:[%s2544 + $0x38] sm:$0xff]
      %v2553 = vld [vmem:[%s2544 + $0x40] sm:$0xff]
      %v2554 = vld [vmem:[%s2544 + $0x48] sm:$0xff]
      %v2555 = vld [vmem:[%s2544 + $0x50] sm:$0xff]
      %v2556 = vld [vmem:[%s2544 + $0x58] sm:$0xff]
      %v2557 = vld [vmem:[%s2544 + $0x60] sm:$0xff]
      %v2558 = vld [vmem:[%s2544 + $0x68] sm:$0xff]
      %v2559 = vld [vmem:[%s2544 + $0x70] sm:$0xff]
      %v2560 = vld [vmem:[%s2544 + $0x78] sm:$0xff]
      %2561 = vmatprep.subr.mxu0 0.0
      %2562 = vmatpush1.msra.mxu0 %v2545
      %2563 = vmatprep.subr.mxu0 0.0
      %2564 = vmatpush1.msra.mxu0 %v2546
      %2565 = vmatprep.subr.mxu0 0.0
      %2566 = vmatpush1.msra.mxu0 %v2547
      %2567 = vmatprep.subr.mxu0 0.0
      %2568 = vmatpush1.msra.mxu0 %v2548
      %2569 = vmatprep.subr.mxu0 0.0
      %2570 = vmatpush1.msra.mxu0 %v2549
      %2571 = vmatprep.subr.mxu0 0.0
      %2572 = vmatpush1.msra.mxu0 %v2550
      %2573 = vmatprep.subr.mxu0 0.0
      %2574 = vmatpush1.msra.mxu0 %v2551
      %2575 = vmatprep.subr.mxu0 0.0
      %2576 = vmatpush1.msra.mxu0 %v2552
      %2577 = vmatprep.subr.mxu0 0.0
      %2578 = vmatpush1.msra.mxu0 %v2553
      %2579 = vmatprep.subr.mxu0 0.0
      %2580 = vmatpush1.msra.mxu0 %v2554
      %2581 = vmatprep.subr.mxu0 0.0
      %2582 = vmatpush1.msra.mxu0 %v2555
      %2583 = vmatprep.subr.mxu0 0.0
      %2584 = vmatpush1.msra.mxu0 %v2556
      %2585 = vmatprep.subr.mxu0 0.0
      %2586 = vmatpush1.msra.mxu0 %v2557
      %2587 = vmatprep.subr.mxu0 0.0
      %2588 = vmatpush1.msra.mxu0 %v2558
      %2589 = vmatprep.subr.mxu0 0.0
      %2590 = vmatpush1.msra.mxu0 %v2559
      %2591 = vmatprep.subr.mxu0 0.0
      %2592 = vmatpush1.msra.mxu0 %v2560
      %2593 = vmatprep.subr.mxu0 0.0
      %2594 = vmatpush1.msra.mxu0 0.0
      %2595 = vmatprep.subr.mxu0 0.0
      %2596 = vmatpush1.msra.mxu0 0.0
      %2597 = vmatprep.subr.mxu0 0.0
      %2598 = vmatpush1.msra.mxu0 0.0
      %2599 = vmatprep.subr.mxu0 0.0
      %2600 = vmatpush1.msra.mxu0 0.0
      %2601 = vmatprep.subr.mxu0 0.0
      %2602 = vmatpush1.msra.mxu0 0.0
      %2603 = vmatprep.subr.mxu0 0.0
      %2604 = vmatpush1.msra.mxu0 0.0
      %2605 = vmatprep.subr.mxu0 0.0
      %2606 = vmatpush1.msra.mxu0 0.0
      %2607 = vmatprep.subr.mxu0 0.0
      %2608 = vmatpush1.msra.mxu0 0.0
      %2609 = vmatprep.subr.mxu0 0.0
      %2610 = vmatpush1.msra.mxu0 0.0
      %2611 = vmatprep.subr.mxu0 0.0
      %2612 = vmatpush1.msra.mxu0 0.0
      %2613 = vmatprep.subr.mxu0 0.0
      %2614 = vmatpush1.msra.mxu0 0.0
      %2615 = vmatprep.subr.mxu0 0.0
      %2616 = vmatpush1.msra.mxu0 0.0
      %2617 = vmatprep.subr.mxu0 0.0
      %2618 = vmatpush1.msra.mxu0 0.0
      %2619 = vmatprep.subr.mxu0 0.0
      %2620 = vmatpush1.msra.mxu0 0.0
      %2621 = vmatprep.subr.mxu0 0.0
      %2622 = vmatpush1.msra.mxu0 0.0
      %2623 = vmatprep.subr.mxu0 0.0
      %2624 = vmatpush1.msra.mxu0 0.0
      %2625 = vmatprep.mubr.f32.mxu0 0.0
      %2626 = vmatmul.mubr.f32.gmra.mrb[0].mxu0 %v2512
      %v2627 = vpop.f32.mrb[0].mxu0
      %v2628 = vadd.f32 0.0, %v2627
      %v2629 = vpop.f32.mrb[0].mxu0
      %2630 = vmatprep.mubr.f32.mxu0 0.0
      %2631 = vmatmul.mubr.f32.gmra.mrb[0].mxu0 %v2513
      %v2632 = vpop.f32.mrb[0].mxu0
      %v2633 = vadd.f32 0.0, %v2632
      %v2634 = vpop.f32.mrb[0].mxu0
      %2635 = vmatprep.mubr.f32.mxu0 0.0
      %2636 = vmatmul.mubr.f32.gmra.mrb[0].mxu0 %v2514
      %v2637 = vpop.f32.mrb[0].mxu0
      %v2638 = vadd.f32 0.0, %v2637
      %v2639 = vpop.f32.mrb[0].mxu0
      %2640 = vmatprep.mubr.f32.mxu0 0.0
      %2641 = vmatmul.mubr.f32.gmra.mrb[0].mxu0 %v2515
      %v2642 = vpop.f32.mrb[0].mxu0
      %v2643 = vadd.f32 0.0, %v2642
      %v2644 = vpop.f32.mrb[0].mxu0
      %2645 = vmatprep.mubr.f32.mxu0 0.0
      %2646 = vmatmul.mubr.f32.gmra.mrb[0].mxu0 %v2516
      %v2647 = vpop.f32.mrb[0].mxu0
      %v2648 = vadd.f32 0.0, %v2647
      %v2649 = vpop.f32.mrb[0].mxu0
      %2650 = vmatprep.mubr.f32.mxu0 0.0
      %2651 = vmatmul.mubr.f32.gmra.mrb[0].mxu0 %v2517
      %v2652 = vpop.f32.mrb[0].mxu0
      %v2653 = vadd.f32 0.0, %v2652
      %v2654 = vpop.f32.mrb[0].mxu0
      %2655 = vmatprep.mubr.f32.mxu0 0.0
      %2656 = vmatmul.mubr.f32.gmra.mrb[0].mxu0 %v2518
      %v2657 = vpop.f32.mrb[0].mxu0
      %v2658 = vadd.f32 0.0, %v2657
      %v2659 = vpop.f32.mrb[0].mxu0
      %2660 = vmatprep.mubr.f32.mxu0 0.0
      %2661 = vmatmul.mubr.f32.gmra.mrb[0].mxu0 %v2519
      %v2662 = vpop.f32.mrb[0].mxu0
      %v2663 = vadd.f32 0.0, %v2662
      %v2664 = vpop.f32.mrb[0].mxu0
      %2665 = vmatprep.mubr.f32.mxu0 0.0
      %2666 = vmatmul.mubr.f32.gmra.mrb[0].mxu0 %v2520
      %v2667 = vpop.f32.mrb[0].mxu0
      %v2668 = vadd.f32 0.0, %v2667
      %v2669 = vpop.f32.mrb[0].mxu0
      %2670 = vmatprep.mubr.f32.mxu0 0.0
      %2671 = vmatmul.mubr.f32.gmra.mrb[0].mxu0 %v2521
      %v2672 = vpop.f32.mrb[0].mxu0
      %v2673 = vadd.f32 0.0, %v2672
      %v2674 = vpop.f32.mrb[0].mxu0
      %2675 = vmatprep.mubr.f32.mxu0 0.0
      %2676 = vmatmul.mubr.f32.gmra.mrb[0].mxu0 %v2522
      %v2677 = vpop.f32.mrb[0].mxu0
      %v2678 = vadd.f32 0.0, %v2677
      %v2679 = vpop.f32.mrb[0].mxu0
      %2680 = vmatprep.mubr.f32.mxu0 0.0
      %2681 = vmatmul.mubr.f32.gmra.mrb[0].mxu0 %v2523
      %v2682 = vpop.f32.mrb[0].mxu0
      %v2683 = vadd.f32 0.0, %v2682
      %v2684 = vpop.f32.mrb[0].mxu0
      %2685 = vmatprep.mubr.f32.mxu0 0.0
      %2686 = vmatmul.mubr.f32.gmra.mrb[0].mxu0 %v2524
      %v2687 = vpop.f32.mrb[0].mxu0
      %v2688 = vadd.f32 0.0, %v2687
      %v2689 = vpop.f32.mrb[0].mxu0
      %2690 = vmatprep.mubr.f32.mxu0 0.0
      %2691 = vmatmul.mubr.f32.gmra.mrb[0].mxu0 %v2525
      %v2692 = vpop.f32.mrb[0].mxu0
      %v2693 = vadd.f32 0.0, %v2692
      %v2694 = vpop.f32.mrb[0].mxu0
      %2695 = vmatprep.mubr.f32.mxu0 0.0
      %2696 = vmatmul.mubr.f32.gmra.mrb[0].mxu0 %v2526
      %v2697 = vpop.f32.mrb[0].mxu0
      %v2698 = vadd.f32 0.0, %v2697
      %v2699 = vpop.f32.mrb[0].mxu0
      %2700 = vmatprep.mubr.f32.mxu0 0.0
      %2701 = vmatmul.mubr.f32.gmra.mrb[0].mxu0 %v2527
      %v2702 = vpop.f32.mrb[0].mxu0
      %v2703 = vadd.f32 0.0, %v2702
      %v2704 = vpop.f32.mrb[0].mxu0
      %2705 = vmatprep.mubr.f32.mxu0 0.0
      %2706 = vmatmul.mubr.f32.gmra.mrb[0].mxu0 %v2528
      %v2707 = vpop.f32.mrb[0].mxu0
      %v2708 = vadd.f32 0.0, %v2707
      %v2709 = vpop.f32.mrb[0].mxu0
      %2710 = vmatprep.mubr.f32.mxu0 0.0
      %2711 = vmatmul.mubr.f32.gmra.mrb[0].mxu0 %v2529
      %v2712 = vpop.f32.mrb[0].mxu0
      %v2713 = vadd.f32 0.0, %v2712
      %v2714 = vpop.f32.mrb[0].mxu0
      %2715 = vmatprep.mubr.f32.mxu0 0.0
      %2716 = vmatmul.mubr.f32.gmra.mrb[0].mxu0 %v2530
      %v2717 = vpop.f32.mrb[0].mxu0
      %v2718 = vadd.f32 0.0, %v2717
      %v2719 = vpop.f32.mrb[0].mxu0
      %2720 = vmatprep.mubr.f32.mxu0 0.0
      %2721 = vmatmul.mubr.f32.gmra.mrb[0].mxu0 %v2531
      %v2722 = vpop.f32.mrb[0].mxu0
      %v2723 = vadd.f32 0.0, %v2722
      %v2724 = vpop.f32.mrb[0].mxu0
      %2725 = vmatprep.mubr.f32.mxu0 0.0
      %2726 = vmatmul.mubr.f32.gmra.mrb[0].mxu0 %v2532
      %v2727 = vpop.f32.mrb[0].mxu0
      %v2728 = vadd.f32 0.0, %v2727
      %v2729 = vpop.f32.mrb[0].mxu0
      %2730 = vmatprep.mubr.f32.mxu0 0.0
      %2731 = vmatmul.mubr.f32.gmra.mrb[0].mxu0 %v2533
      %v2732 = vpop.f32.mrb[0].mxu0
      %v2733 = vadd.f32 0.0, %v2732
      %v2734 = vpop.f32.mrb[0].mxu0
      %2735 = vmatprep.mubr.f32.mxu0 0.0
      %2736 = vmatmul.mubr.f32.gmra.mrb[0].mxu0 %v2534
      %v2737 = vpop.f32.mrb[0].mxu0
      %v2738 = vadd.f32 0.0, %v2737
      %v2739 = vpop.f32.mrb[0].mxu0
      %2740 = vmatprep.mubr.f32.mxu0 0.0
      %2741 = vmatmul.mubr.f32.gmra.mrb[0].mxu0 %v2535
      %v2742 = vpop.f32.mrb[0].mxu0
      %v2743 = vadd.f32 0.0, %v2742
      %v2744 = vpop.f32.mrb[0].mxu0
      %2745 = vmatprep.mubr.f32.mxu0 0.0
      %2746 = vmatmul.mubr.f32.gmra.mrb[0].mxu0 %v2536
      %v2747 = vpop.f32.mrb[0].mxu0
      %v2748 = vadd.f32 0.0, %v2747
      %v2749 = vpop.f32.mrb[0].mxu0
      %2750 = vmatprep.mubr.f32.mxu0 0.0
      %2751 = vmatmul.mubr.f32.gmra.mrb[0].mxu0 %v2537
      %v2752 = vpop.f32.mrb[0].mxu0
      %v2753 = vadd.f32 0.0, %v2752
      %v2754 = vpop.f32.mrb[0].mxu0
      %2755 = vmatprep.mubr.f32.mxu0 0.0
      %2756 = vmatmul.mubr.f32.gmra.mrb[0].mxu0 %v2538
      %v2757 = vpop.f32.mrb[0].mxu0
      %v2758 = vadd.f32 0.0, %v2757
      %v2759 = vpop.f32.mrb[0].mxu0
      %2760 = vmatprep.mubr.f32.mxu0 0.0
      %2761 = vmatmul.mubr.f32.gmra.mrb[0].mxu0 %v2539
      %v2762 = vpop.f32.mrb[0].mxu0
      %v2763 = vadd.f32 0.0, %v2762
      %v2764 = vpop.f32.mrb[0].mxu0
      %2765 = vmatprep.mubr.f32.mxu0 0.0
      %2766 = vmatmul.mubr.f32.gmra.mrb[0].mxu0 %v2540
      %v2767 = vpop.f32.mrb[0].mxu0
      %v2768 = vadd.f32 0.0, %v2767
      %v2769 = vpop.f32.mrb[0].mxu0
      %2770 = vmatprep.mubr.f32.mxu0 0.0
      %2771 = vmatmul.mubr.f32.gmra.mrb[0].mxu0 %v2541
      %v2772 = vpop.f32.mrb[0].mxu0
      %v2773 = vadd.f32 0.0, %v2772
      %v2774 = vpop.f32.mrb[0].mxu0
      %2775 = vmatprep.mubr.f32.mxu0 0.0
      %2776 = vmatmul.mubr.f32.gmra.mrb[0].mxu0 %v2542
      %v2777 = vpop.f32.mrb[0].mxu0
      %v2778 = vadd.f32 0.0, %v2777
      %v2779 = vpop.f32.mrb[0].mxu0
      %2780 = vmatprep.mubr.f32.mxu0 0.0
      %2781 = vmatmul.mubr.f32.gmra.mrb[0].mxu0 %v2543
      %v2782 = vpop.f32.mrb[0].mxu0
      %v2783 = vadd.f32 0.0, %v2782
      %v2784 = vpop.f32.mrb[0].mxu0
      %2785 = vdwg.mxu0
      %v2786 = vadd.f32 %v2480, %v2628
      %v2787 = vadd.f32 %v2481, %v2633
      %v2788 = vadd.f32 %v2482, %v2638
      %v2789 = vadd.f32 %v2483, %v2643
      %v2790 = vadd.f32 %v2484, %v2648
      %v2791 = vadd.f32 %v2485, %v2653
      %v2792 = vadd.f32 %v2486, %v2658
      %v2793 = vadd.f32 %v2487, %v2663
      %v2794 = vadd.f32 %v2488, %v2668
      %v2795 = vadd.f32 %v2489, %v2673
      %v2796 = vadd.f32 %v2490, %v2678
      %v2797 = vadd.f32 %v2491, %v2683
      %v2798 = vadd.f32 %v2492, %v2688
      %v2799 = vadd.f32 %v2493, %v2693
      %v2800 = vadd.f32 %v2494, %v2698
      %v2801 = vadd.f32 %v2495, %v2703
      %v2802 = vadd.f32 %v2496, %v2708
      %v2803 = vadd.f32 %v2497, %v2713
      %v2804 = vadd.f32 %v2498, %v2718
      %v2805 = vadd.f32 %v2499, %v2723
      %v2806 = vadd.f32 %v2500, %v2728
      %v2807 = vadd.f32 %v2501, %v2733
      %v2808 = vadd.f32 %v2502, %v2738
      %v2809 = vadd.f32 %v2503, %v2743
      %v2810 = vadd.f32 %v2504, %v2748
      %v2811 = vadd.f32 %v2505, %v2753
      %v2812 = vadd.f32 %v2506, %v2758
      %v2813 = vadd.f32 %v2507, %v2763
      %v2814 = vadd.f32 %v2508, %v2768
      %v2815 = vadd.f32 %v2509, %v2773
      %v2816 = vadd.f32 %v2510, %v2778
      %v2817 = vadd.f32 %v2511, %v2783
      %v2818 = vld [vmem:[%s2205 + $0x9] sm:$0xff]
      %v2819 = vld [vmem:[%s2205 + $0x11] sm:$0xff]
      %v2820 = vld [vmem:[%s2205 + $0x29] sm:$0xff]
      %v2821 = vld [vmem:[%s2205 + $0x31] sm:$0xff]
      %v2822 = vld [vmem:[%s2205 + $0x49] sm:$0xff]
      %v2823 = vld [vmem:[%s2205 + $0x51] sm:$0xff]
      %v2824 = vld [vmem:[%s2205 + $0x69] sm:$0xff]
      %v2825 = vld [vmem:[%s2205 + $0x71] sm:$0xff]
      %v2826 = vld [vmem:[%s2205 + $0x89] sm:$0xff]
      %v2827 = vld [vmem:[%s2205 + $0x91] sm:$0xff]
      %v2828 = vld [vmem:[%s2205 + $0xa9] sm:$0xff]
      %v2829 = vld [vmem:[%s2205 + $0xb1] sm:$0xff]
      %v2830 = vld [vmem:[%s2205 + $0xc9] sm:$0xff]
      %v2831 = vld [vmem:[%s2205 + $0xd1] sm:$0xff]
      %v2832 = vld [vmem:[%s2205 + $0xe9] sm:$0xff]
      %v2833 = vld [vmem:[%s2205 + $0xf1] sm:$0xff]
      %v2834 = vld [vmem:[%s2205 + $0x109] sm:$0xff]
      %v2835 = vld [vmem:[%s2205 + $0x111] sm:$0xff]
      %v2836 = vld [vmem:[%s2205 + $0x129] sm:$0xff]
      %v2837 = vld [vmem:[%s2205 + $0x131] sm:$0xff]
      %v2838 = vld [vmem:[%s2205 + $0x149] sm:$0xff]
      %v2839 = vld [vmem:[%s2205 + $0x151] sm:$0xff]
      %v2840 = vld [vmem:[%s2205 + $0x169] sm:$0xff]
      %v2841 = vld [vmem:[%s2205 + $0x171] sm:$0xff]
      %v2842 = vld [vmem:[%s2205 + $0x189] sm:$0xff]
      %v2843 = vld [vmem:[%s2205 + $0x191] sm:$0xff]
      %v2844 = vld [vmem:[%s2205 + $0x1a9] sm:$0xff]
      %v2845 = vld [vmem:[%s2205 + $0x1b1] sm:$0xff]
      %v2846 = vld [vmem:[%s2205 + $0x1c9] sm:$0xff]
      %v2847 = vld [vmem:[%s2205 + $0x1d1] sm:$0xff]
      %v2848 = vld [vmem:[%s2205 + $0x1e9] sm:$0xff]
      %v2849 = vld [vmem:[%s2205 + $0x1f1] sm:$0xff]
      %s2850 = scalar_lea.vmem %s1, 1024
      %v2851 = vld [vmem:[%s2850] sm:$0xff]
      %v2852 = vld [vmem:[%s2850 + $0x8] sm:$0xff]
      %v2853 = vld [vmem:[%s2850 + $0x10] sm:$0xff]
      %v2854 = vld [vmem:[%s2850 + $0x18] sm:$0xff]
      %v2855 = vld [vmem:[%s2850 + $0x20] sm:$0xff]
      %v2856 = vld [vmem:[%s2850 + $0x28] sm:$0xff]
      %v2857 = vld [vmem:[%s2850 + $0x30] sm:$0xff]
      %v2858 = vld [vmem:[%s2850 + $0x38] sm:$0xff]
      %v2859 = vld [vmem:[%s2850 + $0x40] sm:$0xff]
      %v2860 = vld [vmem:[%s2850 + $0x48] sm:$0xff]
      %v2861 = vld [vmem:[%s2850 + $0x50] sm:$0xff]
      %v2862 = vld [vmem:[%s2850 + $0x58] sm:$0xff]
      %v2863 = vld [vmem:[%s2850 + $0x60] sm:$0xff]
      %v2864 = vld [vmem:[%s2850 + $0x68] sm:$0xff]
      %v2865 = vld [vmem:[%s2850 + $0x70] sm:$0xff]
      %v2866 = vld [vmem:[%s2850 + $0x78] sm:$0xff]
      %2867 = vmatprep.subr.mxu0 0.0
      %2868 = vmatpush1.msra.mxu0 %v2851
      %2869 = vmatprep.subr.mxu0 0.0
      %2870 = vmatpush1.msra.mxu0 %v2852
      %2871 = vmatprep.subr.mxu0 0.0
      %2872 = vmatpush1.msra.mxu0 %v2853
      %2873 = vmatprep.subr.mxu0 0.0
      %2874 = vmatpush1.msra.mxu0 %v2854
      %2875 = vmatprep.subr.mxu0 0.0
      %2876 = vmatpush1.msra.mxu0 %v2855
      %2877 = vmatprep.subr.mxu0 0.0
      %2878 = vmatpush1.msra.mxu0 %v2856
      %2879 = vmatprep.subr.mxu0 0.0
      %2880 = vmatpush1.msra.mxu0 %v2857
      %2881 = vmatprep.subr.mxu0 0.0
      %2882 = vmatpush1.msra.mxu0 %v2858
      %2883 = vmatprep.subr.mxu0 0.0
      %2884 = vmatpush1.msra.mxu0 %v2859
      %2885 = vmatprep.subr.mxu0 0.0
      %2886 = vmatpush1.msra.mxu0 %v2860
      %2887 = vmatprep.subr.mxu0 0.0
      %2888 = vmatpush1.msra.mxu0 %v2861
      %2889 = vmatprep.subr.mxu0 0.0
      %2890 = vmatpush1.msra.mxu0 %v2862
      %2891 = vmatprep.subr.mxu0 0.0
      %2892 = vmatpush1.msra.mxu0 %v2863
      %2893 = vmatprep.subr.mxu0 0.0
      %2894 = vmatpush1.msra.mxu0 %v2864
      %2895 = vmatprep.subr.mxu0 0.0
      %2896 = vmatpush1.msra.mxu0 %v2865
      %2897 = vmatprep.subr.mxu0 0.0
      %2898 = vmatpush1.msra.mxu0 %v2866
      %2899 = vmatprep.subr.mxu0 0.0
      %2900 = vmatpush1.msra.mxu0 0.0
      %2901 = vmatprep.subr.mxu0 0.0
      %2902 = vmatpush1.msra.mxu0 0.0
      %2903 = vmatprep.subr.mxu0 0.0
      %2904 = vmatpush1.msra.mxu0 0.0
      %2905 = vmatprep.subr.mxu0 0.0
      %2906 = vmatpush1.msra.mxu0 0.0
      %2907 = vmatprep.subr.mxu0 0.0
      %2908 = vmatpush1.msra.mxu0 0.0
      %2909 = vmatprep.subr.mxu0 0.0
      %2910 = vmatpush1.msra.mxu0 0.0
      %2911 = vmatprep.subr.mxu0 0.0
      %2912 = vmatpush1.msra.mxu0 0.0
      %2913 = vmatprep.subr.mxu0 0.0
      %2914 = vmatpush1.msra.mxu0 0.0
      %2915 = vmatprep.subr.mxu0 0.0
      %2916 = vmatpush1.msra.mxu0 0.0
      %2917 = vmatprep.subr.mxu0 0.0
      %2918 = vmatpush1.msra.mxu0 0.0
      %2919 = vmatprep.subr.mxu0 0.0
      %2920 = vmatpush1.msra.mxu0 0.0
      %2921 = vmatprep.subr.mxu0 0.0
      %2922 = vmatpush1.msra.mxu0 0.0
      %2923 = vmatprep.subr.mxu0 0.0
      %2924 = vmatpush1.msra.mxu0 0.0
      %2925 = vmatprep.subr.mxu0 0.0
      %2926 = vmatpush1.msra.mxu0 0.0
      %2927 = vmatprep.subr.mxu0 0.0
      %2928 = vmatpush1.msra.mxu0 0.0
      %2929 = vmatprep.subr.mxu0 0.0
      %2930 = vmatpush1.msra.mxu0 0.0
      %2931 = vmatprep.mubr.f32.mxu0 0.0
      %2932 = vmatmul.mubr.f32.gmra.mrb[0].mxu0 %v2818
      %v2933 = vpop.f32.mrb[0].mxu0
      %v2934 = vadd.f32 0.0, %v2933
      %v2935 = vpop.f32.mrb[0].mxu0
      %2936 = vmatprep.mubr.f32.mxu0 0.0
      %2937 = vmatmul.mubr.f32.gmra.mrb[0].mxu0 %v2819
      %v2938 = vpop.f32.mrb[0].mxu0
      %v2939 = vadd.f32 0.0, %v2938
      %v2940 = vpop.f32.mrb[0].mxu0
      %2941 = vmatprep.mubr.f32.mxu0 0.0
      %2942 = vmatmul.mubr.f32.gmra.mrb[0].mxu0 %v2820
      %v2943 = vpop.f32.mrb[0].mxu0
      %v2944 = vadd.f32 0.0, %v2943
      %v2945 = vpop.f32.mrb[0].mxu0
      %2946 = vmatprep.mubr.f32.mxu0 0.0
      %2947 = vmatmul.mubr.f32.gmra.mrb[0].mxu0 %v2821
      %v2948 = vpop.f32.mrb[0].mxu0
      %v2949 = vadd.f32 0.0, %v2948
      %v2950 = vpop.f32.mrb[0].mxu0
      %2951 = vmatprep.mubr.f32.mxu0 0.0
      %2952 = vmatmul.mubr.f32.gmra.mrb[0].mxu0 %v2822
      %v2953 = vpop.f32.mrb[0].mxu0
      %v2954 = vadd.f32 0.0, %v2953
      %v2955 = vpop.f32.mrb[0].mxu0
      %2956 = vmatprep.mubr.f32.mxu0 0.0
      %2957 = vmatmul.mubr.f32.gmra.mrb[0].mxu0 %v2823
      %v2958 = vpop.f32.mrb[0].mxu0
      %v2959 = vadd.f32 0.0, %v2958
      %v2960 = vpop.f32.mrb[0].mxu0
      %2961 = vmatprep.mubr.f32.mxu0 0.0
      %2962 = vmatmul.mubr.f32.gmra.mrb[0].mxu0 %v2824
      %v2963 = vpop.f32.mrb[0].mxu0
      %v2964 = vadd.f32 0.0, %v2963
      %v2965 = vpop.f32.mrb[0].mxu0
      %2966 = vmatprep.mubr.f32.mxu0 0.0
      %2967 = vmatmul.mubr.f32.gmra.mrb[0].mxu0 %v2825
      %v2968 = vpop.f32.mrb[0].mxu0
      %v2969 = vadd.f32 0.0, %v2968
      %v2970 = vpop.f32.mrb[0].mxu0
      %2971 = vmatprep.mubr.f32.mxu0 0.0
      %2972 = vmatmul.mubr.f32.gmra.mrb[0].mxu0 %v2826
      %v2973 = vpop.f32.mrb[0].mxu0
      %v2974 = vadd.f32 0.0, %v2973
      %v2975 = vpop.f32.mrb[0].mxu0
      %2976 = vmatprep.mubr.f32.mxu0 0.0
      %2977 = vmatmul.mubr.f32.gmra.mrb[0].mxu0 %v2827
      %v2978 = vpop.f32.mrb[0].mxu0
      %v2979 = vadd.f32 0.0, %v2978
      %v2980 = vpop.f32.mrb[0].mxu0
      %2981 = vmatprep.mubr.f32.mxu0 0.0
      %2982 = vmatmul.mubr.f32.gmra.mrb[0].mxu0 %v2828
      %v2983 = vpop.f32.mrb[0].mxu0
      %v2984 = vadd.f32 0.0, %v2983
      %v2985 = vpop.f32.mrb[0].mxu0
      %2986 = vmatprep.mubr.f32.mxu0 0.0
      %2987 = vmatmul.mubr.f32.gmra.mrb[0].mxu0 %v2829
      %v2988 = vpop.f32.mrb[0].mxu0
      %v2989 = vadd.f32 0.0, %v2988
      %v2990 = vpop.f32.mrb[0].mxu0
      %2991 = vmatprep.mubr.f32.mxu0 0.0
      %2992 = vmatmul.mubr.f32.gmra.mrb[0].mxu0 %v2830
      %v2993 = vpop.f32.mrb[0].mxu0
      %v2994 = vadd.f32 0.0, %v2993
      %v2995 = vpop.f32.mrb[0].mxu0
      %2996 = vmatprep.mubr.f32.mxu0 0.0
      %2997 = vmatmul.mubr.f32.gmra.mrb[0].mxu0 %v2831
      %v2998 = vpop.f32.mrb[0].mxu0
      %v2999 = vadd.f32 0.0, %v2998
      %v3000 = vpop.f32.mrb[0].mxu0
      %3001 = vmatprep.mubr.f32.mxu0 0.0
      %3002 = vmatmul.mubr.f32.gmra.mrb[0].mxu0 %v2832
      %v3003 = vpop.f32.mrb[0].mxu0
      %v3004 = vadd.f32 0.0, %v3003
      %v3005 = vpop.f32.mrb[0].mxu0
      %3006 = vmatprep.mubr.f32.mxu0 0.0
      %3007 = vmatmul.mubr.f32.gmra.mrb[0].mxu0 %v2833
      %v3008 = vpop.f32.mrb[0].mxu0
      %v3009 = vadd.f32 0.0, %v3008
      %v3010 = vpop.f32.mrb[0].mxu0
      %3011 = vmatprep.mubr.f32.mxu0 0.0
      %3012 = vmatmul.mubr.f32.gmra.mrb[0].mxu0 %v2834
      %v3013 = vpop.f32.mrb[0].mxu0
      %v3014 = vadd.f32 0.0, %v3013
      %v3015 = vpop.f32.mrb[0].mxu0
      %3016 = vmatprep.mubr.f32.mxu0 0.0
      %3017 = vmatmul.mubr.f32.gmra.mrb[0].mxu0 %v2835
      %v3018 = vpop.f32.mrb[0].mxu0
      %v3019 = vadd.f32 0.0, %v3018
      %v3020 = vpop.f32.mrb[0].mxu0
      %3021 = vmatprep.mubr.f32.mxu0 0.0
      %3022 = vmatmul.mubr.f32.gmra.mrb[0].mxu0 %v2836
      %v3023 = vpop.f32.mrb[0].mxu0
      %v3024 = vadd.f32 0.0, %v3023
      %v3025 = vpop.f32.mrb[0].mxu0
      %3026 = vmatprep.mubr.f32.mxu0 0.0
      %3027 = vmatmul.mubr.f32.gmra.mrb[0].mxu0 %v2837
      %v3028 = vpop.f32.mrb[0].mxu0
      %v3029 = vadd.f32 0.0, %v3028
      %v3030 = vpop.f32.mrb[0].mxu0
      %3031 = vmatprep.mubr.f32.mxu0 0.0
      %3032 = vmatmul.mubr.f32.gmra.mrb[0].mxu0 %v2838
      %v3033 = vpop.f32.mrb[0].mxu0
      %v3034 = vadd.f32 0.0, %v3033
      %v3035 = vpop.f32.mrb[0].mxu0
      %3036 = vmatprep.mubr.f32.mxu0 0.0
      %3037 = vmatmul.mubr.f32.gmra.mrb[0].mxu0 %v2839
      %v3038 = vpop.f32.mrb[0].mxu0
      %v3039 = vadd.f32 0.0, %v3038
      %v3040 = vpop.f32.mrb[0].mxu0
      %3041 = vmatprep.mubr.f32.mxu0 0.0
      %3042 = vmatmul.mubr.f32.gmra.mrb[0].mxu0 %v2840
      %v3043 = vpop.f32.mrb[0].mxu0
      %v3044 = vadd.f32 0.0, %v3043
      %v3045 = vpop.f32.mrb[0].mxu0
      %3046 = vmatprep.mubr.f32.mxu0 0.0
      %3047 = vmatmul.mubr.f32.gmra.mrb[0].mxu0 %v2841
      %v3048 = vpop.f32.mrb[0].mxu0
      %v3049 = vadd.f32 0.0, %v3048
      %v3050 = vpop.f32.mrb[0].mxu0
      %3051 = vmatprep.mubr.f32.mxu0 0.0
      %3052 = vmatmul.mubr.f32.gmra.mrb[0].mxu0 %v2842
      %v3053 = vpop.f32.mrb[0].mxu0
      %v3054 = vadd.f32 0.0, %v3053
      %v3055 = vpop.f32.mrb[0].mxu0
      %3056 = vmatprep.mubr.f32.mxu0 0.0
      %3057 = vmatmul.mubr.f32.gmra.mrb[0].mxu0 %v2843
      %v3058 = vpop.f32.mrb[0].mxu0
      %v3059 = vadd.f32 0.0, %v3058
      %v3060 = vpop.f32.mrb[0].mxu0
      %3061 = vmatprep.mubr.f32.mxu0 0.0
      %3062 = vmatmul.mubr.f32.gmra.mrb[0].mxu0 %v2844
      %v3063 = vpop.f32.mrb[0].mxu0
      %v3064 = vadd.f32 0.0, %v3063
      %v3065 = vpop.f32.mrb[0].mxu0
      %3066 = vmatprep.mubr.f32.mxu0 0.0
      %3067 = vmatmul.mubr.f32.gmra.mrb[0].mxu0 %v2845
      %v3068 = vpop.f32.mrb[0].mxu0
      %v3069 = vadd.f32 0.0, %v3068
      %v3070 = vpop.f32.mrb[0].mxu0
      %3071 = vmatprep.mubr.f32.mxu0 0.0
      %3072 = vmatmul.mubr.f32.gmra.mrb[0].mxu0 %v2846
      %v3073 = vpop.f32.mrb[0].mxu0
      %v3074 = vadd.f32 0.0, %v3073
      %v3075 = vpop.f32.mrb[0].mxu0
      %3076 = vmatprep.mubr.f32.mxu0 0.0
      %3077 = vmatmul.mubr.f32.gmra.mrb[0].mxu0 %v2847
      %v3078 = vpop.f32.mrb[0].mxu0
      %v3079 = vadd.f32 0.0, %v3078
      %v3080 = vpop.f32.mrb[0].mxu0
      %3081 = vmatprep.mubr.f32.mxu0 0.0
      %3082 = vmatmul.mubr.f32.gmra.mrb[0].mxu0 %v2848
      %v3083 = vpop.f32.mrb[0].mxu0
      %v3084 = vadd.f32 0.0, %v3083
      %v3085 = vpop.f32.mrb[0].mxu0
      %3086 = vmatprep.mubr.f32.mxu0 0.0
      %3087 = vmatmul.mubr.f32.gmra.mrb[0].mxu0 %v2849
      %v3088 = vpop.f32.mrb[0].mxu0
      %v3089 = vadd.f32 0.0, %v3088
      %v3090 = vpop.f32.mrb[0].mxu0
      %3091 = vdwg.mxu0
      %v3092 = vadd.f32 %v2786, %v2934
      %v3093 = vadd.f32 %v2787, %v2939
      %v3094 = vadd.f32 %v2788, %v2944
      %v3095 = vadd.f32 %v2789, %v2949
      %v3096 = vadd.f32 %v2790, %v2954
      %v3097 = vadd.f32 %v2791, %v2959
      %v3098 = vadd.f32 %v2792, %v2964
      %v3099 = vadd.f32 %v2793, %v2969
      %v3100 = vadd.f32 %v2794, %v2974
      %v3101 = vadd.f32 %v2795, %v2979
      %v3102 = vadd.f32 %v2796, %v2984
      %v3103 = vadd.f32 %v2797, %v2989
      %v3104 = vadd.f32 %v2798, %v2994
      %v3105 = vadd.f32 %v2799, %v2999
      %v3106 = vadd.f32 %v2800, %v3004
      %v3107 = vadd.f32 %v2801, %v3009
      %v3108 = vadd.f32 %v2802, %v3014
      %v3109 = vadd.f32 %v2803, %v3019
      %v3110 = vadd.f32 %v2804, %v3024
      %v3111 = vadd.f32 %v2805, %v3029
      %v3112 = vadd.f32 %v2806, %v3034
      %v3113 = vadd.f32 %v2807, %v3039
      %v3114 = vadd.f32 %v2808, %v3044
      %v3115 = vadd.f32 %v2809, %v3049
      %v3116 = vadd.f32 %v2810, %v3054
      %v3117 = vadd.f32 %v2811, %v3059
      %v3118 = vadd.f32 %v2812, %v3064
      %v3119 = vadd.f32 %v2813, %v3069
      %v3120 = vadd.f32 %v2814, %v3074
      %v3121 = vadd.f32 %v2815, %v3079
      %v3122 = vadd.f32 %v2816, %v3084
      %v3123 = vadd.f32 %v2817, %v3089
      %v3124 = vld [vmem:[%s2] sm:$0x1]
      %v3126 = vlaneseq
      %v3127 = vshrl.u32 %v3126, 7
      %v3128 = vsub.s32 0, %v3127
      %v3129 = vrot.slane %v3124, %v3128
      %v3131 = vadd.f32 %v3092, %v3129
      %v3132 = vadd.f32 %v3093, %v3129
      %v3133 = vadd.f32 %v3094, %v3129
      %v3134 = vadd.f32 %v3095, %v3129
      %v3135 = vadd.f32 %v3096, %v3129
      %v3136 = vadd.f32 %v3097, %v3129
      %v3137 = vadd.f32 %v3098, %v3129
      %v3138 = vadd.f32 %v3099, %v3129
      %v3139 = vadd.f32 %v3100, %v3129
      %v3140 = vadd.f32 %v3101, %v3129
      %v3141 = vadd.f32 %v3102, %v3129
      %v3142 = vadd.f32 %v3103, %v3129
      %v3143 = vadd.f32 %v3104, %v3129
      %v3144 = vadd.f32 %v3105, %v3129
      %v3145 = vadd.f32 %v3106, %v3129
      %v3146 = vadd.f32 %v3107, %v3129
      %v3147 = vadd.f32 %v3108, %v3129
      %v3148 = vadd.f32 %v3109, %v3129
      %v3149 = vadd.f32 %v3110, %v3129
      %v3150 = vadd.f32 %v3111, %v3129
      %v3151 = vadd.f32 %v3112, %v3129
      %v3152 = vadd.f32 %v3113, %v3129
      %v3153 = vadd.f32 %v3114, %v3129
      %v3154 = vadd.f32 %v3115, %v3129
      %v3155 = vadd.f32 %v3116, %v3129
      %v3156 = vadd.f32 %v3117, %v3129
      %v3157 = vadd.f32 %v3118, %v3129
      %v3158 = vadd.f32 %v3119, %v3129
      %v3159 = vadd.f32 %v3120, %v3129
      %v3160 = vadd.f32 %v3121, %v3129
      %v3161 = vadd.f32 %v3122, %v3129
      %v3162 = vadd.f32 %v3123, %v3129
      %s3163 = scalar_lea.vmem [#allocation3], 32
      %3164 = vst [vmem:[%s3163 + $0x8] sm:$0xff] %v3131
      %3165 = vst [vmem:[%s3163 + $0x10] sm:$0xff] %v3132
      %3166 = vst [vmem:[%s3163 + $0x28] sm:$0xff] %v3133
      %3167 = vst [vmem:[%s3163 + $0x30] sm:$0xff] %v3134
      %3168 = vst [vmem:[%s3163 + $0x48] sm:$0xff] %v3135
      %3169 = vst [vmem:[%s3163 + $0x50] sm:$0xff] %v3136
      %3170 = vst [vmem:[%s3163 + $0x68] sm:$0xff] %v3137
      %3171 = vst [vmem:[%s3163 + $0x70] sm:$0xff] %v3138
      %3172 = vst [vmem:[%s3163 + $0x88] sm:$0xff] %v3139
      %3173 = vst [vmem:[%s3163 + $0x90] sm:$0xff] %v3140
      %3174 = vst [vmem:[%s3163 + $0xa8] sm:$0xff] %v3141
      %3175 = vst [vmem:[%s3163 + $0xb0] sm:$0xff] %v3142
      %3176 = vst [vmem:[%s3163 + $0xc8] sm:$0xff] %v3143
      %3177 = vst [vmem:[%s3163 + $0xd0] sm:$0xff] %v3144
      %3178 = vst [vmem:[%s3163 + $0xe8] sm:$0xff] %v3145
      %3179 = vst [vmem:[%s3163 + $0xf0] sm:$0xff] %v3146
      %3180 = vst [vmem:[%s3163 + $0x108] sm:$0xff] %v3147
      %3181 = vst [vmem:[%s3163 + $0x110] sm:$0xff] %v3148
      %3182 = vst [vmem:[%s3163 + $0x128] sm:$0xff] %v3149
      %3183 = vst [vmem:[%s3163 + $0x130] sm:$0xff] %v3150
      %3184 = vst [vmem:[%s3163 + $0x148] sm:$0xff] %v3151
      %3185 = vst [vmem:[%s3163 + $0x150] sm:$0xff] %v3152
      %3186 = vst [vmem:[%s3163 + $0x168] sm:$0xff] %v3153
      %3187 = vst [vmem:[%s3163 + $0x170] sm:$0xff] %v3154
      %3188 = vst [vmem:[%s3163 + $0x188] sm:$0xff] %v3155
      %3189 = vst [vmem:[%s3163 + $0x190] sm:$0xff] %v3156
      %3190 = vst [vmem:[%s3163 + $0x1a8] sm:$0xff] %v3157
      %3191 = vst [vmem:[%s3163 + $0x1b0] sm:$0xff] %v3158
      %3192 = vst [vmem:[%s3163 + $0x1c8] sm:$0xff] %v3159
      %3193 = vst [vmem:[%s3163 + $0x1d0] sm:$0xff] %v3160
      %3194 = vst [vmem:[%s3163 + $0x1e8] sm:$0xff] %v3161
      %3195 = vst [vmem:[%s3163 + $0x1f0] sm:$0xff] %v3162
      %v3196 = vld [vmem:[#allocation3 + $0x7] sm:$0xff]
      %v3197 = vld [vmem:[#allocation3 + $0xf] sm:$0xff]
      %v3198 = vld [vmem:[#allocation3 + $0x27] sm:$0xff]
      %v3199 = vld [vmem:[#allocation3 + $0x2f] sm:$0xff]
      %v3200 = vld [vmem:[#allocation3 + $0x47] sm:$0xff]
      %v3201 = vld [vmem:[#allocation3 + $0x4f] sm:$0xff]
      %v3202 = vld [vmem:[#allocation3 + $0x67] sm:$0xff]
      %v3203 = vld [vmem:[#allocation3 + $0x6f] sm:$0xff]
      %v3204 = vld [vmem:[#allocation3 + $0x87] sm:$0xff]
      %v3205 = vld [vmem:[#allocation3 + $0x8f] sm:$0xff]
      %v3206 = vld [vmem:[#allocation3 + $0xa7] sm:$0xff]
      %v3207 = vld [vmem:[#allocation3 + $0xaf] sm:$0xff]
      %v3208 = vld [vmem:[#allocation3 + $0xc7] sm:$0xff]
      %v3209 = vld [vmem:[#allocation3 + $0xcf] sm:$0xff]
      %v3210 = vld [vmem:[#allocation3 + $0xe7] sm:$0xff]
      %v3211 = vld [vmem:[#allocation3 + $0xef] sm:$0xff]
      %v3212 = vld [vmem:[#allocation3 + $0x107] sm:$0xff]
      %v3213 = vld [vmem:[#allocation3 + $0x10f] sm:$0xff]
      %v3214 = vld [vmem:[#allocation3 + $0x127] sm:$0xff]
      %v3215 = vld [vmem:[#allocation3 + $0x12f] sm:$0xff]
      %v3216 = vld [vmem:[#allocation3 + $0x147] sm:$0xff]
      %v3217 = vld [vmem:[#allocation3 + $0x14f] sm:$0xff]
      %v3218 = vld [vmem:[#allocation3 + $0x167] sm:$0xff]
      %v3219 = vld [vmem:[#allocation3 + $0x16f] sm:$0xff]
      %v3220 = vld [vmem:[#allocation3 + $0x187] sm:$0xff]
      %v3221 = vld [vmem:[#allocation3 + $0x18f] sm:$0xff]
      %v3222 = vld [vmem:[#allocation3 + $0x1a7] sm:$0xff]
      %v3223 = vld [vmem:[#allocation3 + $0x1af] sm:$0xff]
      %v3224 = vld [vmem:[#allocation3 + $0x1c7] sm:$0xff]
      %v3225 = vld [vmem:[#allocation3 + $0x1cf] sm:$0xff]
      %v3226 = vld [vmem:[#allocation3 + $0x1e7] sm:$0xff]
      %v3227 = vld [vmem:[#allocation3 + $0x1ef] sm:$0xff]
      %s3228 = scalar_lea.vmem %s1, 1152
      %v3229 = vld [vmem:[%s3228] sm:$0xff]
      %v3230 = vld [vmem:[%s3228 + $0x8] sm:$0xff]
      %v3231 = vld [vmem:[%s3228 + $0x10] sm:$0xff]
      %v3232 = vld [vmem:[%s3228 + $0x18] sm:$0xff]
      %v3233 = vld [vmem:[%s3228 + $0x20] sm:$0xff]
      %v3234 = vld [vmem:[%s3228 + $0x28] sm:$0xff]
      %v3235 = vld [vmem:[%s3228 + $0x30] sm:$0xff]
      %v3236 = vld [vmem:[%s3228 + $0x38] sm:$0xff]
      %v3237 = vld [vmem:[%s3228 + $0x40] sm:$0xff]
      %v3238 = vld [vmem:[%s3228 + $0x48] sm:$0xff]
      %v3239 = vld [vmem:[%s3228 + $0x50] sm:$0xff]
      %v3240 = vld [vmem:[%s3228 + $0x58] sm:$0xff]
      %v3241 = vld [vmem:[%s3228 + $0x60] sm:$0xff]
      %v3242 = vld [vmem:[%s3228 + $0x68] sm:$0xff]
      %v3243 = vld [vmem:[%s3228 + $0x70] sm:$0xff]
      %v3244 = vld [vmem:[%s3228 + $0x78] sm:$0xff]
      %v3245 = vld [vmem:[#allocation3 + $0x8] sm:$0xff]
      %v3246 = vld [vmem:[#allocation3 + $0x10] sm:$0xff]
      %v3247 = vld [vmem:[#allocation3 + $0x28] sm:$0xff]
      %v3248 = vld [vmem:[#allocation3 + $0x30] sm:$0xff]
      %v3249 = vld [vmem:[#allocation3 + $0x48] sm:$0xff]
      %v3250 = vld [vmem:[#allocation3 + $0x50] sm:$0xff]
      %v3251 = vld [vmem:[#allocation3 + $0x68] sm:$0xff]
      %v3252 = vld [vmem:[#allocation3 + $0x70] sm:$0xff]
      %v3253 = vld [vmem:[#allocation3 + $0x88] sm:$0xff]
      %v3254 = vld [vmem:[#allocation3 + $0x90] sm:$0xff]
      %v3255 = vld [vmem:[#allocation3 + $0xa8] sm:$0xff]
      %v3256 = vld [vmem:[#allocation3 + $0xb0] sm:$0xff]
      %v3257 = vld [vmem:[#allocation3 + $0xc8] sm:$0xff]
      %v3258 = vld [vmem:[#allocation3 + $0xd0] sm:$0xff]
      %v3259 = vld [vmem:[#allocation3 + $0xe8] sm:$0xff]
      %v3260 = vld [vmem:[#allocation3 + $0xf0] sm:$0xff]
      %v3261 = vld [vmem:[#allocation3 + $0x108] sm:$0xff]
      %v3262 = vld [vmem:[#allocation3 + $0x110] sm:$0xff]
      %v3263 = vld [vmem:[#allocation3 + $0x128] sm:$0xff]
      %v3264 = vld [vmem:[#allocation3 + $0x130] sm:$0xff]
      %v3265 = vld [vmem:[#allocation3 + $0x148] sm:$0xff]
      %v3266 = vld [vmem:[#allocation3 + $0x150] sm:$0xff]
      %v3267 = vld [vmem:[#allocation3 + $0x168] sm:$0xff]
      %v3268 = vld [vmem:[#allocation3 + $0x170] sm:$0xff]
      %v3269 = vld [vmem:[#allocation3 + $0x188] sm:$0xff]
      %v3270 = vld [vmem:[#allocation3 + $0x190] sm:$0xff]
      %v3271 = vld [vmem:[#allocation3 + $0x1a8] sm:$0xff]
      %v3272 = vld [vmem:[#allocation3 + $0x1b0] sm:$0xff]
      %v3273 = vld [vmem:[#allocation3 + $0x1c8] sm:$0xff]
      %v3274 = vld [vmem:[#allocation3 + $0x1d0] sm:$0xff]
      %v3275 = vld [vmem:[#allocation3 + $0x1e8] sm:$0xff]
      %v3276 = vld [vmem:[#allocation3 + $0x1f0] sm:$0xff]
      %s3277 = scalar_lea.vmem %s1, 1280
      %v3278 = vld [vmem:[%s3277] sm:$0xff]
      %v3279 = vld [vmem:[%s3277 + $0x8] sm:$0xff]
      %v3280 = vld [vmem:[%s3277 + $0x10] sm:$0xff]
      %v3281 = vld [vmem:[%s3277 + $0x18] sm:$0xff]
      %v3282 = vld [vmem:[%s3277 + $0x20] sm:$0xff]
      %v3283 = vld [vmem:[%s3277 + $0x28] sm:$0xff]
      %v3284 = vld [vmem:[%s3277 + $0x30] sm:$0xff]
      %v3285 = vld [vmem:[%s3277 + $0x38] sm:$0xff]
      %v3286 = vld [vmem:[%s3277 + $0x40] sm:$0xff]
      %v3287 = vld [vmem:[%s3277 + $0x48] sm:$0xff]
      %v3288 = vld [vmem:[%s3277 + $0x50] sm:$0xff]
      %v3289 = vld [vmem:[%s3277 + $0x58] sm:$0xff]
      %v3290 = vld [vmem:[%s3277 + $0x60] sm:$0xff]
      %v3291 = vld [vmem:[%s3277 + $0x68] sm:$0xff]
      %v3292 = vld [vmem:[%s3277 + $0x70] sm:$0xff]
      %v3293 = vld [vmem:[%s3277 + $0x78] sm:$0xff]
      %3294 = vmatprep.subr.mxu0 0.0
      %3295 = vmatpush1.msra.mxu0 %v3278
      %3296 = vmatprep.subr.mxu0 0.0
      %3297 = vmatpush1.msra.mxu0 %v3279
      %3298 = vmatprep.subr.mxu0 0.0
      %3299 = vmatpush1.msra.mxu0 %v3280
      %3300 = vmatprep.subr.mxu0 0.0
      %3301 = vmatpush1.msra.mxu0 %v3281
      %3302 = vmatprep.subr.mxu0 0.0
      %3303 = vmatpush1.msra.mxu0 %v3282
      %3304 = vmatprep.subr.mxu0 0.0
      %3305 = vmatpush1.msra.mxu0 %v3283
      %3306 = vmatprep.subr.mxu0 0.0
      %3307 = vmatpush1.msra.mxu0 %v3284
      %3308 = vmatprep.subr.mxu0 0.0
      %3309 = vmatpush1.msra.mxu0 %v3285
      %3310 = vmatprep.subr.mxu0 0.0
      %3311 = vmatpush1.msra.mxu0 %v3286
      %3312 = vmatprep.subr.mxu0 0.0
      %3313 = vmatpush1.msra.mxu0 %v3287
      %3314 = vmatprep.subr.mxu0 0.0
      %3315 = vmatpush1.msra.mxu0 %v3288
      %3316 = vmatprep.subr.mxu0 0.0
      %3317 = vmatpush1.msra.mxu0 %v3289
      %3318 = vmatprep.subr.mxu0 0.0
      %3319 = vmatpush1.msra.mxu0 %v3290
      %3320 = vmatprep.subr.mxu0 0.0
      %3321 = vmatpush1.msra.mxu0 %v3291
      %3322 = vmatprep.subr.mxu0 0.0
      %3323 = vmatpush1.msra.mxu0 %v3292
      %3324 = vmatprep.subr.mxu0 0.0
      %3325 = vmatpush1.msra.mxu0 %v3293
      %3326 = vmatprep.subr.mxu0 0.0
      %3327 = vmatpush1.msra.mxu0 0.0
      %3328 = vmatprep.subr.mxu0 0.0
      %3329 = vmatpush1.msra.mxu0 0.0
      %3330 = vmatprep.subr.mxu0 0.0
      %3331 = vmatpush1.msra.mxu0 0.0
      %3332 = vmatprep.subr.mxu0 0.0
      %3333 = vmatpush1.msra.mxu0 0.0
      %3334 = vmatprep.subr.mxu0 0.0
      %3335 = vmatpush1.msra.mxu0 0.0
      %3336 = vmatprep.subr.mxu0 0.0
      %3337 = vmatpush1.msra.mxu0 0.0
      %3338 = vmatprep.subr.mxu0 0.0
      %3339 = vmatpush1.msra.mxu0 0.0
      %3340 = vmatprep.subr.mxu0 0.0
      %3341 = vmatpush1.msra.mxu0 0.0
      %3342 = vmatprep.subr.mxu0 0.0
      %3343 = vmatpush1.msra.mxu0 0.0
      %3344 = vmatprep.subr.mxu0 0.0
      %3345 = vmatpush1.msra.mxu0 0.0
      %3346 = vmatprep.subr.mxu0 0.0
      %3347 = vmatpush1.msra.mxu0 0.0
      %3348 = vmatprep.subr.mxu0 0.0
      %3349 = vmatpush1.msra.mxu0 0.0
      %3350 = vmatprep.subr.mxu0 0.0
      %3351 = vmatpush1.msra.mxu0 0.0
      %3352 = vmatprep.subr.mxu0 0.0
      %3353 = vmatpush1.msra.mxu0 0.0
      %3354 = vmatprep.subr.mxu0 0.0
      %3355 = vmatpush1.msra.mxu0 0.0
      %3356 = vmatprep.subr.mxu0 0.0
      %3357 = vmatpush1.msra.mxu0 0.0
      %3358 = vmatprep.mubr.f32.mxu0 0.0
      %3359 = vmatmul.mubr.f32.gmra.mrb[0].mxu0 %v3245
      %v3360 = vpop.f32.mrb[0].mxu0
      %v3361 = vadd.f32 0.0, %v3360
      %v3362 = vpop.f32.mrb[0].mxu0
      %3363 = vmatprep.mubr.f32.mxu0 0.0
      %3364 = vmatmul.mubr.f32.gmra.mrb[0].mxu0 %v3246
      %v3365 = vpop.f32.mrb[0].mxu0
      %v3366 = vadd.f32 0.0, %v3365
      %v3367 = vpop.f32.mrb[0].mxu0
      %3368 = vmatprep.mubr.f32.mxu0 0.0
      %3369 = vmatmul.mubr.f32.gmra.mrb[0].mxu0 %v3247
      %v3370 = vpop.f32.mrb[0].mxu0
      %v3371 = vadd.f32 0.0, %v3370
      %v3372 = vpop.f32.mrb[0].mxu0
      %3373 = vmatprep.mubr.f32.mxu0 0.0
      %3374 = vmatmul.mubr.f32.gmra.mrb[0].mxu0 %v3248
      %v3375 = vpop.f32.mrb[0].mxu0
      %v3376 = vadd.f32 0.0, %v3375
      %v3377 = vpop.f32.mrb[0].mxu0
      %3378 = vmatprep.mubr.f32.mxu0 0.0
      %3379 = vmatmul.mubr.f32.gmra.mrb[0].mxu0 %v3249
      %v3380 = vpop.f32.mrb[0].mxu0
      %v3381 = vadd.f32 0.0, %v3380
      %v3382 = vpop.f32.mrb[0].mxu0
      %3383 = vmatprep.mubr.f32.mxu0 0.0
      %3384 = vmatmul.mubr.f32.gmra.mrb[0].mxu0 %v3250
      %v3385 = vpop.f32.mrb[0].mxu0
      %v3386 = vadd.f32 0.0, %v3385
      %v3387 = vpop.f32.mrb[0].mxu0
      %3388 = vmatprep.mubr.f32.mxu0 0.0
      %3389 = vmatmul.mubr.f32.gmra.mrb[0].mxu0 %v3251
      %v3390 = vpop.f32.mrb[0].mxu0
      %v3391 = vadd.f32 0.0, %v3390
      %v3392 = vpop.f32.mrb[0].mxu0
      %3393 = vmatprep.mubr.f32.mxu0 0.0
      %3394 = vmatmul.mubr.f32.gmra.mrb[0].mxu0 %v3252
      %v3395 = vpop.f32.mrb[0].mxu0
      %v3396 = vadd.f32 0.0, %v3395
      %v3397 = vpop.f32.mrb[0].mxu0
      %3398 = vmatprep.mubr.f32.mxu0 0.0
      %3399 = vmatmul.mubr.f32.gmra.mrb[0].mxu0 %v3253
      %v3400 = vpop.f32.mrb[0].mxu0
      %v3401 = vadd.f32 0.0, %v3400
      %v3402 = vpop.f32.mrb[0].mxu0
      %3403 = vmatprep.mubr.f32.mxu0 0.0
      %3404 = vmatmul.mubr.f32.gmra.mrb[0].mxu0 %v3254
      %v3405 = vpop.f32.mrb[0].mxu0
      %v3406 = vadd.f32 0.0, %v3405
      %v3407 = vpop.f32.mrb[0].mxu0
      %3408 = vmatprep.mubr.f32.mxu0 0.0
      %3409 = vmatmul.mubr.f32.gmra.mrb[0].mxu0 %v3255
      %v3410 = vpop.f32.mrb[0].mxu0
      %v3411 = vadd.f32 0.0, %v3410
      %v3412 = vpop.f32.mrb[0].mxu0
      %3413 = vmatprep.mubr.f32.mxu0 0.0
      %3414 = vmatmul.mubr.f32.gmra.mrb[0].mxu0 %v3256
      %v3415 = vpop.f32.mrb[0].mxu0
      %v3416 = vadd.f32 0.0, %v3415
      %v3417 = vpop.f32.mrb[0].mxu0
      %3418 = vmatprep.mubr.f32.mxu0 0.0
      %3419 = vmatmul.mubr.f32.gmra.mrb[0].mxu0 %v3257
      %v3420 = vpop.f32.mrb[0].mxu0
      %v3421 = vadd.f32 0.0, %v3420
      %v3422 = vpop.f32.mrb[0].mxu0
      %3423 = vmatprep.mubr.f32.mxu0 0.0
      %3424 = vmatmul.mubr.f32.gmra.mrb[0].mxu0 %v3258
      %v3425 = vpop.f32.mrb[0].mxu0
      %v3426 = vadd.f32 0.0, %v3425
      %v3427 = vpop.f32.mrb[0].mxu0
      %3428 = vmatprep.mubr.f32.mxu0 0.0
      %3429 = vmatmul.mubr.f32.gmra.mrb[0].mxu0 %v3259
      %v3430 = vpop.f32.mrb[0].mxu0
      %v3431 = vadd.f32 0.0, %v3430
      %v3432 = vpop.f32.mrb[0].mxu0
      %3433 = vmatprep.mubr.f32.mxu0 0.0
      %3434 = vmatmul.mubr.f32.gmra.mrb[0].mxu0 %v3260
      %v3435 = vpop.f32.mrb[0].mxu0
      %v3436 = vadd.f32 0.0, %v3435
      %v3437 = vpop.f32.mrb[0].mxu0
      %3438 = vmatprep.mubr.f32.mxu0 0.0
      %3439 = vmatmul.mubr.f32.gmra.mrb[0].mxu0 %v3261
      %v3440 = vpop.f32.mrb[0].mxu0
      %v3441 = vadd.f32 0.0, %v3440
      %v3442 = vpop.f32.mrb[0].mxu0
      %3443 = vmatprep.mubr.f32.mxu0 0.0
      %3444 = vmatmul.mubr.f32.gmra.mrb[0].mxu0 %v3262
      %v3445 = vpop.f32.mrb[0].mxu0
      %v3446 = vadd.f32 0.0, %v3445
      %v3447 = vpop.f32.mrb[0].mxu0
      %3448 = vmatprep.mubr.f32.mxu0 0.0
      %3449 = vmatmul.mubr.f32.gmra.mrb[0].mxu0 %v3263
      %v3450 = vpop.f32.mrb[0].mxu0
      %v3451 = vadd.f32 0.0, %v3450
      %v3452 = vpop.f32.mrb[0].mxu0
      %3453 = vmatprep.mubr.f32.mxu0 0.0
      %3454 = vmatmul.mubr.f32.gmra.mrb[0].mxu0 %v3264
      %v3455 = vpop.f32.mrb[0].mxu0
      %v3456 = vadd.f32 0.0, %v3455
      %v3457 = vpop.f32.mrb[0].mxu0
      %3458 = vmatprep.mubr.f32.mxu0 0.0
      %3459 = vmatmul.mubr.f32.gmra.mrb[0].mxu0 %v3265
      %v3460 = vpop.f32.mrb[0].mxu0
      %v3461 = vadd.f32 0.0, %v3460
      %v3462 = vpop.f32.mrb[0].mxu0
      %3463 = vmatprep.mubr.f32.mxu0 0.0
      %3464 = vmatmul.mubr.f32.gmra.mrb[0].mxu0 %v3266
      %v3465 = vpop.f32.mrb[0].mxu0
      %v3466 = vadd.f32 0.0, %v3465
      %v3467 = vpop.f32.mrb[0].mxu0
      %3468 = vmatprep.mubr.f32.mxu0 0.0
      %3469 = vmatmul.mubr.f32.gmra.mrb[0].mxu0 %v3267
      %v3470 = vpop.f32.mrb[0].mxu0
      %v3471 = vadd.f32 0.0, %v3470
      %v3472 = vpop.f32.mrb[0].mxu0
      %3473 = vmatprep.mubr.f32.mxu0 0.0
      %3474 = vmatmul.mubr.f32.gmra.mrb[0].mxu0 %v3268
      %v3475 = vpop.f32.mrb[0].mxu0
      %v3476 = vadd.f32 0.0, %v3475
      %v3477 = vpop.f32.mrb[0].mxu0
      %3478 = vmatprep.mubr.f32.mxu0 0.0
      %3479 = vmatmul.mubr.f32.gmra.mrb[0].mxu0 %v3269
      %v3480 = vpop.f32.mrb[0].mxu0
      %v3481 = vadd.f32 0.0, %v3480
      %v3482 = vpop.f32.mrb[0].mxu0
      %3483 = vmatprep.mubr.f32.mxu0 0.0
      %3484 = vmatmul.mubr.f32.gmra.mrb[0].mxu0 %v3270
      %v3485 = vpop.f32.mrb[0].mxu0
      %v3486 = vadd.f32 0.0, %v3485
      %v3487 = vpop.f32.mrb[0].mxu0
      %3488 = vmatprep.mubr.f32.mxu0 0.0
      %3489 = vmatmul.mubr.f32.gmra.mrb[0].mxu0 %v3271
      %v3490 = vpop.f32.mrb[0].mxu0
      %v3491 = vadd.f32 0.0, %v3490
      %v3492 = vpop.f32.mrb[0].mxu0
      %3493 = vmatprep.mubr.f32.mxu0 0.0
      %3494 = vmatmul.mubr.f32.gmra.mrb[0].mxu0 %v3272
      %v3495 = vpop.f32.mrb[0].mxu0
      %v3496 = vadd.f32 0.0, %v3495
      %v3497 = vpop.f32.mrb[0].mxu0
      %3498 = vmatprep.mubr.f32.mxu0 0.0
      %3499 = vmatmul.mubr.f32.gmra.mrb[0].mxu0 %v3273
      %v3500 = vpop.f32.mrb[0].mxu0
      %v3501 = vadd.f32 0.0, %v3500
      %v3502 = vpop.f32.mrb[0].mxu0
      %3503 = vmatprep.mubr.f32.mxu0 0.0
      %3504 = vmatmul.mubr.f32.gmra.mrb[0].mxu0 %v3274
      %v3505 = vpop.f32.mrb[0].mxu0
      %v3506 = vadd.f32 0.0, %v3505
      %v3507 = vpop.f32.mrb[0].mxu0
      %3508 = vmatprep.mubr.f32.mxu0 0.0
      %3509 = vmatmul.mubr.f32.gmra.mrb[0].mxu0 %v3275
      %v3510 = vpop.f32.mrb[0].mxu0
      %v3511 = vadd.f32 0.0, %v3510
      %v3512 = vpop.f32.mrb[0].mxu0
      %3513 = vmatprep.mubr.f32.mxu0 0.0
      %3514 = vmatmul.mubr.f32.gmra.mrb[0].mxu0 %v3276
      %v3515 = vpop.f32.mrb[0].mxu0
      %v3516 = vadd.f32 0.0, %v3515
      %v3517 = vpop.f32.mrb[0].mxu0
      %3518 = vdwg.mxu0
      %3519 = vmatprep.subr.mxu0 0.0
      %3520 = vmatpush1.msra.mxu0 %v3229
      %3521 = vmatprep.subr.mxu0 0.0
      %3522 = vmatpush1.msra.mxu0 %v3230
      %3523 = vmatprep.subr.mxu0 0.0
      %3524 = vmatpush1.msra.mxu0 %v3231
      %3525 = vmatprep.subr.mxu0 0.0
      %3526 = vmatpush1.msra.mxu0 %v3232
      %3527 = vmatprep.subr.mxu0 0.0
      %3528 = vmatpush1.msra.mxu0 %v3233
      %3529 = vmatprep.subr.mxu0 0.0
      %3530 = vmatpush1.msra.mxu0 %v3234
      %3531 = vmatprep.subr.mxu0 0.0
      %3532 = vmatpush1.msra.mxu0 %v3235
      %3533 = vmatprep.subr.mxu0 0.0
      %3534 = vmatpush1.msra.mxu0 %v3236
      %3535 = vmatprep.subr.mxu0 0.0
      %3536 = vmatpush1.msra.mxu0 %v3237
      %3537 = vmatprep.subr.mxu0 0.0
      %3538 = vmatpush1.msra.mxu0 %v3238
      %3539 = vmatprep.subr.mxu0 0.0
      %3540 = vmatpush1.msra.mxu0 %v3239
      %3541 = vmatprep.subr.mxu0 0.0
      %3542 = vmatpush1.msra.mxu0 %v3240
      %3543 = vmatprep.subr.mxu0 0.0
      %3544 = vmatpush1.msra.mxu0 %v3241
      %3545 = vmatprep.subr.mxu0 0.0
      %3546 = vmatpush1.msra.mxu0 %v3242
      %3547 = vmatprep.subr.mxu0 0.0
      %3548 = vmatpush1.msra.mxu0 %v3243
      %3549 = vmatprep.subr.mxu0 0.0
      %3550 = vmatpush1.msra.mxu0 %v3244
      %3551 = vmatprep.subr.mxu0 0.0
      %3552 = vmatpush1.msra.mxu0 0.0
      %3553 = vmatprep.subr.mxu0 0.0
      %3554 = vmatpush1.msra.mxu0 0.0
      %3555 = vmatprep.subr.mxu0 0.0
      %3556 = vmatpush1.msra.mxu0 0.0
      %3557 = vmatprep.subr.mxu0 0.0
      %3558 = vmatpush1.msra.mxu0 0.0
      %3559 = vmatprep.subr.mxu0 0.0
      %3560 = vmatpush1.msra.mxu0 0.0
      %3561 = vmatprep.subr.mxu0 0.0
      %3562 = vmatpush1.msra.mxu0 0.0
      %3563 = vmatprep.subr.mxu0 0.0
      %3564 = vmatpush1.msra.mxu0 0.0
      %3565 = vmatprep.subr.mxu0 0.0
      %3566 = vmatpush1.msra.mxu0 0.0
      %3567 = vmatprep.subr.mxu0 0.0
      %3568 = vmatpush1.msra.mxu0 0.0
      %3569 = vmatprep.subr.mxu0 0.0
      %3570 = vmatpush1.msra.mxu0 0.0
      %3571 = vmatprep.subr.mxu0 0.0
      %3572 = vmatpush1.msra.mxu0 0.0
      %3573 = vmatprep.subr.mxu0 0.0
      %3574 = vmatpush1.msra.mxu0 0.0
      %3575 = vmatprep.subr.mxu0 0.0
      %3576 = vmatpush1.msra.mxu0 0.0
      %3577 = vmatprep.subr.mxu0 0.0
      %3578 = vmatpush1.msra.mxu0 0.0
      %3579 = vmatprep.subr.mxu0 0.0
      %3580 = vmatpush1.msra.mxu0 0.0
      %3581 = vmatprep.subr.mxu0 0.0
      %3582 = vmatpush1.msra.mxu0 0.0
      %3583 = vmatprep.mubr.f32.mxu0 0.0
      %3584 = vmatmul.mubr.f32.gmra.mrb[0].mxu0 %v3196
      %v3585 = vpop.f32.mrb[0].mxu0
      %v3586 = vadd.f32 %v3361, %v3585
      %v3587 = vpop.f32.mrb[0].mxu0
      %3588 = vmatprep.mubr.f32.mxu0 0.0
      %3589 = vmatmul.mubr.f32.gmra.mrb[0].mxu0 %v3197
      %v3590 = vpop.f32.mrb[0].mxu0
      %v3591 = vadd.f32 %v3366, %v3590
      %v3592 = vpop.f32.mrb[0].mxu0
      %3593 = vmatprep.mubr.f32.mxu0 0.0
      %3594 = vmatmul.mubr.f32.gmra.mrb[0].mxu0 %v3198
      %v3595 = vpop.f32.mrb[0].mxu0
      %v3596 = vadd.f32 %v3371, %v3595
      %v3597 = vpop.f32.mrb[0].mxu0
      %3598 = vmatprep.mubr.f32.mxu0 0.0
      %3599 = vmatmul.mubr.f32.gmra.mrb[0].mxu0 %v3199
      %v3600 = vpop.f32.mrb[0].mxu0
      %v3601 = vadd.f32 %v3376, %v3600
      %v3602 = vpop.f32.mrb[0].mxu0
      %3603 = vmatprep.mubr.f32.mxu0 0.0
      %3604 = vmatmul.mubr.f32.gmra.mrb[0].mxu0 %v3200
      %v3605 = vpop.f32.mrb[0].mxu0
      %v3606 = vadd.f32 %v3381, %v3605
      %v3607 = vpop.f32.mrb[0].mxu0
      %3608 = vmatprep.mubr.f32.mxu0 0.0
      %3609 = vmatmul.mubr.f32.gmra.mrb[0].mxu0 %v3201
      %v3610 = vpop.f32.mrb[0].mxu0
      %v3611 = vadd.f32 %v3386, %v3610
      %v3612 = vpop.f32.mrb[0].mxu0
      %3613 = vmatprep.mubr.f32.mxu0 0.0
      %3614 = vmatmul.mubr.f32.gmra.mrb[0].mxu0 %v3202
      %v3615 = vpop.f32.mrb[0].mxu0
      %v3616 = vadd.f32 %v3391, %v3615
      %v3617 = vpop.f32.mrb[0].mxu0
      %3618 = vmatprep.mubr.f32.mxu0 0.0
      %3619 = vmatmul.mubr.f32.gmra.mrb[0].mxu0 %v3203
      %v3620 = vpop.f32.mrb[0].mxu0
      %v3621 = vadd.f32 %v3396, %v3620
      %v3622 = vpop.f32.mrb[0].mxu0
      %3623 = vmatprep.mubr.f32.mxu0 0.0
      %3624 = vmatmul.mubr.f32.gmra.mrb[0].mxu0 %v3204
      %v3625 = vpop.f32.mrb[0].mxu0
      %v3626 = vadd.f32 %v3401, %v3625
      %v3627 = vpop.f32.mrb[0].mxu0
      %3628 = vmatprep.mubr.f32.mxu0 0.0
      %3629 = vmatmul.mubr.f32.gmra.mrb[0].mxu0 %v3205
      %v3630 = vpop.f32.mrb[0].mxu0
      %v3631 = vadd.f32 %v3406, %v3630
      %v3632 = vpop.f32.mrb[0].mxu0
      %3633 = vmatprep.mubr.f32.mxu0 0.0
      %3634 = vmatmul.mubr.f32.gmra.mrb[0].mxu0 %v3206
      %v3635 = vpop.f32.mrb[0].mxu0
      %v3636 = vadd.f32 %v3411, %v3635
      %v3637 = vpop.f32.mrb[0].mxu0
      %3638 = vmatprep.mubr.f32.mxu0 0.0
      %3639 = vmatmul.mubr.f32.gmra.mrb[0].mxu0 %v3207
      %v3640 = vpop.f32.mrb[0].mxu0
      %v3641 = vadd.f32 %v3416, %v3640
      %v3642 = vpop.f32.mrb[0].mxu0
      %3643 = vmatprep.mubr.f32.mxu0 0.0
      %3644 = vmatmul.mubr.f32.gmra.mrb[0].mxu0 %v3208
      %v3645 = vpop.f32.mrb[0].mxu0
      %v3646 = vadd.f32 %v3421, %v3645
      %v3647 = vpop.f32.mrb[0].mxu0
      %3648 = vmatprep.mubr.f32.mxu0 0.0
      %3649 = vmatmul.mubr.f32.gmra.mrb[0].mxu0 %v3209
      %v3650 = vpop.f32.mrb[0].mxu0
      %v3651 = vadd.f32 %v3426, %v3650
      %v3652 = vpop.f32.mrb[0].mxu0
      %3653 = vmatprep.mubr.f32.mxu0 0.0
      %3654 = vmatmul.mubr.f32.gmra.mrb[0].mxu0 %v3210
      %v3655 = vpop.f32.mrb[0].mxu0
      %v3656 = vadd.f32 %v3431, %v3655
      %v3657 = vpop.f32.mrb[0].mxu0
      %3658 = vmatprep.mubr.f32.mxu0 0.0
      %3659 = vmatmul.mubr.f32.gmra.mrb[0].mxu0 %v3211
      %v3660 = vpop.f32.mrb[0].mxu0
      %v3661 = vadd.f32 %v3436, %v3660
      %v3662 = vpop.f32.mrb[0].mxu0
      %3663 = vmatprep.mubr.f32.mxu0 0.0
      %3664 = vmatmul.mubr.f32.gmra.mrb[0].mxu0 %v3212
      %v3665 = vpop.f32.mrb[0].mxu0
      %v3666 = vadd.f32 %v3441, %v3665
      %v3667 = vpop.f32.mrb[0].mxu0
      %3668 = vmatprep.mubr.f32.mxu0 0.0
      %3669 = vmatmul.mubr.f32.gmra.mrb[0].mxu0 %v3213
      %v3670 = vpop.f32.mrb[0].mxu0
      %v3671 = vadd.f32 %v3446, %v3670
      %v3672 = vpop.f32.mrb[0].mxu0
      %3673 = vmatprep.mubr.f32.mxu0 0.0
      %3674 = vmatmul.mubr.f32.gmra.mrb[0].mxu0 %v3214
      %v3675 = vpop.f32.mrb[0].mxu0
      %v3676 = vadd.f32 %v3451, %v3675
      %v3677 = vpop.f32.mrb[0].mxu0
      %3678 = vmatprep.mubr.f32.mxu0 0.0
      %3679 = vmatmul.mubr.f32.gmra.mrb[0].mxu0 %v3215
      %v3680 = vpop.f32.mrb[0].mxu0
      %v3681 = vadd.f32 %v3456, %v3680
      %v3682 = vpop.f32.mrb[0].mxu0
      %3683 = vmatprep.mubr.f32.mxu0 0.0
      %3684 = vmatmul.mubr.f32.gmra.mrb[0].mxu0 %v3216
      %v3685 = vpop.f32.mrb[0].mxu0
      %v3686 = vadd.f32 %v3461, %v3685
      %v3687 = vpop.f32.mrb[0].mxu0
      %3688 = vmatprep.mubr.f32.mxu0 0.0
      %3689 = vmatmul.mubr.f32.gmra.mrb[0].mxu0 %v3217
      %v3690 = vpop.f32.mrb[0].mxu0
      %v3691 = vadd.f32 %v3466, %v3690
      %v3692 = vpop.f32.mrb[0].mxu0
      %3693 = vmatprep.mubr.f32.mxu0 0.0
      %3694 = vmatmul.mubr.f32.gmra.mrb[0].mxu0 %v3218
      %v3695 = vpop.f32.mrb[0].mxu0
      %v3696 = vadd.f32 %v3471, %v3695
      %v3697 = vpop.f32.mrb[0].mxu0
      %3698 = vmatprep.mubr.f32.mxu0 0.0
      %3699 = vmatmul.mubr.f32.gmra.mrb[0].mxu0 %v3219
      %v3700 = vpop.f32.mrb[0].mxu0
      %v3701 = vadd.f32 %v3476, %v3700
      %v3702 = vpop.f32.mrb[0].mxu0
      %3703 = vmatprep.mubr.f32.mxu0 0.0
      %3704 = vmatmul.mubr.f32.gmra.mrb[0].mxu0 %v3220
      %v3705 = vpop.f32.mrb[0].mxu0
      %v3706 = vadd.f32 %v3481, %v3705
      %v3707 = vpop.f32.mrb[0].mxu0
      %3708 = vmatprep.mubr.f32.mxu0 0.0
      %3709 = vmatmul.mubr.f32.gmra.mrb[0].mxu0 %v3221
      %v3710 = vpop.f32.mrb[0].mxu0
      %v3711 = vadd.f32 %v3486, %v3710
      %v3712 = vpop.f32.mrb[0].mxu0
      %3713 = vmatprep.mubr.f32.mxu0 0.0
      %3714 = vmatmul.mubr.f32.gmra.mrb[0].mxu0 %v3222
      %v3715 = vpop.f32.mrb[0].mxu0
      %v3716 = vadd.f32 %v3491, %v3715
      %v3717 = vpop.f32.mrb[0].mxu0
      %3718 = vmatprep.mubr.f32.mxu0 0.0
      %3719 = vmatmul.mubr.f32.gmra.mrb[0].mxu0 %v3223
      %v3720 = vpop.f32.mrb[0].mxu0
      %v3721 = vadd.f32 %v3496, %v3720
      %v3722 = vpop.f32.mrb[0].mxu0
      %3723 = vmatprep.mubr.f32.mxu0 0.0
      %3724 = vmatmul.mubr.f32.gmra.mrb[0].mxu0 %v3224
      %v3725 = vpop.f32.mrb[0].mxu0
      %v3726 = vadd.f32 %v3501, %v3725
      %v3727 = vpop.f32.mrb[0].mxu0
      %3728 = vmatprep.mubr.f32.mxu0 0.0
      %3729 = vmatmul.mubr.f32.gmra.mrb[0].mxu0 %v3225
      %v3730 = vpop.f32.mrb[0].mxu0
      %v3731 = vadd.f32 %v3506, %v3730
      %v3732 = vpop.f32.mrb[0].mxu0
      %3733 = vmatprep.mubr.f32.mxu0 0.0
      %3734 = vmatmul.mubr.f32.gmra.mrb[0].mxu0 %v3226
      %v3735 = vpop.f32.mrb[0].mxu0
      %v3736 = vadd.f32 %v3511, %v3735
      %v3737 = vpop.f32.mrb[0].mxu0
      %3738 = vmatprep.mubr.f32.mxu0 0.0
      %3739 = vmatmul.mubr.f32.gmra.mrb[0].mxu0 %v3227
      %v3740 = vpop.f32.mrb[0].mxu0
      %v3741 = vadd.f32 %v3516, %v3740
      %v3742 = vpop.f32.mrb[0].mxu0
      %3743 = vdwg.mxu0
      %v3744 = vld [vmem:[#allocation3 + $0x9] sm:$0xff]
      %v3745 = vld [vmem:[#allocation3 + $0x11] sm:$0xff]
      %v3746 = vld [vmem:[#allocation3 + $0x29] sm:$0xff]
      %v3747 = vld [vmem:[#allocation3 + $0x31] sm:$0xff]
      %v3748 = vld [vmem:[#allocation3 + $0x49] sm:$0xff]
      %v3749 = vld [vmem:[#allocation3 + $0x51] sm:$0xff]
      %v3750 = vld [vmem:[#allocation3 + $0x69] sm:$0xff]
      %v3751 = vld [vmem:[#allocation3 + $0x71] sm:$0xff]
      %v3752 = vld [vmem:[#allocation3 + $0x89] sm:$0xff]
      %v3753 = vld [vmem:[#allocation3 + $0x91] sm:$0xff]
      %v3754 = vld [vmem:[#allocation3 + $0xa9] sm:$0xff]
      %v3755 = vld [vmem:[#allocation3 + $0xb1] sm:$0xff]
      %v3756 = vld [vmem:[#allocation3 + $0xc9] sm:$0xff]
      %v3757 = vld [vmem:[#allocation3 + $0xd1] sm:$0xff]
      %v3758 = vld [vmem:[#allocation3 + $0xe9] sm:$0xff]
      %v3759 = vld [vmem:[#allocation3 + $0xf1] sm:$0xff]
      %v3760 = vld [vmem:[#allocation3 + $0x109] sm:$0xff]
      %v3761 = vld [vmem:[#allocation3 + $0x111] sm:$0xff]
      %v3762 = vld [vmem:[#allocation3 + $0x129] sm:$0xff]
      %v3763 = vld [vmem:[#allocation3 + $0x131] sm:$0xff]
      %v3764 = vld [vmem:[#allocation3 + $0x149] sm:$0xff]
      %v3765 = vld [vmem:[#allocation3 + $0x151] sm:$0xff]
      %v3766 = vld [vmem:[#allocation3 + $0x169] sm:$0xff]
      %v3767 = vld [vmem:[#allocation3 + $0x171] sm:$0xff]
      %v3768 = vld [vmem:[#allocation3 + $0x189] sm:$0xff]
      %v3769 = vld [vmem:[#allocation3 + $0x191] sm:$0xff]
      %v3770 = vld [vmem:[#allocation3 + $0x1a9] sm:$0xff]
      %v3771 = vld [vmem:[#allocation3 + $0x1b1] sm:$0xff]
      %v3772 = vld [vmem:[#allocation3 + $0x1c9] sm:$0xff]
      %v3773 = vld [vmem:[#allocation3 + $0x1d1] sm:$0xff]
      %v3774 = vld [vmem:[#allocation3 + $0x1e9] sm:$0xff]
      %v3775 = vld [vmem:[#allocation3 + $0x1f1] sm:$0xff]
      %s3776 = scalar_lea.vmem %s1, 1408
      %v3777 = vld [vmem:[%s3776] sm:$0xff]
      %v3778 = vld [vmem:[%s3776 + $0x8] sm:$0xff]
      %v3779 = vld [vmem:[%s3776 + $0x10] sm:$0xff]
      %v3780 = vld [vmem:[%s3776 + $0x18] sm:$0xff]
      %v3781 = vld [vmem:[%s3776 + $0x20] sm:$0xff]
      %v3782 = vld [vmem:[%s3776 + $0x28] sm:$0xff]
      %v3783 = vld [vmem:[%s3776 + $0x30] sm:$0xff]
      %v3784 = vld [vmem:[%s3776 + $0x38] sm:$0xff]
      %v3785 = vld [vmem:[%s3776 + $0x40] sm:$0xff]
      %v3786 = vld [vmem:[%s3776 + $0x48] sm:$0xff]
      %v3787 = vld [vmem:[%s3776 + $0x50] sm:$0xff]
      %v3788 = vld [vmem:[%s3776 + $0x58] sm:$0xff]
      %v3789 = vld [vmem:[%s3776 + $0x60] sm:$0xff]
      %v3790 = vld [vmem:[%s3776 + $0x68] sm:$0xff]
      %v3791 = vld [vmem:[%s3776 + $0x70] sm:$0xff]
      %v3792 = vld [vmem:[%s3776 + $0x78] sm:$0xff]
      %3793 = vmatprep.subr.mxu0 0.0
      %3794 = vmatpush1.msra.mxu0 %v3777
      %3795 = vmatprep.subr.mxu0 0.0
      %3796 = vmatpush1.msra.mxu0 %v3778
      %3797 = vmatprep.subr.mxu0 0.0
      %3798 = vmatpush1.msra.mxu0 %v3779
      %3799 = vmatprep.subr.mxu0 0.0
      %3800 = vmatpush1.msra.mxu0 %v3780
      %3801 = vmatprep.subr.mxu0 0.0
      %3802 = vmatpush1.msra.mxu0 %v3781
      %3803 = vmatprep.subr.mxu0 0.0
      %3804 = vmatpush1.msra.mxu0 %v3782
      %3805 = vmatprep.subr.mxu0 0.0
      %3806 = vmatpush1.msra.mxu0 %v3783
      %3807 = vmatprep.subr.mxu0 0.0
      %3808 = vmatpush1.msra.mxu0 %v3784
      %3809 = vmatprep.subr.mxu0 0.0
      %3810 = vmatpush1.msra.mxu0 %v3785
      %3811 = vmatprep.subr.mxu0 0.0
      %3812 = vmatpush1.msra.mxu0 %v3786
      %3813 = vmatprep.subr.mxu0 0.0
      %3814 = vmatpush1.msra.mxu0 %v3787
      %3815 = vmatprep.subr.mxu0 0.0
      %3816 = vmatpush1.msra.mxu0 %v3788
      %3817 = vmatprep.subr.mxu0 0.0
      %3818 = vmatpush1.msra.mxu0 %v3789
      %3819 = vmatprep.subr.mxu0 0.0
      %3820 = vmatpush1.msra.mxu0 %v3790
      %3821 = vmatprep.subr.mxu0 0.0
      %3822 = vmatpush1.msra.mxu0 %v3791
      %3823 = vmatprep.subr.mxu0 0.0
      %3824 = vmatpush1.msra.mxu0 %v3792
      %3825 = vmatprep.subr.mxu0 0.0
      %3826 = vmatpush1.msra.mxu0 0.0
      %3827 = vmatprep.subr.mxu0 0.0
      %3828 = vmatpush1.msra.mxu0 0.0
      %3829 = vmatprep.subr.mxu0 0.0
      %3830 = vmatpush1.msra.mxu0 0.0
      %3831 = vmatprep.subr.mxu0 0.0
      %3832 = vmatpush1.msra.mxu0 0.0
      %3833 = vmatprep.subr.mxu0 0.0
      %3834 = vmatpush1.msra.mxu0 0.0
      %3835 = vmatprep.subr.mxu0 0.0
      %3836 = vmatpush1.msra.mxu0 0.0
      %3837 = vmatprep.subr.mxu0 0.0
      %3838 = vmatpush1.msra.mxu0 0.0
      %3839 = vmatprep.subr.mxu0 0.0
      %3840 = vmatpush1.msra.mxu0 0.0
      %3841 = vmatprep.subr.mxu0 0.0
      %3842 = vmatpush1.msra.mxu0 0.0
      %3843 = vmatprep.subr.mxu0 0.0
      %3844 = vmatpush1.msra.mxu0 0.0
      %3845 = vmatprep.subr.mxu0 0.0
      %3846 = vmatpush1.msra.mxu0 0.0
      %3847 = vmatprep.subr.mxu0 0.0
      %3848 = vmatpush1.msra.mxu0 0.0
      %3849 = vmatprep.subr.mxu0 0.0
      %3850 = vmatpush1.msra.mxu0 0.0
      %3851 = vmatprep.subr.mxu0 0.0
      %3852 = vmatpush1.msra.mxu0 0.0
      %3853 = vmatprep.subr.mxu0 0.0
      %3854 = vmatpush1.msra.mxu0 0.0
      %3855 = vmatprep.subr.mxu0 0.0
      %3856 = vmatpush1.msra.mxu0 0.0
      %3857 = vmatprep.mubr.f32.mxu0 0.0
      %3858 = vmatmul.mubr.f32.gmra.mrb[0].mxu0 %v3744
      %v3859 = vpop.f32.mrb[0].mxu0
      %v3860 = vadd.f32 0.0, %v3859
      %v3861 = vpop.f32.mrb[0].mxu0
      %3862 = vmatprep.mubr.f32.mxu0 0.0
      %3863 = vmatmul.mubr.f32.gmra.mrb[0].mxu0 %v3745
      %v3864 = vpop.f32.mrb[0].mxu0
      %v3865 = vadd.f32 0.0, %v3864
      %v3866 = vpop.f32.mrb[0].mxu0
      %3867 = vmatprep.mubr.f32.mxu0 0.0
      %3868 = vmatmul.mubr.f32.gmra.mrb[0].mxu0 %v3746
      %v3869 = vpop.f32.mrb[0].mxu0
      %v3870 = vadd.f32 0.0, %v3869
      %v3871 = vpop.f32.mrb[0].mxu0
      %3872 = vmatprep.mubr.f32.mxu0 0.0
      %3873 = vmatmul.mubr.f32.gmra.mrb[0].mxu0 %v3747
      %v3874 = vpop.f32.mrb[0].mxu0
      %v3875 = vadd.f32 0.0, %v3874
      %v3876 = vpop.f32.mrb[0].mxu0
      %3877 = vmatprep.mubr.f32.mxu0 0.0
      %3878 = vmatmul.mubr.f32.gmra.mrb[0].mxu0 %v3748
      %v3879 = vpop.f32.mrb[0].mxu0
      %v3880 = vadd.f32 0.0, %v3879
      %v3881 = vpop.f32.mrb[0].mxu0
      %3882 = vmatprep.mubr.f32.mxu0 0.0
      %3883 = vmatmul.mubr.f32.gmra.mrb[0].mxu0 %v3749
      %v3884 = vpop.f32.mrb[0].mxu0
      %v3885 = vadd.f32 0.0, %v3884
      %v3886 = vpop.f32.mrb[0].mxu0
      %3887 = vmatprep.mubr.f32.mxu0 0.0
      %3888 = vmatmul.mubr.f32.gmra.mrb[0].mxu0 %v3750
      %v3889 = vpop.f32.mrb[0].mxu0
      %v3890 = vadd.f32 0.0, %v3889
      %v3891 = vpop.f32.mrb[0].mxu0
      %3892 = vmatprep.mubr.f32.mxu0 0.0
      %3893 = vmatmul.mubr.f32.gmra.mrb[0].mxu0 %v3751
      %v3894 = vpop.f32.mrb[0].mxu0
      %v3895 = vadd.f32 0.0, %v3894
      %v3896 = vpop.f32.mrb[0].mxu0
      %3897 = vmatprep.mubr.f32.mxu0 0.0
      %3898 = vmatmul.mubr.f32.gmra.mrb[0].mxu0 %v3752
      %v3899 = vpop.f32.mrb[0].mxu0
      %v3900 = vadd.f32 0.0, %v3899
      %v3901 = vpop.f32.mrb[0].mxu0
      %3902 = vmatprep.mubr.f32.mxu0 0.0
      %3903 = vmatmul.mubr.f32.gmra.mrb[0].mxu0 %v3753
      %v3904 = vpop.f32.mrb[0].mxu0
      %v3905 = vadd.f32 0.0, %v3904
      %v3906 = vpop.f32.mrb[0].mxu0
      %3907 = vmatprep.mubr.f32.mxu0 0.0
      %3908 = vmatmul.mubr.f32.gmra.mrb[0].mxu0 %v3754
      %v3909 = vpop.f32.mrb[0].mxu0
      %v3910 = vadd.f32 0.0, %v3909
      %v3911 = vpop.f32.mrb[0].mxu0
      %3912 = vmatprep.mubr.f32.mxu0 0.0
      %3913 = vmatmul.mubr.f32.gmra.mrb[0].mxu0 %v3755
      %v3914 = vpop.f32.mrb[0].mxu0
      %v3915 = vadd.f32 0.0, %v3914
      %v3916 = vpop.f32.mrb[0].mxu0
      %3917 = vmatprep.mubr.f32.mxu0 0.0
      %3918 = vmatmul.mubr.f32.gmra.mrb[0].mxu0 %v3756
      %v3919 = vpop.f32.mrb[0].mxu0
      %v3920 = vadd.f32 0.0, %v3919
      %v3921 = vpop.f32.mrb[0].mxu0
      %3922 = vmatprep.mubr.f32.mxu0 0.0
      %3923 = vmatmul.mubr.f32.gmra.mrb[0].mxu0 %v3757
      %v3924 = vpop.f32.mrb[0].mxu0
      %v3925 = vadd.f32 0.0, %v3924
      %v3926 = vpop.f32.mrb[0].mxu0
      %3927 = vmatprep.mubr.f32.mxu0 0.0
      %3928 = vmatmul.mubr.f32.gmra.mrb[0].mxu0 %v3758
      %v3929 = vpop.f32.mrb[0].mxu0
      %v3930 = vadd.f32 0.0, %v3929
      %v3931 = vpop.f32.mrb[0].mxu0
      %3932 = vmatprep.mubr.f32.mxu0 0.0
      %3933 = vmatmul.mubr.f32.gmra.mrb[0].mxu0 %v3759
      %v3934 = vpop.f32.mrb[0].mxu0
      %v3935 = vadd.f32 0.0, %v3934
      %v3936 = vpop.f32.mrb[0].mxu0
      %3937 = vmatprep.mubr.f32.mxu0 0.0
      %3938 = vmatmul.mubr.f32.gmra.mrb[0].mxu0 %v3760
      %v3939 = vpop.f32.mrb[0].mxu0
      %v3940 = vadd.f32 0.0, %v3939
      %v3941 = vpop.f32.mrb[0].mxu0
      %3942 = vmatprep.mubr.f32.mxu0 0.0
      %3943 = vmatmul.mubr.f32.gmra.mrb[0].mxu0 %v3761
      %v3944 = vpop.f32.mrb[0].mxu0
      %v3945 = vadd.f32 0.0, %v3944
      %v3946 = vpop.f32.mrb[0].mxu0
      %3947 = vmatprep.mubr.f32.mxu0 0.0
      %3948 = vmatmul.mubr.f32.gmra.mrb[0].mxu0 %v3762
      %v3949 = vpop.f32.mrb[0].mxu0
      %v3950 = vadd.f32 0.0, %v3949
      %v3951 = vpop.f32.mrb[0].mxu0
      %3952 = vmatprep.mubr.f32.mxu0 0.0
      %3953 = vmatmul.mubr.f32.gmra.mrb[0].mxu0 %v3763
      %v3954 = vpop.f32.mrb[0].mxu0
      %v3955 = vadd.f32 0.0, %v3954
      %v3956 = vpop.f32.mrb[0].mxu0
      %3957 = vmatprep.mubr.f32.mxu0 0.0
      %3958 = vmatmul.mubr.f32.gmra.mrb[0].mxu0 %v3764
      %v3959 = vpop.f32.mrb[0].mxu0
      %v3960 = vadd.f32 0.0, %v3959
      %v3961 = vpop.f32.mrb[0].mxu0
      %3962 = vmatprep.mubr.f32.mxu0 0.0
      %3963 = vmatmul.mubr.f32.gmra.mrb[0].mxu0 %v3765
      %v3964 = vpop.f32.mrb[0].mxu0
      %v3965 = vadd.f32 0.0, %v3964
      %v3966 = vpop.f32.mrb[0].mxu0
      %3967 = vmatprep.mubr.f32.mxu0 0.0
      %3968 = vmatmul.mubr.f32.gmra.mrb[0].mxu0 %v3766
      %v3969 = vpop.f32.mrb[0].mxu0
      %v3970 = vadd.f32 0.0, %v3969
      %v3971 = vpop.f32.mrb[0].mxu0
      %3972 = vmatprep.mubr.f32.mxu0 0.0
      %3973 = vmatmul.mubr.f32.gmra.mrb[0].mxu0 %v3767
      %v3974 = vpop.f32.mrb[0].mxu0
      %v3975 = vadd.f32 0.0, %v3974
      %v3976 = vpop.f32.mrb[0].mxu0
      %3977 = vmatprep.mubr.f32.mxu0 0.0
      %3978 = vmatmul.mubr.f32.gmra.mrb[0].mxu0 %v3768
      %v3979 = vpop.f32.mrb[0].mxu0
      %v3980 = vadd.f32 0.0, %v3979
      %v3981 = vpop.f32.mrb[0].mxu0
      %3982 = vmatprep.mubr.f32.mxu0 0.0
      %3983 = vmatmul.mubr.f32.gmra.mrb[0].mxu0 %v3769
      %v3984 = vpop.f32.mrb[0].mxu0
      %v3985 = vadd.f32 0.0, %v3984
      %v3986 = vpop.f32.mrb[0].mxu0
      %3987 = vmatprep.mubr.f32.mxu0 0.0
      %3988 = vmatmul.mubr.f32.gmra.mrb[0].mxu0 %v3770
      %v3989 = vpop.f32.mrb[0].mxu0
      %v3990 = vadd.f32 0.0, %v3989
      %v3991 = vpop.f32.mrb[0].mxu0
      %3992 = vmatprep.mubr.f32.mxu0 0.0
      %3993 = vmatmul.mubr.f32.gmra.mrb[0].mxu0 %v3771
      %v3994 = vpop.f32.mrb[0].mxu0
      %v3995 = vadd.f32 0.0, %v3994
      %v3996 = vpop.f32.mrb[0].mxu0
      %3997 = vmatprep.mubr.f32.mxu0 0.0
      %3998 = vmatmul.mubr.f32.gmra.mrb[0].mxu0 %v3772
      %v3999 = vpop.f32.mrb[0].mxu0
      %v4000 = vadd.f32 0.0, %v3999
      %v4001 = vpop.f32.mrb[0].mxu0
      %4002 = vmatprep.mubr.f32.mxu0 0.0
      %4003 = vmatmul.mubr.f32.gmra.mrb[0].mxu0 %v3773
      %v4004 = vpop.f32.mrb[0].mxu0
      %v4005 = vadd.f32 0.0, %v4004
      %v4006 = vpop.f32.mrb[0].mxu0
      %4007 = vmatprep.mubr.f32.mxu0 0.0
      %4008 = vmatmul.mubr.f32.gmra.mrb[0].mxu0 %v3774
      %v4009 = vpop.f32.mrb[0].mxu0
      %v4010 = vadd.f32 0.0, %v4009
      %v4011 = vpop.f32.mrb[0].mxu0
      %4012 = vmatprep.mubr.f32.mxu0 0.0
      %4013 = vmatmul.mubr.f32.gmra.mrb[0].mxu0 %v3775
      %v4014 = vpop.f32.mrb[0].mxu0
      %v4015 = vadd.f32 0.0, %v4014
      %v4016 = vpop.f32.mrb[0].mxu0
      %4017 = vdwg.mxu0
      %v4018 = vadd.f32 %v3586, %v3860
      %v4019 = vadd.f32 %v3591, %v3865
      %v4020 = vadd.f32 %v3596, %v3870
      %v4021 = vadd.f32 %v3601, %v3875
      %v4022 = vadd.f32 %v3606, %v3880
      %v4023 = vadd.f32 %v3611, %v3885
      %v4024 = vadd.f32 %v3616, %v3890
      %v4025 = vadd.f32 %v3621, %v3895
      %v4026 = vadd.f32 %v3626, %v3900
      %v4027 = vadd.f32 %v3631, %v3905
      %v4028 = vadd.f32 %v3636, %v3910
      %v4029 = vadd.f32 %v3641, %v3915
      %v4030 = vadd.f32 %v3646, %v3920
      %v4031 = vadd.f32 %v3651, %v3925
      %v4032 = vadd.f32 %v3656, %v3930
      %v4033 = vadd.f32 %v3661, %v3935
      %v4034 = vadd.f32 %v3666, %v3940
      %v4035 = vadd.f32 %v3671, %v3945
      %v4036 = vadd.f32 %v3676, %v3950
      %v4037 = vadd.f32 %v3681, %v3955
      %v4038 = vadd.f32 %v3686, %v3960
      %v4039 = vadd.f32 %v3691, %v3965
      %v4040 = vadd.f32 %v3696, %v3970
      %v4041 = vadd.f32 %v3701, %v3975
      %v4042 = vadd.f32 %v3706, %v3980
      %v4043 = vadd.f32 %v3711, %v3985
      %v4044 = vadd.f32 %v3716, %v3990
      %v4045 = vadd.f32 %v3721, %v3995
      %v4046 = vadd.f32 %v3726, %v4000
      %v4047 = vadd.f32 %v3731, %v4005
      %v4048 = vadd.f32 %v3736, %v4010
      %v4049 = vadd.f32 %v3741, %v4015
      %v4050 = vld [vmem:[%s3163 + $0x7] sm:$0xff]
      %v4051 = vld [vmem:[%s3163 + $0xf] sm:$0xff]
      %v4052 = vld [vmem:[%s3163 + $0x27] sm:$0xff]
      %v4053 = vld [vmem:[%s3163 + $0x2f] sm:$0xff]
      %v4054 = vld [vmem:[%s3163 + $0x47] sm:$0xff]
      %v4055 = vld [vmem:[%s3163 + $0x4f] sm:$0xff]
      %v4056 = vld [vmem:[%s3163 + $0x67] sm:$0xff]
      %v4057 = vld [vmem:[%s3163 + $0x6f] sm:$0xff]
      %v4058 = vld [vmem:[%s3163 + $0x87] sm:$0xff]
      %v4059 = vld [vmem:[%s3163 + $0x8f] sm:$0xff]
      %v4060 = vld [vmem:[%s3163 + $0xa7] sm:$0xff]
      %v4061 = vld [vmem:[%s3163 + $0xaf] sm:$0xff]
      %v4062 = vld [vmem:[%s3163 + $0xc7] sm:$0xff]
      %v4063 = vld [vmem:[%s3163 + $0xcf] sm:$0xff]
      %v4064 = vld [vmem:[%s3163 + $0xe7] sm:$0xff]
      %v4065 = vld [vmem:[%s3163 + $0xef] sm:$0xff]
      %v4066 = vld [vmem:[%s3163 + $0x107] sm:$0xff]
      %v4067 = vld [vmem:[%s3163 + $0x10f] sm:$0xff]
      %v4068 = vld [vmem:[%s3163 + $0x127] sm:$0xff]
      %v4069 = vld [vmem:[%s3163 + $0x12f] sm:$0xff]
      %v4070 = vld [vmem:[%s3163 + $0x147] sm:$0xff]
      %v4071 = vld [vmem:[%s3163 + $0x14f] sm:$0xff]
      %v4072 = vld [vmem:[%s3163 + $0x167] sm:$0xff]
      %v4073 = vld [vmem:[%s3163 + $0x16f] sm:$0xff]
      %v4074 = vld [vmem:[%s3163 + $0x187] sm:$0xff]
      %v4075 = vld [vmem:[%s3163 + $0x18f] sm:$0xff]
      %v4076 = vld [vmem:[%s3163 + $0x1a7] sm:$0xff]
      %v4077 = vld [vmem:[%s3163 + $0x1af] sm:$0xff]
      %v4078 = vld [vmem:[%s3163 + $0x1c7] sm:$0xff]
      %v4079 = vld [vmem:[%s3163 + $0x1cf] sm:$0xff]
      %v4080 = vld [vmem:[%s3163 + $0x1e7] sm:$0xff]
      %v4081 = vld [vmem:[%s3163 + $0x1ef] sm:$0xff]
      %s4082 = scalar_lea.vmem %s1, 1536
      %v4083 = vld [vmem:[%s4082] sm:$0xff]
      %v4084 = vld [vmem:[%s4082 + $0x8] sm:$0xff]
      %v4085 = vld [vmem:[%s4082 + $0x10] sm:$0xff]
      %v4086 = vld [vmem:[%s4082 + $0x18] sm:$0xff]
      %v4087 = vld [vmem:[%s4082 + $0x20] sm:$0xff]
      %v4088 = vld [vmem:[%s4082 + $0x28] sm:$0xff]
      %v4089 = vld [vmem:[%s4082 + $0x30] sm:$0xff]
      %v4090 = vld [vmem:[%s4082 + $0x38] sm:$0xff]
      %v4091 = vld [vmem:[%s4082 + $0x40] sm:$0xff]
      %v4092 = vld [vmem:[%s4082 + $0x48] sm:$0xff]
      %v4093 = vld [vmem:[%s4082 + $0x50] sm:$0xff]
      %v4094 = vld [vmem:[%s4082 + $0x58] sm:$0xff]
      %v4095 = vld [vmem:[%s4082 + $0x60] sm:$0xff]
      %v4096 = vld [vmem:[%s4082 + $0x68] sm:$0xff]
      %v4097 = vld [vmem:[%s4082 + $0x70] sm:$0xff]
      %v4098 = vld [vmem:[%s4082 + $0x78] sm:$0xff]
      %4099 = vmatprep.subr.mxu0 0.0
      %4100 = vmatpush1.msra.mxu0 %v4083
      %4101 = vmatprep.subr.mxu0 0.0
      %4102 = vmatpush1.msra.mxu0 %v4084
      %4103 = vmatprep.subr.mxu0 0.0
      %4104 = vmatpush1.msra.mxu0 %v4085
      %4105 = vmatprep.subr.mxu0 0.0
      %4106 = vmatpush1.msra.mxu0 %v4086
      %4107 = vmatprep.subr.mxu0 0.0
      %4108 = vmatpush1.msra.mxu0 %v4087
      %4109 = vmatprep.subr.mxu0 0.0
      %4110 = vmatpush1.msra.mxu0 %v4088
      %4111 = vmatprep.subr.mxu0 0.0
      %4112 = vmatpush1.msra.mxu0 %v4089
      %4113 = vmatprep.subr.mxu0 0.0
      %4114 = vmatpush1.msra.mxu0 %v4090
      %4115 = vmatprep.subr.mxu0 0.0
      %4116 = vmatpush1.msra.mxu0 %v4091
      %4117 = vmatprep.subr.mxu0 0.0
      %4118 = vmatpush1.msra.mxu0 %v4092
      %4119 = vmatprep.subr.mxu0 0.0
      %4120 = vmatpush1.msra.mxu0 %v4093
      %4121 = vmatprep.subr.mxu0 0.0
      %4122 = vmatpush1.msra.mxu0 %v4094
      %4123 = vmatprep.subr.mxu0 0.0
      %4124 = vmatpush1.msra.mxu0 %v4095
      %4125 = vmatprep.subr.mxu0 0.0
      %4126 = vmatpush1.msra.mxu0 %v4096
      %4127 = vmatprep.subr.mxu0 0.0
      %4128 = vmatpush1.msra.mxu0 %v4097
      %4129 = vmatprep.subr.mxu0 0.0
      %4130 = vmatpush1.msra.mxu0 %v4098
      %4131 = vmatprep.subr.mxu0 0.0
      %4132 = vmatpush1.msra.mxu0 0.0
      %4133 = vmatprep.subr.mxu0 0.0
      %4134 = vmatpush1.msra.mxu0 0.0
      %4135 = vmatprep.subr.mxu0 0.0
      %4136 = vmatpush1.msra.mxu0 0.0
      %4137 = vmatprep.subr.mxu0 0.0
      %4138 = vmatpush1.msra.mxu0 0.0
      %4139 = vmatprep.subr.mxu0 0.0
      %4140 = vmatpush1.msra.mxu0 0.0
      %4141 = vmatprep.subr.mxu0 0.0
      %4142 = vmatpush1.msra.mxu0 0.0
      %4143 = vmatprep.subr.mxu0 0.0
      %4144 = vmatpush1.msra.mxu0 0.0
      %4145 = vmatprep.subr.mxu0 0.0
      %4146 = vmatpush1.msra.mxu0 0.0
      %4147 = vmatprep.subr.mxu0 0.0
      %4148 = vmatpush1.msra.mxu0 0.0
      %4149 = vmatprep.subr.mxu0 0.0
      %4150 = vmatpush1.msra.mxu0 0.0
      %4151 = vmatprep.subr.mxu0 0.0
      %4152 = vmatpush1.msra.mxu0 0.0
      %4153 = vmatprep.subr.mxu0 0.0
      %4154 = vmatpush1.msra.mxu0 0.0
      %4155 = vmatprep.subr.mxu0 0.0
      %4156 = vmatpush1.msra.mxu0 0.0
      %4157 = vmatprep.subr.mxu0 0.0
      %4158 = vmatpush1.msra.mxu0 0.0
      %4159 = vmatprep.subr.mxu0 0.0
      %4160 = vmatpush1.msra.mxu0 0.0
      %4161 = vmatprep.subr.mxu0 0.0
      %4162 = vmatpush1.msra.mxu0 0.0
      %4163 = vmatprep.mubr.f32.mxu0 0.0
      %4164 = vmatmul.mubr.f32.gmra.mrb[0].mxu0 %v4050
      %v4165 = vpop.f32.mrb[0].mxu0
      %v4166 = vadd.f32 0.0, %v4165
      %v4167 = vpop.f32.mrb[0].mxu0
      %4168 = vmatprep.mubr.f32.mxu0 0.0
      %4169 = vmatmul.mubr.f32.gmra.mrb[0].mxu0 %v4051
      %v4170 = vpop.f32.mrb[0].mxu0
      %v4171 = vadd.f32 0.0, %v4170
      %v4172 = vpop.f32.mrb[0].mxu0
      %4173 = vmatprep.mubr.f32.mxu0 0.0
      %4174 = vmatmul.mubr.f32.gmra.mrb[0].mxu0 %v4052
      %v4175 = vpop.f32.mrb[0].mxu0
      %v4176 = vadd.f32 0.0, %v4175
      %v4177 = vpop.f32.mrb[0].mxu0
      %4178 = vmatprep.mubr.f32.mxu0 0.0
      %4179 = vmatmul.mubr.f32.gmra.mrb[0].mxu0 %v4053
      %v4180 = vpop.f32.mrb[0].mxu0
      %v4181 = vadd.f32 0.0, %v4180
      %v4182 = vpop.f32.mrb[0].mxu0
      %4183 = vmatprep.mubr.f32.mxu0 0.0
      %4184 = vmatmul.mubr.f32.gmra.mrb[0].mxu0 %v4054
      %v4185 = vpop.f32.mrb[0].mxu0
      %v4186 = vadd.f32 0.0, %v4185
      %v4187 = vpop.f32.mrb[0].mxu0
      %4188 = vmatprep.mubr.f32.mxu0 0.0
      %4189 = vmatmul.mubr.f32.gmra.mrb[0].mxu0 %v4055
      %v4190 = vpop.f32.mrb[0].mxu0
      %v4191 = vadd.f32 0.0, %v4190
      %v4192 = vpop.f32.mrb[0].mxu0
      %4193 = vmatprep.mubr.f32.mxu0 0.0
      %4194 = vmatmul.mubr.f32.gmra.mrb[0].mxu0 %v4056
      %v4195 = vpop.f32.mrb[0].mxu0
      %v4196 = vadd.f32 0.0, %v4195
      %v4197 = vpop.f32.mrb[0].mxu0
      %4198 = vmatprep.mubr.f32.mxu0 0.0
      %4199 = vmatmul.mubr.f32.gmra.mrb[0].mxu0 %v4057
      %v4200 = vpop.f32.mrb[0].mxu0
      %v4201 = vadd.f32 0.0, %v4200
      %v4202 = vpop.f32.mrb[0].mxu0
      %4203 = vmatprep.mubr.f32.mxu0 0.0
      %4204 = vmatmul.mubr.f32.gmra.mrb[0].mxu0 %v4058
      %v4205 = vpop.f32.mrb[0].mxu0
      %v4206 = vadd.f32 0.0, %v4205
      %v4207 = vpop.f32.mrb[0].mxu0
      %4208 = vmatprep.mubr.f32.mxu0 0.0
      %4209 = vmatmul.mubr.f32.gmra.mrb[0].mxu0 %v4059
      %v4210 = vpop.f32.mrb[0].mxu0
      %v4211 = vadd.f32 0.0, %v4210
      %v4212 = vpop.f32.mrb[0].mxu0
      %4213 = vmatprep.mubr.f32.mxu0 0.0
      %4214 = vmatmul.mubr.f32.gmra.mrb[0].mxu0 %v4060
      %v4215 = vpop.f32.mrb[0].mxu0
      %v4216 = vadd.f32 0.0, %v4215
      %v4217 = vpop.f32.mrb[0].mxu0
      %4218 = vmatprep.mubr.f32.mxu0 0.0
      %4219 = vmatmul.mubr.f32.gmra.mrb[0].mxu0 %v4061
      %v4220 = vpop.f32.mrb[0].mxu0
      %v4221 = vadd.f32 0.0, %v4220
      %v4222 = vpop.f32.mrb[0].mxu0
      %4223 = vmatprep.mubr.f32.mxu0 0.0
      %4224 = vmatmul.mubr.f32.gmra.mrb[0].mxu0 %v4062
      %v4225 = vpop.f32.mrb[0].mxu0
      %v4226 = vadd.f32 0.0, %v4225
      %v4227 = vpop.f32.mrb[0].mxu0
      %4228 = vmatprep.mubr.f32.mxu0 0.0
      %4229 = vmatmul.mubr.f32.gmra.mrb[0].mxu0 %v4063
      %v4230 = vpop.f32.mrb[0].mxu0
      %v4231 = vadd.f32 0.0, %v4230
      %v4232 = vpop.f32.mrb[0].mxu0
      %4233 = vmatprep.mubr.f32.mxu0 0.0
      %4234 = vmatmul.mubr.f32.gmra.mrb[0].mxu0 %v4064
      %v4235 = vpop.f32.mrb[0].mxu0
      %v4236 = vadd.f32 0.0, %v4235
      %v4237 = vpop.f32.mrb[0].mxu0
      %4238 = vmatprep.mubr.f32.mxu0 0.0
      %4239 = vmatmul.mubr.f32.gmra.mrb[0].mxu0 %v4065
      %v4240 = vpop.f32.mrb[0].mxu0
      %v4241 = vadd.f32 0.0, %v4240
      %v4242 = vpop.f32.mrb[0].mxu0
      %4243 = vmatprep.mubr.f32.mxu0 0.0
      %4244 = vmatmul.mubr.f32.gmra.mrb[0].mxu0 %v4066
      %v4245 = vpop.f32.mrb[0].mxu0
      %v4246 = vadd.f32 0.0, %v4245
      %v4247 = vpop.f32.mrb[0].mxu0
      %4248 = vmatprep.mubr.f32.mxu0 0.0
      %4249 = vmatmul.mubr.f32.gmra.mrb[0].mxu0 %v4067
      %v4250 = vpop.f32.mrb[0].mxu0
      %v4251 = vadd.f32 0.0, %v4250
      %v4252 = vpop.f32.mrb[0].mxu0
      %4253 = vmatprep.mubr.f32.mxu0 0.0
      %4254 = vmatmul.mubr.f32.gmra.mrb[0].mxu0 %v4068
      %v4255 = vpop.f32.mrb[0].mxu0
      %v4256 = vadd.f32 0.0, %v4255
      %v4257 = vpop.f32.mrb[0].mxu0
      %4258 = vmatprep.mubr.f32.mxu0 0.0
      %4259 = vmatmul.mubr.f32.gmra.mrb[0].mxu0 %v4069
      %v4260 = vpop.f32.mrb[0].mxu0
      %v4261 = vadd.f32 0.0, %v4260
      %v4262 = vpop.f32.mrb[0].mxu0
      %4263 = vmatprep.mubr.f32.mxu0 0.0
      %4264 = vmatmul.mubr.f32.gmra.mrb[0].mxu0 %v4070
      %v4265 = vpop.f32.mrb[0].mxu0
      %v4266 = vadd.f32 0.0, %v4265
      %v4267 = vpop.f32.mrb[0].mxu0
      %4268 = vmatprep.mubr.f32.mxu0 0.0
      %4269 = vmatmul.mubr.f32.gmra.mrb[0].mxu0 %v4071
      %v4270 = vpop.f32.mrb[0].mxu0
      %v4271 = vadd.f32 0.0, %v4270
      %v4272 = vpop.f32.mrb[0].mxu0
      %4273 = vmatprep.mubr.f32.mxu0 0.0
      %4274 = vmatmul.mubr.f32.gmra.mrb[0].mxu0 %v4072
      %v4275 = vpop.f32.mrb[0].mxu0
      %v4276 = vadd.f32 0.0, %v4275
      %v4277 = vpop.f32.mrb[0].mxu0
      %4278 = vmatprep.mubr.f32.mxu0 0.0
      %4279 = vmatmul.mubr.f32.gmra.mrb[0].mxu0 %v4073
      %v4280 = vpop.f32.mrb[0].mxu0
      %v4281 = vadd.f32 0.0, %v4280
      %v4282 = vpop.f32.mrb[0].mxu0
      %4283 = vmatprep.mubr.f32.mxu0 0.0
      %4284 = vmatmul.mubr.f32.gmra.mrb[0].mxu0 %v4074
      %v4285 = vpop.f32.mrb[0].mxu0
      %v4286 = vadd.f32 0.0, %v4285
      %v4287 = vpop.f32.mrb[0].mxu0
      %4288 = vmatprep.mubr.f32.mxu0 0.0
      %4289 = vmatmul.mubr.f32.gmra.mrb[0].mxu0 %v4075
      %v4290 = vpop.f32.mrb[0].mxu0
      %v4291 = vadd.f32 0.0, %v4290
      %v4292 = vpop.f32.mrb[0].mxu0
      %4293 = vmatprep.mubr.f32.mxu0 0.0
      %4294 = vmatmul.mubr.f32.gmra.mrb[0].mxu0 %v4076
      %v4295 = vpop.f32.mrb[0].mxu0
      %v4296 = vadd.f32 0.0, %v4295
      %v4297 = vpop.f32.mrb[0].mxu0
      %4298 = vmatprep.mubr.f32.mxu0 0.0
      %4299 = vmatmul.mubr.f32.gmra.mrb[0].mxu0 %v4077
      %v4300 = vpop.f32.mrb[0].mxu0
      %v4301 = vadd.f32 0.0, %v4300
      %v4302 = vpop.f32.mrb[0].mxu0
      %4303 = vmatprep.mubr.f32.mxu0 0.0
      %4304 = vmatmul.mubr.f32.gmra.mrb[0].mxu0 %v4078
      %v4305 = vpop.f32.mrb[0].mxu0
      %v4306 = vadd.f32 0.0, %v4305
      %v4307 = vpop.f32.mrb[0].mxu0
      %4308 = vmatprep.mubr.f32.mxu0 0.0
      %4309 = vmatmul.mubr.f32.gmra.mrb[0].mxu0 %v4079
      %v4310 = vpop.f32.mrb[0].mxu0
      %v4311 = vadd.f32 0.0, %v4310
      %v4312 = vpop.f32.mrb[0].mxu0
      %4313 = vmatprep.mubr.f32.mxu0 0.0
      %4314 = vmatmul.mubr.f32.gmra.mrb[0].mxu0 %v4080
      %v4315 = vpop.f32.mrb[0].mxu0
      %v4316 = vadd.f32 0.0, %v4315
      %v4317 = vpop.f32.mrb[0].mxu0
      %4318 = vmatprep.mubr.f32.mxu0 0.0
      %4319 = vmatmul.mubr.f32.gmra.mrb[0].mxu0 %v4081
      %v4320 = vpop.f32.mrb[0].mxu0
      %v4321 = vadd.f32 0.0, %v4320
      %v4322 = vpop.f32.mrb[0].mxu0
      %4323 = vdwg.mxu0
      %v4324 = vadd.f32 %v4018, %v4166
      %v4325 = vadd.f32 %v4019, %v4171
      %v4326 = vadd.f32 %v4020, %v4176
      %v4327 = vadd.f32 %v4021, %v4181
      %v4328 = vadd.f32 %v4022, %v4186
      %v4329 = vadd.f32 %v4023, %v4191
      %v4330 = vadd.f32 %v4024, %v4196
      %v4331 = vadd.f32 %v4025, %v4201
      %v4332 = vadd.f32 %v4026, %v4206
      %v4333 = vadd.f32 %v4027, %v4211
      %v4334 = vadd.f32 %v4028, %v4216
      %v4335 = vadd.f32 %v4029, %v4221
      %v4336 = vadd.f32 %v4030, %v4226
      %v4337 = vadd.f32 %v4031, %v4231
      %v4338 = vadd.f32 %v4032, %v4236
      %v4339 = vadd.f32 %v4033, %v4241
      %v4340 = vadd.f32 %v4034, %v4246
      %v4341 = vadd.f32 %v4035, %v4251
      %v4342 = vadd.f32 %v4036, %v4256
      %v4343 = vadd.f32 %v4037, %v4261
      %v4344 = vadd.f32 %v4038, %v4266
      %v4345 = vadd.f32 %v4039, %v4271
      %v4346 = vadd.f32 %v4040, %v4276
      %v4347 = vadd.f32 %v4041, %v4281
      %v4348 = vadd.f32 %v4042, %v4286
      %v4349 = vadd.f32 %v4043, %v4291
      %v4350 = vadd.f32 %v4044, %v4296
      %v4351 = vadd.f32 %v4045, %v4301
      %v4352 = vadd.f32 %v4046, %v4306
      %v4353 = vadd.f32 %v4047, %v4311
      %v4354 = vadd.f32 %v4048, %v4316
      %v4355 = vadd.f32 %v4049, %v4321
      %v4356 = vld [vmem:[%s3163 + $0x8] sm:$0xff]
      %v4357 = vld [vmem:[%s3163 + $0x10] sm:$0xff]
      %v4358 = vld [vmem:[%s3163 + $0x28] sm:$0xff]
      %v4359 = vld [vmem:[%s3163 + $0x30] sm:$0xff]
      %v4360 = vld [vmem:[%s3163 + $0x48] sm:$0xff]
      %v4361 = vld [vmem:[%s3163 + $0x50] sm:$0xff]
      %v4362 = vld [vmem:[%s3163 + $0x68] sm:$0xff]
      %v4363 = vld [vmem:[%s3163 + $0x70] sm:$0xff]
      %v4364 = vld [vmem:[%s3163 + $0x88] sm:$0xff]
      %v4365 = vld [vmem:[%s3163 + $0x90] sm:$0xff]
      %v4366 = vld [vmem:[%s3163 + $0xa8] sm:$0xff]
      %v4367 = vld [vmem:[%s3163 + $0xb0] sm:$0xff]
      %v4368 = vld [vmem:[%s3163 + $0xc8] sm:$0xff]
      %v4369 = vld [vmem:[%s3163 + $0xd0] sm:$0xff]
      %v4370 = vld [vmem:[%s3163 + $0xe8] sm:$0xff]
      %v4371 = vld [vmem:[%s3163 + $0xf0] sm:$0xff]
      %v4372 = vld [vmem:[%s3163 + $0x108] sm:$0xff]
      %v4373 = vld [vmem:[%s3163 + $0x110] sm:$0xff]
      %v4374 = vld [vmem:[%s3163 + $0x128] sm:$0xff]
      %v4375 = vld [vmem:[%s3163 + $0x130] sm:$0xff]
      %v4376 = vld [vmem:[%s3163 + $0x148] sm:$0xff]
      %v4377 = vld [vmem:[%s3163 + $0x150] sm:$0xff]
      %v4378 = vld [vmem:[%s3163 + $0x168] sm:$0xff]
      %v4379 = vld [vmem:[%s3163 + $0x170] sm:$0xff]
      %v4380 = vld [vmem:[%s3163 + $0x188] sm:$0xff]
      %v4381 = vld [vmem:[%s3163 + $0x190] sm:$0xff]
      %v4382 = vld [vmem:[%s3163 + $0x1a8] sm:$0xff]
      %v4383 = vld [vmem:[%s3163 + $0x1b0] sm:$0xff]
      %v4384 = vld [vmem:[%s3163 + $0x1c8] sm:$0xff]
      %v4385 = vld [vmem:[%s3163 + $0x1d0] sm:$0xff]
      %v4386 = vld [vmem:[%s3163 + $0x1e8] sm:$0xff]
      %v4387 = vld [vmem:[%s3163 + $0x1f0] sm:$0xff]
      %s4388 = scalar_lea.vmem %s1, 1664
      %v4389 = vld [vmem:[%s4388] sm:$0xff]
      %v4390 = vld [vmem:[%s4388 + $0x8] sm:$0xff]
      %v4391 = vld [vmem:[%s4388 + $0x10] sm:$0xff]
      %v4392 = vld [vmem:[%s4388 + $0x18] sm:$0xff]
      %v4393 = vld [vmem:[%s4388 + $0x20] sm:$0xff]
      %v4394 = vld [vmem:[%s4388 + $0x28] sm:$0xff]
      %v4395 = vld [vmem:[%s4388 + $0x30] sm:$0xff]
      %v4396 = vld [vmem:[%s4388 + $0x38] sm:$0xff]
      %v4397 = vld [vmem:[%s4388 + $0x40] sm:$0xff]
      %v4398 = vld [vmem:[%s4388 + $0x48] sm:$0xff]
      %v4399 = vld [vmem:[%s4388 + $0x50] sm:$0xff]
      %v4400 = vld [vmem:[%s4388 + $0x58] sm:$0xff]
      %v4401 = vld [vmem:[%s4388 + $0x60] sm:$0xff]
      %v4402 = vld [vmem:[%s4388 + $0x68] sm:$0xff]
      %v4403 = vld [vmem:[%s4388 + $0x70] sm:$0xff]
      %v4404 = vld [vmem:[%s4388 + $0x78] sm:$0xff]
      %4405 = vmatprep.subr.mxu0 0.0
      %4406 = vmatpush1.msra.mxu0 %v4389
      %4407 = vmatprep.subr.mxu0 0.0
      %4408 = vmatpush1.msra.mxu0 %v4390
      %4409 = vmatprep.subr.mxu0 0.0
      %4410 = vmatpush1.msra.mxu0 %v4391
      %4411 = vmatprep.subr.mxu0 0.0
      %4412 = vmatpush1.msra.mxu0 %v4392
      %4413 = vmatprep.subr.mxu0 0.0
      %4414 = vmatpush1.msra.mxu0 %v4393
      %4415 = vmatprep.subr.mxu0 0.0
      %4416 = vmatpush1.msra.mxu0 %v4394
      %4417 = vmatprep.subr.mxu0 0.0
      %4418 = vmatpush1.msra.mxu0 %v4395
      %4419 = vmatprep.subr.mxu0 0.0
      %4420 = vmatpush1.msra.mxu0 %v4396
      %4421 = vmatprep.subr.mxu0 0.0
      %4422 = vmatpush1.msra.mxu0 %v4397
      %4423 = vmatprep.subr.mxu0 0.0
      %4424 = vmatpush1.msra.mxu0 %v4398
      %4425 = vmatprep.subr.mxu0 0.0
      %4426 = vmatpush1.msra.mxu0 %v4399
      %4427 = vmatprep.subr.mxu0 0.0
      %4428 = vmatpush1.msra.mxu0 %v4400
      %4429 = vmatprep.subr.mxu0 0.0
      %4430 = vmatpush1.msra.mxu0 %v4401
      %4431 = vmatprep.subr.mxu0 0.0
      %4432 = vmatpush1.msra.mxu0 %v4402
      %4433 = vmatprep.subr.mxu0 0.0
      %4434 = vmatpush1.msra.mxu0 %v4403
      %4435 = vmatprep.subr.mxu0 0.0
      %4436 = vmatpush1.msra.mxu0 %v4404
      %4437 = vmatprep.subr.mxu0 0.0
      %4438 = vmatpush1.msra.mxu0 0.0
      %4439 = vmatprep.subr.mxu0 0.0
      %4440 = vmatpush1.msra.mxu0 0.0
      %4441 = vmatprep.subr.mxu0 0.0
      %4442 = vmatpush1.msra.mxu0 0.0
      %4443 = vmatprep.subr.mxu0 0.0
      %4444 = vmatpush1.msra.mxu0 0.0
      %4445 = vmatprep.subr.mxu0 0.0
      %4446 = vmatpush1.msra.mxu0 0.0
      %4447 = vmatprep.subr.mxu0 0.0
      %4448 = vmatpush1.msra.mxu0 0.0
      %4449 = vmatprep.subr.mxu0 0.0
      %4450 = vmatpush1.msra.mxu0 0.0
      %4451 = vmatprep.subr.mxu0 0.0
      %4452 = vmatpush1.msra.mxu0 0.0
      %4453 = vmatprep.subr.mxu0 0.0
      %4454 = vmatpush1.msra.mxu0 0.0
      %4455 = vmatprep.subr.mxu0 0.0
      %4456 = vmatpush1.msra.mxu0 0.0
      %4457 = vmatprep.subr.mxu0 0.0
      %4458 = vmatpush1.msra.mxu0 0.0
      %4459 = vmatprep.subr.mxu0 0.0
      %4460 = vmatpush1.msra.mxu0 0.0
      %4461 = vmatprep.subr.mxu0 0.0
      %4462 = vmatpush1.msra.mxu0 0.0
      %4463 = vmatprep.subr.mxu0 0.0
      %4464 = vmatpush1.msra.mxu0 0.0
      %4465 = vmatprep.subr.mxu0 0.0
      %4466 = vmatpush1.msra.mxu0 0.0
      %4467 = vmatprep.subr.mxu0 0.0
      %4468 = vmatpush1.msra.mxu0 0.0
      %4469 = vmatprep.mubr.f32.mxu0 0.0
      %4470 = vmatmul.mubr.f32.gmra.mrb[0].mxu0 %v4356
      %v4471 = vpop.f32.mrb[0].mxu0
      %v4472 = vadd.f32 0.0, %v4471
      %v4473 = vpop.f32.mrb[0].mxu0
      %4474 = vmatprep.mubr.f32.mxu0 0.0
      %4475 = vmatmul.mubr.f32.gmra.mrb[0].mxu0 %v4357
      %v4476 = vpop.f32.mrb[0].mxu0
      %v4477 = vadd.f32 0.0, %v4476
      %v4478 = vpop.f32.mrb[0].mxu0
      %4479 = vmatprep.mubr.f32.mxu0 0.0
      %4480 = vmatmul.mubr.f32.gmra.mrb[0].mxu0 %v4358
      %v4481 = vpop.f32.mrb[0].mxu0
      %v4482 = vadd.f32 0.0, %v4481
      %v4483 = vpop.f32.mrb[0].mxu0
      %4484 = vmatprep.mubr.f32.mxu0 0.0
      %4485 = vmatmul.mubr.f32.gmra.mrb[0].mxu0 %v4359
      %v4486 = vpop.f32.mrb[0].mxu0
      %v4487 = vadd.f32 0.0, %v4486
      %v4488 = vpop.f32.mrb[0].mxu0
      %4489 = vmatprep.mubr.f32.mxu0 0.0
      %4490 = vmatmul.mubr.f32.gmra.mrb[0].mxu0 %v4360
      %v4491 = vpop.f32.mrb[0].mxu0
      %v4492 = vadd.f32 0.0, %v4491
      %v4493 = vpop.f32.mrb[0].mxu0
      %4494 = vmatprep.mubr.f32.mxu0 0.0
      %4495 = vmatmul.mubr.f32.gmra.mrb[0].mxu0 %v4361
      %v4496 = vpop.f32.mrb[0].mxu0
      %v4497 = vadd.f32 0.0, %v4496
      %v4498 = vpop.f32.mrb[0].mxu0
      %4499 = vmatprep.mubr.f32.mxu0 0.0
      %4500 = vmatmul.mubr.f32.gmra.mrb[0].mxu0 %v4362
      %v4501 = vpop.f32.mrb[0].mxu0
      %v4502 = vadd.f32 0.0, %v4501
      %v4503 = vpop.f32.mrb[0].mxu0
      %4504 = vmatprep.mubr.f32.mxu0 0.0
      %4505 = vmatmul.mubr.f32.gmra.mrb[0].mxu0 %v4363
      %v4506 = vpop.f32.mrb[0].mxu0
      %v4507 = vadd.f32 0.0, %v4506
      %v4508 = vpop.f32.mrb[0].mxu0
      %4509 = vmatprep.mubr.f32.mxu0 0.0
      %4510 = vmatmul.mubr.f32.gmra.mrb[0].mxu0 %v4364
      %v4511 = vpop.f32.mrb[0].mxu0
      %v4512 = vadd.f32 0.0, %v4511
      %v4513 = vpop.f32.mrb[0].mxu0
      %4514 = vmatprep.mubr.f32.mxu0 0.0
      %4515 = vmatmul.mubr.f32.gmra.mrb[0].mxu0 %v4365
      %v4516 = vpop.f32.mrb[0].mxu0
      %v4517 = vadd.f32 0.0, %v4516
      %v4518 = vpop.f32.mrb[0].mxu0
      %4519 = vmatprep.mubr.f32.mxu0 0.0
      %4520 = vmatmul.mubr.f32.gmra.mrb[0].mxu0 %v4366
      %v4521 = vpop.f32.mrb[0].mxu0
      %v4522 = vadd.f32 0.0, %v4521
      %v4523 = vpop.f32.mrb[0].mxu0
      %4524 = vmatprep.mubr.f32.mxu0 0.0
      %4525 = vmatmul.mubr.f32.gmra.mrb[0].mxu0 %v4367
      %v4526 = vpop.f32.mrb[0].mxu0
      %v4527 = vadd.f32 0.0, %v4526
      %v4528 = vpop.f32.mrb[0].mxu0
      %4529 = vmatprep.mubr.f32.mxu0 0.0
      %4530 = vmatmul.mubr.f32.gmra.mrb[0].mxu0 %v4368
      %v4531 = vpop.f32.mrb[0].mxu0
      %v4532 = vadd.f32 0.0, %v4531
      %v4533 = vpop.f32.mrb[0].mxu0
      %4534 = vmatprep.mubr.f32.mxu0 0.0
      %4535 = vmatmul.mubr.f32.gmra.mrb[0].mxu0 %v4369
      %v4536 = vpop.f32.mrb[0].mxu0
      %v4537 = vadd.f32 0.0, %v4536
      %v4538 = vpop.f32.mrb[0].mxu0
      %4539 = vmatprep.mubr.f32.mxu0 0.0
      %4540 = vmatmul.mubr.f32.gmra.mrb[0].mxu0 %v4370
      %v4541 = vpop.f32.mrb[0].mxu0
      %v4542 = vadd.f32 0.0, %v4541
      %v4543 = vpop.f32.mrb[0].mxu0
      %4544 = vmatprep.mubr.f32.mxu0 0.0
      %4545 = vmatmul.mubr.f32.gmra.mrb[0].mxu0 %v4371
      %v4546 = vpop.f32.mrb[0].mxu0
      %v4547 = vadd.f32 0.0, %v4546
      %v4548 = vpop.f32.mrb[0].mxu0
      %4549 = vmatprep.mubr.f32.mxu0 0.0
      %4550 = vmatmul.mubr.f32.gmra.mrb[0].mxu0 %v4372
      %v4551 = vpop.f32.mrb[0].mxu0
      %v4552 = vadd.f32 0.0, %v4551
      %v4553 = vpop.f32.mrb[0].mxu0
      %4554 = vmatprep.mubr.f32.mxu0 0.0
      %4555 = vmatmul.mubr.f32.gmra.mrb[0].mxu0 %v4373
      %v4556 = vpop.f32.mrb[0].mxu0
      %v4557 = vadd.f32 0.0, %v4556
      %v4558 = vpop.f32.mrb[0].mxu0
      %4559 = vmatprep.mubr.f32.mxu0 0.0
      %4560 = vmatmul.mubr.f32.gmra.mrb[0].mxu0 %v4374
      %v4561 = vpop.f32.mrb[0].mxu0
      %v4562 = vadd.f32 0.0, %v4561
      %v4563 = vpop.f32.mrb[0].mxu0
      %4564 = vmatprep.mubr.f32.mxu0 0.0
      %4565 = vmatmul.mubr.f32.gmra.mrb[0].mxu0 %v4375
      %v4566 = vpop.f32.mrb[0].mxu0
      %v4567 = vadd.f32 0.0, %v4566
      %v4568 = vpop.f32.mrb[0].mxu0
      %4569 = vmatprep.mubr.f32.mxu0 0.0
      %4570 = vmatmul.mubr.f32.gmra.mrb[0].mxu0 %v4376
      %v4571 = vpop.f32.mrb[0].mxu0
      %v4572 = vadd.f32 0.0, %v4571
      %v4573 = vpop.f32.mrb[0].mxu0
      %4574 = vmatprep.mubr.f32.mxu0 0.0
      %4575 = vmatmul.mubr.f32.gmra.mrb[0].mxu0 %v4377
      %v4576 = vpop.f32.mrb[0].mxu0
      %v4577 = vadd.f32 0.0, %v4576
      %v4578 = vpop.f32.mrb[0].mxu0
      %4579 = vmatprep.mubr.f32.mxu0 0.0
      %4580 = vmatmul.mubr.f32.gmra.mrb[0].mxu0 %v4378
      %v4581 = vpop.f32.mrb[0].mxu0
      %v4582 = vadd.f32 0.0, %v4581
      %v4583 = vpop.f32.mrb[0].mxu0
      %4584 = vmatprep.mubr.f32.mxu0 0.0
      %4585 = vmatmul.mubr.f32.gmra.mrb[0].mxu0 %v4379
      %v4586 = vpop.f32.mrb[0].mxu0
      %v4587 = vadd.f32 0.0, %v4586
      %v4588 = vpop.f32.mrb[0].mxu0
      %4589 = vmatprep.mubr.f32.mxu0 0.0
      %4590 = vmatmul.mubr.f32.gmra.mrb[0].mxu0 %v4380
      %v4591 = vpop.f32.mrb[0].mxu0
      %v4592 = vadd.f32 0.0, %v4591
      %v4593 = vpop.f32.mrb[0].mxu0
      %4594 = vmatprep.mubr.f32.mxu0 0.0
      %4595 = vmatmul.mubr.f32.gmra.mrb[0].mxu0 %v4381
      %v4596 = vpop.f32.mrb[0].mxu0
      %v4597 = vadd.f32 0.0, %v4596
      %v4598 = vpop.f32.mrb[0].mxu0
      %4599 = vmatprep.mubr.f32.mxu0 0.0
      %4600 = vmatmul.mubr.f32.gmra.mrb[0].mxu0 %v4382
      %v4601 = vpop.f32.mrb[0].mxu0
      %v4602 = vadd.f32 0.0, %v4601
      %v4603 = vpop.f32.mrb[0].mxu0
      %4604 = vmatprep.mubr.f32.mxu0 0.0
      %4605 = vmatmul.mubr.f32.gmra.mrb[0].mxu0 %v4383
      %v4606 = vpop.f32.mrb[0].mxu0
      %v4607 = vadd.f32 0.0, %v4606
      %v4608 = vpop.f32.mrb[0].mxu0
      %4609 = vmatprep.mubr.f32.mxu0 0.0
      %4610 = vmatmul.mubr.f32.gmra.mrb[0].mxu0 %v4384
      %v4611 = vpop.f32.mrb[0].mxu0
      %v4612 = vadd.f32 0.0, %v4611
      %v4613 = vpop.f32.mrb[0].mxu0
      %4614 = vmatprep.mubr.f32.mxu0 0.0
      %4615 = vmatmul.mubr.f32.gmra.mrb[0].mxu0 %v4385
      %v4616 = vpop.f32.mrb[0].mxu0
      %v4617 = vadd.f32 0.0, %v4616
      %v4618 = vpop.f32.mrb[0].mxu0
      %4619 = vmatprep.mubr.f32.mxu0 0.0
      %4620 = vmatmul.mubr.f32.gmra.mrb[0].mxu0 %v4386
      %v4621 = vpop.f32.mrb[0].mxu0
      %v4622 = vadd.f32 0.0, %v4621
      %v4623 = vpop.f32.mrb[0].mxu0
      %4624 = vmatprep.mubr.f32.mxu0 0.0
      %4625 = vmatmul.mubr.f32.gmra.mrb[0].mxu0 %v4387
      %v4626 = vpop.f32.mrb[0].mxu0
      %v4627 = vadd.f32 0.0, %v4626
      %v4628 = vpop.f32.mrb[0].mxu0
      %4629 = vdwg.mxu0
      %v4630 = vadd.f32 %v4324, %v4472
      %v4631 = vadd.f32 %v4325, %v4477
      %v4632 = vadd.f32 %v4326, %v4482
      %v4633 = vadd.f32 %v4327, %v4487
      %v4634 = vadd.f32 %v4328, %v4492
      %v4635 = vadd.f32 %v4329, %v4497
      %v4636 = vadd.f32 %v4330, %v4502
      %v4637 = vadd.f32 %v4331, %v4507
      %v4638 = vadd.f32 %v4332, %v4512
      %v4639 = vadd.f32 %v4333, %v4517
      %v4640 = vadd.f32 %v4334, %v4522
      %v4641 = vadd.f32 %v4335, %v4527
      %v4642 = vadd.f32 %v4336, %v4532
      %v4643 = vadd.f32 %v4337, %v4537
      %v4644 = vadd.f32 %v4338, %v4542
      %v4645 = vadd.f32 %v4339, %v4547
      %v4646 = vadd.f32 %v4340, %v4552
      %v4647 = vadd.f32 %v4341, %v4557
      %v4648 = vadd.f32 %v4342, %v4562
      %v4649 = vadd.f32 %v4343, %v4567
      %v4650 = vadd.f32 %v4344, %v4572
      %v4651 = vadd.f32 %v4345, %v4577
      %v4652 = vadd.f32 %v4346, %v4582
      %v4653 = vadd.f32 %v4347, %v4587
      %v4654 = vadd.f32 %v4348, %v4592
      %v4655 = vadd.f32 %v4349, %v4597
      %v4656 = vadd.f32 %v4350, %v4602
      %v4657 = vadd.f32 %v4351, %v4607
      %v4658 = vadd.f32 %v4352, %v4612
      %v4659 = vadd.f32 %v4353, %v4617
      %v4660 = vadd.f32 %v4354, %v4622
      %v4661 = vadd.f32 %v4355, %v4627
      %v4662 = vld [vmem:[%s3163 + $0x9] sm:$0xff]
      %v4663 = vld [vmem:[%s3163 + $0x11] sm:$0xff]
      %v4664 = vld [vmem:[%s3163 + $0x29] sm:$0xff]
      %v4665 = vld [vmem:[%s3163 + $0x31] sm:$0xff]
      %v4666 = vld [vmem:[%s3163 + $0x49] sm:$0xff]
      %v4667 = vld [vmem:[%s3163 + $0x51] sm:$0xff]
      %v4668 = vld [vmem:[%s3163 + $0x69] sm:$0xff]
      %v4669 = vld [vmem:[%s3163 + $0x71] sm:$0xff]
      %v4670 = vld [vmem:[%s3163 + $0x89] sm:$0xff]
      %v4671 = vld [vmem:[%s3163 + $0x91] sm:$0xff]
      %v4672 = vld [vmem:[%s3163 + $0xa9] sm:$0xff]
      %v4673 = vld [vmem:[%s3163 + $0xb1] sm:$0xff]
      %v4674 = vld [vmem:[%s3163 + $0xc9] sm:$0xff]
      %v4675 = vld [vmem:[%s3163 + $0xd1] sm:$0xff]
      %v4676 = vld [vmem:[%s3163 + $0xe9] sm:$0xff]
      %v4677 = vld [vmem:[%s3163 + $0xf1] sm:$0xff]
      %v4678 = vld [vmem:[%s3163 + $0x109] sm:$0xff]
      %v4679 = vld [vmem:[%s3163 + $0x111] sm:$0xff]
      %v4680 = vld [vmem:[%s3163 + $0x129] sm:$0xff]
      %v4681 = vld [vmem:[%s3163 + $0x131] sm:$0xff]
      %v4682 = vld [vmem:[%s3163 + $0x149] sm:$0xff]
      %v4683 = vld [vmem:[%s3163 + $0x151] sm:$0xff]
      %v4684 = vld [vmem:[%s3163 + $0x169] sm:$0xff]
      %v4685 = vld [vmem:[%s3163 + $0x171] sm:$0xff]
      %v4686 = vld [vmem:[%s3163 + $0x189] sm:$0xff]
      %v4687 = vld [vmem:[%s3163 + $0x191] sm:$0xff]
      %v4688 = vld [vmem:[%s3163 + $0x1a9] sm:$0xff]
      %v4689 = vld [vmem:[%s3163 + $0x1b1] sm:$0xff]
      %v4690 = vld [vmem:[%s3163 + $0x1c9] sm:$0xff]
      %v4691 = vld [vmem:[%s3163 + $0x1d1] sm:$0xff]
      %v4692 = vld [vmem:[%s3163 + $0x1e9] sm:$0xff]
      %v4693 = vld [vmem:[%s3163 + $0x1f1] sm:$0xff]
      %s4694 = scalar_lea.vmem %s1, 1792
      %v4695 = vld [vmem:[%s4694] sm:$0xff]
      %v4696 = vld [vmem:[%s4694 + $0x8] sm:$0xff]
      %v4697 = vld [vmem:[%s4694 + $0x10] sm:$0xff]
      %v4698 = vld [vmem:[%s4694 + $0x18] sm:$0xff]
      %v4699 = vld [vmem:[%s4694 + $0x20] sm:$0xff]
      %v4700 = vld [vmem:[%s4694 + $0x28] sm:$0xff]
      %v4701 = vld [vmem:[%s4694 + $0x30] sm:$0xff]
      %v4702 = vld [vmem:[%s4694 + $0x38] sm:$0xff]
      %v4703 = vld [vmem:[%s4694 + $0x40] sm:$0xff]
      %v4704 = vld [vmem:[%s4694 + $0x48] sm:$0xff]
      %v4705 = vld [vmem:[%s4694 + $0x50] sm:$0xff]
      %v4706 = vld [vmem:[%s4694 + $0x58] sm:$0xff]
      %v4707 = vld [vmem:[%s4694 + $0x60] sm:$0xff]
      %v4708 = vld [vmem:[%s4694 + $0x68] sm:$0xff]
      %v4709 = vld [vmem:[%s4694 + $0x70] sm:$0xff]
      %v4710 = vld [vmem:[%s4694 + $0x78] sm:$0xff]
      %4711 = vmatprep.subr.mxu0 0.0
      %4712 = vmatpush1.msra.mxu0 %v4695
      %4713 = vmatprep.subr.mxu0 0.0
      %4714 = vmatpush1.msra.mxu0 %v4696
      %4715 = vmatprep.subr.mxu0 0.0
      %4716 = vmatpush1.msra.mxu0 %v4697
      %4717 = vmatprep.subr.mxu0 0.0
      %4718 = vmatpush1.msra.mxu0 %v4698
      %4719 = vmatprep.subr.mxu0 0.0
      %4720 = vmatpush1.msra.mxu0 %v4699
      %4721 = vmatprep.subr.mxu0 0.0
      %4722 = vmatpush1.msra.mxu0 %v4700
      %4723 = vmatprep.subr.mxu0 0.0
      %4724 = vmatpush1.msra.mxu0 %v4701
      %4725 = vmatprep.subr.mxu0 0.0
      %4726 = vmatpush1.msra.mxu0 %v4702
      %4727 = vmatprep.subr.mxu0 0.0
      %4728 = vmatpush1.msra.mxu0 %v4703
      %4729 = vmatprep.subr.mxu0 0.0
      %4730 = vmatpush1.msra.mxu0 %v4704
      %4731 = vmatprep.subr.mxu0 0.0
      %4732 = vmatpush1.msra.mxu0 %v4705
      %4733 = vmatprep.subr.mxu0 0.0
      %4734 = vmatpush1.msra.mxu0 %v4706
      %4735 = vmatprep.subr.mxu0 0.0
      %4736 = vmatpush1.msra.mxu0 %v4707
      %4737 = vmatprep.subr.mxu0 0.0
      %4738 = vmatpush1.msra.mxu0 %v4708
      %4739 = vmatprep.subr.mxu0 0.0
      %4740 = vmatpush1.msra.mxu0 %v4709
      %4741 = vmatprep.subr.mxu0 0.0
      %4742 = vmatpush1.msra.mxu0 %v4710
      %4743 = vmatprep.subr.mxu0 0.0
      %4744 = vmatpush1.msra.mxu0 0.0
      %4745 = vmatprep.subr.mxu0 0.0
      %4746 = vmatpush1.msra.mxu0 0.0
      %4747 = vmatprep.subr.mxu0 0.0
      %4748 = vmatpush1.msra.mxu0 0.0
      %4749 = vmatprep.subr.mxu0 0.0
      %4750 = vmatpush1.msra.mxu0 0.0
      %4751 = vmatprep.subr.mxu0 0.0
      %4752 = vmatpush1.msra.mxu0 0.0
      %4753 = vmatprep.subr.mxu0 0.0
      %4754 = vmatpush1.msra.mxu0 0.0
      %4755 = vmatprep.subr.mxu0 0.0
      %4756 = vmatpush1.msra.mxu0 0.0
      %4757 = vmatprep.subr.mxu0 0.0
      %4758 = vmatpush1.msra.mxu0 0.0
      %4759 = vmatprep.subr.mxu0 0.0
      %4760 = vmatpush1.msra.mxu0 0.0
      %4761 = vmatprep.subr.mxu0 0.0
      %4762 = vmatpush1.msra.mxu0 0.0
      %4763 = vmatprep.subr.mxu0 0.0
      %4764 = vmatpush1.msra.mxu0 0.0
      %4765 = vmatprep.subr.mxu0 0.0
      %4766 = vmatpush1.msra.mxu0 0.0
      %4767 = vmatprep.subr.mxu0 0.0
      %4768 = vmatpush1.msra.mxu0 0.0
      %4769 = vmatprep.subr.mxu0 0.0
      %4770 = vmatpush1.msra.mxu0 0.0
      %4771 = vmatprep.subr.mxu0 0.0
      %4772 = vmatpush1.msra.mxu0 0.0
      %4773 = vmatprep.subr.mxu0 0.0
      %4774 = vmatpush1.msra.mxu0 0.0
      %4775 = vmatprep.mubr.f32.mxu0 0.0
      %4776 = vmatmul.mubr.f32.gmra.mrb[0].mxu0 %v4662
      %v4777 = vpop.f32.mrb[0].mxu0
      %v4778 = vadd.f32 0.0, %v4777
      %v4779 = vpop.f32.mrb[0].mxu0
      %4780 = vmatprep.mubr.f32.mxu0 0.0
      %4781 = vmatmul.mubr.f32.gmra.mrb[0].mxu0 %v4663
      %v4782 = vpop.f32.mrb[0].mxu0
      %v4783 = vadd.f32 0.0, %v4782
      %v4784 = vpop.f32.mrb[0].mxu0
      %4785 = vmatprep.mubr.f32.mxu0 0.0
      %4786 = vmatmul.mubr.f32.gmra.mrb[0].mxu0 %v4664
      %v4787 = vpop.f32.mrb[0].mxu0
      %v4788 = vadd.f32 0.0, %v4787
      %v4789 = vpop.f32.mrb[0].mxu0
      %4790 = vmatprep.mubr.f32.mxu0 0.0
      %4791 = vmatmul.mubr.f32.gmra.mrb[0].mxu0 %v4665
      %v4792 = vpop.f32.mrb[0].mxu0
      %v4793 = vadd.f32 0.0, %v4792
      %v4794 = vpop.f32.mrb[0].mxu0
      %4795 = vmatprep.mubr.f32.mxu0 0.0
      %4796 = vmatmul.mubr.f32.gmra.mrb[0].mxu0 %v4666
      %v4797 = vpop.f32.mrb[0].mxu0
      %v4798 = vadd.f32 0.0, %v4797
      %v4799 = vpop.f32.mrb[0].mxu0
      %4800 = vmatprep.mubr.f32.mxu0 0.0
      %4801 = vmatmul.mubr.f32.gmra.mrb[0].mxu0 %v4667
      %v4802 = vpop.f32.mrb[0].mxu0
      %v4803 = vadd.f32 0.0, %v4802
      %v4804 = vpop.f32.mrb[0].mxu0
      %4805 = vmatprep.mubr.f32.mxu0 0.0
      %4806 = vmatmul.mubr.f32.gmra.mrb[0].mxu0 %v4668
      %v4807 = vpop.f32.mrb[0].mxu0
      %v4808 = vadd.f32 0.0, %v4807
      %v4809 = vpop.f32.mrb[0].mxu0
      %4810 = vmatprep.mubr.f32.mxu0 0.0
      %4811 = vmatmul.mubr.f32.gmra.mrb[0].mxu0 %v4669
      %v4812 = vpop.f32.mrb[0].mxu0
      %v4813 = vadd.f32 0.0, %v4812
      %v4814 = vpop.f32.mrb[0].mxu0
      %4815 = vmatprep.mubr.f32.mxu0 0.0
      %4816 = vmatmul.mubr.f32.gmra.mrb[0].mxu0 %v4670
      %v4817 = vpop.f32.mrb[0].mxu0
      %v4818 = vadd.f32 0.0, %v4817
      %v4819 = vpop.f32.mrb[0].mxu0
      %4820 = vmatprep.mubr.f32.mxu0 0.0
      %4821 = vmatmul.mubr.f32.gmra.mrb[0].mxu0 %v4671
      %v4822 = vpop.f32.mrb[0].mxu0
      %v4823 = vadd.f32 0.0, %v4822
      %v4824 = vpop.f32.mrb[0].mxu0
      %4825 = vmatprep.mubr.f32.mxu0 0.0
      %4826 = vmatmul.mubr.f32.gmra.mrb[0].mxu0 %v4672
      %v4827 = vpop.f32.mrb[0].mxu0
      %v4828 = vadd.f32 0.0, %v4827
      %v4829 = vpop.f32.mrb[0].mxu0
      %4830 = vmatprep.mubr.f32.mxu0 0.0
      %4831 = vmatmul.mubr.f32.gmra.mrb[0].mxu0 %v4673
      %v4832 = vpop.f32.mrb[0].mxu0
      %v4833 = vadd.f32 0.0, %v4832
      %v4834 = vpop.f32.mrb[0].mxu0
      %4835 = vmatprep.mubr.f32.mxu0 0.0
      %4836 = vmatmul.mubr.f32.gmra.mrb[0].mxu0 %v4674
      %v4837 = vpop.f32.mrb[0].mxu0
      %v4838 = vadd.f32 0.0, %v4837
      %v4839 = vpop.f32.mrb[0].mxu0
      %4840 = vmatprep.mubr.f32.mxu0 0.0
      %4841 = vmatmul.mubr.f32.gmra.mrb[0].mxu0 %v4675
      %v4842 = vpop.f32.mrb[0].mxu0
      %v4843 = vadd.f32 0.0, %v4842
      %v4844 = vpop.f32.mrb[0].mxu0
      %4845 = vmatprep.mubr.f32.mxu0 0.0
      %4846 = vmatmul.mubr.f32.gmra.mrb[0].mxu0 %v4676
      %v4847 = vpop.f32.mrb[0].mxu0
      %v4848 = vadd.f32 0.0, %v4847
      %v4849 = vpop.f32.mrb[0].mxu0
      %4850 = vmatprep.mubr.f32.mxu0 0.0
      %4851 = vmatmul.mubr.f32.gmra.mrb[0].mxu0 %v4677
      %v4852 = vpop.f32.mrb[0].mxu0
      %v4853 = vadd.f32 0.0, %v4852
      %v4854 = vpop.f32.mrb[0].mxu0
      %4855 = vmatprep.mubr.f32.mxu0 0.0
      %4856 = vmatmul.mubr.f32.gmra.mrb[0].mxu0 %v4678
      %v4857 = vpop.f32.mrb[0].mxu0
      %v4858 = vadd.f32 0.0, %v4857
      %v4859 = vpop.f32.mrb[0].mxu0
      %4860 = vmatprep.mubr.f32.mxu0 0.0
      %4861 = vmatmul.mubr.f32.gmra.mrb[0].mxu0 %v4679
      %v4862 = vpop.f32.mrb[0].mxu0
      %v4863 = vadd.f32 0.0, %v4862
      %v4864 = vpop.f32.mrb[0].mxu0
      %4865 = vmatprep.mubr.f32.mxu0 0.0
      %4866 = vmatmul.mubr.f32.gmra.mrb[0].mxu0 %v4680
      %v4867 = vpop.f32.mrb[0].mxu0
      %v4868 = vadd.f32 0.0, %v4867
      %v4869 = vpop.f32.mrb[0].mxu0
      %4870 = vmatprep.mubr.f32.mxu0 0.0
      %4871 = vmatmul.mubr.f32.gmra.mrb[0].mxu0 %v4681
      %v4872 = vpop.f32.mrb[0].mxu0
      %v4873 = vadd.f32 0.0, %v4872
      %v4874 = vpop.f32.mrb[0].mxu0
      %4875 = vmatprep.mubr.f32.mxu0 0.0
      %4876 = vmatmul.mubr.f32.gmra.mrb[0].mxu0 %v4682
      %v4877 = vpop.f32.mrb[0].mxu0
      %v4878 = vadd.f32 0.0, %v4877
      %v4879 = vpop.f32.mrb[0].mxu0
      %4880 = vmatprep.mubr.f32.mxu0 0.0
      %4881 = vmatmul.mubr.f32.gmra.mrb[0].mxu0 %v4683
      %v4882 = vpop.f32.mrb[0].mxu0
      %v4883 = vadd.f32 0.0, %v4882
      %v4884 = vpop.f32.mrb[0].mxu0
      %4885 = vmatprep.mubr.f32.mxu0 0.0
      %4886 = vmatmul.mubr.f32.gmra.mrb[0].mxu0 %v4684
      %v4887 = vpop.f32.mrb[0].mxu0
      %v4888 = vadd.f32 0.0, %v4887
      %v4889 = vpop.f32.mrb[0].mxu0
      %4890 = vmatprep.mubr.f32.mxu0 0.0
      %4891 = vmatmul.mubr.f32.gmra.mrb[0].mxu0 %v4685
      %v4892 = vpop.f32.mrb[0].mxu0
      %v4893 = vadd.f32 0.0, %v4892
      %v4894 = vpop.f32.mrb[0].mxu0
      %4895 = vmatprep.mubr.f32.mxu0 0.0
      %4896 = vmatmul.mubr.f32.gmra.mrb[0].mxu0 %v4686
      %v4897 = vpop.f32.mrb[0].mxu0
      %v4898 = vadd.f32 0.0, %v4897
      %v4899 = vpop.f32.mrb[0].mxu0
      %4900 = vmatprep.mubr.f32.mxu0 0.0
      %4901 = vmatmul.mubr.f32.gmra.mrb[0].mxu0 %v4687
      %v4902 = vpop.f32.mrb[0].mxu0
      %v4903 = vadd.f32 0.0, %v4902
      %v4904 = vpop.f32.mrb[0].mxu0
      %4905 = vmatprep.mubr.f32.mxu0 0.0
      %4906 = vmatmul.mubr.f32.gmra.mrb[0].mxu0 %v4688
      %v4907 = vpop.f32.mrb[0].mxu0
      %v4908 = vadd.f32 0.0, %v4907
      %v4909 = vpop.f32.mrb[0].mxu0
      %4910 = vmatprep.mubr.f32.mxu0 0.0
      %4911 = vmatmul.mubr.f32.gmra.mrb[0].mxu0 %v4689
      %v4912 = vpop.f32.mrb[0].mxu0
      %v4913 = vadd.f32 0.0, %v4912
      %v4914 = vpop.f32.mrb[0].mxu0
      %4915 = vmatprep.mubr.f32.mxu0 0.0
      %4916 = vmatmul.mubr.f32.gmra.mrb[0].mxu0 %v4690
      %v4917 = vpop.f32.mrb[0].mxu0
      %v4918 = vadd.f32 0.0, %v4917
      %v4919 = vpop.f32.mrb[0].mxu0
      %4920 = vmatprep.mubr.f32.mxu0 0.0
      %4921 = vmatmul.mubr.f32.gmra.mrb[0].mxu0 %v4691
      %v4922 = vpop.f32.mrb[0].mxu0
      %v4923 = vadd.f32 0.0, %v4922
      %v4924 = vpop.f32.mrb[0].mxu0
      %4925 = vmatprep.mubr.f32.mxu0 0.0
      %4926 = vmatmul.mubr.f32.gmra.mrb[0].mxu0 %v4692
      %v4927 = vpop.f32.mrb[0].mxu0
      %v4928 = vadd.f32 0.0, %v4927
      %v4929 = vpop.f32.mrb[0].mxu0
      %4930 = vmatprep.mubr.f32.mxu0 0.0
      %4931 = vmatmul.mubr.f32.gmra.mrb[0].mxu0 %v4693
      %v4932 = vpop.f32.mrb[0].mxu0
      %v4933 = vadd.f32 0.0, %v4932
      %v4934 = vpop.f32.mrb[0].mxu0
      %4935 = vdwg.mxu0
      %v4936 = vadd.f32 %v4630, %v4778
      %v4937 = vadd.f32 %v4631, %v4783
      %v4938 = vadd.f32 %v4632, %v4788
      %v4939 = vadd.f32 %v4633, %v4793
      %v4940 = vadd.f32 %v4634, %v4798
      %v4941 = vadd.f32 %v4635, %v4803
      %v4942 = vadd.f32 %v4636, %v4808
      %v4943 = vadd.f32 %v4637, %v4813
      %v4944 = vadd.f32 %v4638, %v4818
      %v4945 = vadd.f32 %v4639, %v4823
      %v4946 = vadd.f32 %v4640, %v4828
      %v4947 = vadd.f32 %v4641, %v4833
      %v4948 = vadd.f32 %v4642, %v4838
      %v4949 = vadd.f32 %v4643, %v4843
      %v4950 = vadd.f32 %v4644, %v4848
      %v4951 = vadd.f32 %v4645, %v4853
      %v4952 = vadd.f32 %v4646, %v4858
      %v4953 = vadd.f32 %v4647, %v4863
      %v4954 = vadd.f32 %v4648, %v4868
      %v4955 = vadd.f32 %v4649, %v4873
      %v4956 = vadd.f32 %v4650, %v4878
      %v4957 = vadd.f32 %v4651, %v4883
      %v4958 = vadd.f32 %v4652, %v4888
      %v4959 = vadd.f32 %v4653, %v4893
      %v4960 = vadd.f32 %v4654, %v4898
      %v4961 = vadd.f32 %v4655, %v4903
      %v4962 = vadd.f32 %v4656, %v4908
      %v4963 = vadd.f32 %v4657, %v4913
      %v4964 = vadd.f32 %v4658, %v4918
      %v4965 = vadd.f32 %v4659, %v4923
      %v4966 = vadd.f32 %v4660, %v4928
      %v4967 = vadd.f32 %v4661, %v4933
      %s4968 = scalar_lea.vmem [#allocation3], 64
      %v4969 = vld [vmem:[%s4968 + $0x7] sm:$0xff]
      %v4970 = vld [vmem:[%s4968 + $0xf] sm:$0xff]
      %v4971 = vld [vmem:[%s4968 + $0x27] sm:$0xff]
      %v4972 = vld [vmem:[%s4968 + $0x2f] sm:$0xff]
      %v4973 = vld [vmem:[%s4968 + $0x47] sm:$0xff]
      %v4974 = vld [vmem:[%s4968 + $0x4f] sm:$0xff]
      %v4975 = vld [vmem:[%s4968 + $0x67] sm:$0xff]
      %v4976 = vld [vmem:[%s4968 + $0x6f] sm:$0xff]
      %v4977 = vld [vmem:[%s4968 + $0x87] sm:$0xff]
      %v4978 = vld [vmem:[%s4968 + $0x8f] sm:$0xff]
      %v4979 = vld [vmem:[%s4968 + $0xa7] sm:$0xff]
      %v4980 = vld [vmem:[%s4968 + $0xaf] sm:$0xff]
      %v4981 = vld [vmem:[%s4968 + $0xc7] sm:$0xff]
      %v4982 = vld [vmem:[%s4968 + $0xcf] sm:$0xff]
      %v4983 = vld [vmem:[%s4968 + $0xe7] sm:$0xff]
      %v4984 = vld [vmem:[%s4968 + $0xef] sm:$0xff]
      %v4985 = vld [vmem:[%s4968 + $0x107] sm:$0xff]
      %v4986 = vld [vmem:[%s4968 + $0x10f] sm:$0xff]
      %v4987 = vld [vmem:[%s4968 + $0x127] sm:$0xff]
      %v4988 = vld [vmem:[%s4968 + $0x12f] sm:$0xff]
      %v4989 = vld [vmem:[%s4968 + $0x147] sm:$0xff]
      %v4990 = vld [vmem:[%s4968 + $0x14f] sm:$0xff]
      %v4991 = vld [vmem:[%s4968 + $0x167] sm:$0xff]
      %v4992 = vld [vmem:[%s4968 + $0x16f] sm:$0xff]
      %v4993 = vld [vmem:[%s4968 + $0x187] sm:$0xff]
      %v4994 = vld [vmem:[%s4968 + $0x18f] sm:$0xff]
      %v4995 = vld [vmem:[%s4968 + $0x1a7] sm:$0xff]
      %v4996 = vld [vmem:[%s4968 + $0x1af] sm:$0xff]
      %v4997 = vld [vmem:[%s4968 + $0x1c7] sm:$0xff]
      %v4998 = vld [vmem:[%s4968 + $0x1cf] sm:$0xff]
      %v4999 = vld [vmem:[%s4968 + $0x1e7] sm:$0xff]
      %v5000 = vld [vmem:[%s4968 + $0x1ef] sm:$0xff]
      %s5001 = scalar_lea.vmem %s1, 1920
      %v5002 = vld [vmem:[%s5001] sm:$0xff]
      %v5003 = vld [vmem:[%s5001 + $0x8] sm:$0xff]
      %v5004 = vld [vmem:[%s5001 + $0x10] sm:$0xff]
      %v5005 = vld [vmem:[%s5001 + $0x18] sm:$0xff]
      %v5006 = vld [vmem:[%s5001 + $0x20] sm:$0xff]
      %v5007 = vld [vmem:[%s5001 + $0x28] sm:$0xff]
      %v5008 = vld [vmem:[%s5001 + $0x30] sm:$0xff]
      %v5009 = vld [vmem:[%s5001 + $0x38] sm:$0xff]
      %v5010 = vld [vmem:[%s5001 + $0x40] sm:$0xff]
      %v5011 = vld [vmem:[%s5001 + $0x48] sm:$0xff]
      %v5012 = vld [vmem:[%s5001 + $0x50] sm:$0xff]
      %v5013 = vld [vmem:[%s5001 + $0x58] sm:$0xff]
      %v5014 = vld [vmem:[%s5001 + $0x60] sm:$0xff]
      %v5015 = vld [vmem:[%s5001 + $0x68] sm:$0xff]
      %v5016 = vld [vmem:[%s5001 + $0x70] sm:$0xff]
      %v5017 = vld [vmem:[%s5001 + $0x78] sm:$0xff]
      %5018 = vmatprep.subr.mxu0 0.0
      %5019 = vmatpush1.msra.mxu0 %v5002
      %5020 = vmatprep.subr.mxu0 0.0
      %5021 = vmatpush1.msra.mxu0 %v5003
      %5022 = vmatprep.subr.mxu0 0.0
      %5023 = vmatpush1.msra.mxu0 %v5004
      %5024 = vmatprep.subr.mxu0 0.0
      %5025 = vmatpush1.msra.mxu0 %v5005
      %5026 = vmatprep.subr.mxu0 0.0
      %5027 = vmatpush1.msra.mxu0 %v5006
      %5028 = vmatprep.subr.mxu0 0.0
      %5029 = vmatpush1.msra.mxu0 %v5007
      %5030 = vmatprep.subr.mxu0 0.0
      %5031 = vmatpush1.msra.mxu0 %v5008
      %5032 = vmatprep.subr.mxu0 0.0
      %5033 = vmatpush1.msra.mxu0 %v5009
      %5034 = vmatprep.subr.mxu0 0.0
      %5035 = vmatpush1.msra.mxu0 %v5010
      %5036 = vmatprep.subr.mxu0 0.0
      %5037 = vmatpush1.msra.mxu0 %v5011
      %5038 = vmatprep.subr.mxu0 0.0
      %5039 = vmatpush1.msra.mxu0 %v5012
      %5040 = vmatprep.subr.mxu0 0.0
      %5041 = vmatpush1.msra.mxu0 %v5013
      %5042 = vmatprep.subr.mxu0 0.0
      %5043 = vmatpush1.msra.mxu0 %v5014
      %5044 = vmatprep.subr.mxu0 0.0
      %5045 = vmatpush1.msra.mxu0 %v5015
      %5046 = vmatprep.subr.mxu0 0.0
      %5047 = vmatpush1.msra.mxu0 %v5016
      %5048 = vmatprep.subr.mxu0 0.0
      %5049 = vmatpush1.msra.mxu0 %v5017
      %5050 = vmatprep.subr.mxu0 0.0
      %5051 = vmatpush1.msra.mxu0 0.0
      %5052 = vmatprep.subr.mxu0 0.0
      %5053 = vmatpush1.msra.mxu0 0.0
      %5054 = vmatprep.subr.mxu0 0.0
      %5055 = vmatpush1.msra.mxu0 0.0
      %5056 = vmatprep.subr.mxu0 0.0
      %5057 = vmatpush1.msra.mxu0 0.0
      %5058 = vmatprep.subr.mxu0 0.0
      %5059 = vmatpush1.msra.mxu0 0.0
      %5060 = vmatprep.subr.mxu0 0.0
      %5061 = vmatpush1.msra.mxu0 0.0
      %5062 = vmatprep.subr.mxu0 0.0
      %5063 = vmatpush1.msra.mxu0 0.0
      %5064 = vmatprep.subr.mxu0 0.0
      %5065 = vmatpush1.msra.mxu0 0.0
      %5066 = vmatprep.subr.mxu0 0.0
      %5067 = vmatpush1.msra.mxu0 0.0
      %5068 = vmatprep.subr.mxu0 0.0
      %5069 = vmatpush1.msra.mxu0 0.0
      %5070 = vmatprep.subr.mxu0 0.0
      %5071 = vmatpush1.msra.mxu0 0.0
      %5072 = vmatprep.subr.mxu0 0.0
      %5073 = vmatpush1.msra.mxu0 0.0
      %5074 = vmatprep.subr.mxu0 0.0
      %5075 = vmatpush1.msra.mxu0 0.0
      %5076 = vmatprep.subr.mxu0 0.0
      %5077 = vmatpush1.msra.mxu0 0.0
      %5078 = vmatprep.subr.mxu0 0.0
      %5079 = vmatpush1.msra.mxu0 0.0
      %5080 = vmatprep.subr.mxu0 0.0
      %5081 = vmatpush1.msra.mxu0 0.0
      %5082 = vmatprep.mubr.f32.mxu0 0.0
      %5083 = vmatmul.mubr.f32.gmra.mrb[0].mxu0 %v4969
      %v5084 = vpop.f32.mrb[0].mxu0
      %v5085 = vadd.f32 0.0, %v5084
      %v5086 = vpop.f32.mrb[0].mxu0
      %5087 = vmatprep.mubr.f32.mxu0 0.0
      %5088 = vmatmul.mubr.f32.gmra.mrb[0].mxu0 %v4970
      %v5089 = vpop.f32.mrb[0].mxu0
      %v5090 = vadd.f32 0.0, %v5089
      %v5091 = vpop.f32.mrb[0].mxu0
      %5092 = vmatprep.mubr.f32.mxu0 0.0
      %5093 = vmatmul.mubr.f32.gmra.mrb[0].mxu0 %v4971
      %v5094 = vpop.f32.mrb[0].mxu0
      %v5095 = vadd.f32 0.0, %v5094
      %v5096 = vpop.f32.mrb[0].mxu0
      %5097 = vmatprep.mubr.f32.mxu0 0.0
      %5098 = vmatmul.mubr.f32.gmra.mrb[0].mxu0 %v4972
      %v5099 = vpop.f32.mrb[0].mxu0
      %v5100 = vadd.f32 0.0, %v5099
      %v5101 = vpop.f32.mrb[0].mxu0
      %5102 = vmatprep.mubr.f32.mxu0 0.0
      %5103 = vmatmul.mubr.f32.gmra.mrb[0].mxu0 %v4973
      %v5104 = vpop.f32.mrb[0].mxu0
      %v5105 = vadd.f32 0.0, %v5104
      %v5106 = vpop.f32.mrb[0].mxu0
      %5107 = vmatprep.mubr.f32.mxu0 0.0
      %5108 = vmatmul.mubr.f32.gmra.mrb[0].mxu0 %v4974
      %v5109 = vpop.f32.mrb[0].mxu0
      %v5110 = vadd.f32 0.0, %v5109
      %v5111 = vpop.f32.mrb[0].mxu0
      %5112 = vmatprep.mubr.f32.mxu0 0.0
      %5113 = vmatmul.mubr.f32.gmra.mrb[0].mxu0 %v4975
      %v5114 = vpop.f32.mrb[0].mxu0
      %v5115 = vadd.f32 0.0, %v5114
      %v5116 = vpop.f32.mrb[0].mxu0
      %5117 = vmatprep.mubr.f32.mxu0 0.0
      %5118 = vmatmul.mubr.f32.gmra.mrb[0].mxu0 %v4976
      %v5119 = vpop.f32.mrb[0].mxu0
      %v5120 = vadd.f32 0.0, %v5119
      %v5121 = vpop.f32.mrb[0].mxu0
      %5122 = vmatprep.mubr.f32.mxu0 0.0
      %5123 = vmatmul.mubr.f32.gmra.mrb[0].mxu0 %v4977
      %v5124 = vpop.f32.mrb[0].mxu0
      %v5125 = vadd.f32 0.0, %v5124
      %v5126 = vpop.f32.mrb[0].mxu0
      %5127 = vmatprep.mubr.f32.mxu0 0.0
      %5128 = vmatmul.mubr.f32.gmra.mrb[0].mxu0 %v4978
      %v5129 = vpop.f32.mrb[0].mxu0
      %v5130 = vadd.f32 0.0, %v5129
      %v5131 = vpop.f32.mrb[0].mxu0
      %5132 = vmatprep.mubr.f32.mxu0 0.0
      %5133 = vmatmul.mubr.f32.gmra.mrb[0].mxu0 %v4979
      %v5134 = vpop.f32.mrb[0].mxu0
      %v5135 = vadd.f32 0.0, %v5134
      %v5136 = vpop.f32.mrb[0].mxu0
      %5137 = vmatprep.mubr.f32.mxu0 0.0
      %5138 = vmatmul.mubr.f32.gmra.mrb[0].mxu0 %v4980
      %v5139 = vpop.f32.mrb[0].mxu0
      %v5140 = vadd.f32 0.0, %v5139
      %v5141 = vpop.f32.mrb[0].mxu0
      %5142 = vmatprep.mubr.f32.mxu0 0.0
      %5143 = vmatmul.mubr.f32.gmra.mrb[0].mxu0 %v4981
      %v5144 = vpop.f32.mrb[0].mxu0
      %v5145 = vadd.f32 0.0, %v5144
      %v5146 = vpop.f32.mrb[0].mxu0
      %5147 = vmatprep.mubr.f32.mxu0 0.0
      %5148 = vmatmul.mubr.f32.gmra.mrb[0].mxu0 %v4982
      %v5149 = vpop.f32.mrb[0].mxu0
      %v5150 = vadd.f32 0.0, %v5149
      %v5151 = vpop.f32.mrb[0].mxu0
      %5152 = vmatprep.mubr.f32.mxu0 0.0
      %5153 = vmatmul.mubr.f32.gmra.mrb[0].mxu0 %v4983
      %v5154 = vpop.f32.mrb[0].mxu0
      %v5155 = vadd.f32 0.0, %v5154
      %v5156 = vpop.f32.mrb[0].mxu0
      %5157 = vmatprep.mubr.f32.mxu0 0.0
      %5158 = vmatmul.mubr.f32.gmra.mrb[0].mxu0 %v4984
      %v5159 = vpop.f32.mrb[0].mxu0
      %v5160 = vadd.f32 0.0, %v5159
      %v5161 = vpop.f32.mrb[0].mxu0
      %5162 = vmatprep.mubr.f32.mxu0 0.0
      %5163 = vmatmul.mubr.f32.gmra.mrb[0].mxu0 %v4985
      %v5164 = vpop.f32.mrb[0].mxu0
      %v5165 = vadd.f32 0.0, %v5164
      %v5166 = vpop.f32.mrb[0].mxu0
      %5167 = vmatprep.mubr.f32.mxu0 0.0
      %5168 = vmatmul.mubr.f32.gmra.mrb[0].mxu0 %v4986
      %v5169 = vpop.f32.mrb[0].mxu0
      %v5170 = vadd.f32 0.0, %v5169
      %v5171 = vpop.f32.mrb[0].mxu0
      %5172 = vmatprep.mubr.f32.mxu0 0.0
      %5173 = vmatmul.mubr.f32.gmra.mrb[0].mxu0 %v4987
      %v5174 = vpop.f32.mrb[0].mxu0
      %v5175 = vadd.f32 0.0, %v5174
      %v5176 = vpop.f32.mrb[0].mxu0
      %5177 = vmatprep.mubr.f32.mxu0 0.0
      %5178 = vmatmul.mubr.f32.gmra.mrb[0].mxu0 %v4988
      %v5179 = vpop.f32.mrb[0].mxu0
      %v5180 = vadd.f32 0.0, %v5179
      %v5181 = vpop.f32.mrb[0].mxu0
      %5182 = vmatprep.mubr.f32.mxu0 0.0
      %5183 = vmatmul.mubr.f32.gmra.mrb[0].mxu0 %v4989
      %v5184 = vpop.f32.mrb[0].mxu0
      %v5185 = vadd.f32 0.0, %v5184
      %v5186 = vpop.f32.mrb[0].mxu0
      %5187 = vmatprep.mubr.f32.mxu0 0.0
      %5188 = vmatmul.mubr.f32.gmra.mrb[0].mxu0 %v4990
      %v5189 = vpop.f32.mrb[0].mxu0
      %v5190 = vadd.f32 0.0, %v5189
      %v5191 = vpop.f32.mrb[0].mxu0
      %5192 = vmatprep.mubr.f32.mxu0 0.0
      %5193 = vmatmul.mubr.f32.gmra.mrb[0].mxu0 %v4991
      %v5194 = vpop.f32.mrb[0].mxu0
      %v5195 = vadd.f32 0.0, %v5194
      %v5196 = vpop.f32.mrb[0].mxu0
      %5197 = vmatprep.mubr.f32.mxu0 0.0
      %5198 = vmatmul.mubr.f32.gmra.mrb[0].mxu0 %v4992
      %v5199 = vpop.f32.mrb[0].mxu0
      %v5200 = vadd.f32 0.0, %v5199
      %v5201 = vpop.f32.mrb[0].mxu0
      %5202 = vmatprep.mubr.f32.mxu0 0.0
      %5203 = vmatmul.mubr.f32.gmra.mrb[0].mxu0 %v4993
      %v5204 = vpop.f32.mrb[0].mxu0
      %v5205 = vadd.f32 0.0, %v5204
      %v5206 = vpop.f32.mrb[0].mxu0
      %5207 = vmatprep.mubr.f32.mxu0 0.0
      %5208 = vmatmul.mubr.f32.gmra.mrb[0].mxu0 %v4994
      %v5209 = vpop.f32.mrb[0].mxu0
      %v5210 = vadd.f32 0.0, %v5209
      %v5211 = vpop.f32.mrb[0].mxu0
      %5212 = vmatprep.mubr.f32.mxu0 0.0
      %5213 = vmatmul.mubr.f32.gmra.mrb[0].mxu0 %v4995
      %v5214 = vpop.f32.mrb[0].mxu0
      %v5215 = vadd.f32 0.0, %v5214
      %v5216 = vpop.f32.mrb[0].mxu0
      %5217 = vmatprep.mubr.f32.mxu0 0.0
      %5218 = vmatmul.mubr.f32.gmra.mrb[0].mxu0 %v4996
      %v5219 = vpop.f32.mrb[0].mxu0
      %v5220 = vadd.f32 0.0, %v5219
      %v5221 = vpop.f32.mrb[0].mxu0
      %5222 = vmatprep.mubr.f32.mxu0 0.0
      %5223 = vmatmul.mubr.f32.gmra.mrb[0].mxu0 %v4997
      %v5224 = vpop.f32.mrb[0].mxu0
      %v5225 = vadd.f32 0.0, %v5224
      %v5226 = vpop.f32.mrb[0].mxu0
      %5227 = vmatprep.mubr.f32.mxu0 0.0
      %5228 = vmatmul.mubr.f32.gmra.mrb[0].mxu0 %v4998
      %v5229 = vpop.f32.mrb[0].mxu0
      %v5230 = vadd.f32 0.0, %v5229
      %v5231 = vpop.f32.mrb[0].mxu0
      %5232 = vmatprep.mubr.f32.mxu0 0.0
      %5233 = vmatmul.mubr.f32.gmra.mrb[0].mxu0 %v4999
      %v5234 = vpop.f32.mrb[0].mxu0
      %v5235 = vadd.f32 0.0, %v5234
      %v5236 = vpop.f32.mrb[0].mxu0
      %5237 = vmatprep.mubr.f32.mxu0 0.0
      %5238 = vmatmul.mubr.f32.gmra.mrb[0].mxu0 %v5000
      %v5239 = vpop.f32.mrb[0].mxu0
      %v5240 = vadd.f32 0.0, %v5239
      %v5241 = vpop.f32.mrb[0].mxu0
      %5242 = vdwg.mxu0
      %v5243 = vadd.f32 %v4936, %v5085
      %v5244 = vadd.f32 %v4937, %v5090
      %v5245 = vadd.f32 %v4938, %v5095
      %v5246 = vadd.f32 %v4939, %v5100
      %v5247 = vadd.f32 %v4940, %v5105
      %v5248 = vadd.f32 %v4941, %v5110
      %v5249 = vadd.f32 %v4942, %v5115
      %v5250 = vadd.f32 %v4943, %v5120
      %v5251 = vadd.f32 %v4944, %v5125
      %v5252 = vadd.f32 %v4945, %v5130
      %v5253 = vadd.f32 %v4946, %v5135
      %v5254 = vadd.f32 %v4947, %v5140
      %v5255 = vadd.f32 %v4948, %v5145
      %v5256 = vadd.f32 %v4949, %v5150
      %v5257 = vadd.f32 %v4950, %v5155
      %v5258 = vadd.f32 %v4951, %v5160
      %v5259 = vadd.f32 %v4952, %v5165
      %v5260 = vadd.f32 %v4953, %v5170
      %v5261 = vadd.f32 %v4954, %v5175
      %v5262 = vadd.f32 %v4955, %v5180
      %v5263 = vadd.f32 %v4956, %v5185
      %v5264 = vadd.f32 %v4957, %v5190
      %v5265 = vadd.f32 %v4958, %v5195
      %v5266 = vadd.f32 %v4959, %v5200
      %v5267 = vadd.f32 %v4960, %v5205
      %v5268 = vadd.f32 %v4961, %v5210
      %v5269 = vadd.f32 %v4962, %v5215
      %v5270 = vadd.f32 %v4963, %v5220
      %v5271 = vadd.f32 %v4964, %v5225
      %v5272 = vadd.f32 %v4965, %v5230
      %v5273 = vadd.f32 %v4966, %v5235
      %v5274 = vadd.f32 %v4967, %v5240
      %v5275 = vld [vmem:[%s4968 + $0x8] sm:$0xff]
      %v5276 = vld [vmem:[%s4968 + $0x10] sm:$0xff]
      %v5277 = vld [vmem:[%s4968 + $0x28] sm:$0xff]
      %v5278 = vld [vmem:[%s4968 + $0x30] sm:$0xff]
      %v5279 = vld [vmem:[%s4968 + $0x48] sm:$0xff]
      %v5280 = vld [vmem:[%s4968 + $0x50] sm:$0xff]
      %v5281 = vld [vmem:[%s4968 + $0x68] sm:$0xff]
      %v5282 = vld [vmem:[%s4968 + $0x70] sm:$0xff]
      %v5283 = vld [vmem:[%s4968 + $0x88] sm:$0xff]
      %v5284 = vld [vmem:[%s4968 + $0x90] sm:$0xff]
      %v5285 = vld [vmem:[%s4968 + $0xa8] sm:$0xff]
      %v5286 = vld [vmem:[%s4968 + $0xb0] sm:$0xff]
      %v5287 = vld [vmem:[%s4968 + $0xc8] sm:$0xff]
      %v5288 = vld [vmem:[%s4968 + $0xd0] sm:$0xff]
      %v5289 = vld [vmem:[%s4968 + $0xe8] sm:$0xff]
      %v5290 = vld [vmem:[%s4968 + $0xf0] sm:$0xff]
      %v5291 = vld [vmem:[%s4968 + $0x108] sm:$0xff]
      %v5292 = vld [vmem:[%s4968 + $0x110] sm:$0xff]
      %v5293 = vld [vmem:[%s4968 + $0x128] sm:$0xff]
      %v5294 = vld [vmem:[%s4968 + $0x130] sm:$0xff]
      %v5295 = vld [vmem:[%s4968 + $0x148] sm:$0xff]
      %v5296 = vld [vmem:[%s4968 + $0x150] sm:$0xff]
      %v5297 = vld [vmem:[%s4968 + $0x168] sm:$0xff]
      %v5298 = vld [vmem:[%s4968 + $0x170] sm:$0xff]
      %v5299 = vld [vmem:[%s4968 + $0x188] sm:$0xff]
      %v5300 = vld [vmem:[%s4968 + $0x190] sm:$0xff]
      %v5301 = vld [vmem:[%s4968 + $0x1a8] sm:$0xff]
      %v5302 = vld [vmem:[%s4968 + $0x1b0] sm:$0xff]
      %v5303 = vld [vmem:[%s4968 + $0x1c8] sm:$0xff]
      %v5304 = vld [vmem:[%s4968 + $0x1d0] sm:$0xff]
      %v5305 = vld [vmem:[%s4968 + $0x1e8] sm:$0xff]
      %v5306 = vld [vmem:[%s4968 + $0x1f0] sm:$0xff]
      %s5307 = scalar_lea.vmem %s1, 2048
      %v5308 = vld [vmem:[%s5307] sm:$0xff]
      %v5309 = vld [vmem:[%s5307 + $0x8] sm:$0xff]
      %v5310 = vld [vmem:[%s5307 + $0x10] sm:$0xff]
      %v5311 = vld [vmem:[%s5307 + $0x18] sm:$0xff]
      %v5312 = vld [vmem:[%s5307 + $0x20] sm:$0xff]
      %v5313 = vld [vmem:[%s5307 + $0x28] sm:$0xff]
      %v5314 = vld [vmem:[%s5307 + $0x30] sm:$0xff]
      %v5315 = vld [vmem:[%s5307 + $0x38] sm:$0xff]
      %v5316 = vld [vmem:[%s5307 + $0x40] sm:$0xff]
      %v5317 = vld [vmem:[%s5307 + $0x48] sm:$0xff]
      %v5318 = vld [vmem:[%s5307 + $0x50] sm:$0xff]
      %v5319 = vld [vmem:[%s5307 + $0x58] sm:$0xff]
      %v5320 = vld [vmem:[%s5307 + $0x60] sm:$0xff]
      %v5321 = vld [vmem:[%s5307 + $0x68] sm:$0xff]
      %v5322 = vld [vmem:[%s5307 + $0x70] sm:$0xff]
      %v5323 = vld [vmem:[%s5307 + $0x78] sm:$0xff]
      %5324 = vmatprep.subr.mxu0 0.0
      %5325 = vmatpush1.msra.mxu0 %v5308
      %5326 = vmatprep.subr.mxu0 0.0
      %5327 = vmatpush1.msra.mxu0 %v5309
      %5328 = vmatprep.subr.mxu0 0.0
      %5329 = vmatpush1.msra.mxu0 %v5310
      %5330 = vmatprep.subr.mxu0 0.0
      %5331 = vmatpush1.msra.mxu0 %v5311
      %5332 = vmatprep.subr.mxu0 0.0
      %5333 = vmatpush1.msra.mxu0 %v5312
      %5334 = vmatprep.subr.mxu0 0.0
      %5335 = vmatpush1.msra.mxu0 %v5313
      %5336 = vmatprep.subr.mxu0 0.0
      %5337 = vmatpush1.msra.mxu0 %v5314
      %5338 = vmatprep.subr.mxu0 0.0
      %5339 = vmatpush1.msra.mxu0 %v5315
      %5340 = vmatprep.subr.mxu0 0.0
      %5341 = vmatpush1.msra.mxu0 %v5316
      %5342 = vmatprep.subr.mxu0 0.0
      %5343 = vmatpush1.msra.mxu0 %v5317
      %5344 = vmatprep.subr.mxu0 0.0
      %5345 = vmatpush1.msra.mxu0 %v5318
      %5346 = vmatprep.subr.mxu0 0.0
      %5347 = vmatpush1.msra.mxu0 %v5319
      %5348 = vmatprep.subr.mxu0 0.0
      %5349 = vmatpush1.msra.mxu0 %v5320
      %5350 = vmatprep.subr.mxu0 0.0
      %5351 = vmatpush1.msra.mxu0 %v5321
      %5352 = vmatprep.subr.mxu0 0.0
      %5353 = vmatpush1.msra.mxu0 %v5322
      %5354 = vmatprep.subr.mxu0 0.0
      %5355 = vmatpush1.msra.mxu0 %v5323
      %5356 = vmatprep.subr.mxu0 0.0
      %5357 = vmatpush1.msra.mxu0 0.0
      %5358 = vmatprep.subr.mxu0 0.0
      %5359 = vmatpush1.msra.mxu0 0.0
      %5360 = vmatprep.subr.mxu0 0.0
      %5361 = vmatpush1.msra.mxu0 0.0
      %5362 = vmatprep.subr.mxu0 0.0
      %5363 = vmatpush1.msra.mxu0 0.0
      %5364 = vmatprep.subr.mxu0 0.0
      %5365 = vmatpush1.msra.mxu0 0.0
      %5366 = vmatprep.subr.mxu0 0.0
      %5367 = vmatpush1.msra.mxu0 0.0
      %5368 = vmatprep.subr.mxu0 0.0
      %5369 = vmatpush1.msra.mxu0 0.0
      %5370 = vmatprep.subr.mxu0 0.0
      %5371 = vmatpush1.msra.mxu0 0.0
      %5372 = vmatprep.subr.mxu0 0.0
      %5373 = vmatpush1.msra.mxu0 0.0
      %5374 = vmatprep.subr.mxu0 0.0
      %5375 = vmatpush1.msra.mxu0 0.0
      %5376 = vmatprep.subr.mxu0 0.0
      %5377 = vmatpush1.msra.mxu0 0.0
      %5378 = vmatprep.subr.mxu0 0.0
      %5379 = vmatpush1.msra.mxu0 0.0
      %5380 = vmatprep.subr.mxu0 0.0
      %5381 = vmatpush1.msra.mxu0 0.0
      %5382 = vmatprep.subr.mxu0 0.0
      %5383 = vmatpush1.msra.mxu0 0.0
      %5384 = vmatprep.subr.mxu0 0.0
      %5385 = vmatpush1.msra.mxu0 0.0
      %5386 = vmatprep.subr.mxu0 0.0
      %5387 = vmatpush1.msra.mxu0 0.0
      %5388 = vmatprep.mubr.f32.mxu0 0.0
      %5389 = vmatmul.mubr.f32.gmra.mrb[0].mxu0 %v5275
      %v5390 = vpop.f32.mrb[0].mxu0
      %v5391 = vadd.f32 0.0, %v5390
      %v5392 = vpop.f32.mrb[0].mxu0
      %5393 = vmatprep.mubr.f32.mxu0 0.0
      %5394 = vmatmul.mubr.f32.gmra.mrb[0].mxu0 %v5276
      %v5395 = vpop.f32.mrb[0].mxu0
      %v5396 = vadd.f32 0.0, %v5395
      %v5397 = vpop.f32.mrb[0].mxu0
      %5398 = vmatprep.mubr.f32.mxu0 0.0
      %5399 = vmatmul.mubr.f32.gmra.mrb[0].mxu0 %v5277
      %v5400 = vpop.f32.mrb[0].mxu0
      %v5401 = vadd.f32 0.0, %v5400
      %v5402 = vpop.f32.mrb[0].mxu0
      %5403 = vmatprep.mubr.f32.mxu0 0.0
      %5404 = vmatmul.mubr.f32.gmra.mrb[0].mxu0 %v5278
      %v5405 = vpop.f32.mrb[0].mxu0
      %v5406 = vadd.f32 0.0, %v5405
      %v5407 = vpop.f32.mrb[0].mxu0
      %5408 = vmatprep.mubr.f32.mxu0 0.0
      %5409 = vmatmul.mubr.f32.gmra.mrb[0].mxu0 %v5279
      %v5410 = vpop.f32.mrb[0].mxu0
      %v5411 = vadd.f32 0.0, %v5410
      %v5412 = vpop.f32.mrb[0].mxu0
      %5413 = vmatprep.mubr.f32.mxu0 0.0
      %5414 = vmatmul.mubr.f32.gmra.mrb[0].mxu0 %v5280
      %v5415 = vpop.f32.mrb[0].mxu0
      %v5416 = vadd.f32 0.0, %v5415
      %v5417 = vpop.f32.mrb[0].mxu0
      %5418 = vmatprep.mubr.f32.mxu0 0.0
      %5419 = vmatmul.mubr.f32.gmra.mrb[0].mxu0 %v5281
      %v5420 = vpop.f32.mrb[0].mxu0
      %v5421 = vadd.f32 0.0, %v5420
      %v5422 = vpop.f32.mrb[0].mxu0
      %5423 = vmatprep.mubr.f32.mxu0 0.0
      %5424 = vmatmul.mubr.f32.gmra.mrb[0].mxu0 %v5282
      %v5425 = vpop.f32.mrb[0].mxu0
      %v5426 = vadd.f32 0.0, %v5425
      %v5427 = vpop.f32.mrb[0].mxu0
      %5428 = vmatprep.mubr.f32.mxu0 0.0
      %5429 = vmatmul.mubr.f32.gmra.mrb[0].mxu0 %v5283
      %v5430 = vpop.f32.mrb[0].mxu0
      %v5431 = vadd.f32 0.0, %v5430
      %v5432 = vpop.f32.mrb[0].mxu0
      %5433 = vmatprep.mubr.f32.mxu0 0.0
      %5434 = vmatmul.mubr.f32.gmra.mrb[0].mxu0 %v5284
      %v5435 = vpop.f32.mrb[0].mxu0
      %v5436 = vadd.f32 0.0, %v5435
      %v5437 = vpop.f32.mrb[0].mxu0
      %5438 = vmatprep.mubr.f32.mxu0 0.0
      %5439 = vmatmul.mubr.f32.gmra.mrb[0].mxu0 %v5285
      %v5440 = vpop.f32.mrb[0].mxu0
      %v5441 = vadd.f32 0.0, %v5440
      %v5442 = vpop.f32.mrb[0].mxu0
      %5443 = vmatprep.mubr.f32.mxu0 0.0
      %5444 = vmatmul.mubr.f32.gmra.mrb[0].mxu0 %v5286
      %v5445 = vpop.f32.mrb[0].mxu0
      %v5446 = vadd.f32 0.0, %v5445
      %v5447 = vpop.f32.mrb[0].mxu0
      %5448 = vmatprep.mubr.f32.mxu0 0.0
      %5449 = vmatmul.mubr.f32.gmra.mrb[0].mxu0 %v5287
      %v5450 = vpop.f32.mrb[0].mxu0
      %v5451 = vadd.f32 0.0, %v5450
      %v5452 = vpop.f32.mrb[0].mxu0
      %5453 = vmatprep.mubr.f32.mxu0 0.0
      %5454 = vmatmul.mubr.f32.gmra.mrb[0].mxu0 %v5288
      %v5455 = vpop.f32.mrb[0].mxu0
      %v5456 = vadd.f32 0.0, %v5455
      %v5457 = vpop.f32.mrb[0].mxu0
      %5458 = vmatprep.mubr.f32.mxu0 0.0
      %5459 = vmatmul.mubr.f32.gmra.mrb[0].mxu0 %v5289
      %v5460 = vpop.f32.mrb[0].mxu0
      %v5461 = vadd.f32 0.0, %v5460
      %v5462 = vpop.f32.mrb[0].mxu0
      %5463 = vmatprep.mubr.f32.mxu0 0.0
      %5464 = vmatmul.mubr.f32.gmra.mrb[0].mxu0 %v5290
      %v5465 = vpop.f32.mrb[0].mxu0
      %v5466 = vadd.f32 0.0, %v5465
      %v5467 = vpop.f32.mrb[0].mxu0
      %5468 = vmatprep.mubr.f32.mxu0 0.0
      %5469 = vmatmul.mubr.f32.gmra.mrb[0].mxu0 %v5291
      %v5470 = vpop.f32.mrb[0].mxu0
      %v5471 = vadd.f32 0.0, %v5470
      %v5472 = vpop.f32.mrb[0].mxu0
      %5473 = vmatprep.mubr.f32.mxu0 0.0
      %5474 = vmatmul.mubr.f32.gmra.mrb[0].mxu0 %v5292
      %v5475 = vpop.f32.mrb[0].mxu0
      %v5476 = vadd.f32 0.0, %v5475
      %v5477 = vpop.f32.mrb[0].mxu0
      %5478 = vmatprep.mubr.f32.mxu0 0.0
      %5479 = vmatmul.mubr.f32.gmra.mrb[0].mxu0 %v5293
      %v5480 = vpop.f32.mrb[0].mxu0
      %v5481 = vadd.f32 0.0, %v5480
      %v5482 = vpop.f32.mrb[0].mxu0
      %5483 = vmatprep.mubr.f32.mxu0 0.0
      %5484 = vmatmul.mubr.f32.gmra.mrb[0].mxu0 %v5294
      %v5485 = vpop.f32.mrb[0].mxu0
      %v5486 = vadd.f32 0.0, %v5485
      %v5487 = vpop.f32.mrb[0].mxu0
      %5488 = vmatprep.mubr.f32.mxu0 0.0
      %5489 = vmatmul.mubr.f32.gmra.mrb[0].mxu0 %v5295
      %v5490 = vpop.f32.mrb[0].mxu0
      %v5491 = vadd.f32 0.0, %v5490
      %v5492 = vpop.f32.mrb[0].mxu0
      %5493 = vmatprep.mubr.f32.mxu0 0.0
      %5494 = vmatmul.mubr.f32.gmra.mrb[0].mxu0 %v5296
      %v5495 = vpop.f32.mrb[0].mxu0
      %v5496 = vadd.f32 0.0, %v5495
      %v5497 = vpop.f32.mrb[0].mxu0
      %5498 = vmatprep.mubr.f32.mxu0 0.0
      %5499 = vmatmul.mubr.f32.gmra.mrb[0].mxu0 %v5297
      %v5500 = vpop.f32.mrb[0].mxu0
      %v5501 = vadd.f32 0.0, %v5500
      %v5502 = vpop.f32.mrb[0].mxu0
      %5503 = vmatprep.mubr.f32.mxu0 0.0
      %5504 = vmatmul.mubr.f32.gmra.mrb[0].mxu0 %v5298
      %v5505 = vpop.f32.mrb[0].mxu0
      %v5506 = vadd.f32 0.0, %v5505
      %v5507 = vpop.f32.mrb[0].mxu0
      %5508 = vmatprep.mubr.f32.mxu0 0.0
      %5509 = vmatmul.mubr.f32.gmra.mrb[0].mxu0 %v5299
      %v5510 = vpop.f32.mrb[0].mxu0
      %v5511 = vadd.f32 0.0, %v5510
      %v5512 = vpop.f32.mrb[0].mxu0
      %5513 = vmatprep.mubr.f32.mxu0 0.0
      %5514 = vmatmul.mubr.f32.gmra.mrb[0].mxu0 %v5300
      %v5515 = vpop.f32.mrb[0].mxu0
      %v5516 = vadd.f32 0.0, %v5515
      %v5517 = vpop.f32.mrb[0].mxu0
      %5518 = vmatprep.mubr.f32.mxu0 0.0
      %5519 = vmatmul.mubr.f32.gmra.mrb[0].mxu0 %v5301
      %v5520 = vpop.f32.mrb[0].mxu0
      %v5521 = vadd.f32 0.0, %v5520
      %v5522 = vpop.f32.mrb[0].mxu0
      %5523 = vmatprep.mubr.f32.mxu0 0.0
      %5524 = vmatmul.mubr.f32.gmra.mrb[0].mxu0 %v5302
      %v5525 = vpop.f32.mrb[0].mxu0
      %v5526 = vadd.f32 0.0, %v5525
      %v5527 = vpop.f32.mrb[0].mxu0
      %5528 = vmatprep.mubr.f32.mxu0 0.0
      %5529 = vmatmul.mubr.f32.gmra.mrb[0].mxu0 %v5303
      %v5530 = vpop.f32.mrb[0].mxu0
      %v5531 = vadd.f32 0.0, %v5530
      %v5532 = vpop.f32.mrb[0].mxu0
      %5533 = vmatprep.mubr.f32.mxu0 0.0
      %5534 = vmatmul.mubr.f32.gmra.mrb[0].mxu0 %v5304
      %v5535 = vpop.f32.mrb[0].mxu0
      %v5536 = vadd.f32 0.0, %v5535
      %v5537 = vpop.f32.mrb[0].mxu0
      %5538 = vmatprep.mubr.f32.mxu0 0.0
      %5539 = vmatmul.mubr.f32.gmra.mrb[0].mxu0 %v5305
      %v5540 = vpop.f32.mrb[0].mxu0
      %v5541 = vadd.f32 0.0, %v5540
      %v5542 = vpop.f32.mrb[0].mxu0
      %5543 = vmatprep.mubr.f32.mxu0 0.0
      %5544 = vmatmul.mubr.f32.gmra.mrb[0].mxu0 %v5306
      %v5545 = vpop.f32.mrb[0].mxu0
      %v5546 = vadd.f32 0.0, %v5545
      %v5547 = vpop.f32.mrb[0].mxu0
      %5548 = vdwg.mxu0
      %v5549 = vadd.f32 %v5243, %v5391
      %v5550 = vadd.f32 %v5244, %v5396
      %v5551 = vadd.f32 %v5245, %v5401
      %v5552 = vadd.f32 %v5246, %v5406
      %v5553 = vadd.f32 %v5247, %v5411
      %v5554 = vadd.f32 %v5248, %v5416
      %v5555 = vadd.f32 %v5249, %v5421
      %v5556 = vadd.f32 %v5250, %v5426
      %v5557 = vadd.f32 %v5251, %v5431
      %v5558 = vadd.f32 %v5252, %v5436
      %v5559 = vadd.f32 %v5253, %v5441
      %v5560 = vadd.f32 %v5254, %v5446
      %v5561 = vadd.f32 %v5255, %v5451
      %v5562 = vadd.f32 %v5256, %v5456
      %v5563 = vadd.f32 %v5257, %v5461
      %v5564 = vadd.f32 %v5258, %v5466
      %v5565 = vadd.f32 %v5259, %v5471
      %v5566 = vadd.f32 %v5260, %v5476
      %v5567 = vadd.f32 %v5261, %v5481
      %v5568 = vadd.f32 %v5262, %v5486
      %v5569 = vadd.f32 %v5263, %v5491
      %v5570 = vadd.f32 %v5264, %v5496
      %v5571 = vadd.f32 %v5265, %v5501
      %v5572 = vadd.f32 %v5266, %v5506
      %v5573 = vadd.f32 %v5267, %v5511
      %v5574 = vadd.f32 %v5268, %v5516
      %v5575 = vadd.f32 %v5269, %v5521
      %v5576 = vadd.f32 %v5270, %v5526
      %v5577 = vadd.f32 %v5271, %v5531
      %v5578 = vadd.f32 %v5272, %v5536
      %v5579 = vadd.f32 %v5273, %v5541
      %v5580 = vadd.f32 %v5274, %v5546
      %v5581 = vld [vmem:[%s4968 + $0x9] sm:$0xff]
      %v5582 = vld [vmem:[%s4968 + $0x11] sm:$0xff]
      %v5583 = vld [vmem:[%s4968 + $0x29] sm:$0xff]
      %v5584 = vld [vmem:[%s4968 + $0x31] sm:$0xff]
      %v5585 = vld [vmem:[%s4968 + $0x49] sm:$0xff]
      %v5586 = vld [vmem:[%s4968 + $0x51] sm:$0xff]
      %v5587 = vld [vmem:[%s4968 + $0x69] sm:$0xff]
      %v5588 = vld [vmem:[%s4968 + $0x71] sm:$0xff]
      %v5589 = vld [vmem:[%s4968 + $0x89] sm:$0xff]
      %v5590 = vld [vmem:[%s4968 + $0x91] sm:$0xff]
      %v5591 = vld [vmem:[%s4968 + $0xa9] sm:$0xff]
      %v5592 = vld [vmem:[%s4968 + $0xb1] sm:$0xff]
      %v5593 = vld [vmem:[%s4968 + $0xc9] sm:$0xff]
      %v5594 = vld [vmem:[%s4968 + $0xd1] sm:$0xff]
      %v5595 = vld [vmem:[%s4968 + $0xe9] sm:$0xff]
      %v5596 = vld [vmem:[%s4968 + $0xf1] sm:$0xff]
      %v5597 = vld [vmem:[%s4968 + $0x109] sm:$0xff]
      %v5598 = vld [vmem:[%s4968 + $0x111] sm:$0xff]
      %v5599 = vld [vmem:[%s4968 + $0x129] sm:$0xff]
      %v5600 = vld [vmem:[%s4968 + $0x131] sm:$0xff]
      %v5601 = vld [vmem:[%s4968 + $0x149] sm:$0xff]
      %v5602 = vld [vmem:[%s4968 + $0x151] sm:$0xff]
      %v5603 = vld [vmem:[%s4968 + $0x169] sm:$0xff]
      %v5604 = vld [vmem:[%s4968 + $0x171] sm:$0xff]
      %v5605 = vld [vmem:[%s4968 + $0x189] sm:$0xff]
      %v5606 = vld [vmem:[%s4968 + $0x191] sm:$0xff]
      %v5607 = vld [vmem:[%s4968 + $0x1a9] sm:$0xff]
      %v5608 = vld [vmem:[%s4968 + $0x1b1] sm:$0xff]
      %v5609 = vld [vmem:[%s4968 + $0x1c9] sm:$0xff]
      %v5610 = vld [vmem:[%s4968 + $0x1d1] sm:$0xff]
      %v5611 = vld [vmem:[%s4968 + $0x1e9] sm:$0xff]
      %v5612 = vld [vmem:[%s4968 + $0x1f1] sm:$0xff]
      %s5613 = scalar_lea.vmem %s1, 2176
      %v5614 = vld [vmem:[%s5613] sm:$0xff]
      %v5615 = vld [vmem:[%s5613 + $0x8] sm:$0xff]
      %v5616 = vld [vmem:[%s5613 + $0x10] sm:$0xff]
      %v5617 = vld [vmem:[%s5613 + $0x18] sm:$0xff]
      %v5618 = vld [vmem:[%s5613 + $0x20] sm:$0xff]
      %v5619 = vld [vmem:[%s5613 + $0x28] sm:$0xff]
      %v5620 = vld [vmem:[%s5613 + $0x30] sm:$0xff]
      %v5621 = vld [vmem:[%s5613 + $0x38] sm:$0xff]
      %v5622 = vld [vmem:[%s5613 + $0x40] sm:$0xff]
      %v5623 = vld [vmem:[%s5613 + $0x48] sm:$0xff]
      %v5624 = vld [vmem:[%s5613 + $0x50] sm:$0xff]
      %v5625 = vld [vmem:[%s5613 + $0x58] sm:$0xff]
      %v5626 = vld [vmem:[%s5613 + $0x60] sm:$0xff]
      %v5627 = vld [vmem:[%s5613 + $0x68] sm:$0xff]
      %v5628 = vld [vmem:[%s5613 + $0x70] sm:$0xff]
      %v5629 = vld [vmem:[%s5613 + $0x78] sm:$0xff]
      %5630 = vmatprep.subr.mxu0 0.0
      %5631 = vmatpush1.msra.mxu0 %v5614
      %5632 = vmatprep.subr.mxu0 0.0
      %5633 = vmatpush1.msra.mxu0 %v5615
      %5634 = vmatprep.subr.mxu0 0.0
      %5635 = vmatpush1.msra.mxu0 %v5616
      %5636 = vmatprep.subr.mxu0 0.0
      %5637 = vmatpush1.msra.mxu0 %v5617
      %5638 = vmatprep.subr.mxu0 0.0
      %5639 = vmatpush1.msra.mxu0 %v5618
      %5640 = vmatprep.subr.mxu0 0.0
      %5641 = vmatpush1.msra.mxu0 %v5619
      %5642 = vmatprep.subr.mxu0 0.0
      %5643 = vmatpush1.msra.mxu0 %v5620
      %5644 = vmatprep.subr.mxu0 0.0
      %5645 = vmatpush1.msra.mxu0 %v5621
      %5646 = vmatprep.subr.mxu0 0.0
      %5647 = vmatpush1.msra.mxu0 %v5622
      %5648 = vmatprep.subr.mxu0 0.0
      %5649 = vmatpush1.msra.mxu0 %v5623
      %5650 = vmatprep.subr.mxu0 0.0
      %5651 = vmatpush1.msra.mxu0 %v5624
      %5652 = vmatprep.subr.mxu0 0.0
      %5653 = vmatpush1.msra.mxu0 %v5625
      %5654 = vmatprep.subr.mxu0 0.0
      %5655 = vmatpush1.msra.mxu0 %v5626
      %5656 = vmatprep.subr.mxu0 0.0
      %5657 = vmatpush1.msra.mxu0 %v5627
      %5658 = vmatprep.subr.mxu0 0.0
      %5659 = vmatpush1.msra.mxu0 %v5628
      %5660 = vmatprep.subr.mxu0 0.0
      %5661 = vmatpush1.msra.mxu0 %v5629
      %5662 = vmatprep.subr.mxu0 0.0
      %5663 = vmatpush1.msra.mxu0 0.0
      %5664 = vmatprep.subr.mxu0 0.0
      %5665 = vmatpush1.msra.mxu0 0.0
      %5666 = vmatprep.subr.mxu0 0.0
      %5667 = vmatpush1.msra.mxu0 0.0
      %5668 = vmatprep.subr.mxu0 0.0
      %5669 = vmatpush1.msra.mxu0 0.0
      %5670 = vmatprep.subr.mxu0 0.0
      %5671 = vmatpush1.msra.mxu0 0.0
      %5672 = vmatprep.subr.mxu0 0.0
      %5673 = vmatpush1.msra.mxu0 0.0
      %5674 = vmatprep.subr.mxu0 0.0
      %5675 = vmatpush1.msra.mxu0 0.0
      %5676 = vmatprep.subr.mxu0 0.0
      %5677 = vmatpush1.msra.mxu0 0.0
      %5678 = vmatprep.subr.mxu0 0.0
      %5679 = vmatpush1.msra.mxu0 0.0
      %5680 = vmatprep.subr.mxu0 0.0
      %5681 = vmatpush1.msra.mxu0 0.0
      %5682 = vmatprep.subr.mxu0 0.0
      %5683 = vmatpush1.msra.mxu0 0.0
      %5684 = vmatprep.subr.mxu0 0.0
      %5685 = vmatpush1.msra.mxu0 0.0
      %5686 = vmatprep.subr.mxu0 0.0
      %5687 = vmatpush1.msra.mxu0 0.0
      %5688 = vmatprep.subr.mxu0 0.0
      %5689 = vmatpush1.msra.mxu0 0.0
      %5690 = vmatprep.subr.mxu0 0.0
      %5691 = vmatpush1.msra.mxu0 0.0
      %5692 = vmatprep.subr.mxu0 0.0
      %5693 = vmatpush1.msra.mxu0 0.0
      %5694 = vmatprep.mubr.f32.mxu0 0.0
      %5695 = vmatmul.mubr.f32.gmra.mrb[0].mxu0 %v5581
      %v5696 = vpop.f32.mrb[0].mxu0
      %v5697 = vadd.f32 0.0, %v5696
      %v5698 = vpop.f32.mrb[0].mxu0
      %5699 = vmatprep.mubr.f32.mxu0 0.0
      %5700 = vmatmul.mubr.f32.gmra.mrb[0].mxu0 %v5582
      %v5701 = vpop.f32.mrb[0].mxu0
      %v5702 = vadd.f32 0.0, %v5701
      %v5703 = vpop.f32.mrb[0].mxu0
      %5704 = vmatprep.mubr.f32.mxu0 0.0
      %5705 = vmatmul.mubr.f32.gmra.mrb[0].mxu0 %v5583
      %v5706 = vpop.f32.mrb[0].mxu0
      %v5707 = vadd.f32 0.0, %v5706
      %v5708 = vpop.f32.mrb[0].mxu0
      %5709 = vmatprep.mubr.f32.mxu0 0.0
      %5710 = vmatmul.mubr.f32.gmra.mrb[0].mxu0 %v5584
      %v5711 = vpop.f32.mrb[0].mxu0
      %v5712 = vadd.f32 0.0, %v5711
      %v5713 = vpop.f32.mrb[0].mxu0
      %5714 = vmatprep.mubr.f32.mxu0 0.0
      %5715 = vmatmul.mubr.f32.gmra.mrb[0].mxu0 %v5585
      %v5716 = vpop.f32.mrb[0].mxu0
      %v5717 = vadd.f32 0.0, %v5716
      %v5718 = vpop.f32.mrb[0].mxu0
      %5719 = vmatprep.mubr.f32.mxu0 0.0
      %5720 = vmatmul.mubr.f32.gmra.mrb[0].mxu0 %v5586
      %v5721 = vpop.f32.mrb[0].mxu0
      %v5722 = vadd.f32 0.0, %v5721
      %v5723 = vpop.f32.mrb[0].mxu0
      %5724 = vmatprep.mubr.f32.mxu0 0.0
      %5725 = vmatmul.mubr.f32.gmra.mrb[0].mxu0 %v5587
      %v5726 = vpop.f32.mrb[0].mxu0
      %v5727 = vadd.f32 0.0, %v5726
      %v5728 = vpop.f32.mrb[0].mxu0
      %5729 = vmatprep.mubr.f32.mxu0 0.0
      %5730 = vmatmul.mubr.f32.gmra.mrb[0].mxu0 %v5588
      %v5731 = vpop.f32.mrb[0].mxu0
      %v5732 = vadd.f32 0.0, %v5731
      %v5733 = vpop.f32.mrb[0].mxu0
      %5734 = vmatprep.mubr.f32.mxu0 0.0
      %5735 = vmatmul.mubr.f32.gmra.mrb[0].mxu0 %v5589
      %v5736 = vpop.f32.mrb[0].mxu0
      %v5737 = vadd.f32 0.0, %v5736
      %v5738 = vpop.f32.mrb[0].mxu0
      %5739 = vmatprep.mubr.f32.mxu0 0.0
      %5740 = vmatmul.mubr.f32.gmra.mrb[0].mxu0 %v5590
      %v5741 = vpop.f32.mrb[0].mxu0
      %v5742 = vadd.f32 0.0, %v5741
      %v5743 = vpop.f32.mrb[0].mxu0
      %5744 = vmatprep.mubr.f32.mxu0 0.0
      %5745 = vmatmul.mubr.f32.gmra.mrb[0].mxu0 %v5591
      %v5746 = vpop.f32.mrb[0].mxu0
      %v5747 = vadd.f32 0.0, %v5746
      %v5748 = vpop.f32.mrb[0].mxu0
      %5749 = vmatprep.mubr.f32.mxu0 0.0
      %5750 = vmatmul.mubr.f32.gmra.mrb[0].mxu0 %v5592
      %v5751 = vpop.f32.mrb[0].mxu0
      %v5752 = vadd.f32 0.0, %v5751
      %v5753 = vpop.f32.mrb[0].mxu0
      %5754 = vmatprep.mubr.f32.mxu0 0.0
      %5755 = vmatmul.mubr.f32.gmra.mrb[0].mxu0 %v5593
      %v5756 = vpop.f32.mrb[0].mxu0
      %v5757 = vadd.f32 0.0, %v5756
      %v5758 = vpop.f32.mrb[0].mxu0
      %5759 = vmatprep.mubr.f32.mxu0 0.0
      %5760 = vmatmul.mubr.f32.gmra.mrb[0].mxu0 %v5594
      %v5761 = vpop.f32.mrb[0].mxu0
      %v5762 = vadd.f32 0.0, %v5761
      %v5763 = vpop.f32.mrb[0].mxu0
      %5764 = vmatprep.mubr.f32.mxu0 0.0
      %5765 = vmatmul.mubr.f32.gmra.mrb[0].mxu0 %v5595
      %v5766 = vpop.f32.mrb[0].mxu0
      %v5767 = vadd.f32 0.0, %v5766
      %v5768 = vpop.f32.mrb[0].mxu0
      %5769 = vmatprep.mubr.f32.mxu0 0.0
      %5770 = vmatmul.mubr.f32.gmra.mrb[0].mxu0 %v5596
      %v5771 = vpop.f32.mrb[0].mxu0
      %v5772 = vadd.f32 0.0, %v5771
      %v5773 = vpop.f32.mrb[0].mxu0
      %5774 = vmatprep.mubr.f32.mxu0 0.0
      %5775 = vmatmul.mubr.f32.gmra.mrb[0].mxu0 %v5597
      %v5776 = vpop.f32.mrb[0].mxu0
      %v5777 = vadd.f32 0.0, %v5776
      %v5778 = vpop.f32.mrb[0].mxu0
      %5779 = vmatprep.mubr.f32.mxu0 0.0
      %5780 = vmatmul.mubr.f32.gmra.mrb[0].mxu0 %v5598
      %v5781 = vpop.f32.mrb[0].mxu0
      %v5782 = vadd.f32 0.0, %v5781
      %v5783 = vpop.f32.mrb[0].mxu0
      %5784 = vmatprep.mubr.f32.mxu0 0.0
      %5785 = vmatmul.mubr.f32.gmra.mrb[0].mxu0 %v5599
      %v5786 = vpop.f32.mrb[0].mxu0
      %v5787 = vadd.f32 0.0, %v5786
      %v5788 = vpop.f32.mrb[0].mxu0
      %5789 = vmatprep.mubr.f32.mxu0 0.0
      %5790 = vmatmul.mubr.f32.gmra.mrb[0].mxu0 %v5600
      %v5791 = vpop.f32.mrb[0].mxu0
      %v5792 = vadd.f32 0.0, %v5791
      %v5793 = vpop.f32.mrb[0].mxu0
      %5794 = vmatprep.mubr.f32.mxu0 0.0
      %5795 = vmatmul.mubr.f32.gmra.mrb[0].mxu0 %v5601
      %v5796 = vpop.f32.mrb[0].mxu0
      %v5797 = vadd.f32 0.0, %v5796
      %v5798 = vpop.f32.mrb[0].mxu0
      %5799 = vmatprep.mubr.f32.mxu0 0.0
      %5800 = vmatmul.mubr.f32.gmra.mrb[0].mxu0 %v5602
      %v5801 = vpop.f32.mrb[0].mxu0
      %v5802 = vadd.f32 0.0, %v5801
      %v5803 = vpop.f32.mrb[0].mxu0
      %5804 = vmatprep.mubr.f32.mxu0 0.0
      %5805 = vmatmul.mubr.f32.gmra.mrb[0].mxu0 %v5603
      %v5806 = vpop.f32.mrb[0].mxu0
      %v5807 = vadd.f32 0.0, %v5806
      %v5808 = vpop.f32.mrb[0].mxu0
      %5809 = vmatprep.mubr.f32.mxu0 0.0
      %5810 = vmatmul.mubr.f32.gmra.mrb[0].mxu0 %v5604
      %v5811 = vpop.f32.mrb[0].mxu0
      %v5812 = vadd.f32 0.0, %v5811
      %v5813 = vpop.f32.mrb[0].mxu0
      %5814 = vmatprep.mubr.f32.mxu0 0.0
      %5815 = vmatmul.mubr.f32.gmra.mrb[0].mxu0 %v5605
      %v5816 = vpop.f32.mrb[0].mxu0
      %v5817 = vadd.f32 0.0, %v5816
      %v5818 = vpop.f32.mrb[0].mxu0
      %5819 = vmatprep.mubr.f32.mxu0 0.0
      %5820 = vmatmul.mubr.f32.gmra.mrb[0].mxu0 %v5606
      %v5821 = vpop.f32.mrb[0].mxu0
      %v5822 = vadd.f32 0.0, %v5821
      %v5823 = vpop.f32.mrb[0].mxu0
      %5824 = vmatprep.mubr.f32.mxu0 0.0
      %5825 = vmatmul.mubr.f32.gmra.mrb[0].mxu0 %v5607
      %v5826 = vpop.f32.mrb[0].mxu0
      %v5827 = vadd.f32 0.0, %v5826
      %v5828 = vpop.f32.mrb[0].mxu0
      %5829 = vmatprep.mubr.f32.mxu0 0.0
      %5830 = vmatmul.mubr.f32.gmra.mrb[0].mxu0 %v5608
      %v5831 = vpop.f32.mrb[0].mxu0
      %v5832 = vadd.f32 0.0, %v5831
      %v5833 = vpop.f32.mrb[0].mxu0
      %5834 = vmatprep.mubr.f32.mxu0 0.0
      %5835 = vmatmul.mubr.f32.gmra.mrb[0].mxu0 %v5609
      %v5836 = vpop.f32.mrb[0].mxu0
      %v5837 = vadd.f32 0.0, %v5836
      %v5838 = vpop.f32.mrb[0].mxu0
      %5839 = vmatprep.mubr.f32.mxu0 0.0
      %5840 = vmatmul.mubr.f32.gmra.mrb[0].mxu0 %v5610
      %v5841 = vpop.f32.mrb[0].mxu0
      %v5842 = vadd.f32 0.0, %v5841
      %v5843 = vpop.f32.mrb[0].mxu0
      %5844 = vmatprep.mubr.f32.mxu0 0.0
      %5845 = vmatmul.mubr.f32.gmra.mrb[0].mxu0 %v5611
      %v5846 = vpop.f32.mrb[0].mxu0
      %v5847 = vadd.f32 0.0, %v5846
      %v5848 = vpop.f32.mrb[0].mxu0
      %5849 = vmatprep.mubr.f32.mxu0 0.0
      %5850 = vmatmul.mubr.f32.gmra.mrb[0].mxu0 %v5612
      %v5851 = vpop.f32.mrb[0].mxu0
      %v5852 = vadd.f32 0.0, %v5851
      %v5853 = vpop.f32.mrb[0].mxu0
      %5854 = vdwg.mxu0
      %v5855 = vadd.f32 %v5549, %v5697
      %v5856 = vadd.f32 %v5550, %v5702
      %v5857 = vadd.f32 %v5551, %v5707
      %v5858 = vadd.f32 %v5552, %v5712
      %v5859 = vadd.f32 %v5553, %v5717
      %v5860 = vadd.f32 %v5554, %v5722
      %v5861 = vadd.f32 %v5555, %v5727
      %v5862 = vadd.f32 %v5556, %v5732
      %v5863 = vadd.f32 %v5557, %v5737
      %v5864 = vadd.f32 %v5558, %v5742
      %v5865 = vadd.f32 %v5559, %v5747
      %v5866 = vadd.f32 %v5560, %v5752
      %v5867 = vadd.f32 %v5561, %v5757
      %v5868 = vadd.f32 %v5562, %v5762
      %v5869 = vadd.f32 %v5563, %v5767
      %v5870 = vadd.f32 %v5564, %v5772
      %v5871 = vadd.f32 %v5565, %v5777
      %v5872 = vadd.f32 %v5566, %v5782
      %v5873 = vadd.f32 %v5567, %v5787
      %v5874 = vadd.f32 %v5568, %v5792
      %v5875 = vadd.f32 %v5569, %v5797
      %v5876 = vadd.f32 %v5570, %v5802
      %v5877 = vadd.f32 %v5571, %v5807
      %v5878 = vadd.f32 %v5572, %v5812
      %v5879 = vadd.f32 %v5573, %v5817
      %v5880 = vadd.f32 %v5574, %v5822
      %v5881 = vadd.f32 %v5575, %v5827
      %v5882 = vadd.f32 %v5576, %v5832
      %v5883 = vadd.f32 %v5577, %v5837
      %v5884 = vadd.f32 %v5578, %v5842
      %v5885 = vadd.f32 %v5579, %v5847
      %v5886 = vadd.f32 %v5580, %v5852
      %s5887 = scalar_lea.vmem %s2, 1
      %v5888 = vld [vmem:[%s5887] sm:$0x1]
      %v5890 = vlaneseq
      %v5891 = vshrl.u32 %v5890, 7
      %v5892 = vsub.s32 0, %v5891
      %v5893 = vrot.slane %v5888, %v5892
      %v5895 = vadd.f32 %v5855, %v5893
      %v5896 = vadd.f32 %v5856, %v5893
      %v5897 = vadd.f32 %v5857, %v5893
      %v5898 = vadd.f32 %v5858, %v5893
      %v5899 = vadd.f32 %v5859, %v5893
      %v5900 = vadd.f32 %v5860, %v5893
      %v5901 = vadd.f32 %v5861, %v5893
      %v5902 = vadd.f32 %v5862, %v5893
      %v5903 = vadd.f32 %v5863, %v5893
      %v5904 = vadd.f32 %v5864, %v5893
      %v5905 = vadd.f32 %v5865, %v5893
      %v5906 = vadd.f32 %v5866, %v5893
      %v5907 = vadd.f32 %v5867, %v5893
      %v5908 = vadd.f32 %v5868, %v5893
      %v5909 = vadd.f32 %v5869, %v5893
      %v5910 = vadd.f32 %v5870, %v5893
      %v5911 = vadd.f32 %v5871, %v5893
      %v5912 = vadd.f32 %v5872, %v5893
      %v5913 = vadd.f32 %v5873, %v5893
      %v5914 = vadd.f32 %v5874, %v5893
      %v5915 = vadd.f32 %v5875, %v5893
      %v5916 = vadd.f32 %v5876, %v5893
      %v5917 = vadd.f32 %v5877, %v5893
      %v5918 = vadd.f32 %v5878, %v5893
      %v5919 = vadd.f32 %v5879, %v5893
      %v5920 = vadd.f32 %v5880, %v5893
      %v5921 = vadd.f32 %v5881, %v5893
      %v5922 = vadd.f32 %v5882, %v5893
      %v5923 = vadd.f32 %v5883, %v5893
      %v5924 = vadd.f32 %v5884, %v5893
      %v5925 = vadd.f32 %v5885, %v5893
      %v5926 = vadd.f32 %v5886, %v5893
      %5927 = vst [vmem:[%s401 + $0x8] sm:$0xff] %v5895
      %5928 = vst [vmem:[%s401 + $0x10] sm:$0xff] %v5896
      %5929 = vst [vmem:[%s401 + $0x28] sm:$0xff] %v5897
      %5930 = vst [vmem:[%s401 + $0x30] sm:$0xff] %v5898
      %5931 = vst [vmem:[%s401 + $0x48] sm:$0xff] %v5899
      %5932 = vst [vmem:[%s401 + $0x50] sm:$0xff] %v5900
      %5933 = vst [vmem:[%s401 + $0x68] sm:$0xff] %v5901
      %5934 = vst [vmem:[%s401 + $0x70] sm:$0xff] %v5902
      %5935 = vst [vmem:[%s401 + $0x88] sm:$0xff] %v5903
      %5936 = vst [vmem:[%s401 + $0x90] sm:$0xff] %v5904
      %5937 = vst [vmem:[%s401 + $0xa8] sm:$0xff] %v5905
      %5938 = vst [vmem:[%s401 + $0xb0] sm:$0xff] %v5906
      %5939 = vst [vmem:[%s401 + $0xc8] sm:$0xff] %v5907
      %5940 = vst [vmem:[%s401 + $0xd0] sm:$0xff] %v5908
      %5941 = vst [vmem:[%s401 + $0xe8] sm:$0xff] %v5909
      %5942 = vst [vmem:[%s401 + $0xf0] sm:$0xff] %v5910
      %5943 = vst [vmem:[%s401 + $0x108] sm:$0xff] %v5911
      %5944 = vst [vmem:[%s401 + $0x110] sm:$0xff] %v5912
      %5945 = vst [vmem:[%s401 + $0x128] sm:$0xff] %v5913
      %5946 = vst [vmem:[%s401 + $0x130] sm:$0xff] %v5914
      %5947 = vst [vmem:[%s401 + $0x148] sm:$0xff] %v5915
      %5948 = vst [vmem:[%s401 + $0x150] sm:$0xff] %v5916
      %5949 = vst [vmem:[%s401 + $0x168] sm:$0xff] %v5917
      %5950 = vst [vmem:[%s401 + $0x170] sm:$0xff] %v5918
      %5951 = vst [vmem:[%s401 + $0x188] sm:$0xff] %v5919
      %5952 = vst [vmem:[%s401 + $0x190] sm:$0xff] %v5920
      %5953 = vst [vmem:[%s401 + $0x1a8] sm:$0xff] %v5921
      %5954 = vst [vmem:[%s401 + $0x1b0] sm:$0xff] %v5922
      %5955 = vst [vmem:[%s401 + $0x1c8] sm:$0xff] %v5923
      %5956 = vst [vmem:[%s401 + $0x1d0] sm:$0xff] %v5924
      %5957 = vst [vmem:[%s401 + $0x1e8] sm:$0xff] %v5925
      %5958 = vst [vmem:[%s401 + $0x1f0] sm:$0xff] %v5926
      %v5959 = vld [vmem:[#allocation2 + $0x7] sm:$0xff]
      %v5960 = vld [vmem:[#allocation2 + $0xf] sm:$0xff]
      %v5961 = vld [vmem:[#allocation2 + $0x27] sm:$0xff]
      %v5962 = vld [vmem:[#allocation2 + $0x2f] sm:$0xff]
      %v5963 = vld [vmem:[#allocation2 + $0x47] sm:$0xff]
      %v5964 = vld [vmem:[#allocation2 + $0x4f] sm:$0xff]
      %v5965 = vld [vmem:[#allocation2 + $0x67] sm:$0xff]
      %v5966 = vld [vmem:[#allocation2 + $0x6f] sm:$0xff]
      %v5967 = vld [vmem:[#allocation2 + $0x87] sm:$0xff]
      %v5968 = vld [vmem:[#allocation2 + $0x8f] sm:$0xff]
      %v5969 = vld [vmem:[#allocation2 + $0xa7] sm:$0xff]
      %v5970 = vld [vmem:[#allocation2 + $0xaf] sm:$0xff]
      %v5971 = vld [vmem:[#allocation2 + $0xc7] sm:$0xff]
      %v5972 = vld [vmem:[#allocation2 + $0xcf] sm:$0xff]
      %v5973 = vld [vmem:[#allocation2 + $0xe7] sm:$0xff]
      %v5974 = vld [vmem:[#allocation2 + $0xef] sm:$0xff]
      %v5975 = vld [vmem:[#allocation2 + $0x107] sm:$0xff]
      %v5976 = vld [vmem:[#allocation2 + $0x10f] sm:$0xff]
      %v5977 = vld [vmem:[#allocation2 + $0x127] sm:$0xff]
      %v5978 = vld [vmem:[#allocation2 + $0x12f] sm:$0xff]
      %v5979 = vld [vmem:[#allocation2 + $0x147] sm:$0xff]
      %v5980 = vld [vmem:[#allocation2 + $0x14f] sm:$0xff]
      %v5981 = vld [vmem:[#allocation2 + $0x167] sm:$0xff]
      %v5982 = vld [vmem:[#allocation2 + $0x16f] sm:$0xff]
      %v5983 = vld [vmem:[#allocation2 + $0x187] sm:$0xff]
      %v5984 = vld [vmem:[#allocation2 + $0x18f] sm:$0xff]
      %v5985 = vld [vmem:[#allocation2 + $0x1a7] sm:$0xff]
      %v5986 = vld [vmem:[#allocation2 + $0x1af] sm:$0xff]
      %v5987 = vld [vmem:[#allocation2 + $0x1c7] sm:$0xff]
      %v5988 = vld [vmem:[#allocation2 + $0x1cf] sm:$0xff]
      %v5989 = vld [vmem:[#allocation2 + $0x1e7] sm:$0xff]
      %v5990 = vld [vmem:[#allocation2 + $0x1ef] sm:$0xff]
      %s5991 = scalar_lea.vmem %s1, 2304
      %v5992 = vld [vmem:[%s5991] sm:$0xff]
      %v5993 = vld [vmem:[%s5991 + $0x8] sm:$0xff]
      %v5994 = vld [vmem:[%s5991 + $0x10] sm:$0xff]
      %v5995 = vld [vmem:[%s5991 + $0x18] sm:$0xff]
      %v5996 = vld [vmem:[%s5991 + $0x20] sm:$0xff]
      %v5997 = vld [vmem:[%s5991 + $0x28] sm:$0xff]
      %v5998 = vld [vmem:[%s5991 + $0x30] sm:$0xff]
      %v5999 = vld [vmem:[%s5991 + $0x38] sm:$0xff]
      %v6000 = vld [vmem:[%s5991 + $0x40] sm:$0xff]
      %v6001 = vld [vmem:[%s5991 + $0x48] sm:$0xff]
      %v6002 = vld [vmem:[%s5991 + $0x50] sm:$0xff]
      %v6003 = vld [vmem:[%s5991 + $0x58] sm:$0xff]
      %v6004 = vld [vmem:[%s5991 + $0x60] sm:$0xff]
      %v6005 = vld [vmem:[%s5991 + $0x68] sm:$0xff]
      %v6006 = vld [vmem:[%s5991 + $0x70] sm:$0xff]
      %v6007 = vld [vmem:[%s5991 + $0x78] sm:$0xff]
      %v6008 = vld [vmem:[#allocation2 + $0x8] sm:$0xff]
      %v6009 = vld [vmem:[#allocation2 + $0x10] sm:$0xff]
      %v6010 = vld [vmem:[#allocation2 + $0x28] sm:$0xff]
      %v6011 = vld [vmem:[#allocation2 + $0x30] sm:$0xff]
      %v6012 = vld [vmem:[#allocation2 + $0x48] sm:$0xff]
      %v6013 = vld [vmem:[#allocation2 + $0x50] sm:$0xff]
      %v6014 = vld [vmem:[#allocation2 + $0x68] sm:$0xff]
      %v6015 = vld [vmem:[#allocation2 + $0x70] sm:$0xff]
      %v6016 = vld [vmem:[#allocation2 + $0x88] sm:$0xff]
      %v6017 = vld [vmem:[#allocation2 + $0x90] sm:$0xff]
      %v6018 = vld [vmem:[#allocation2 + $0xa8] sm:$0xff]
      %v6019 = vld [vmem:[#allocation2 + $0xb0] sm:$0xff]
      %v6020 = vld [vmem:[#allocation2 + $0xc8] sm:$0xff]
      %v6021 = vld [vmem:[#allocation2 + $0xd0] sm:$0xff]
      %v6022 = vld [vmem:[#allocation2 + $0xe8] sm:$0xff]
      %v6023 = vld [vmem:[#allocation2 + $0xf0] sm:$0xff]
      %v6024 = vld [vmem:[#allocation2 + $0x108] sm:$0xff]
      %v6025 = vld [vmem:[#allocation2 + $0x110] sm:$0xff]
      %v6026 = vld [vmem:[#allocation2 + $0x128] sm:$0xff]
      %v6027 = vld [vmem:[#allocation2 + $0x130] sm:$0xff]
      %v6028 = vld [vmem:[#allocation2 + $0x148] sm:$0xff]
      %v6029 = vld [vmem:[#allocation2 + $0x150] sm:$0xff]
      %v6030 = vld [vmem:[#allocation2 + $0x168] sm:$0xff]
      %v6031 = vld [vmem:[#allocation2 + $0x170] sm:$0xff]
      %v6032 = vld [vmem:[#allocation2 + $0x188] sm:$0xff]
      %v6033 = vld [vmem:[#allocation2 + $0x190] sm:$0xff]
      %v6034 = vld [vmem:[#allocation2 + $0x1a8] sm:$0xff]
      %v6035 = vld [vmem:[#allocation2 + $0x1b0] sm:$0xff]
      %v6036 = vld [vmem:[#allocation2 + $0x1c8] sm:$0xff]
      %v6037 = vld [vmem:[#allocation2 + $0x1d0] sm:$0xff]
      %v6038 = vld [vmem:[#allocation2 + $0x1e8] sm:$0xff]
      %v6039 = vld [vmem:[#allocation2 + $0x1f0] sm:$0xff]
      %s6040 = scalar_lea.vmem %s1, 2432
      %v6041 = vld [vmem:[%s6040] sm:$0xff]
      %v6042 = vld [vmem:[%s6040 + $0x8] sm:$0xff]
      %v6043 = vld [vmem:[%s6040 + $0x10] sm:$0xff]
      %v6044 = vld [vmem:[%s6040 + $0x18] sm:$0xff]
      %v6045 = vld [vmem:[%s6040 + $0x20] sm:$0xff]
      %v6046 = vld [vmem:[%s6040 + $0x28] sm:$0xff]
      %v6047 = vld [vmem:[%s6040 + $0x30] sm:$0xff]
      %v6048 = vld [vmem:[%s6040 + $0x38] sm:$0xff]
      %v6049 = vld [vmem:[%s6040 + $0x40] sm:$0xff]
      %v6050 = vld [vmem:[%s6040 + $0x48] sm:$0xff]
      %v6051 = vld [vmem:[%s6040 + $0x50] sm:$0xff]
      %v6052 = vld [vmem:[%s6040 + $0x58] sm:$0xff]
      %v6053 = vld [vmem:[%s6040 + $0x60] sm:$0xff]
      %v6054 = vld [vmem:[%s6040 + $0x68] sm:$0xff]
      %v6055 = vld [vmem:[%s6040 + $0x70] sm:$0xff]
      %v6056 = vld [vmem:[%s6040 + $0x78] sm:$0xff]
      %6057 = vmatprep.subr.mxu0 0.0
      %6058 = vmatpush1.msra.mxu0 %v6041
      %6059 = vmatprep.subr.mxu0 0.0
      %6060 = vmatpush1.msra.mxu0 %v6042
      %6061 = vmatprep.subr.mxu0 0.0
      %6062 = vmatpush1.msra.mxu0 %v6043
      %6063 = vmatprep.subr.mxu0 0.0
      %6064 = vmatpush1.msra.mxu0 %v6044
      %6065 = vmatprep.subr.mxu0 0.0
      %6066 = vmatpush1.msra.mxu0 %v6045
      %6067 = vmatprep.subr.mxu0 0.0
      %6068 = vmatpush1.msra.mxu0 %v6046
      %6069 = vmatprep.subr.mxu0 0.0
      %6070 = vmatpush1.msra.mxu0 %v6047
      %6071 = vmatprep.subr.mxu0 0.0
      %6072 = vmatpush1.msra.mxu0 %v6048
      %6073 = vmatprep.subr.mxu0 0.0
      %6074 = vmatpush1.msra.mxu0 %v6049
      %6075 = vmatprep.subr.mxu0 0.0
      %6076 = vmatpush1.msra.mxu0 %v6050
      %6077 = vmatprep.subr.mxu0 0.0
      %6078 = vmatpush1.msra.mxu0 %v6051
      %6079 = vmatprep.subr.mxu0 0.0
      %6080 = vmatpush1.msra.mxu0 %v6052
      %6081 = vmatprep.subr.mxu0 0.0
      %6082 = vmatpush1.msra.mxu0 %v6053
      %6083 = vmatprep.subr.mxu0 0.0
      %6084 = vmatpush1.msra.mxu0 %v6054
      %6085 = vmatprep.subr.mxu0 0.0
      %6086 = vmatpush1.msra.mxu0 %v6055
      %6087 = vmatprep.subr.mxu0 0.0
      %6088 = vmatpush1.msra.mxu0 %v6056
      %6089 = vmatprep.subr.mxu0 0.0
      %6090 = vmatpush1.msra.mxu0 0.0
      %6091 = vmatprep.subr.mxu0 0.0
      %6092 = vmatpush1.msra.mxu0 0.0
      %6093 = vmatprep.subr.mxu0 0.0
      %6094 = vmatpush1.msra.mxu0 0.0
      %6095 = vmatprep.subr.mxu0 0.0
      %6096 = vmatpush1.msra.mxu0 0.0
      %6097 = vmatprep.subr.mxu0 0.0
      %6098 = vmatpush1.msra.mxu0 0.0
      %6099 = vmatprep.subr.mxu0 0.0
      %6100 = vmatpush1.msra.mxu0 0.0
      %6101 = vmatprep.subr.mxu0 0.0
      %6102 = vmatpush1.msra.mxu0 0.0
      %6103 = vmatprep.subr.mxu0 0.0
      %6104 = vmatpush1.msra.mxu0 0.0
      %6105 = vmatprep.subr.mxu0 0.0
      %6106 = vmatpush1.msra.mxu0 0.0
      %6107 = vmatprep.subr.mxu0 0.0
      %6108 = vmatpush1.msra.mxu0 0.0
      %6109 = vmatprep.subr.mxu0 0.0
      %6110 = vmatpush1.msra.mxu0 0.0
      %6111 = vmatprep.subr.mxu0 0.0
      %6112 = vmatpush1.msra.mxu0 0.0
      %6113 = vmatprep.subr.mxu0 0.0
      %6114 = vmatpush1.msra.mxu0 0.0
      %6115 = vmatprep.subr.mxu0 0.0
      %6116 = vmatpush1.msra.mxu0 0.0
      %6117 = vmatprep.subr.mxu0 0.0
      %6118 = vmatpush1.msra.mxu0 0.0
      %6119 = vmatprep.subr.mxu0 0.0
      %6120 = vmatpush1.msra.mxu0 0.0
      %6121 = vmatprep.mubr.f32.mxu0 0.0
      %6122 = vmatmul.mubr.f32.gmra.mrb[0].mxu0 %v6008
      %v6123 = vpop.f32.mrb[0].mxu0
      %v6124 = vadd.f32 0.0, %v6123
      %v6125 = vpop.f32.mrb[0].mxu0
      %6126 = vmatprep.mubr.f32.mxu0 0.0
      %6127 = vmatmul.mubr.f32.gmra.mrb[0].mxu0 %v6009
      %v6128 = vpop.f32.mrb[0].mxu0
      %v6129 = vadd.f32 0.0, %v6128
      %v6130 = vpop.f32.mrb[0].mxu0
      %6131 = vmatprep.mubr.f32.mxu0 0.0
      %6132 = vmatmul.mubr.f32.gmra.mrb[0].mxu0 %v6010
      %v6133 = vpop.f32.mrb[0].mxu0
      %v6134 = vadd.f32 0.0, %v6133
      %v6135 = vpop.f32.mrb[0].mxu0
      %6136 = vmatprep.mubr.f32.mxu0 0.0
      %6137 = vmatmul.mubr.f32.gmra.mrb[0].mxu0 %v6011
      %v6138 = vpop.f32.mrb[0].mxu0
      %v6139 = vadd.f32 0.0, %v6138
      %v6140 = vpop.f32.mrb[0].mxu0
      %6141 = vmatprep.mubr.f32.mxu0 0.0
      %6142 = vmatmul.mubr.f32.gmra.mrb[0].mxu0 %v6012
      %v6143 = vpop.f32.mrb[0].mxu0
      %v6144 = vadd.f32 0.0, %v6143
      %v6145 = vpop.f32.mrb[0].mxu0
      %6146 = vmatprep.mubr.f32.mxu0 0.0
      %6147 = vmatmul.mubr.f32.gmra.mrb[0].mxu0 %v6013
      %v6148 = vpop.f32.mrb[0].mxu0
      %v6149 = vadd.f32 0.0, %v6148
      %v6150 = vpop.f32.mrb[0].mxu0
      %6151 = vmatprep.mubr.f32.mxu0 0.0
      %6152 = vmatmul.mubr.f32.gmra.mrb[0].mxu0 %v6014
      %v6153 = vpop.f32.mrb[0].mxu0
      %v6154 = vadd.f32 0.0, %v6153
      %v6155 = vpop.f32.mrb[0].mxu0
      %6156 = vmatprep.mubr.f32.mxu0 0.0
      %6157 = vmatmul.mubr.f32.gmra.mrb[0].mxu0 %v6015
      %v6158 = vpop.f32.mrb[0].mxu0
      %v6159 = vadd.f32 0.0, %v6158
      %v6160 = vpop.f32.mrb[0].mxu0
      %6161 = vmatprep.mubr.f32.mxu0 0.0
      %6162 = vmatmul.mubr.f32.gmra.mrb[0].mxu0 %v6016
      %v6163 = vpop.f32.mrb[0].mxu0
      %v6164 = vadd.f32 0.0, %v6163
      %v6165 = vpop.f32.mrb[0].mxu0
      %6166 = vmatprep.mubr.f32.mxu0 0.0
      %6167 = vmatmul.mubr.f32.gmra.mrb[0].mxu0 %v6017
      %v6168 = vpop.f32.mrb[0].mxu0
      %v6169 = vadd.f32 0.0, %v6168
      %v6170 = vpop.f32.mrb[0].mxu0
      %6171 = vmatprep.mubr.f32.mxu0 0.0
      %6172 = vmatmul.mubr.f32.gmra.mrb[0].mxu0 %v6018
      %v6173 = vpop.f32.mrb[0].mxu0
      %v6174 = vadd.f32 0.0, %v6173
      %v6175 = vpop.f32.mrb[0].mxu0
      %6176 = vmatprep.mubr.f32.mxu0 0.0
      %6177 = vmatmul.mubr.f32.gmra.mrb[0].mxu0 %v6019
      %v6178 = vpop.f32.mrb[0].mxu0
      %v6179 = vadd.f32 0.0, %v6178
      %v6180 = vpop.f32.mrb[0].mxu0
      %6181 = vmatprep.mubr.f32.mxu0 0.0
      %6182 = vmatmul.mubr.f32.gmra.mrb[0].mxu0 %v6020
      %v6183 = vpop.f32.mrb[0].mxu0
      %v6184 = vadd.f32 0.0, %v6183
      %v6185 = vpop.f32.mrb[0].mxu0
      %6186 = vmatprep.mubr.f32.mxu0 0.0
      %6187 = vmatmul.mubr.f32.gmra.mrb[0].mxu0 %v6021
      %v6188 = vpop.f32.mrb[0].mxu0
      %v6189 = vadd.f32 0.0, %v6188
      %v6190 = vpop.f32.mrb[0].mxu0
      %6191 = vmatprep.mubr.f32.mxu0 0.0
      %6192 = vmatmul.mubr.f32.gmra.mrb[0].mxu0 %v6022
      %v6193 = vpop.f32.mrb[0].mxu0
      %v6194 = vadd.f32 0.0, %v6193
      %v6195 = vpop.f32.mrb[0].mxu0
      %6196 = vmatprep.mubr.f32.mxu0 0.0
      %6197 = vmatmul.mubr.f32.gmra.mrb[0].mxu0 %v6023
      %v6198 = vpop.f32.mrb[0].mxu0
      %v6199 = vadd.f32 0.0, %v6198
      %v6200 = vpop.f32.mrb[0].mxu0
      %6201 = vmatprep.mubr.f32.mxu0 0.0
      %6202 = vmatmul.mubr.f32.gmra.mrb[0].mxu0 %v6024
      %v6203 = vpop.f32.mrb[0].mxu0
      %v6204 = vadd.f32 0.0, %v6203
      %v6205 = vpop.f32.mrb[0].mxu0
      %6206 = vmatprep.mubr.f32.mxu0 0.0
      %6207 = vmatmul.mubr.f32.gmra.mrb[0].mxu0 %v6025
      %v6208 = vpop.f32.mrb[0].mxu0
      %v6209 = vadd.f32 0.0, %v6208
      %v6210 = vpop.f32.mrb[0].mxu0
      %6211 = vmatprep.mubr.f32.mxu0 0.0
      %6212 = vmatmul.mubr.f32.gmra.mrb[0].mxu0 %v6026
      %v6213 = vpop.f32.mrb[0].mxu0
      %v6214 = vadd.f32 0.0, %v6213
      %v6215 = vpop.f32.mrb[0].mxu0
      %6216 = vmatprep.mubr.f32.mxu0 0.0
      %6217 = vmatmul.mubr.f32.gmra.mrb[0].mxu0 %v6027
      %v6218 = vpop.f32.mrb[0].mxu0
      %v6219 = vadd.f32 0.0, %v6218
      %v6220 = vpop.f32.mrb[0].mxu0
      %6221 = vmatprep.mubr.f32.mxu0 0.0
      %6222 = vmatmul.mubr.f32.gmra.mrb[0].mxu0 %v6028
      %v6223 = vpop.f32.mrb[0].mxu0
      %v6224 = vadd.f32 0.0, %v6223
      %v6225 = vpop.f32.mrb[0].mxu0
      %6226 = vmatprep.mubr.f32.mxu0 0.0
      %6227 = vmatmul.mubr.f32.gmra.mrb[0].mxu0 %v6029
      %v6228 = vpop.f32.mrb[0].mxu0
      %v6229 = vadd.f32 0.0, %v6228
      %v6230 = vpop.f32.mrb[0].mxu0
      %6231 = vmatprep.mubr.f32.mxu0 0.0
      %6232 = vmatmul.mubr.f32.gmra.mrb[0].mxu0 %v6030
      %v6233 = vpop.f32.mrb[0].mxu0
      %v6234 = vadd.f32 0.0, %v6233
      %v6235 = vpop.f32.mrb[0].mxu0
      %6236 = vmatprep.mubr.f32.mxu0 0.0
      %6237 = vmatmul.mubr.f32.gmra.mrb[0].mxu0 %v6031
      %v6238 = vpop.f32.mrb[0].mxu0
      %v6239 = vadd.f32 0.0, %v6238
      %v6240 = vpop.f32.mrb[0].mxu0
      %6241 = vmatprep.mubr.f32.mxu0 0.0
      %6242 = vmatmul.mubr.f32.gmra.mrb[0].mxu0 %v6032
      %v6243 = vpop.f32.mrb[0].mxu0
      %v6244 = vadd.f32 0.0, %v6243
      %v6245 = vpop.f32.mrb[0].mxu0
      %6246 = vmatprep.mubr.f32.mxu0 0.0
      %6247 = vmatmul.mubr.f32.gmra.mrb[0].mxu0 %v6033
      %v6248 = vpop.f32.mrb[0].mxu0
      %v6249 = vadd.f32 0.0, %v6248
      %v6250 = vpop.f32.mrb[0].mxu0
      %6251 = vmatprep.mubr.f32.mxu0 0.0
      %6252 = vmatmul.mubr.f32.gmra.mrb[0].mxu0 %v6034
      %v6253 = vpop.f32.mrb[0].mxu0
      %v6254 = vadd.f32 0.0, %v6253
      %v6255 = vpop.f32.mrb[0].mxu0
      %6256 = vmatprep.mubr.f32.mxu0 0.0
      %6257 = vmatmul.mubr.f32.gmra.mrb[0].mxu0 %v6035
      %v6258 = vpop.f32.mrb[0].mxu0
      %v6259 = vadd.f32 0.0, %v6258
      %v6260 = vpop.f32.mrb[0].mxu0
      %6261 = vmatprep.mubr.f32.mxu0 0.0
      %6262 = vmatmul.mubr.f32.gmra.mrb[0].mxu0 %v6036
      %v6263 = vpop.f32.mrb[0].mxu0
      %v6264 = vadd.f32 0.0, %v6263
      %v6265 = vpop.f32.mrb[0].mxu0
      %6266 = vmatprep.mubr.f32.mxu0 0.0
      %6267 = vmatmul.mubr.f32.gmra.mrb[0].mxu0 %v6037
      %v6268 = vpop.f32.mrb[0].mxu0
      %v6269 = vadd.f32 0.0, %v6268
      %v6270 = vpop.f32.mrb[0].mxu0
      %6271 = vmatprep.mubr.f32.mxu0 0.0
      %6272 = vmatmul.mubr.f32.gmra.mrb[0].mxu0 %v6038
      %v6273 = vpop.f32.mrb[0].mxu0
      %v6274 = vadd.f32 0.0, %v6273
      %v6275 = vpop.f32.mrb[0].mxu0
      %6276 = vmatprep.mubr.f32.mxu0 0.0
      %6277 = vmatmul.mubr.f32.gmra.mrb[0].mxu0 %v6039
      %v6278 = vpop.f32.mrb[0].mxu0
      %v6279 = vadd.f32 0.0, %v6278
      %v6280 = vpop.f32.mrb[0].mxu0
      %6281 = vdwg.mxu0
      %6282 = vmatprep.subr.mxu0 0.0
      %6283 = vmatpush1.msra.mxu0 %v5992
      %6284 = vmatprep.subr.mxu0 0.0
      %6285 = vmatpush1.msra.mxu0 %v5993
      %6286 = vmatprep.subr.mxu0 0.0
      %6287 = vmatpush1.msra.mxu0 %v5994
      %6288 = vmatprep.subr.mxu0 0.0
      %6289 = vmatpush1.msra.mxu0 %v5995
      %6290 = vmatprep.subr.mxu0 0.0
      %6291 = vmatpush1.msra.mxu0 %v5996
      %6292 = vmatprep.subr.mxu0 0.0
      %6293 = vmatpush1.msra.mxu0 %v5997
      %6294 = vmatprep.subr.mxu0 0.0
      %6295 = vmatpush1.msra.mxu0 %v5998
      %6296 = vmatprep.subr.mxu0 0.0
      %6297 = vmatpush1.msra.mxu0 %v5999
      %6298 = vmatprep.subr.mxu0 0.0
      %6299 = vmatpush1.msra.mxu0 %v6000
      %6300 = vmatprep.subr.mxu0 0.0
      %6301 = vmatpush1.msra.mxu0 %v6001
      %6302 = vmatprep.subr.mxu0 0.0
      %6303 = vmatpush1.msra.mxu0 %v6002
      %6304 = vmatprep.subr.mxu0 0.0
      %6305 = vmatpush1.msra.mxu0 %v6003
      %6306 = vmatprep.subr.mxu0 0.0
      %6307 = vmatpush1.msra.mxu0 %v6004
      %6308 = vmatprep.subr.mxu0 0.0
      %6309 = vmatpush1.msra.mxu0 %v6005
      %6310 = vmatprep.subr.mxu0 0.0
      %6311 = vmatpush1.msra.mxu0 %v6006
      %6312 = vmatprep.subr.mxu0 0.0
      %6313 = vmatpush1.msra.mxu0 %v6007
      %6314 = vmatprep.subr.mxu0 0.0
      %6315 = vmatpush1.msra.mxu0 0.0
      %6316 = vmatprep.subr.mxu0 0.0
      %6317 = vmatpush1.msra.mxu0 0.0
      %6318 = vmatprep.subr.mxu0 0.0
      %6319 = vmatpush1.msra.mxu0 0.0
      %6320 = vmatprep.subr.mxu0 0.0
      %6321 = vmatpush1.msra.mxu0 0.0
      %6322 = vmatprep.subr.mxu0 0.0
      %6323 = vmatpush1.msra.mxu0 0.0
      %6324 = vmatprep.subr.mxu0 0.0
      %6325 = vmatpush1.msra.mxu0 0.0
      %6326 = vmatprep.subr.mxu0 0.0
      %6327 = vmatpush1.msra.mxu0 0.0
      %6328 = vmatprep.subr.mxu0 0.0
      %6329 = vmatpush1.msra.mxu0 0.0
      %6330 = vmatprep.subr.mxu0 0.0
      %6331 = vmatpush1.msra.mxu0 0.0
      %6332 = vmatprep.subr.mxu0 0.0
      %6333 = vmatpush1.msra.mxu0 0.0
      %6334 = vmatprep.subr.mxu0 0.0
      %6335 = vmatpush1.msra.mxu0 0.0
      %6336 = vmatprep.subr.mxu0 0.0
      %6337 = vmatpush1.msra.mxu0 0.0
      %6338 = vmatprep.subr.mxu0 0.0
      %6339 = vmatpush1.msra.mxu0 0.0
      %6340 = vmatprep.subr.mxu0 0.0
      %6341 = vmatpush1.msra.mxu0 0.0
      %6342 = vmatprep.subr.mxu0 0.0
      %6343 = vmatpush1.msra.mxu0 0.0
      %6344 = vmatprep.subr.mxu0 0.0
      %6345 = vmatpush1.msra.mxu0 0.0
      %6346 = vmatprep.mubr.f32.mxu0 0.0
      %6347 = vmatmul.mubr.f32.gmra.mrb[0].mxu0 %v5959
      %v6348 = vpop.f32.mrb[0].mxu0
      %v6349 = vadd.f32 %v6124, %v6348
      %v6350 = vpop.f32.mrb[0].mxu0
      %6351 = vmatprep.mubr.f32.mxu0 0.0
      %6352 = vmatmul.mubr.f32.gmra.mrb[0].mxu0 %v5960
      %v6353 = vpop.f32.mrb[0].mxu0
      %v6354 = vadd.f32 %v6129, %v6353
      %v6355 = vpop.f32.mrb[0].mxu0
      %6356 = vmatprep.mubr.f32.mxu0 0.0
      %6357 = vmatmul.mubr.f32.gmra.mrb[0].mxu0 %v5961
      %v6358 = vpop.f32.mrb[0].mxu0
      %v6359 = vadd.f32 %v6134, %v6358
      %v6360 = vpop.f32.mrb[0].mxu0
      %6361 = vmatprep.mubr.f32.mxu0 0.0
      %6362 = vmatmul.mubr.f32.gmra.mrb[0].mxu0 %v5962
      %v6363 = vpop.f32.mrb[0].mxu0
      %v6364 = vadd.f32 %v6139, %v6363
      %v6365 = vpop.f32.mrb[0].mxu0
      %6366 = vmatprep.mubr.f32.mxu0 0.0
      %6367 = vmatmul.mubr.f32.gmra.mrb[0].mxu0 %v5963
      %v6368 = vpop.f32.mrb[0].mxu0
      %v6369 = vadd.f32 %v6144, %v6368
      %v6370 = vpop.f32.mrb[0].mxu0
      %6371 = vmatprep.mubr.f32.mxu0 0.0
      %6372 = vmatmul.mubr.f32.gmra.mrb[0].mxu0 %v5964
      %v6373 = vpop.f32.mrb[0].mxu0
      %v6374 = vadd.f32 %v6149, %v6373
      %v6375 = vpop.f32.mrb[0].mxu0
      %6376 = vmatprep.mubr.f32.mxu0 0.0
      %6377 = vmatmul.mubr.f32.gmra.mrb[0].mxu0 %v5965
      %v6378 = vpop.f32.mrb[0].mxu0
      %v6379 = vadd.f32 %v6154, %v6378
      %v6380 = vpop.f32.mrb[0].mxu0
      %6381 = vmatprep.mubr.f32.mxu0 0.0
      %6382 = vmatmul.mubr.f32.gmra.mrb[0].mxu0 %v5966
      %v6383 = vpop.f32.mrb[0].mxu0
      %v6384 = vadd.f32 %v6159, %v6383
      %v6385 = vpop.f32.mrb[0].mxu0
      %6386 = vmatprep.mubr.f32.mxu0 0.0
      %6387 = vmatmul.mubr.f32.gmra.mrb[0].mxu0 %v5967
      %v6388 = vpop.f32.mrb[0].mxu0
      %v6389 = vadd.f32 %v6164, %v6388
      %v6390 = vpop.f32.mrb[0].mxu0
      %6391 = vmatprep.mubr.f32.mxu0 0.0
      %6392 = vmatmul.mubr.f32.gmra.mrb[0].mxu0 %v5968
      %v6393 = vpop.f32.mrb[0].mxu0
      %v6394 = vadd.f32 %v6169, %v6393
      %v6395 = vpop.f32.mrb[0].mxu0
      %6396 = vmatprep.mubr.f32.mxu0 0.0
      %6397 = vmatmul.mubr.f32.gmra.mrb[0].mxu0 %v5969
      %v6398 = vpop.f32.mrb[0].mxu0
      %v6399 = vadd.f32 %v6174, %v6398
      %v6400 = vpop.f32.mrb[0].mxu0
      %6401 = vmatprep.mubr.f32.mxu0 0.0
      %6402 = vmatmul.mubr.f32.gmra.mrb[0].mxu0 %v5970
      %v6403 = vpop.f32.mrb[0].mxu0
      %v6404 = vadd.f32 %v6179, %v6403
      %v6405 = vpop.f32.mrb[0].mxu0
      %6406 = vmatprep.mubr.f32.mxu0 0.0
      %6407 = vmatmul.mubr.f32.gmra.mrb[0].mxu0 %v5971
      %v6408 = vpop.f32.mrb[0].mxu0
      %v6409 = vadd.f32 %v6184, %v6408
      %v6410 = vpop.f32.mrb[0].mxu0
      %6411 = vmatprep.mubr.f32.mxu0 0.0
      %6412 = vmatmul.mubr.f32.gmra.mrb[0].mxu0 %v5972
      %v6413 = vpop.f32.mrb[0].mxu0
      %v6414 = vadd.f32 %v6189, %v6413
      %v6415 = vpop.f32.mrb[0].mxu0
      %6416 = vmatprep.mubr.f32.mxu0 0.0
      %6417 = vmatmul.mubr.f32.gmra.mrb[0].mxu0 %v5973
      %v6418 = vpop.f32.mrb[0].mxu0
      %v6419 = vadd.f32 %v6194, %v6418
      %v6420 = vpop.f32.mrb[0].mxu0
      %6421 = vmatprep.mubr.f32.mxu0 0.0
      %6422 = vmatmul.mubr.f32.gmra.mrb[0].mxu0 %v5974
      %v6423 = vpop.f32.mrb[0].mxu0
      %v6424 = vadd.f32 %v6199, %v6423
      %v6425 = vpop.f32.mrb[0].mxu0
      %6426 = vmatprep.mubr.f32.mxu0 0.0
      %6427 = vmatmul.mubr.f32.gmra.mrb[0].mxu0 %v5975
      %v6428 = vpop.f32.mrb[0].mxu0
      %v6429 = vadd.f32 %v6204, %v6428
      %v6430 = vpop.f32.mrb[0].mxu0
      %6431 = vmatprep.mubr.f32.mxu0 0.0
      %6432 = vmatmul.mubr.f32.gmra.mrb[0].mxu0 %v5976
      %v6433 = vpop.f32.mrb[0].mxu0
      %v6434 = vadd.f32 %v6209, %v6433
      %v6435 = vpop.f32.mrb[0].mxu0
      %6436 = vmatprep.mubr.f32.mxu0 0.0
      %6437 = vmatmul.mubr.f32.gmra.mrb[0].mxu0 %v5977
      %v6438 = vpop.f32.mrb[0].mxu0
      %v6439 = vadd.f32 %v6214, %v6438
      %v6440 = vpop.f32.mrb[0].mxu0
      %6441 = vmatprep.mubr.f32.mxu0 0.0
      %6442 = vmatmul.mubr.f32.gmra.mrb[0].mxu0 %v5978
      %v6443 = vpop.f32.mrb[0].mxu0
      %v6444 = vadd.f32 %v6219, %v6443
      %v6445 = vpop.f32.mrb[0].mxu0
      %6446 = vmatprep.mubr.f32.mxu0 0.0
      %6447 = vmatmul.mubr.f32.gmra.mrb[0].mxu0 %v5979
      %v6448 = vpop.f32.mrb[0].mxu0
      %v6449 = vadd.f32 %v6224, %v6448
      %v6450 = vpop.f32.mrb[0].mxu0
      %6451 = vmatprep.mubr.f32.mxu0 0.0
      %6452 = vmatmul.mubr.f32.gmra.mrb[0].mxu0 %v5980
      %v6453 = vpop.f32.mrb[0].mxu0
      %v6454 = vadd.f32 %v6229, %v6453
      %v6455 = vpop.f32.mrb[0].mxu0
      %6456 = vmatprep.mubr.f32.mxu0 0.0
      %6457 = vmatmul.mubr.f32.gmra.mrb[0].mxu0 %v5981
      %v6458 = vpop.f32.mrb[0].mxu0
      %v6459 = vadd.f32 %v6234, %v6458
      %v6460 = vpop.f32.mrb[0].mxu0
      %6461 = vmatprep.mubr.f32.mxu0 0.0
      %6462 = vmatmul.mubr.f32.gmra.mrb[0].mxu0 %v5982
      %v6463 = vpop.f32.mrb[0].mxu0
      %v6464 = vadd.f32 %v6239, %v6463
      %v6465 = vpop.f32.mrb[0].mxu0
      %6466 = vmatprep.mubr.f32.mxu0 0.0
      %6467 = vmatmul.mubr.f32.gmra.mrb[0].mxu0 %v5983
      %v6468 = vpop.f32.mrb[0].mxu0
      %v6469 = vadd.f32 %v6244, %v6468
      %v6470 = vpop.f32.mrb[0].mxu0
      %6471 = vmatprep.mubr.f32.mxu0 0.0
      %6472 = vmatmul.mubr.f32.gmra.mrb[0].mxu0 %v5984
      %v6473 = vpop.f32.mrb[0].mxu0
      %v6474 = vadd.f32 %v6249, %v6473
      %v6475 = vpop.f32.mrb[0].mxu0
      %6476 = vmatprep.mubr.f32.mxu0 0.0
      %6477 = vmatmul.mubr.f32.gmra.mrb[0].mxu0 %v5985
      %v6478 = vpop.f32.mrb[0].mxu0
      %v6479 = vadd.f32 %v6254, %v6478
      %v6480 = vpop.f32.mrb[0].mxu0
      %6481 = vmatprep.mubr.f32.mxu0 0.0
      %6482 = vmatmul.mubr.f32.gmra.mrb[0].mxu0 %v5986
      %v6483 = vpop.f32.mrb[0].mxu0
      %v6484 = vadd.f32 %v6259, %v6483
      %v6485 = vpop.f32.mrb[0].mxu0
      %6486 = vmatprep.mubr.f32.mxu0 0.0
      %6487 = vmatmul.mubr.f32.gmra.mrb[0].mxu0 %v5987
      %v6488 = vpop.f32.mrb[0].mxu0
      %v6489 = vadd.f32 %v6264, %v6488
      %v6490 = vpop.f32.mrb[0].mxu0
      %6491 = vmatprep.mubr.f32.mxu0 0.0
      %6492 = vmatmul.mubr.f32.gmra.mrb[0].mxu0 %v5988
      %v6493 = vpop.f32.mrb[0].mxu0
      %v6494 = vadd.f32 %v6269, %v6493
      %v6495 = vpop.f32.mrb[0].mxu0
      %6496 = vmatprep.mubr.f32.mxu0 0.0
      %6497 = vmatmul.mubr.f32.gmra.mrb[0].mxu0 %v5989
      %v6498 = vpop.f32.mrb[0].mxu0
      %v6499 = vadd.f32 %v6274, %v6498
      %v6500 = vpop.f32.mrb[0].mxu0
      %6501 = vmatprep.mubr.f32.mxu0 0.0
      %6502 = vmatmul.mubr.f32.gmra.mrb[0].mxu0 %v5990
      %v6503 = vpop.f32.mrb[0].mxu0
      %v6504 = vadd.f32 %v6279, %v6503
      %v6505 = vpop.f32.mrb[0].mxu0
      %6506 = vdwg.mxu0
      %v6507 = vld [vmem:[#allocation2 + $0x9] sm:$0xff]
      %v6508 = vld [vmem:[#allocation2 + $0x11] sm:$0xff]
      %v6509 = vld [vmem:[#allocation2 + $0x29] sm:$0xff]
      %v6510 = vld [vmem:[#allocation2 + $0x31] sm:$0xff]
      %v6511 = vld [vmem:[#allocation2 + $0x49] sm:$0xff]
      %v6512 = vld [vmem:[#allocation2 + $0x51] sm:$0xff]
      %v6513 = vld [vmem:[#allocation2 + $0x69] sm:$0xff]
      %v6514 = vld [vmem:[#allocation2 + $0x71] sm:$0xff]
      %v6515 = vld [vmem:[#allocation2 + $0x89] sm:$0xff]
      %v6516 = vld [vmem:[#allocation2 + $0x91] sm:$0xff]
      %v6517 = vld [vmem:[#allocation2 + $0xa9] sm:$0xff]
      %v6518 = vld [vmem:[#allocation2 + $0xb1] sm:$0xff]
      %v6519 = vld [vmem:[#allocation2 + $0xc9] sm:$0xff]
      %v6520 = vld [vmem:[#allocation2 + $0xd1] sm:$0xff]
      %v6521 = vld [vmem:[#allocation2 + $0xe9] sm:$0xff]
      %v6522 = vld [vmem:[#allocation2 + $0xf1] sm:$0xff]
      %v6523 = vld [vmem:[#allocation2 + $0x109] sm:$0xff]
      %v6524 = vld [vmem:[#allocation2 + $0x111] sm:$0xff]
      %v6525 = vld [vmem:[#allocation2 + $0x129] sm:$0xff]
      %v6526 = vld [vmem:[#allocation2 + $0x131] sm:$0xff]
      %v6527 = vld [vmem:[#allocation2 + $0x149] sm:$0xff]
      %v6528 = vld [vmem:[#allocation2 + $0x151] sm:$0xff]
      %v6529 = vld [vmem:[#allocation2 + $0x169] sm:$0xff]
      %v6530 = vld [vmem:[#allocation2 + $0x171] sm:$0xff]
      %v6531 = vld [vmem:[#allocation2 + $0x189] sm:$0xff]
      %v6532 = vld [vmem:[#allocation2 + $0x191] sm:$0xff]
      %v6533 = vld [vmem:[#allocation2 + $0x1a9] sm:$0xff]
      %v6534 = vld [vmem:[#allocation2 + $0x1b1] sm:$0xff]
      %v6535 = vld [vmem:[#allocation2 + $0x1c9] sm:$0xff]
      %v6536 = vld [vmem:[#allocation2 + $0x1d1] sm:$0xff]
      %v6537 = vld [vmem:[#allocation2 + $0x1e9] sm:$0xff]
      %v6538 = vld [vmem:[#allocation2 + $0x1f1] sm:$0xff]
      %s6539 = scalar_lea.vmem %s1, 2560
      %v6540 = vld [vmem:[%s6539] sm:$0xff]
      %v6541 = vld [vmem:[%s6539 + $0x8] sm:$0xff]
      %v6542 = vld [vmem:[%s6539 + $0x10] sm:$0xff]
      %v6543 = vld [vmem:[%s6539 + $0x18] sm:$0xff]
      %v6544 = vld [vmem:[%s6539 + $0x20] sm:$0xff]
      %v6545 = vld [vmem:[%s6539 + $0x28] sm:$0xff]
      %v6546 = vld [vmem:[%s6539 + $0x30] sm:$0xff]
      %v6547 = vld [vmem:[%s6539 + $0x38] sm:$0xff]
      %v6548 = vld [vmem:[%s6539 + $0x40] sm:$0xff]
      %v6549 = vld [vmem:[%s6539 + $0x48] sm:$0xff]
      %v6550 = vld [vmem:[%s6539 + $0x50] sm:$0xff]
      %v6551 = vld [vmem:[%s6539 + $0x58] sm:$0xff]
      %v6552 = vld [vmem:[%s6539 + $0x60] sm:$0xff]
      %v6553 = vld [vmem:[%s6539 + $0x68] sm:$0xff]
      %v6554 = vld [vmem:[%s6539 + $0x70] sm:$0xff]
      %v6555 = vld [vmem:[%s6539 + $0x78] sm:$0xff]
      %6556 = vmatprep.subr.mxu0 0.0
      %6557 = vmatpush1.msra.mxu0 %v6540
      %6558 = vmatprep.subr.mxu0 0.0
      %6559 = vmatpush1.msra.mxu0 %v6541
      %6560 = vmatprep.subr.mxu0 0.0
      %6561 = vmatpush1.msra.mxu0 %v6542
      %6562 = vmatprep.subr.mxu0 0.0
      %6563 = vmatpush1.msra.mxu0 %v6543
      %6564 = vmatprep.subr.mxu0 0.0
      %6565 = vmatpush1.msra.mxu0 %v6544
      %6566 = vmatprep.subr.mxu0 0.0
      %6567 = vmatpush1.msra.mxu0 %v6545
      %6568 = vmatprep.subr.mxu0 0.0
      %6569 = vmatpush1.msra.mxu0 %v6546
      %6570 = vmatprep.subr.mxu0 0.0
      %6571 = vmatpush1.msra.mxu0 %v6547
      %6572 = vmatprep.subr.mxu0 0.0
      %6573 = vmatpush1.msra.mxu0 %v6548
      %6574 = vmatprep.subr.mxu0 0.0
      %6575 = vmatpush1.msra.mxu0 %v6549
      %6576 = vmatprep.subr.mxu0 0.0
      %6577 = vmatpush1.msra.mxu0 %v6550
      %6578 = vmatprep.subr.mxu0 0.0
      %6579 = vmatpush1.msra.mxu0 %v6551
      %6580 = vmatprep.subr.mxu0 0.0
      %6581 = vmatpush1.msra.mxu0 %v6552
      %6582 = vmatprep.subr.mxu0 0.0
      %6583 = vmatpush1.msra.mxu0 %v6553
      %6584 = vmatprep.subr.mxu0 0.0
      %6585 = vmatpush1.msra.mxu0 %v6554
      %6586 = vmatprep.subr.mxu0 0.0
      %6587 = vmatpush1.msra.mxu0 %v6555
      %6588 = vmatprep.subr.mxu0 0.0
      %6589 = vmatpush1.msra.mxu0 0.0
      %6590 = vmatprep.subr.mxu0 0.0
      %6591 = vmatpush1.msra.mxu0 0.0
      %6592 = vmatprep.subr.mxu0 0.0
      %6593 = vmatpush1.msra.mxu0 0.0
      %6594 = vmatprep.subr.mxu0 0.0
      %6595 = vmatpush1.msra.mxu0 0.0
      %6596 = vmatprep.subr.mxu0 0.0
      %6597 = vmatpush1.msra.mxu0 0.0
      %6598 = vmatprep.subr.mxu0 0.0
      %6599 = vmatpush1.msra.mxu0 0.0
      %6600 = vmatprep.subr.mxu0 0.0
      %6601 = vmatpush1.msra.mxu0 0.0
      %6602 = vmatprep.subr.mxu0 0.0
      %6603 = vmatpush1.msra.mxu0 0.0
      %6604 = vmatprep.subr.mxu0 0.0
      %6605 = vmatpush1.msra.mxu0 0.0
      %6606 = vmatprep.subr.mxu0 0.0
      %6607 = vmatpush1.msra.mxu0 0.0
      %6608 = vmatprep.subr.mxu0 0.0
      %6609 = vmatpush1.msra.mxu0 0.0
      %6610 = vmatprep.subr.mxu0 0.0
      %6611 = vmatpush1.msra.mxu0 0.0
      %6612 = vmatprep.subr.mxu0 0.0
      %6613 = vmatpush1.msra.mxu0 0.0
      %6614 = vmatprep.subr.mxu0 0.0
      %6615 = vmatpush1.msra.mxu0 0.0
      %6616 = vmatprep.subr.mxu0 0.0
      %6617 = vmatpush1.msra.mxu0 0.0
      %6618 = vmatprep.subr.mxu0 0.0
      %6619 = vmatpush1.msra.mxu0 0.0
      %6620 = vmatprep.mubr.f32.mxu0 0.0
      %6621 = vmatmul.mubr.f32.gmra.mrb[0].mxu0 %v6507
      %v6622 = vpop.f32.mrb[0].mxu0
      %v6623 = vadd.f32 0.0, %v6622
      %v6624 = vpop.f32.mrb[0].mxu0
      %6625 = vmatprep.mubr.f32.mxu0 0.0
      %6626 = vmatmul.mubr.f32.gmra.mrb[0].mxu0 %v6508
      %v6627 = vpop.f32.mrb[0].mxu0
      %v6628 = vadd.f32 0.0, %v6627
      %v6629 = vpop.f32.mrb[0].mxu0
      %6630 = vmatprep.mubr.f32.mxu0 0.0
      %6631 = vmatmul.mubr.f32.gmra.mrb[0].mxu0 %v6509
      %v6632 = vpop.f32.mrb[0].mxu0
      %v6633 = vadd.f32 0.0, %v6632
      %v6634 = vpop.f32.mrb[0].mxu0
      %6635 = vmatprep.mubr.f32.mxu0 0.0
      %6636 = vmatmul.mubr.f32.gmra.mrb[0].mxu0 %v6510
      %v6637 = vpop.f32.mrb[0].mxu0
      %v6638 = vadd.f32 0.0, %v6637
      %v6639 = vpop.f32.mrb[0].mxu0
      %6640 = vmatprep.mubr.f32.mxu0 0.0
      %6641 = vmatmul.mubr.f32.gmra.mrb[0].mxu0 %v6511
      %v6642 = vpop.f32.mrb[0].mxu0
      %v6643 = vadd.f32 0.0, %v6642
      %v6644 = vpop.f32.mrb[0].mxu0
      %6645 = vmatprep.mubr.f32.mxu0 0.0
      %6646 = vmatmul.mubr.f32.gmra.mrb[0].mxu0 %v6512
      %v6647 = vpop.f32.mrb[0].mxu0
      %v6648 = vadd.f32 0.0, %v6647
      %v6649 = vpop.f32.mrb[0].mxu0
      %6650 = vmatprep.mubr.f32.mxu0 0.0
      %6651 = vmatmul.mubr.f32.gmra.mrb[0].mxu0 %v6513
      %v6652 = vpop.f32.mrb[0].mxu0
      %v6653 = vadd.f32 0.0, %v6652
      %v6654 = vpop.f32.mrb[0].mxu0
      %6655 = vmatprep.mubr.f32.mxu0 0.0
      %6656 = vmatmul.mubr.f32.gmra.mrb[0].mxu0 %v6514
      %v6657 = vpop.f32.mrb[0].mxu0
      %v6658 = vadd.f32 0.0, %v6657
      %v6659 = vpop.f32.mrb[0].mxu0
      %6660 = vmatprep.mubr.f32.mxu0 0.0
      %6661 = vmatmul.mubr.f32.gmra.mrb[0].mxu0 %v6515
      %v6662 = vpop.f32.mrb[0].mxu0
      %v6663 = vadd.f32 0.0, %v6662
      %v6664 = vpop.f32.mrb[0].mxu0
      %6665 = vmatprep.mubr.f32.mxu0 0.0
      %6666 = vmatmul.mubr.f32.gmra.mrb[0].mxu0 %v6516
      %v6667 = vpop.f32.mrb[0].mxu0
      %v6668 = vadd.f32 0.0, %v6667
      %v6669 = vpop.f32.mrb[0].mxu0
      %6670 = vmatprep.mubr.f32.mxu0 0.0
      %6671 = vmatmul.mubr.f32.gmra.mrb[0].mxu0 %v6517
      %v6672 = vpop.f32.mrb[0].mxu0
      %v6673 = vadd.f32 0.0, %v6672
      %v6674 = vpop.f32.mrb[0].mxu0
      %6675 = vmatprep.mubr.f32.mxu0 0.0
      %6676 = vmatmul.mubr.f32.gmra.mrb[0].mxu0 %v6518
      %v6677 = vpop.f32.mrb[0].mxu0
      %v6678 = vadd.f32 0.0, %v6677
      %v6679 = vpop.f32.mrb[0].mxu0
      %6680 = vmatprep.mubr.f32.mxu0 0.0
      %6681 = vmatmul.mubr.f32.gmra.mrb[0].mxu0 %v6519
      %v6682 = vpop.f32.mrb[0].mxu0
      %v6683 = vadd.f32 0.0, %v6682
      %v6684 = vpop.f32.mrb[0].mxu0
      %6685 = vmatprep.mubr.f32.mxu0 0.0
      %6686 = vmatmul.mubr.f32.gmra.mrb[0].mxu0 %v6520
      %v6687 = vpop.f32.mrb[0].mxu0
      %v6688 = vadd.f32 0.0, %v6687
      %v6689 = vpop.f32.mrb[0].mxu0
      %6690 = vmatprep.mubr.f32.mxu0 0.0
      %6691 = vmatmul.mubr.f32.gmra.mrb[0].mxu0 %v6521
      %v6692 = vpop.f32.mrb[0].mxu0
      %v6693 = vadd.f32 0.0, %v6692
      %v6694 = vpop.f32.mrb[0].mxu0
      %6695 = vmatprep.mubr.f32.mxu0 0.0
      %6696 = vmatmul.mubr.f32.gmra.mrb[0].mxu0 %v6522
      %v6697 = vpop.f32.mrb[0].mxu0
      %v6698 = vadd.f32 0.0, %v6697
      %v6699 = vpop.f32.mrb[0].mxu0
      %6700 = vmatprep.mubr.f32.mxu0 0.0
      %6701 = vmatmul.mubr.f32.gmra.mrb[0].mxu0 %v6523
      %v6702 = vpop.f32.mrb[0].mxu0
      %v6703 = vadd.f32 0.0, %v6702
      %v6704 = vpop.f32.mrb[0].mxu0
      %6705 = vmatprep.mubr.f32.mxu0 0.0
      %6706 = vmatmul.mubr.f32.gmra.mrb[0].mxu0 %v6524
      %v6707 = vpop.f32.mrb[0].mxu0
      %v6708 = vadd.f32 0.0, %v6707
      %v6709 = vpop.f32.mrb[0].mxu0
      %6710 = vmatprep.mubr.f32.mxu0 0.0
      %6711 = vmatmul.mubr.f32.gmra.mrb[0].mxu0 %v6525
      %v6712 = vpop.f32.mrb[0].mxu0
      %v6713 = vadd.f32 0.0, %v6712
      %v6714 = vpop.f32.mrb[0].mxu0
      %6715 = vmatprep.mubr.f32.mxu0 0.0
      %6716 = vmatmul.mubr.f32.gmra.mrb[0].mxu0 %v6526
      %v6717 = vpop.f32.mrb[0].mxu0
      %v6718 = vadd.f32 0.0, %v6717
      %v6719 = vpop.f32.mrb[0].mxu0
      %6720 = vmatprep.mubr.f32.mxu0 0.0
      %6721 = vmatmul.mubr.f32.gmra.mrb[0].mxu0 %v6527
      %v6722 = vpop.f32.mrb[0].mxu0
      %v6723 = vadd.f32 0.0, %v6722
      %v6724 = vpop.f32.mrb[0].mxu0
      %6725 = vmatprep.mubr.f32.mxu0 0.0
      %6726 = vmatmul.mubr.f32.gmra.mrb[0].mxu0 %v6528
      %v6727 = vpop.f32.mrb[0].mxu0
      %v6728 = vadd.f32 0.0, %v6727
      %v6729 = vpop.f32.mrb[0].mxu0
      %6730 = vmatprep.mubr.f32.mxu0 0.0
      %6731 = vmatmul.mubr.f32.gmra.mrb[0].mxu0 %v6529
      %v6732 = vpop.f32.mrb[0].mxu0
      %v6733 = vadd.f32 0.0, %v6732
      %v6734 = vpop.f32.mrb[0].mxu0
      %6735 = vmatprep.mubr.f32.mxu0 0.0
      %6736 = vmatmul.mubr.f32.gmra.mrb[0].mxu0 %v6530
      %v6737 = vpop.f32.mrb[0].mxu0
      %v6738 = vadd.f32 0.0, %v6737
      %v6739 = vpop.f32.mrb[0].mxu0
      %6740 = vmatprep.mubr.f32.mxu0 0.0
      %6741 = vmatmul.mubr.f32.gmra.mrb[0].mxu0 %v6531
      %v6742 = vpop.f32.mrb[0].mxu0
      %v6743 = vadd.f32 0.0, %v6742
      %v6744 = vpop.f32.mrb[0].mxu0
      %6745 = vmatprep.mubr.f32.mxu0 0.0
      %6746 = vmatmul.mubr.f32.gmra.mrb[0].mxu0 %v6532
      %v6747 = vpop.f32.mrb[0].mxu0
      %v6748 = vadd.f32 0.0, %v6747
      %v6749 = vpop.f32.mrb[0].mxu0
      %6750 = vmatprep.mubr.f32.mxu0 0.0
      %6751 = vmatmul.mubr.f32.gmra.mrb[0].mxu0 %v6533
      %v6752 = vpop.f32.mrb[0].mxu0
      %v6753 = vadd.f32 0.0, %v6752
      %v6754 = vpop.f32.mrb[0].mxu0
      %6755 = vmatprep.mubr.f32.mxu0 0.0
      %6756 = vmatmul.mubr.f32.gmra.mrb[0].mxu0 %v6534
      %v6757 = vpop.f32.mrb[0].mxu0
      %v6758 = vadd.f32 0.0, %v6757
      %v6759 = vpop.f32.mrb[0].mxu0
      %6760 = vmatprep.mubr.f32.mxu0 0.0
      %6761 = vmatmul.mubr.f32.gmra.mrb[0].mxu0 %v6535
      %v6762 = vpop.f32.mrb[0].mxu0
      %v6763 = vadd.f32 0.0, %v6762
      %v6764 = vpop.f32.mrb[0].mxu0
      %6765 = vmatprep.mubr.f32.mxu0 0.0
      %6766 = vmatmul.mubr.f32.gmra.mrb[0].mxu0 %v6536
      %v6767 = vpop.f32.mrb[0].mxu0
      %v6768 = vadd.f32 0.0, %v6767
      %v6769 = vpop.f32.mrb[0].mxu0
      %6770 = vmatprep.mubr.f32.mxu0 0.0
      %6771 = vmatmul.mubr.f32.gmra.mrb[0].mxu0 %v6537
      %v6772 = vpop.f32.mrb[0].mxu0
      %v6773 = vadd.f32 0.0, %v6772
      %v6774 = vpop.f32.mrb[0].mxu0
      %6775 = vmatprep.mubr.f32.mxu0 0.0
      %6776 = vmatmul.mubr.f32.gmra.mrb[0].mxu0 %v6538
      %v6777 = vpop.f32.mrb[0].mxu0
      %v6778 = vadd.f32 0.0, %v6777
      %v6779 = vpop.f32.mrb[0].mxu0
      %6780 = vdwg.mxu0
      %v6781 = vadd.f32 %v6349, %v6623
      %v6782 = vadd.f32 %v6354, %v6628
      %v6783 = vadd.f32 %v6359, %v6633
      %v6784 = vadd.f32 %v6364, %v6638
      %v6785 = vadd.f32 %v6369, %v6643
      %v6786 = vadd.f32 %v6374, %v6648
      %v6787 = vadd.f32 %v6379, %v6653
      %v6788 = vadd.f32 %v6384, %v6658
      %v6789 = vadd.f32 %v6389, %v6663
      %v6790 = vadd.f32 %v6394, %v6668
      %v6791 = vadd.f32 %v6399, %v6673
      %v6792 = vadd.f32 %v6404, %v6678
      %v6793 = vadd.f32 %v6409, %v6683
      %v6794 = vadd.f32 %v6414, %v6688
      %v6795 = vadd.f32 %v6419, %v6693
      %v6796 = vadd.f32 %v6424, %v6698
      %v6797 = vadd.f32 %v6429, %v6703
      %v6798 = vadd.f32 %v6434, %v6708
      %v6799 = vadd.f32 %v6439, %v6713
      %v6800 = vadd.f32 %v6444, %v6718
      %v6801 = vadd.f32 %v6449, %v6723
      %v6802 = vadd.f32 %v6454, %v6728
      %v6803 = vadd.f32 %v6459, %v6733
      %v6804 = vadd.f32 %v6464, %v6738
      %v6805 = vadd.f32 %v6469, %v6743
      %v6806 = vadd.f32 %v6474, %v6748
      %v6807 = vadd.f32 %v6479, %v6753
      %v6808 = vadd.f32 %v6484, %v6758
      %v6809 = vadd.f32 %v6489, %v6763
      %v6810 = vadd.f32 %v6494, %v6768
      %v6811 = vadd.f32 %v6499, %v6773
      %v6812 = vadd.f32 %v6504, %v6778
      %v6813 = vld [vmem:[%s401 + $0x7] sm:$0xff]
      %v6814 = vld [vmem:[%s401 + $0xf] sm:$0xff]
      %v6815 = vld [vmem:[%s401 + $0x27] sm:$0xff]
      %v6816 = vld [vmem:[%s401 + $0x2f] sm:$0xff]
      %v6817 = vld [vmem:[%s401 + $0x47] sm:$0xff]
      %v6818 = vld [vmem:[%s401 + $0x4f] sm:$0xff]
      %v6819 = vld [vmem:[%s401 + $0x67] sm:$0xff]
      %v6820 = vld [vmem:[%s401 + $0x6f] sm:$0xff]
      %v6821 = vld [vmem:[%s401 + $0x87] sm:$0xff]
      %v6822 = vld [vmem:[%s401 + $0x8f] sm:$0xff]
      %v6823 = vld [vmem:[%s401 + $0xa7] sm:$0xff]
      %v6824 = vld [vmem:[%s401 + $0xaf] sm:$0xff]
      %v6825 = vld [vmem:[%s401 + $0xc7] sm:$0xff]
      %v6826 = vld [vmem:[%s401 + $0xcf] sm:$0xff]
      %v6827 = vld [vmem:[%s401 + $0xe7] sm:$0xff]
      %v6828 = vld [vmem:[%s401 + $0xef] sm:$0xff]
      %v6829 = vld [vmem:[%s401 + $0x107] sm:$0xff]
      %v6830 = vld [vmem:[%s401 + $0x10f] sm:$0xff]
      %v6831 = vld [vmem:[%s401 + $0x127] sm:$0xff]
      %v6832 = vld [vmem:[%s401 + $0x12f] sm:$0xff]
      %v6833 = vld [vmem:[%s401 + $0x147] sm:$0xff]
      %v6834 = vld [vmem:[%s401 + $0x14f] sm:$0xff]
      %v6835 = vld [vmem:[%s401 + $0x167] sm:$0xff]
      %v6836 = vld [vmem:[%s401 + $0x16f] sm:$0xff]
      %v6837 = vld [vmem:[%s401 + $0x187] sm:$0xff]
      %v6838 = vld [vmem:[%s401 + $0x18f] sm:$0xff]
      %v6839 = vld [vmem:[%s401 + $0x1a7] sm:$0xff]
      %v6840 = vld [vmem:[%s401 + $0x1af] sm:$0xff]
      %v6841 = vld [vmem:[%s401 + $0x1c7] sm:$0xff]
      %v6842 = vld [vmem:[%s401 + $0x1cf] sm:$0xff]
      %v6843 = vld [vmem:[%s401 + $0x1e7] sm:$0xff]
      %v6844 = vld [vmem:[%s401 + $0x1ef] sm:$0xff]
      %s6845 = scalar_lea.vmem %s1, 2688
      %v6846 = vld [vmem:[%s6845] sm:$0xff]
      %v6847 = vld [vmem:[%s6845 + $0x8] sm:$0xff]
      %v6848 = vld [vmem:[%s6845 + $0x10] sm:$0xff]
      %v6849 = vld [vmem:[%s6845 + $0x18] sm:$0xff]
      %v6850 = vld [vmem:[%s6845 + $0x20] sm:$0xff]
      %v6851 = vld [vmem:[%s6845 + $0x28] sm:$0xff]
      %v6852 = vld [vmem:[%s6845 + $0x30] sm:$0xff]
      %v6853 = vld [vmem:[%s6845 + $0x38] sm:$0xff]
      %v6854 = vld [vmem:[%s6845 + $0x40] sm:$0xff]
      %v6855 = vld [vmem:[%s6845 + $0x48] sm:$0xff]
      %v6856 = vld [vmem:[%s6845 + $0x50] sm:$0xff]
      %v6857 = vld [vmem:[%s6845 + $0x58] sm:$0xff]
      %v6858 = vld [vmem:[%s6845 + $0x60] sm:$0xff]
      %v6859 = vld [vmem:[%s6845 + $0x68] sm:$0xff]
      %v6860 = vld [vmem:[%s6845 + $0x70] sm:$0xff]
      %v6861 = vld [vmem:[%s6845 + $0x78] sm:$0xff]
      %6862 = vmatprep.subr.mxu0 0.0
      %6863 = vmatpush1.msra.mxu0 %v6846
      %6864 = vmatprep.subr.mxu0 0.0
      %6865 = vmatpush1.msra.mxu0 %v6847
      %6866 = vmatprep.subr.mxu0 0.0
      %6867 = vmatpush1.msra.mxu0 %v6848
      %6868 = vmatprep.subr.mxu0 0.0
      %6869 = vmatpush1.msra.mxu0 %v6849
      %6870 = vmatprep.subr.mxu0 0.0
      %6871 = vmatpush1.msra.mxu0 %v6850
      %6872 = vmatprep.subr.mxu0 0.0
      %6873 = vmatpush1.msra.mxu0 %v6851
      %6874 = vmatprep.subr.mxu0 0.0
      %6875 = vmatpush1.msra.mxu0 %v6852
      %6876 = vmatprep.subr.mxu0 0.0
      %6877 = vmatpush1.msra.mxu0 %v6853
      %6878 = vmatprep.subr.mxu0 0.0
      %6879 = vmatpush1.msra.mxu0 %v6854
      %6880 = vmatprep.subr.mxu0 0.0
      %6881 = vmatpush1.msra.mxu0 %v6855
      %6882 = vmatprep.subr.mxu0 0.0
      %6883 = vmatpush1.msra.mxu0 %v6856
      %6884 = vmatprep.subr.mxu0 0.0
      %6885 = vmatpush1.msra.mxu0 %v6857
      %6886 = vmatprep.subr.mxu0 0.0
      %6887 = vmatpush1.msra.mxu0 %v6858
      %6888 = vmatprep.subr.mxu0 0.0
      %6889 = vmatpush1.msra.mxu0 %v6859
      %6890 = vmatprep.subr.mxu0 0.0
      %6891 = vmatpush1.msra.mxu0 %v6860
      %6892 = vmatprep.subr.mxu0 0.0
      %6893 = vmatpush1.msra.mxu0 %v6861
      %6894 = vmatprep.subr.mxu0 0.0
      %6895 = vmatpush1.msra.mxu0 0.0
      %6896 = vmatprep.subr.mxu0 0.0
      %6897 = vmatpush1.msra.mxu0 0.0
      %6898 = vmatprep.subr.mxu0 0.0
      %6899 = vmatpush1.msra.mxu0 0.0
      %6900 = vmatprep.subr.mxu0 0.0
      %6901 = vmatpush1.msra.mxu0 0.0
      %6902 = vmatprep.subr.mxu0 0.0
      %6903 = vmatpush1.msra.mxu0 0.0
      %6904 = vmatprep.subr.mxu0 0.0
      %6905 = vmatpush1.msra.mxu0 0.0
      %6906 = vmatprep.subr.mxu0 0.0
      %6907 = vmatpush1.msra.mxu0 0.0
      %6908 = vmatprep.subr.mxu0 0.0
      %6909 = vmatpush1.msra.mxu0 0.0
      %6910 = vmatprep.subr.mxu0 0.0
      %6911 = vmatpush1.msra.mxu0 0.0
      %6912 = vmatprep.subr.mxu0 0.0
      %6913 = vmatpush1.msra.mxu0 0.0
      %6914 = vmatprep.subr.mxu0 0.0
      %6915 = vmatpush1.msra.mxu0 0.0
      %6916 = vmatprep.subr.mxu0 0.0
      %6917 = vmatpush1.msra.mxu0 0.0
      %6918 = vmatprep.subr.mxu0 0.0
      %6919 = vmatpush1.msra.mxu0 0.0
      %6920 = vmatprep.subr.mxu0 0.0
      %6921 = vmatpush1.msra.mxu0 0.0
      %6922 = vmatprep.subr.mxu0 0.0
      %6923 = vmatpush1.msra.mxu0 0.0
      %6924 = vmatprep.subr.mxu0 0.0
      %6925 = vmatpush1.msra.mxu0 0.0
      %6926 = vmatprep.mubr.f32.mxu0 0.0
      %6927 = vmatmul.mubr.f32.gmra.mrb[0].mxu0 %v6813
      %v6928 = vpop.f32.mrb[0].mxu0
      %v6929 = vadd.f32 0.0, %v6928
      %v6930 = vpop.f32.mrb[0].mxu0
      %6931 = vmatprep.mubr.f32.mxu0 0.0
      %6932 = vmatmul.mubr.f32.gmra.mrb[0].mxu0 %v6814
      %v6933 = vpop.f32.mrb[0].mxu0
      %v6934 = vadd.f32 0.0, %v6933
      %v6935 = vpop.f32.mrb[0].mxu0
      %6936 = vmatprep.mubr.f32.mxu0 0.0
      %6937 = vmatmul.mubr.f32.gmra.mrb[0].mxu0 %v6815
      %v6938 = vpop.f32.mrb[0].mxu0
      %v6939 = vadd.f32 0.0, %v6938
      %v6940 = vpop.f32.mrb[0].mxu0
      %6941 = vmatprep.mubr.f32.mxu0 0.0
      %6942 = vmatmul.mubr.f32.gmra.mrb[0].mxu0 %v6816
      %v6943 = vpop.f32.mrb[0].mxu0
      %v6944 = vadd.f32 0.0, %v6943
      %v6945 = vpop.f32.mrb[0].mxu0
      %6946 = vmatprep.mubr.f32.mxu0 0.0
      %6947 = vmatmul.mubr.f32.gmra.mrb[0].mxu0 %v6817
      %v6948 = vpop.f32.mrb[0].mxu0
      %v6949 = vadd.f32 0.0, %v6948
      %v6950 = vpop.f32.mrb[0].mxu0
      %6951 = vmatprep.mubr.f32.mxu0 0.0
      %6952 = vmatmul.mubr.f32.gmra.mrb[0].mxu0 %v6818
      %v6953 = vpop.f32.mrb[0].mxu0
      %v6954 = vadd.f32 0.0, %v6953
      %v6955 = vpop.f32.mrb[0].mxu0
      %6956 = vmatprep.mubr.f32.mxu0 0.0
      %6957 = vmatmul.mubr.f32.gmra.mrb[0].mxu0 %v6819
      %v6958 = vpop.f32.mrb[0].mxu0
      %v6959 = vadd.f32 0.0, %v6958
      %v6960 = vpop.f32.mrb[0].mxu0
      %6961 = vmatprep.mubr.f32.mxu0 0.0
      %6962 = vmatmul.mubr.f32.gmra.mrb[0].mxu0 %v6820
      %v6963 = vpop.f32.mrb[0].mxu0
      %v6964 = vadd.f32 0.0, %v6963
      %v6965 = vpop.f32.mrb[0].mxu0
      %6966 = vmatprep.mubr.f32.mxu0 0.0
      %6967 = vmatmul.mubr.f32.gmra.mrb[0].mxu0 %v6821
      %v6968 = vpop.f32.mrb[0].mxu0
      %v6969 = vadd.f32 0.0, %v6968
      %v6970 = vpop.f32.mrb[0].mxu0
      %6971 = vmatprep.mubr.f32.mxu0 0.0
      %6972 = vmatmul.mubr.f32.gmra.mrb[0].mxu0 %v6822
      %v6973 = vpop.f32.mrb[0].mxu0
      %v6974 = vadd.f32 0.0, %v6973
      %v6975 = vpop.f32.mrb[0].mxu0
      %6976 = vmatprep.mubr.f32.mxu0 0.0
      %6977 = vmatmul.mubr.f32.gmra.mrb[0].mxu0 %v6823
      %v6978 = vpop.f32.mrb[0].mxu0
      %v6979 = vadd.f32 0.0, %v6978
      %v6980 = vpop.f32.mrb[0].mxu0
      %6981 = vmatprep.mubr.f32.mxu0 0.0
      %6982 = vmatmul.mubr.f32.gmra.mrb[0].mxu0 %v6824
      %v6983 = vpop.f32.mrb[0].mxu0
      %v6984 = vadd.f32 0.0, %v6983
      %v6985 = vpop.f32.mrb[0].mxu0
      %6986 = vmatprep.mubr.f32.mxu0 0.0
      %6987 = vmatmul.mubr.f32.gmra.mrb[0].mxu0 %v6825
      %v6988 = vpop.f32.mrb[0].mxu0
      %v6989 = vadd.f32 0.0, %v6988
      %v6990 = vpop.f32.mrb[0].mxu0
      %6991 = vmatprep.mubr.f32.mxu0 0.0
      %6992 = vmatmul.mubr.f32.gmra.mrb[0].mxu0 %v6826
      %v6993 = vpop.f32.mrb[0].mxu0
      %v6994 = vadd.f32 0.0, %v6993
      %v6995 = vpop.f32.mrb[0].mxu0
      %6996 = vmatprep.mubr.f32.mxu0 0.0
      %6997 = vmatmul.mubr.f32.gmra.mrb[0].mxu0 %v6827
      %v6998 = vpop.f32.mrb[0].mxu0
      %v6999 = vadd.f32 0.0, %v6998
      %v7000 = vpop.f32.mrb[0].mxu0
      %7001 = vmatprep.mubr.f32.mxu0 0.0
      %7002 = vmatmul.mubr.f32.gmra.mrb[0].mxu0 %v6828
      %v7003 = vpop.f32.mrb[0].mxu0
      %v7004 = vadd.f32 0.0, %v7003
      %v7005 = vpop.f32.mrb[0].mxu0
      %7006 = vmatprep.mubr.f32.mxu0 0.0
      %7007 = vmatmul.mubr.f32.gmra.mrb[0].mxu0 %v6829
      %v7008 = vpop.f32.mrb[0].mxu0
      %v7009 = vadd.f32 0.0, %v7008
      %v7010 = vpop.f32.mrb[0].mxu0
      %7011 = vmatprep.mubr.f32.mxu0 0.0
      %7012 = vmatmul.mubr.f32.gmra.mrb[0].mxu0 %v6830
      %v7013 = vpop.f32.mrb[0].mxu0
      %v7014 = vadd.f32 0.0, %v7013
      %v7015 = vpop.f32.mrb[0].mxu0
      %7016 = vmatprep.mubr.f32.mxu0 0.0
      %7017 = vmatmul.mubr.f32.gmra.mrb[0].mxu0 %v6831
      %v7018 = vpop.f32.mrb[0].mxu0
      %v7019 = vadd.f32 0.0, %v7018
      %v7020 = vpop.f32.mrb[0].mxu0
      %7021 = vmatprep.mubr.f32.mxu0 0.0
      %7022 = vmatmul.mubr.f32.gmra.mrb[0].mxu0 %v6832
      %v7023 = vpop.f32.mrb[0].mxu0
      %v7024 = vadd.f32 0.0, %v7023
      %v7025 = vpop.f32.mrb[0].mxu0
      %7026 = vmatprep.mubr.f32.mxu0 0.0
      %7027 = vmatmul.mubr.f32.gmra.mrb[0].mxu0 %v6833
      %v7028 = vpop.f32.mrb[0].mxu0
      %v7029 = vadd.f32 0.0, %v7028
      %v7030 = vpop.f32.mrb[0].mxu0
      %7031 = vmatprep.mubr.f32.mxu0 0.0
      %7032 = vmatmul.mubr.f32.gmra.mrb[0].mxu0 %v6834
      %v7033 = vpop.f32.mrb[0].mxu0
      %v7034 = vadd.f32 0.0, %v7033
      %v7035 = vpop.f32.mrb[0].mxu0
      %7036 = vmatprep.mubr.f32.mxu0 0.0
      %7037 = vmatmul.mubr.f32.gmra.mrb[0].mxu0 %v6835
      %v7038 = vpop.f32.mrb[0].mxu0
      %v7039 = vadd.f32 0.0, %v7038
      %v7040 = vpop.f32.mrb[0].mxu0
      %7041 = vmatprep.mubr.f32.mxu0 0.0
      %7042 = vmatmul.mubr.f32.gmra.mrb[0].mxu0 %v6836
      %v7043 = vpop.f32.mrb[0].mxu0
      %v7044 = vadd.f32 0.0, %v7043
      %v7045 = vpop.f32.mrb[0].mxu0
      %7046 = vmatprep.mubr.f32.mxu0 0.0
      %7047 = vmatmul.mubr.f32.gmra.mrb[0].mxu0 %v6837
      %v7048 = vpop.f32.mrb[0].mxu0
      %v7049 = vadd.f32 0.0, %v7048
      %v7050 = vpop.f32.mrb[0].mxu0
      %7051 = vmatprep.mubr.f32.mxu0 0.0
      %7052 = vmatmul.mubr.f32.gmra.mrb[0].mxu0 %v6838
      %v7053 = vpop.f32.mrb[0].mxu0
      %v7054 = vadd.f32 0.0, %v7053
      %v7055 = vpop.f32.mrb[0].mxu0
      %7056 = vmatprep.mubr.f32.mxu0 0.0
      %7057 = vmatmul.mubr.f32.gmra.mrb[0].mxu0 %v6839
      %v7058 = vpop.f32.mrb[0].mxu0
      %v7059 = vadd.f32 0.0, %v7058
      %v7060 = vpop.f32.mrb[0].mxu0
      %7061 = vmatprep.mubr.f32.mxu0 0.0
      %7062 = vmatmul.mubr.f32.gmra.mrb[0].mxu0 %v6840
      %v7063 = vpop.f32.mrb[0].mxu0
      %v7064 = vadd.f32 0.0, %v7063
      %v7065 = vpop.f32.mrb[0].mxu0
      %7066 = vmatprep.mubr.f32.mxu0 0.0
      %7067 = vmatmul.mubr.f32.gmra.mrb[0].mxu0 %v6841
      %v7068 = vpop.f32.mrb[0].mxu0
      %v7069 = vadd.f32 0.0, %v7068
      %v7070 = vpop.f32.mrb[0].mxu0
      %7071 = vmatprep.mubr.f32.mxu0 0.0
      %7072 = vmatmul.mubr.f32.gmra.mrb[0].mxu0 %v6842
      %v7073 = vpop.f32.mrb[0].mxu0
      %v7074 = vadd.f32 0.0, %v7073
      %v7075 = vpop.f32.mrb[0].mxu0
      %7076 = vmatprep.mubr.f32.mxu0 0.0
      %7077 = vmatmul.mubr.f32.gmra.mrb[0].mxu0 %v6843
      %v7078 = vpop.f32.mrb[0].mxu0
      %v7079 = vadd.f32 0.0, %v7078
      %v7080 = vpop.f32.mrb[0].mxu0
      %7081 = vmatprep.mubr.f32.mxu0 0.0
      %7082 = vmatmul.mubr.f32.gmra.mrb[0].mxu0 %v6844
      %v7083 = vpop.f32.mrb[0].mxu0
      %v7084 = vadd.f32 0.0, %v7083
      %v7085 = vpop.f32.mrb[0].mxu0
      %7086 = vdwg.mxu0
      %v7087 = vadd.f32 %v6781, %v6929
      %v7088 = vadd.f32 %v6782, %v6934
      %v7089 = vadd.f32 %v6783, %v6939
      %v7090 = vadd.f32 %v6784, %v6944
      %v7091 = vadd.f32 %v6785, %v6949
      %v7092 = vadd.f32 %v6786, %v6954
      %v7093 = vadd.f32 %v6787, %v6959
      %v7094 = vadd.f32 %v6788, %v6964
      %v7095 = vadd.f32 %v6789, %v6969
      %v7096 = vadd.f32 %v6790, %v6974
      %v7097 = vadd.f32 %v6791, %v6979
      %v7098 = vadd.f32 %v6792, %v6984
      %v7099 = vadd.f32 %v6793, %v6989
      %v7100 = vadd.f32 %v6794, %v6994
      %v7101 = vadd.f32 %v6795, %v6999
      %v7102 = vadd.f32 %v6796, %v7004
      %v7103 = vadd.f32 %v6797, %v7009
      %v7104 = vadd.f32 %v6798, %v7014
      %v7105 = vadd.f32 %v6799, %v7019
      %v7106 = vadd.f32 %v6800, %v7024
      %v7107 = vadd.f32 %v6801, %v7029
      %v7108 = vadd.f32 %v6802, %v7034
      %v7109 = vadd.f32 %v6803, %v7039
      %v7110 = vadd.f32 %v6804, %v7044
      %v7111 = vadd.f32 %v6805, %v7049
      %v7112 = vadd.f32 %v6806, %v7054
      %v7113 = vadd.f32 %v6807, %v7059
      %v7114 = vadd.f32 %v6808, %v7064
      %v7115 = vadd.f32 %v6809, %v7069
      %v7116 = vadd.f32 %v6810, %v7074
      %v7117 = vadd.f32 %v6811, %v7079
      %v7118 = vadd.f32 %v6812, %v7084
      %v7119 = vld [vmem:[%s401 + $0x8] sm:$0xff]
      %v7120 = vld [vmem:[%s401 + $0x10] sm:$0xff]
      %v7121 = vld [vmem:[%s401 + $0x28] sm:$0xff]
      %v7122 = vld [vmem:[%s401 + $0x30] sm:$0xff]
      %v7123 = vld [vmem:[%s401 + $0x48] sm:$0xff]
      %v7124 = vld [vmem:[%s401 + $0x50] sm:$0xff]
      %v7125 = vld [vmem:[%s401 + $0x68] sm:$0xff]
      %v7126 = vld [vmem:[%s401 + $0x70] sm:$0xff]
      %v7127 = vld [vmem:[%s401 + $0x88] sm:$0xff]
      %v7128 = vld [vmem:[%s401 + $0x90] sm:$0xff]
      %v7129 = vld [vmem:[%s401 + $0xa8] sm:$0xff]
      %v7130 = vld [vmem:[%s401 + $0xb0] sm:$0xff]
      %v7131 = vld [vmem:[%s401 + $0xc8] sm:$0xff]
      %v7132 = vld [vmem:[%s401 + $0xd0] sm:$0xff]
      %v7133 = vld [vmem:[%s401 + $0xe8] sm:$0xff]
      %v7134 = vld [vmem:[%s401 + $0xf0] sm:$0xff]
      %v7135 = vld [vmem:[%s401 + $0x108] sm:$0xff]
      %v7136 = vld [vmem:[%s401 + $0x110] sm:$0xff]
      %v7137 = vld [vmem:[%s401 + $0x128] sm:$0xff]
      %v7138 = vld [vmem:[%s401 + $0x130] sm:$0xff]
      %v7139 = vld [vmem:[%s401 + $0x148] sm:$0xff]
      %v7140 = vld [vmem:[%s401 + $0x150] sm:$0xff]
      %v7141 = vld [vmem:[%s401 + $0x168] sm:$0xff]
      %v7142 = vld [vmem:[%s401 + $0x170] sm:$0xff]
      %v7143 = vld [vmem:[%s401 + $0x188] sm:$0xff]
      %v7144 = vld [vmem:[%s401 + $0x190] sm:$0xff]
      %v7145 = vld [vmem:[%s401 + $0x1a8] sm:$0xff]
      %v7146 = vld [vmem:[%s401 + $0x1b0] sm:$0xff]
      %v7147 = vld [vmem:[%s401 + $0x1c8] sm:$0xff]
      %v7148 = vld [vmem:[%s401 + $0x1d0] sm:$0xff]
      %v7149 = vld [vmem:[%s401 + $0x1e8] sm:$0xff]
      %v7150 = vld [vmem:[%s401 + $0x1f0] sm:$0xff]
      %s7151 = scalar_lea.vmem %s1, 2816
      %v7152 = vld [vmem:[%s7151] sm:$0xff]
      %v7153 = vld [vmem:[%s7151 + $0x8] sm:$0xff]
      %v7154 = vld [vmem:[%s7151 + $0x10] sm:$0xff]
      %v7155 = vld [vmem:[%s7151 + $0x18] sm:$0xff]
      %v7156 = vld [vmem:[%s7151 + $0x20] sm:$0xff]
      %v7157 = vld [vmem:[%s7151 + $0x28] sm:$0xff]
      %v7158 = vld [vmem:[%s7151 + $0x30] sm:$0xff]
      %v7159 = vld [vmem:[%s7151 + $0x38] sm:$0xff]
      %v7160 = vld [vmem:[%s7151 + $0x40] sm:$0xff]
      %v7161 = vld [vmem:[%s7151 + $0x48] sm:$0xff]
      %v7162 = vld [vmem:[%s7151 + $0x50] sm:$0xff]
      %v7163 = vld [vmem:[%s7151 + $0x58] sm:$0xff]
      %v7164 = vld [vmem:[%s7151 + $0x60] sm:$0xff]
      %v7165 = vld [vmem:[%s7151 + $0x68] sm:$0xff]
      %v7166 = vld [vmem:[%s7151 + $0x70] sm:$0xff]
      %v7167 = vld [vmem:[%s7151 + $0x78] sm:$0xff]
      %7168 = vmatprep.subr.mxu0 0.0
      %7169 = vmatpush1.msra.mxu0 %v7152
      %7170 = vmatprep.subr.mxu0 0.0
      %7171 = vmatpush1.msra.mxu0 %v7153
      %7172 = vmatprep.subr.mxu0 0.0
      %7173 = vmatpush1.msra.mxu0 %v7154
      %7174 = vmatprep.subr.mxu0 0.0
      %7175 = vmatpush1.msra.mxu0 %v7155
      %7176 = vmatprep.subr.mxu0 0.0
      %7177 = vmatpush1.msra.mxu0 %v7156
      %7178 = vmatprep.subr.mxu0 0.0
      %7179 = vmatpush1.msra.mxu0 %v7157
      %7180 = vmatprep.subr.mxu0 0.0
      %7181 = vmatpush1.msra.mxu0 %v7158
      %7182 = vmatprep.subr.mxu0 0.0
      %7183 = vmatpush1.msra.mxu0 %v7159
      %7184 = vmatprep.subr.mxu0 0.0
      %7185 = vmatpush1.msra.mxu0 %v7160
      %7186 = vmatprep.subr.mxu0 0.0
      %7187 = vmatpush1.msra.mxu0 %v7161
      %7188 = vmatprep.subr.mxu0 0.0
      %7189 = vmatpush1.msra.mxu0 %v7162
      %7190 = vmatprep.subr.mxu0 0.0
      %7191 = vmatpush1.msra.mxu0 %v7163
      %7192 = vmatprep.subr.mxu0 0.0
      %7193 = vmatpush1.msra.mxu0 %v7164
      %7194 = vmatprep.subr.mxu0 0.0
      %7195 = vmatpush1.msra.mxu0 %v7165
      %7196 = vmatprep.subr.mxu0 0.0
      %7197 = vmatpush1.msra.mxu0 %v7166
      %7198 = vmatprep.subr.mxu0 0.0
      %7199 = vmatpush1.msra.mxu0 %v7167
      %7200 = vmatprep.subr.mxu0 0.0
      %7201 = vmatpush1.msra.mxu0 0.0
      %7202 = vmatprep.subr.mxu0 0.0
      %7203 = vmatpush1.msra.mxu0 0.0
      %7204 = vmatprep.subr.mxu0 0.0
      %7205 = vmatpush1.msra.mxu0 0.0
      %7206 = vmatprep.subr.mxu0 0.0
      %7207 = vmatpush1.msra.mxu0 0.0
      %7208 = vmatprep.subr.mxu0 0.0
      %7209 = vmatpush1.msra.mxu0 0.0
      %7210 = vmatprep.subr.mxu0 0.0
      %7211 = vmatpush1.msra.mxu0 0.0
      %7212 = vmatprep.subr.mxu0 0.0
      %7213 = vmatpush1.msra.mxu0 0.0
      %7214 = vmatprep.subr.mxu0 0.0
      %7215 = vmatpush1.msra.mxu0 0.0
      %7216 = vmatprep.subr.mxu0 0.0
      %7217 = vmatpush1.msra.mxu0 0.0
      %7218 = vmatprep.subr.mxu0 0.0
      %7219 = vmatpush1.msra.mxu0 0.0
      %7220 = vmatprep.subr.mxu0 0.0
      %7221 = vmatpush1.msra.mxu0 0.0
      %7222 = vmatprep.subr.mxu0 0.0
      %7223 = vmatpush1.msra.mxu0 0.0
      %7224 = vmatprep.subr.mxu0 0.0
      %7225 = vmatpush1.msra.mxu0 0.0
      %7226 = vmatprep.subr.mxu0 0.0
      %7227 = vmatpush1.msra.mxu0 0.0
      %7228 = vmatprep.subr.mxu0 0.0
      %7229 = vmatpush1.msra.mxu0 0.0
      %7230 = vmatprep.subr.mxu0 0.0
      %7231 = vmatpush1.msra.mxu0 0.0
      %7232 = vmatprep.mubr.f32.mxu0 0.0
      %7233 = vmatmul.mubr.f32.gmra.mrb[0].mxu0 %v7119
      %v7234 = vpop.f32.mrb[0].mxu0
      %v7235 = vadd.f32 0.0, %v7234
      %v7236 = vpop.f32.mrb[0].mxu0
      %7237 = vmatprep.mubr.f32.mxu0 0.0
      %7238 = vmatmul.mubr.f32.gmra.mrb[0].mxu0 %v7120
      %v7239 = vpop.f32.mrb[0].mxu0
      %v7240 = vadd.f32 0.0, %v7239
      %v7241 = vpop.f32.mrb[0].mxu0
      %7242 = vmatprep.mubr.f32.mxu0 0.0
      %7243 = vmatmul.mubr.f32.gmra.mrb[0].mxu0 %v7121
      %v7244 = vpop.f32.mrb[0].mxu0
      %v7245 = vadd.f32 0.0, %v7244
      %v7246 = vpop.f32.mrb[0].mxu0
      %7247 = vmatprep.mubr.f32.mxu0 0.0
      %7248 = vmatmul.mubr.f32.gmra.mrb[0].mxu0 %v7122
      %v7249 = vpop.f32.mrb[0].mxu0
      %v7250 = vadd.f32 0.0, %v7249
      %v7251 = vpop.f32.mrb[0].mxu0
      %7252 = vmatprep.mubr.f32.mxu0 0.0
      %7253 = vmatmul.mubr.f32.gmra.mrb[0].mxu0 %v7123
      %v7254 = vpop.f32.mrb[0].mxu0
      %v7255 = vadd.f32 0.0, %v7254
      %v7256 = vpop.f32.mrb[0].mxu0
      %7257 = vmatprep.mubr.f32.mxu0 0.0
      %7258 = vmatmul.mubr.f32.gmra.mrb[0].mxu0 %v7124
      %v7259 = vpop.f32.mrb[0].mxu0
      %v7260 = vadd.f32 0.0, %v7259
      %v7261 = vpop.f32.mrb[0].mxu0
      %7262 = vmatprep.mubr.f32.mxu0 0.0
      %7263 = vmatmul.mubr.f32.gmra.mrb[0].mxu0 %v7125
      %v7264 = vpop.f32.mrb[0].mxu0
      %v7265 = vadd.f32 0.0, %v7264
      %v7266 = vpop.f32.mrb[0].mxu0
      %7267 = vmatprep.mubr.f32.mxu0 0.0
      %7268 = vmatmul.mubr.f32.gmra.mrb[0].mxu0 %v7126
      %v7269 = vpop.f32.mrb[0].mxu0
      %v7270 = vadd.f32 0.0, %v7269
      %v7271 = vpop.f32.mrb[0].mxu0
      %7272 = vmatprep.mubr.f32.mxu0 0.0
      %7273 = vmatmul.mubr.f32.gmra.mrb[0].mxu0 %v7127
      %v7274 = vpop.f32.mrb[0].mxu0
      %v7275 = vadd.f32 0.0, %v7274
      %v7276 = vpop.f32.mrb[0].mxu0
      %7277 = vmatprep.mubr.f32.mxu0 0.0
      %7278 = vmatmul.mubr.f32.gmra.mrb[0].mxu0 %v7128
      %v7279 = vpop.f32.mrb[0].mxu0
      %v7280 = vadd.f32 0.0, %v7279
      %v7281 = vpop.f32.mrb[0].mxu0
      %7282 = vmatprep.mubr.f32.mxu0 0.0
      %7283 = vmatmul.mubr.f32.gmra.mrb[0].mxu0 %v7129
      %v7284 = vpop.f32.mrb[0].mxu0
      %v7285 = vadd.f32 0.0, %v7284
      %v7286 = vpop.f32.mrb[0].mxu0
      %7287 = vmatprep.mubr.f32.mxu0 0.0
      %7288 = vmatmul.mubr.f32.gmra.mrb[0].mxu0 %v7130
      %v7289 = vpop.f32.mrb[0].mxu0
      %v7290 = vadd.f32 0.0, %v7289
      %v7291 = vpop.f32.mrb[0].mxu0
      %7292 = vmatprep.mubr.f32.mxu0 0.0
      %7293 = vmatmul.mubr.f32.gmra.mrb[0].mxu0 %v7131
      %v7294 = vpop.f32.mrb[0].mxu0
      %v7295 = vadd.f32 0.0, %v7294
      %v7296 = vpop.f32.mrb[0].mxu0
      %7297 = vmatprep.mubr.f32.mxu0 0.0
      %7298 = vmatmul.mubr.f32.gmra.mrb[0].mxu0 %v7132
      %v7299 = vpop.f32.mrb[0].mxu0
      %v7300 = vadd.f32 0.0, %v7299
      %v7301 = vpop.f32.mrb[0].mxu0
      %7302 = vmatprep.mubr.f32.mxu0 0.0
      %7303 = vmatmul.mubr.f32.gmra.mrb[0].mxu0 %v7133
      %v7304 = vpop.f32.mrb[0].mxu0
      %v7305 = vadd.f32 0.0, %v7304
      %v7306 = vpop.f32.mrb[0].mxu0
      %7307 = vmatprep.mubr.f32.mxu0 0.0
      %7308 = vmatmul.mubr.f32.gmra.mrb[0].mxu0 %v7134
      %v7309 = vpop.f32.mrb[0].mxu0
      %v7310 = vadd.f32 0.0, %v7309
      %v7311 = vpop.f32.mrb[0].mxu0
      %7312 = vmatprep.mubr.f32.mxu0 0.0
      %7313 = vmatmul.mubr.f32.gmra.mrb[0].mxu0 %v7135
      %v7314 = vpop.f32.mrb[0].mxu0
      %v7315 = vadd.f32 0.0, %v7314
      %v7316 = vpop.f32.mrb[0].mxu0
      %7317 = vmatprep.mubr.f32.mxu0 0.0
      %7318 = vmatmul.mubr.f32.gmra.mrb[0].mxu0 %v7136
      %v7319 = vpop.f32.mrb[0].mxu0
      %v7320 = vadd.f32 0.0, %v7319
      %v7321 = vpop.f32.mrb[0].mxu0
      %7322 = vmatprep.mubr.f32.mxu0 0.0
      %7323 = vmatmul.mubr.f32.gmra.mrb[0].mxu0 %v7137
      %v7324 = vpop.f32.mrb[0].mxu0
      %v7325 = vadd.f32 0.0, %v7324
      %v7326 = vpop.f32.mrb[0].mxu0
      %7327 = vmatprep.mubr.f32.mxu0 0.0
      %7328 = vmatmul.mubr.f32.gmra.mrb[0].mxu0 %v7138
      %v7329 = vpop.f32.mrb[0].mxu0
      %v7330 = vadd.f32 0.0, %v7329
      %v7331 = vpop.f32.mrb[0].mxu0
      %7332 = vmatprep.mubr.f32.mxu0 0.0
      %7333 = vmatmul.mubr.f32.gmra.mrb[0].mxu0 %v7139
      %v7334 = vpop.f32.mrb[0].mxu0
      %v7335 = vadd.f32 0.0, %v7334
      %v7336 = vpop.f32.mrb[0].mxu0
      %7337 = vmatprep.mubr.f32.mxu0 0.0
      %7338 = vmatmul.mubr.f32.gmra.mrb[0].mxu0 %v7140
      %v7339 = vpop.f32.mrb[0].mxu0
      %v7340 = vadd.f32 0.0, %v7339
      %v7341 = vpop.f32.mrb[0].mxu0
      %7342 = vmatprep.mubr.f32.mxu0 0.0
      %7343 = vmatmul.mubr.f32.gmra.mrb[0].mxu0 %v7141
      %v7344 = vpop.f32.mrb[0].mxu0
      %v7345 = vadd.f32 0.0, %v7344
      %v7346 = vpop.f32.mrb[0].mxu0
      %7347 = vmatprep.mubr.f32.mxu0 0.0
      %7348 = vmatmul.mubr.f32.gmra.mrb[0].mxu0 %v7142
      %v7349 = vpop.f32.mrb[0].mxu0
      %v7350 = vadd.f32 0.0, %v7349
      %v7351 = vpop.f32.mrb[0].mxu0
      %7352 = vmatprep.mubr.f32.mxu0 0.0
      %7353 = vmatmul.mubr.f32.gmra.mrb[0].mxu0 %v7143
      %v7354 = vpop.f32.mrb[0].mxu0
      %v7355 = vadd.f32 0.0, %v7354
      %v7356 = vpop.f32.mrb[0].mxu0
      %7357 = vmatprep.mubr.f32.mxu0 0.0
      %7358 = vmatmul.mubr.f32.gmra.mrb[0].mxu0 %v7144
      %v7359 = vpop.f32.mrb[0].mxu0
      %v7360 = vadd.f32 0.0, %v7359
      %v7361 = vpop.f32.mrb[0].mxu0
      %7362 = vmatprep.mubr.f32.mxu0 0.0
      %7363 = vmatmul.mubr.f32.gmra.mrb[0].mxu0 %v7145
      %v7364 = vpop.f32.mrb[0].mxu0
      %v7365 = vadd.f32 0.0, %v7364
      %v7366 = vpop.f32.mrb[0].mxu0
      %7367 = vmatprep.mubr.f32.mxu0 0.0
      %7368 = vmatmul.mubr.f32.gmra.mrb[0].mxu0 %v7146
      %v7369 = vpop.f32.mrb[0].mxu0
      %v7370 = vadd.f32 0.0, %v7369
      %v7371 = vpop.f32.mrb[0].mxu0
      %7372 = vmatprep.mubr.f32.mxu0 0.0
      %7373 = vmatmul.mubr.f32.gmra.mrb[0].mxu0 %v7147
      %v7374 = vpop.f32.mrb[0].mxu0
      %v7375 = vadd.f32 0.0, %v7374
      %v7376 = vpop.f32.mrb[0].mxu0
      %7377 = vmatprep.mubr.f32.mxu0 0.0
      %7378 = vmatmul.mubr.f32.gmra.mrb[0].mxu0 %v7148
      %v7379 = vpop.f32.mrb[0].mxu0
      %v7380 = vadd.f32 0.0, %v7379
      %v7381 = vpop.f32.mrb[0].mxu0
      %7382 = vmatprep.mubr.f32.mxu0 0.0
      %7383 = vmatmul.mubr.f32.gmra.mrb[0].mxu0 %v7149
      %v7384 = vpop.f32.mrb[0].mxu0
      %v7385 = vadd.f32 0.0, %v7384
      %v7386 = vpop.f32.mrb[0].mxu0
      %7387 = vmatprep.mubr.f32.mxu0 0.0
      %7388 = vmatmul.mubr.f32.gmra.mrb[0].mxu0 %v7150
      %v7389 = vpop.f32.mrb[0].mxu0
      %v7390 = vadd.f32 0.0, %v7389
      %v7391 = vpop.f32.mrb[0].mxu0
      %7392 = vdwg.mxu0
      %v7393 = vadd.f32 %v7087, %v7235
      %v7394 = vadd.f32 %v7088, %v7240
      %v7395 = vadd.f32 %v7089, %v7245
      %v7396 = vadd.f32 %v7090, %v7250
      %v7397 = vadd.f32 %v7091, %v7255
      %v7398 = vadd.f32 %v7092, %v7260
      %v7399 = vadd.f32 %v7093, %v7265
      %v7400 = vadd.f32 %v7094, %v7270
      %v7401 = vadd.f32 %v7095, %v7275
      %v7402 = vadd.f32 %v7096, %v7280
      %v7403 = vadd.f32 %v7097, %v7285
      %v7404 = vadd.f32 %v7098, %v7290
      %v7405 = vadd.f32 %v7099, %v7295
      %v7406 = vadd.f32 %v7100, %v7300
      %v7407 = vadd.f32 %v7101, %v7305
      %v7408 = vadd.f32 %v7102, %v7310
      %v7409 = vadd.f32 %v7103, %v7315
      %v7410 = vadd.f32 %v7104, %v7320
      %v7411 = vadd.f32 %v7105, %v7325
      %v7412 = vadd.f32 %v7106, %v7330
      %v7413 = vadd.f32 %v7107, %v7335
      %v7414 = vadd.f32 %v7108, %v7340
      %v7415 = vadd.f32 %v7109, %v7345
      %v7416 = vadd.f32 %v7110, %v7350
      %v7417 = vadd.f32 %v7111, %v7355
      %v7418 = vadd.f32 %v7112, %v7360
      %v7419 = vadd.f32 %v7113, %v7365
      %v7420 = vadd.f32 %v7114, %v7370
      %v7421 = vadd.f32 %v7115, %v7375
      %v7422 = vadd.f32 %v7116, %v7380
      %v7423 = vadd.f32 %v7117, %v7385
      %v7424 = vadd.f32 %v7118, %v7390
      %v7425 = vld [vmem:[%s401 + $0x9] sm:$0xff]
      %v7426 = vld [vmem:[%s401 + $0x11] sm:$0xff]
      %v7427 = vld [vmem:[%s401 + $0x29] sm:$0xff]
      %v7428 = vld [vmem:[%s401 + $0x31] sm:$0xff]
      %v7429 = vld [vmem:[%s401 + $0x49] sm:$0xff]
      %v7430 = vld [vmem:[%s401 + $0x51] sm:$0xff]
      %v7431 = vld [vmem:[%s401 + $0x69] sm:$0xff]
      %v7432 = vld [vmem:[%s401 + $0x71] sm:$0xff]
      %v7433 = vld [vmem:[%s401 + $0x89] sm:$0xff]
      %v7434 = vld [vmem:[%s401 + $0x91] sm:$0xff]
      %v7435 = vld [vmem:[%s401 + $0xa9] sm:$0xff]
      %v7436 = vld [vmem:[%s401 + $0xb1] sm:$0xff]
      %v7437 = vld [vmem:[%s401 + $0xc9] sm:$0xff]
      %v7438 = vld [vmem:[%s401 + $0xd1] sm:$0xff]
      %v7439 = vld [vmem:[%s401 + $0xe9] sm:$0xff]
      %v7440 = vld [vmem:[%s401 + $0xf1] sm:$0xff]
      %v7441 = vld [vmem:[%s401 + $0x109] sm:$0xff]
      %v7442 = vld [vmem:[%s401 + $0x111] sm:$0xff]
      %v7443 = vld [vmem:[%s401 + $0x129] sm:$0xff]
      %v7444 = vld [vmem:[%s401 + $0x131] sm:$0xff]
      %v7445 = vld [vmem:[%s401 + $0x149] sm:$0xff]
      %v7446 = vld [vmem:[%s401 + $0x151] sm:$0xff]
      %v7447 = vld [vmem:[%s401 + $0x169] sm:$0xff]
      %v7448 = vld [vmem:[%s401 + $0x171] sm:$0xff]
      %v7449 = vld [vmem:[%s401 + $0x189] sm:$0xff]
      %v7450 = vld [vmem:[%s401 + $0x191] sm:$0xff]
      %v7451 = vld [vmem:[%s401 + $0x1a9] sm:$0xff]
      %v7452 = vld [vmem:[%s401 + $0x1b1] sm:$0xff]
      %v7453 = vld [vmem:[%s401 + $0x1c9] sm:$0xff]
      %v7454 = vld [vmem:[%s401 + $0x1d1] sm:$0xff]
      %v7455 = vld [vmem:[%s401 + $0x1e9] sm:$0xff]
      %v7456 = vld [vmem:[%s401 + $0x1f1] sm:$0xff]
      %s7457 = scalar_lea.vmem %s1, 2944
      %v7458 = vld [vmem:[%s7457] sm:$0xff]
      %v7459 = vld [vmem:[%s7457 + $0x8] sm:$0xff]
      %v7460 = vld [vmem:[%s7457 + $0x10] sm:$0xff]
      %v7461 = vld [vmem:[%s7457 + $0x18] sm:$0xff]
      %v7462 = vld [vmem:[%s7457 + $0x20] sm:$0xff]
      %v7463 = vld [vmem:[%s7457 + $0x28] sm:$0xff]
      %v7464 = vld [vmem:[%s7457 + $0x30] sm:$0xff]
      %v7465 = vld [vmem:[%s7457 + $0x38] sm:$0xff]
      %v7466 = vld [vmem:[%s7457 + $0x40] sm:$0xff]
      %v7467 = vld [vmem:[%s7457 + $0x48] sm:$0xff]
      %v7468 = vld [vmem:[%s7457 + $0x50] sm:$0xff]
      %v7469 = vld [vmem:[%s7457 + $0x58] sm:$0xff]
      %v7470 = vld [vmem:[%s7457 + $0x60] sm:$0xff]
      %v7471 = vld [vmem:[%s7457 + $0x68] sm:$0xff]
      %v7472 = vld [vmem:[%s7457 + $0x70] sm:$0xff]
      %v7473 = vld [vmem:[%s7457 + $0x78] sm:$0xff]
      %7474 = vmatprep.subr.mxu0 0.0
      %7475 = vmatpush1.msra.mxu0 %v7458
      %7476 = vmatprep.subr.mxu0 0.0
      %7477 = vmatpush1.msra.mxu0 %v7459
      %7478 = vmatprep.subr.mxu0 0.0
      %7479 = vmatpush1.msra.mxu0 %v7460
      %7480 = vmatprep.subr.mxu0 0.0
      %7481 = vmatpush1.msra.mxu0 %v7461
      %7482 = vmatprep.subr.mxu0 0.0
      %7483 = vmatpush1.msra.mxu0 %v7462
      %7484 = vmatprep.subr.mxu0 0.0
      %7485 = vmatpush1.msra.mxu0 %v7463
      %7486 = vmatprep.subr.mxu0 0.0
      %7487 = vmatpush1.msra.mxu0 %v7464
      %7488 = vmatprep.subr.mxu0 0.0
      %7489 = vmatpush1.msra.mxu0 %v7465
      %7490 = vmatprep.subr.mxu0 0.0
      %7491 = vmatpush1.msra.mxu0 %v7466
      %7492 = vmatprep.subr.mxu0 0.0
      %7493 = vmatpush1.msra.mxu0 %v7467
      %7494 = vmatprep.subr.mxu0 0.0
      %7495 = vmatpush1.msra.mxu0 %v7468
      %7496 = vmatprep.subr.mxu0 0.0
      %7497 = vmatpush1.msra.mxu0 %v7469
      %7498 = vmatprep.subr.mxu0 0.0
      %7499 = vmatpush1.msra.mxu0 %v7470
      %7500 = vmatprep.subr.mxu0 0.0
      %7501 = vmatpush1.msra.mxu0 %v7471
      %7502 = vmatprep.subr.mxu0 0.0
      %7503 = vmatpush1.msra.mxu0 %v7472
      %7504 = vmatprep.subr.mxu0 0.0
      %7505 = vmatpush1.msra.mxu0 %v7473
      %7506 = vmatprep.subr.mxu0 0.0
      %7507 = vmatpush1.msra.mxu0 0.0
      %7508 = vmatprep.subr.mxu0 0.0
      %7509 = vmatpush1.msra.mxu0 0.0
      %7510 = vmatprep.subr.mxu0 0.0
      %7511 = vmatpush1.msra.mxu0 0.0
      %7512 = vmatprep.subr.mxu0 0.0
      %7513 = vmatpush1.msra.mxu0 0.0
      %7514 = vmatprep.subr.mxu0 0.0
      %7515 = vmatpush1.msra.mxu0 0.0
      %7516 = vmatprep.subr.mxu0 0.0
      %7517 = vmatpush1.msra.mxu0 0.0
      %7518 = vmatprep.subr.mxu0 0.0
      %7519 = vmatpush1.msra.mxu0 0.0
      %7520 = vmatprep.subr.mxu0 0.0
      %7521 = vmatpush1.msra.mxu0 0.0
      %7522 = vmatprep.subr.mxu0 0.0
      %7523 = vmatpush1.msra.mxu0 0.0
      %7524 = vmatprep.subr.mxu0 0.0
      %7525 = vmatpush1.msra.mxu0 0.0
      %7526 = vmatprep.subr.mxu0 0.0
      %7527 = vmatpush1.msra.mxu0 0.0
      %7528 = vmatprep.subr.mxu0 0.0
      %7529 = vmatpush1.msra.mxu0 0.0
      %7530 = vmatprep.subr.mxu0 0.0
      %7531 = vmatpush1.msra.mxu0 0.0
      %7532 = vmatprep.subr.mxu0 0.0
      %7533 = vmatpush1.msra.mxu0 0.0
      %7534 = vmatprep.subr.mxu0 0.0
      %7535 = vmatpush1.msra.mxu0 0.0
      %7536 = vmatprep.subr.mxu0 0.0
      %7537 = vmatpush1.msra.mxu0 0.0
      %7538 = vmatprep.mubr.f32.mxu0 0.0
      %7539 = vmatmul.mubr.f32.gmra.mrb[0].mxu0 %v7425
      %v7540 = vpop.f32.mrb[0].mxu0
      %v7541 = vadd.f32 0.0, %v7540
      %v7542 = vpop.f32.mrb[0].mxu0
      %7543 = vmatprep.mubr.f32.mxu0 0.0
      %7544 = vmatmul.mubr.f32.gmra.mrb[0].mxu0 %v7426
      %v7545 = vpop.f32.mrb[0].mxu0
      %v7546 = vadd.f32 0.0, %v7545
      %v7547 = vpop.f32.mrb[0].mxu0
      %7548 = vmatprep.mubr.f32.mxu0 0.0
      %7549 = vmatmul.mubr.f32.gmra.mrb[0].mxu0 %v7427
      %v7550 = vpop.f32.mrb[0].mxu0
      %v7551 = vadd.f32 0.0, %v7550
      %v7552 = vpop.f32.mrb[0].mxu0
      %7553 = vmatprep.mubr.f32.mxu0 0.0
      %7554 = vmatmul.mubr.f32.gmra.mrb[0].mxu0 %v7428
      %v7555 = vpop.f32.mrb[0].mxu0
      %v7556 = vadd.f32 0.0, %v7555
      %v7557 = vpop.f32.mrb[0].mxu0
      %7558 = vmatprep.mubr.f32.mxu0 0.0
      %7559 = vmatmul.mubr.f32.gmra.mrb[0].mxu0 %v7429
      %v7560 = vpop.f32.mrb[0].mxu0
      %v7561 = vadd.f32 0.0, %v7560
      %v7562 = vpop.f32.mrb[0].mxu0
      %7563 = vmatprep.mubr.f32.mxu0 0.0
      %7564 = vmatmul.mubr.f32.gmra.mrb[0].mxu0 %v7430
      %v7565 = vpop.f32.mrb[0].mxu0
      %v7566 = vadd.f32 0.0, %v7565
      %v7567 = vpop.f32.mrb[0].mxu0
      %7568 = vmatprep.mubr.f32.mxu0 0.0
      %7569 = vmatmul.mubr.f32.gmra.mrb[0].mxu0 %v7431
      %v7570 = vpop.f32.mrb[0].mxu0
      %v7571 = vadd.f32 0.0, %v7570
      %v7572 = vpop.f32.mrb[0].mxu0
      %7573 = vmatprep.mubr.f32.mxu0 0.0
      %7574 = vmatmul.mubr.f32.gmra.mrb[0].mxu0 %v7432
      %v7575 = vpop.f32.mrb[0].mxu0
      %v7576 = vadd.f32 0.0, %v7575
      %v7577 = vpop.f32.mrb[0].mxu0
      %7578 = vmatprep.mubr.f32.mxu0 0.0
      %7579 = vmatmul.mubr.f32.gmra.mrb[0].mxu0 %v7433
      %v7580 = vpop.f32.mrb[0].mxu0
      %v7581 = vadd.f32 0.0, %v7580
      %v7582 = vpop.f32.mrb[0].mxu0
      %7583 = vmatprep.mubr.f32.mxu0 0.0
      %7584 = vmatmul.mubr.f32.gmra.mrb[0].mxu0 %v7434
      %v7585 = vpop.f32.mrb[0].mxu0
      %v7586 = vadd.f32 0.0, %v7585
      %v7587 = vpop.f32.mrb[0].mxu0
      %7588 = vmatprep.mubr.f32.mxu0 0.0
      %7589 = vmatmul.mubr.f32.gmra.mrb[0].mxu0 %v7435
      %v7590 = vpop.f32.mrb[0].mxu0
      %v7591 = vadd.f32 0.0, %v7590
      %v7592 = vpop.f32.mrb[0].mxu0
      %7593 = vmatprep.mubr.f32.mxu0 0.0
      %7594 = vmatmul.mubr.f32.gmra.mrb[0].mxu0 %v7436
      %v7595 = vpop.f32.mrb[0].mxu0
      %v7596 = vadd.f32 0.0, %v7595
      %v7597 = vpop.f32.mrb[0].mxu0
      %7598 = vmatprep.mubr.f32.mxu0 0.0
      %7599 = vmatmul.mubr.f32.gmra.mrb[0].mxu0 %v7437
      %v7600 = vpop.f32.mrb[0].mxu0
      %v7601 = vadd.f32 0.0, %v7600
      %v7602 = vpop.f32.mrb[0].mxu0
      %7603 = vmatprep.mubr.f32.mxu0 0.0
      %7604 = vmatmul.mubr.f32.gmra.mrb[0].mxu0 %v7438
      %v7605 = vpop.f32.mrb[0].mxu0
      %v7606 = vadd.f32 0.0, %v7605
      %v7607 = vpop.f32.mrb[0].mxu0
      %7608 = vmatprep.mubr.f32.mxu0 0.0
      %7609 = vmatmul.mubr.f32.gmra.mrb[0].mxu0 %v7439
      %v7610 = vpop.f32.mrb[0].mxu0
      %v7611 = vadd.f32 0.0, %v7610
      %v7612 = vpop.f32.mrb[0].mxu0
      %7613 = vmatprep.mubr.f32.mxu0 0.0
      %7614 = vmatmul.mubr.f32.gmra.mrb[0].mxu0 %v7440
      %v7615 = vpop.f32.mrb[0].mxu0
      %v7616 = vadd.f32 0.0, %v7615
      %v7617 = vpop.f32.mrb[0].mxu0
      %7618 = vmatprep.mubr.f32.mxu0 0.0
      %7619 = vmatmul.mubr.f32.gmra.mrb[0].mxu0 %v7441
      %v7620 = vpop.f32.mrb[0].mxu0
      %v7621 = vadd.f32 0.0, %v7620
      %v7622 = vpop.f32.mrb[0].mxu0
      %7623 = vmatprep.mubr.f32.mxu0 0.0
      %7624 = vmatmul.mubr.f32.gmra.mrb[0].mxu0 %v7442
      %v7625 = vpop.f32.mrb[0].mxu0
      %v7626 = vadd.f32 0.0, %v7625
      %v7627 = vpop.f32.mrb[0].mxu0
      %7628 = vmatprep.mubr.f32.mxu0 0.0
      %7629 = vmatmul.mubr.f32.gmra.mrb[0].mxu0 %v7443
      %v7630 = vpop.f32.mrb[0].mxu0
      %v7631 = vadd.f32 0.0, %v7630
      %v7632 = vpop.f32.mrb[0].mxu0
      %7633 = vmatprep.mubr.f32.mxu0 0.0
      %7634 = vmatmul.mubr.f32.gmra.mrb[0].mxu0 %v7444
      %v7635 = vpop.f32.mrb[0].mxu0
      %v7636 = vadd.f32 0.0, %v7635
      %v7637 = vpop.f32.mrb[0].mxu0
      %7638 = vmatprep.mubr.f32.mxu0 0.0
      %7639 = vmatmul.mubr.f32.gmra.mrb[0].mxu0 %v7445
      %v7640 = vpop.f32.mrb[0].mxu0
      %v7641 = vadd.f32 0.0, %v7640
      %v7642 = vpop.f32.mrb[0].mxu0
      %7643 = vmatprep.mubr.f32.mxu0 0.0
      %7644 = vmatmul.mubr.f32.gmra.mrb[0].mxu0 %v7446
      %v7645 = vpop.f32.mrb[0].mxu0
      %v7646 = vadd.f32 0.0, %v7645
      %v7647 = vpop.f32.mrb[0].mxu0
      %7648 = vmatprep.mubr.f32.mxu0 0.0
      %7649 = vmatmul.mubr.f32.gmra.mrb[0].mxu0 %v7447
      %v7650 = vpop.f32.mrb[0].mxu0
      %v7651 = vadd.f32 0.0, %v7650
      %v7652 = vpop.f32.mrb[0].mxu0
      %7653 = vmatprep.mubr.f32.mxu0 0.0
      %7654 = vmatmul.mubr.f32.gmra.mrb[0].mxu0 %v7448
      %v7655 = vpop.f32.mrb[0].mxu0
      %v7656 = vadd.f32 0.0, %v7655
      %v7657 = vpop.f32.mrb[0].mxu0
      %7658 = vmatprep.mubr.f32.mxu0 0.0
      %7659 = vmatmul.mubr.f32.gmra.mrb[0].mxu0 %v7449
      %v7660 = vpop.f32.mrb[0].mxu0
      %v7661 = vadd.f32 0.0, %v7660
      %v7662 = vpop.f32.mrb[0].mxu0
      %7663 = vmatprep.mubr.f32.mxu0 0.0
      %7664 = vmatmul.mubr.f32.gmra.mrb[0].mxu0 %v7450
      %v7665 = vpop.f32.mrb[0].mxu0
      %v7666 = vadd.f32 0.0, %v7665
      %v7667 = vpop.f32.mrb[0].mxu0
      %7668 = vmatprep.mubr.f32.mxu0 0.0
      %7669 = vmatmul.mubr.f32.gmra.mrb[0].mxu0 %v7451
      %v7670 = vpop.f32.mrb[0].mxu0
      %v7671 = vadd.f32 0.0, %v7670
      %v7672 = vpop.f32.mrb[0].mxu0
      %7673 = vmatprep.mubr.f32.mxu0 0.0
      %7674 = vmatmul.mubr.f32.gmra.mrb[0].mxu0 %v7452
      %v7675 = vpop.f32.mrb[0].mxu0
      %v7676 = vadd.f32 0.0, %v7675
      %v7677 = vpop.f32.mrb[0].mxu0
      %7678 = vmatprep.mubr.f32.mxu0 0.0
      %7679 = vmatmul.mubr.f32.gmra.mrb[0].mxu0 %v7453
      %v7680 = vpop.f32.mrb[0].mxu0
      %v7681 = vadd.f32 0.0, %v7680
      %v7682 = vpop.f32.mrb[0].mxu0
      %7683 = vmatprep.mubr.f32.mxu0 0.0
      %7684 = vmatmul.mubr.f32.gmra.mrb[0].mxu0 %v7454
      %v7685 = vpop.f32.mrb[0].mxu0
      %v7686 = vadd.f32 0.0, %v7685
      %v7687 = vpop.f32.mrb[0].mxu0
      %7688 = vmatprep.mubr.f32.mxu0 0.0
      %7689 = vmatmul.mubr.f32.gmra.mrb[0].mxu0 %v7455
      %v7690 = vpop.f32.mrb[0].mxu0
      %v7691 = vadd.f32 0.0, %v7690
      %v7692 = vpop.f32.mrb[0].mxu0
      %7693 = vmatprep.mubr.f32.mxu0 0.0
      %7694 = vmatmul.mubr.f32.gmra.mrb[0].mxu0 %v7456
      %v7695 = vpop.f32.mrb[0].mxu0
      %v7696 = vadd.f32 0.0, %v7695
      %v7697 = vpop.f32.mrb[0].mxu0
      %7698 = vdwg.mxu0
      %v7699 = vadd.f32 %v7393, %v7541
      %v7700 = vadd.f32 %v7394, %v7546
      %v7701 = vadd.f32 %v7395, %v7551
      %v7702 = vadd.f32 %v7396, %v7556
      %v7703 = vadd.f32 %v7397, %v7561
      %v7704 = vadd.f32 %v7398, %v7566
      %v7705 = vadd.f32 %v7399, %v7571
      %v7706 = vadd.f32 %v7400, %v7576
      %v7707 = vadd.f32 %v7401, %v7581
      %v7708 = vadd.f32 %v7402, %v7586
      %v7709 = vadd.f32 %v7403, %v7591
      %v7710 = vadd.f32 %v7404, %v7596
      %v7711 = vadd.f32 %v7405, %v7601
      %v7712 = vadd.f32 %v7406, %v7606
      %v7713 = vadd.f32 %v7407, %v7611
      %v7714 = vadd.f32 %v7408, %v7616
      %v7715 = vadd.f32 %v7409, %v7621
      %v7716 = vadd.f32 %v7410, %v7626
      %v7717 = vadd.f32 %v7411, %v7631
      %v7718 = vadd.f32 %v7412, %v7636
      %v7719 = vadd.f32 %v7413, %v7641
      %v7720 = vadd.f32 %v7414, %v7646
      %v7721 = vadd.f32 %v7415, %v7651
      %v7722 = vadd.f32 %v7416, %v7656
      %v7723 = vadd.f32 %v7417, %v7661
      %v7724 = vadd.f32 %v7418, %v7666
      %v7725 = vadd.f32 %v7419, %v7671
      %v7726 = vadd.f32 %v7420, %v7676
      %v7727 = vadd.f32 %v7421, %v7681
      %v7728 = vadd.f32 %v7422, %v7686
      %v7729 = vadd.f32 %v7423, %v7691
      %v7730 = vadd.f32 %v7424, %v7696
      %v7731 = vld [vmem:[%s2205 + $0x7] sm:$0xff]
      %v7732 = vld [vmem:[%s2205 + $0xf] sm:$0xff]
      %v7733 = vld [vmem:[%s2205 + $0x27] sm:$0xff]
      %v7734 = vld [vmem:[%s2205 + $0x2f] sm:$0xff]
      %v7735 = vld [vmem:[%s2205 + $0x47] sm:$0xff]
      %v7736 = vld [vmem:[%s2205 + $0x4f] sm:$0xff]
      %v7737 = vld [vmem:[%s2205 + $0x67] sm:$0xff]
      %v7738 = vld [vmem:[%s2205 + $0x6f] sm:$0xff]
      %v7739 = vld [vmem:[%s2205 + $0x87] sm:$0xff]
      %v7740 = vld [vmem:[%s2205 + $0x8f] sm:$0xff]
      %v7741 = vld [vmem:[%s2205 + $0xa7] sm:$0xff]
      %v7742 = vld [vmem:[%s2205 + $0xaf] sm:$0xff]
      %v7743 = vld [vmem:[%s2205 + $0xc7] sm:$0xff]
      %v7744 = vld [vmem:[%s2205 + $0xcf] sm:$0xff]
      %v7745 = vld [vmem:[%s2205 + $0xe7] sm:$0xff]
      %v7746 = vld [vmem:[%s2205 + $0xef] sm:$0xff]
      %v7747 = vld [vmem:[%s2205 + $0x107] sm:$0xff]
      %v7748 = vld [vmem:[%s2205 + $0x10f] sm:$0xff]
      %v7749 = vld [vmem:[%s2205 + $0x127] sm:$0xff]
      %v7750 = vld [vmem:[%s2205 + $0x12f] sm:$0xff]
      %v7751 = vld [vmem:[%s2205 + $0x147] sm:$0xff]
      %v7752 = vld [vmem:[%s2205 + $0x14f] sm:$0xff]
      %v7753 = vld [vmem:[%s2205 + $0x167] sm:$0xff]
      %v7754 = vld [vmem:[%s2205 + $0x16f] sm:$0xff]
      %v7755 = vld [vmem:[%s2205 + $0x187] sm:$0xff]
      %v7756 = vld [vmem:[%s2205 + $0x18f] sm:$0xff]
      %v7757 = vld [vmem:[%s2205 + $0x1a7] sm:$0xff]
      %v7758 = vld [vmem:[%s2205 + $0x1af] sm:$0xff]
      %v7759 = vld [vmem:[%s2205 + $0x1c7] sm:$0xff]
      %v7760 = vld [vmem:[%s2205 + $0x1cf] sm:$0xff]
      %v7761 = vld [vmem:[%s2205 + $0x1e7] sm:$0xff]
      %v7762 = vld [vmem:[%s2205 + $0x1ef] sm:$0xff]
      %s7763 = scalar_lea.vmem %s1, 3072
      %v7764 = vld [vmem:[%s7763] sm:$0xff]
      %v7765 = vld [vmem:[%s7763 + $0x8] sm:$0xff]
      %v7766 = vld [vmem:[%s7763 + $0x10] sm:$0xff]
      %v7767 = vld [vmem:[%s7763 + $0x18] sm:$0xff]
      %v7768 = vld [vmem:[%s7763 + $0x20] sm:$0xff]
      %v7769 = vld [vmem:[%s7763 + $0x28] sm:$0xff]
      %v7770 = vld [vmem:[%s7763 + $0x30] sm:$0xff]
      %v7771 = vld [vmem:[%s7763 + $0x38] sm:$0xff]
      %v7772 = vld [vmem:[%s7763 + $0x40] sm:$0xff]
      %v7773 = vld [vmem:[%s7763 + $0x48] sm:$0xff]
      %v7774 = vld [vmem:[%s7763 + $0x50] sm:$0xff]
      %v7775 = vld [vmem:[%s7763 + $0x58] sm:$0xff]
      %v7776 = vld [vmem:[%s7763 + $0x60] sm:$0xff]
      %v7777 = vld [vmem:[%s7763 + $0x68] sm:$0xff]
      %v7778 = vld [vmem:[%s7763 + $0x70] sm:$0xff]
      %v7779 = vld [vmem:[%s7763 + $0x78] sm:$0xff]
      %7780 = vmatprep.subr.mxu0 0.0
      %7781 = vmatpush1.msra.mxu0 %v7764
      %7782 = vmatprep.subr.mxu0 0.0
      %7783 = vmatpush1.msra.mxu0 %v7765
      %7784 = vmatprep.subr.mxu0 0.0
      %7785 = vmatpush1.msra.mxu0 %v7766
      %7786 = vmatprep.subr.mxu0 0.0
      %7787 = vmatpush1.msra.mxu0 %v7767
      %7788 = vmatprep.subr.mxu0 0.0
      %7789 = vmatpush1.msra.mxu0 %v7768
      %7790 = vmatprep.subr.mxu0 0.0
      %7791 = vmatpush1.msra.mxu0 %v7769
      %7792 = vmatprep.subr.mxu0 0.0
      %7793 = vmatpush1.msra.mxu0 %v7770
      %7794 = vmatprep.subr.mxu0 0.0
      %7795 = vmatpush1.msra.mxu0 %v7771
      %7796 = vmatprep.subr.mxu0 0.0
      %7797 = vmatpush1.msra.mxu0 %v7772
      %7798 = vmatprep.subr.mxu0 0.0
      %7799 = vmatpush1.msra.mxu0 %v7773
      %7800 = vmatprep.subr.mxu0 0.0
      %7801 = vmatpush1.msra.mxu0 %v7774
      %7802 = vmatprep.subr.mxu0 0.0
      %7803 = vmatpush1.msra.mxu0 %v7775
      %7804 = vmatprep.subr.mxu0 0.0
      %7805 = vmatpush1.msra.mxu0 %v7776
      %7806 = vmatprep.subr.mxu0 0.0
      %7807 = vmatpush1.msra.mxu0 %v7777
      %7808 = vmatprep.subr.mxu0 0.0
      %7809 = vmatpush1.msra.mxu0 %v7778
      %7810 = vmatprep.subr.mxu0 0.0
      %7811 = vmatpush1.msra.mxu0 %v7779
      %7812 = vmatprep.subr.mxu0 0.0
      %7813 = vmatpush1.msra.mxu0 0.0
      %7814 = vmatprep.subr.mxu0 0.0
      %7815 = vmatpush1.msra.mxu0 0.0
      %7816 = vmatprep.subr.mxu0 0.0
      %7817 = vmatpush1.msra.mxu0 0.0
      %7818 = vmatprep.subr.mxu0 0.0
      %7819 = vmatpush1.msra.mxu0 0.0
      %7820 = vmatprep.subr.mxu0 0.0
      %7821 = vmatpush1.msra.mxu0 0.0
      %7822 = vmatprep.subr.mxu0 0.0
      %7823 = vmatpush1.msra.mxu0 0.0
      %7824 = vmatprep.subr.mxu0 0.0
      %7825 = vmatpush1.msra.mxu0 0.0
      %7826 = vmatprep.subr.mxu0 0.0
      %7827 = vmatpush1.msra.mxu0 0.0
      %7828 = vmatprep.subr.mxu0 0.0
      %7829 = vmatpush1.msra.mxu0 0.0
      %7830 = vmatprep.subr.mxu0 0.0
      %7831 = vmatpush1.msra.mxu0 0.0
      %7832 = vmatprep.subr.mxu0 0.0
      %7833 = vmatpush1.msra.mxu0 0.0
      %7834 = vmatprep.subr.mxu0 0.0
      %7835 = vmatpush1.msra.mxu0 0.0
      %7836 = vmatprep.subr.mxu0 0.0
      %7837 = vmatpush1.msra.mxu0 0.0
      %7838 = vmatprep.subr.mxu0 0.0
      %7839 = vmatpush1.msra.mxu0 0.0
      %7840 = vmatprep.subr.mxu0 0.0
      %7841 = vmatpush1.msra.mxu0 0.0
      %7842 = vmatprep.subr.mxu0 0.0
      %7843 = vmatpush1.msra.mxu0 0.0
      %7844 = vmatprep.mubr.f32.mxu0 0.0
      %7845 = vmatmul.mubr.f32.gmra.mrb[0].mxu0 %v7731
      %v7846 = vpop.f32.mrb[0].mxu0
      %v7847 = vadd.f32 0.0, %v7846
      %v7848 = vpop.f32.mrb[0].mxu0
      %7849 = vmatprep.mubr.f32.mxu0 0.0
      %7850 = vmatmul.mubr.f32.gmra.mrb[0].mxu0 %v7732
      %v7851 = vpop.f32.mrb[0].mxu0
      %v7852 = vadd.f32 0.0, %v7851
      %v7853 = vpop.f32.mrb[0].mxu0
      %7854 = vmatprep.mubr.f32.mxu0 0.0
      %7855 = vmatmul.mubr.f32.gmra.mrb[0].mxu0 %v7733
      %v7856 = vpop.f32.mrb[0].mxu0
      %v7857 = vadd.f32 0.0, %v7856
      %v7858 = vpop.f32.mrb[0].mxu0
      %7859 = vmatprep.mubr.f32.mxu0 0.0
      %7860 = vmatmul.mubr.f32.gmra.mrb[0].mxu0 %v7734
      %v7861 = vpop.f32.mrb[0].mxu0
      %v7862 = vadd.f32 0.0, %v7861
      %v7863 = vpop.f32.mrb[0].mxu0
      %7864 = vmatprep.mubr.f32.mxu0 0.0
      %7865 = vmatmul.mubr.f32.gmra.mrb[0].mxu0 %v7735
      %v7866 = vpop.f32.mrb[0].mxu0
      %v7867 = vadd.f32 0.0, %v7866
      %v7868 = vpop.f32.mrb[0].mxu0
      %7869 = vmatprep.mubr.f32.mxu0 0.0
      %7870 = vmatmul.mubr.f32.gmra.mrb[0].mxu0 %v7736
      %v7871 = vpop.f32.mrb[0].mxu0
      %v7872 = vadd.f32 0.0, %v7871
      %v7873 = vpop.f32.mrb[0].mxu0
      %7874 = vmatprep.mubr.f32.mxu0 0.0
      %7875 = vmatmul.mubr.f32.gmra.mrb[0].mxu0 %v7737
      %v7876 = vpop.f32.mrb[0].mxu0
      %v7877 = vadd.f32 0.0, %v7876
      %v7878 = vpop.f32.mrb[0].mxu0
      %7879 = vmatprep.mubr.f32.mxu0 0.0
      %7880 = vmatmul.mubr.f32.gmra.mrb[0].mxu0 %v7738
      %v7881 = vpop.f32.mrb[0].mxu0
      %v7882 = vadd.f32 0.0, %v7881
      %v7883 = vpop.f32.mrb[0].mxu0
      %7884 = vmatprep.mubr.f32.mxu0 0.0
      %7885 = vmatmul.mubr.f32.gmra.mrb[0].mxu0 %v7739
      %v7886 = vpop.f32.mrb[0].mxu0
      %v7887 = vadd.f32 0.0, %v7886
      %v7888 = vpop.f32.mrb[0].mxu0
      %7889 = vmatprep.mubr.f32.mxu0 0.0
      %7890 = vmatmul.mubr.f32.gmra.mrb[0].mxu0 %v7740
      %v7891 = vpop.f32.mrb[0].mxu0
      %v7892 = vadd.f32 0.0, %v7891
      %v7893 = vpop.f32.mrb[0].mxu0
      %7894 = vmatprep.mubr.f32.mxu0 0.0
      %7895 = vmatmul.mubr.f32.gmra.mrb[0].mxu0 %v7741
      %v7896 = vpop.f32.mrb[0].mxu0
      %v7897 = vadd.f32 0.0, %v7896
      %v7898 = vpop.f32.mrb[0].mxu0
      %7899 = vmatprep.mubr.f32.mxu0 0.0
      %7900 = vmatmul.mubr.f32.gmra.mrb[0].mxu0 %v7742
      %v7901 = vpop.f32.mrb[0].mxu0
      %v7902 = vadd.f32 0.0, %v7901
      %v7903 = vpop.f32.mrb[0].mxu0
      %7904 = vmatprep.mubr.f32.mxu0 0.0
      %7905 = vmatmul.mubr.f32.gmra.mrb[0].mxu0 %v7743
      %v7906 = vpop.f32.mrb[0].mxu0
      %v7907 = vadd.f32 0.0, %v7906
      %v7908 = vpop.f32.mrb[0].mxu0
      %7909 = vmatprep.mubr.f32.mxu0 0.0
      %7910 = vmatmul.mubr.f32.gmra.mrb[0].mxu0 %v7744
      %v7911 = vpop.f32.mrb[0].mxu0
      %v7912 = vadd.f32 0.0, %v7911
      %v7913 = vpop.f32.mrb[0].mxu0
      %7914 = vmatprep.mubr.f32.mxu0 0.0
      %7915 = vmatmul.mubr.f32.gmra.mrb[0].mxu0 %v7745
      %v7916 = vpop.f32.mrb[0].mxu0
      %v7917 = vadd.f32 0.0, %v7916
      %v7918 = vpop.f32.mrb[0].mxu0
      %7919 = vmatprep.mubr.f32.mxu0 0.0
      %7920 = vmatmul.mubr.f32.gmra.mrb[0].mxu0 %v7746
      %v7921 = vpop.f32.mrb[0].mxu0
      %v7922 = vadd.f32 0.0, %v7921
      %v7923 = vpop.f32.mrb[0].mxu0
      %7924 = vmatprep.mubr.f32.mxu0 0.0
      %7925 = vmatmul.mubr.f32.gmra.mrb[0].mxu0 %v7747
      %v7926 = vpop.f32.mrb[0].mxu0
      %v7927 = vadd.f32 0.0, %v7926
      %v7928 = vpop.f32.mrb[0].mxu0
      %7929 = vmatprep.mubr.f32.mxu0 0.0
      %7930 = vmatmul.mubr.f32.gmra.mrb[0].mxu0 %v7748
      %v7931 = vpop.f32.mrb[0].mxu0
      %v7932 = vadd.f32 0.0, %v7931
      %v7933 = vpop.f32.mrb[0].mxu0
      %7934 = vmatprep.mubr.f32.mxu0 0.0
      %7935 = vmatmul.mubr.f32.gmra.mrb[0].mxu0 %v7749
      %v7936 = vpop.f32.mrb[0].mxu0
      %v7937 = vadd.f32 0.0, %v7936
      %v7938 = vpop.f32.mrb[0].mxu0
      %7939 = vmatprep.mubr.f32.mxu0 0.0
      %7940 = vmatmul.mubr.f32.gmra.mrb[0].mxu0 %v7750
      %v7941 = vpop.f32.mrb[0].mxu0
      %v7942 = vadd.f32 0.0, %v7941
      %v7943 = vpop.f32.mrb[0].mxu0
      %7944 = vmatprep.mubr.f32.mxu0 0.0
      %7945 = vmatmul.mubr.f32.gmra.mrb[0].mxu0 %v7751
      %v7946 = vpop.f32.mrb[0].mxu0
      %v7947 = vadd.f32 0.0, %v7946
      %v7948 = vpop.f32.mrb[0].mxu0
      %7949 = vmatprep.mubr.f32.mxu0 0.0
      %7950 = vmatmul.mubr.f32.gmra.mrb[0].mxu0 %v7752
      %v7951 = vpop.f32.mrb[0].mxu0
      %v7952 = vadd.f32 0.0, %v7951
      %v7953 = vpop.f32.mrb[0].mxu0
      %7954 = vmatprep.mubr.f32.mxu0 0.0
      %7955 = vmatmul.mubr.f32.gmra.mrb[0].mxu0 %v7753
      %v7956 = vpop.f32.mrb[0].mxu0
      %v7957 = vadd.f32 0.0, %v7956
      %v7958 = vpop.f32.mrb[0].mxu0
      %7959 = vmatprep.mubr.f32.mxu0 0.0
      %7960 = vmatmul.mubr.f32.gmra.mrb[0].mxu0 %v7754
      %v7961 = vpop.f32.mrb[0].mxu0
      %v7962 = vadd.f32 0.0, %v7961
      %v7963 = vpop.f32.mrb[0].mxu0
      %7964 = vmatprep.mubr.f32.mxu0 0.0
      %7965 = vmatmul.mubr.f32.gmra.mrb[0].mxu0 %v7755
      %v7966 = vpop.f32.mrb[0].mxu0
      %v7967 = vadd.f32 0.0, %v7966
      %v7968 = vpop.f32.mrb[0].mxu0
      %7969 = vmatprep.mubr.f32.mxu0 0.0
      %7970 = vmatmul.mubr.f32.gmra.mrb[0].mxu0 %v7756
      %v7971 = vpop.f32.mrb[0].mxu0
      %v7972 = vadd.f32 0.0, %v7971
      %v7973 = vpop.f32.mrb[0].mxu0
      %7974 = vmatprep.mubr.f32.mxu0 0.0
      %7975 = vmatmul.mubr.f32.gmra.mrb[0].mxu0 %v7757
      %v7976 = vpop.f32.mrb[0].mxu0
      %v7977 = vadd.f32 0.0, %v7976
      %v7978 = vpop.f32.mrb[0].mxu0
      %7979 = vmatprep.mubr.f32.mxu0 0.0
      %7980 = vmatmul.mubr.f32.gmra.mrb[0].mxu0 %v7758
      %v7981 = vpop.f32.mrb[0].mxu0
      %v7982 = vadd.f32 0.0, %v7981
      %v7983 = vpop.f32.mrb[0].mxu0
      %7984 = vmatprep.mubr.f32.mxu0 0.0
      %7985 = vmatmul.mubr.f32.gmra.mrb[0].mxu0 %v7759
      %v7986 = vpop.f32.mrb[0].mxu0
      %v7987 = vadd.f32 0.0, %v7986
      %v7988 = vpop.f32.mrb[0].mxu0
      %7989 = vmatprep.mubr.f32.mxu0 0.0
      %7990 = vmatmul.mubr.f32.gmra.mrb[0].mxu0 %v7760
      %v7991 = vpop.f32.mrb[0].mxu0
      %v7992 = vadd.f32 0.0, %v7991
      %v7993 = vpop.f32.mrb[0].mxu0
      %7994 = vmatprep.mubr.f32.mxu0 0.0
      %7995 = vmatmul.mubr.f32.gmra.mrb[0].mxu0 %v7761
      %v7996 = vpop.f32.mrb[0].mxu0
      %v7997 = vadd.f32 0.0, %v7996
      %v7998 = vpop.f32.mrb[0].mxu0
      %7999 = vmatprep.mubr.f32.mxu0 0.0
      %8000 = vmatmul.mubr.f32.gmra.mrb[0].mxu0 %v7762
      %v8001 = vpop.f32.mrb[0].mxu0
      %v8002 = vadd.f32 0.0, %v8001
      %v8003 = vpop.f32.mrb[0].mxu0
      %8004 = vdwg.mxu0
      %v8005 = vadd.f32 %v7699, %v7847
      %v8006 = vadd.f32 %v7700, %v7852
      %v8007 = vadd.f32 %v7701, %v7857
      %v8008 = vadd.f32 %v7702, %v7862
      %v8009 = vadd.f32 %v7703, %v7867
      %v8010 = vadd.f32 %v7704, %v7872
      %v8011 = vadd.f32 %v7705, %v7877
      %v8012 = vadd.f32 %v7706, %v7882
      %v8013 = vadd.f32 %v7707, %v7887
      %v8014 = vadd.f32 %v7708, %v7892
      %v8015 = vadd.f32 %v7709, %v7897
      %v8016 = vadd.f32 %v7710, %v7902
      %v8017 = vadd.f32 %v7711, %v7907
      %v8018 = vadd.f32 %v7712, %v7912
      %v8019 = vadd.f32 %v7713, %v7917
      %v8020 = vadd.f32 %v7714, %v7922
      %v8021 = vadd.f32 %v7715, %v7927
      %v8022 = vadd.f32 %v7716, %v7932
      %v8023 = vadd.f32 %v7717, %v7937
      %v8024 = vadd.f32 %v7718, %v7942
      %v8025 = vadd.f32 %v7719, %v7947
      %v8026 = vadd.f32 %v7720, %v7952
      %v8027 = vadd.f32 %v7721, %v7957
      %v8028 = vadd.f32 %v7722, %v7962
      %v8029 = vadd.f32 %v7723, %v7967
      %v8030 = vadd.f32 %v7724, %v7972
      %v8031 = vadd.f32 %v7725, %v7977
      %v8032 = vadd.f32 %v7726, %v7982
      %v8033 = vadd.f32 %v7727, %v7987
      %v8034 = vadd.f32 %v7728, %v7992
      %v8035 = vadd.f32 %v7729, %v7997
      %v8036 = vadd.f32 %v7730, %v8002
      %v8037 = vld [vmem:[%s2205 + $0x8] sm:$0xff]
      %v8038 = vld [vmem:[%s2205 + $0x10] sm:$0xff]
      %v8039 = vld [vmem:[%s2205 + $0x28] sm:$0xff]
      %v8040 = vld [vmem:[%s2205 + $0x30] sm:$0xff]
      %v8041 = vld [vmem:[%s2205 + $0x48] sm:$0xff]
      %v8042 = vld [vmem:[%s2205 + $0x50] sm:$0xff]
      %v8043 = vld [vmem:[%s2205 + $0x68] sm:$0xff]
      %v8044 = vld [vmem:[%s2205 + $0x70] sm:$0xff]
      %v8045 = vld [vmem:[%s2205 + $0x88] sm:$0xff]
      %v8046 = vld [vmem:[%s2205 + $0x90] sm:$0xff]
      %v8047 = vld [vmem:[%s2205 + $0xa8] sm:$0xff]
      %v8048 = vld [vmem:[%s2205 + $0xb0] sm:$0xff]
      %v8049 = vld [vmem:[%s2205 + $0xc8] sm:$0xff]
      %v8050 = vld [vmem:[%s2205 + $0xd0] sm:$0xff]
      %v8051 = vld [vmem:[%s2205 + $0xe8] sm:$0xff]
      %v8052 = vld [vmem:[%s2205 + $0xf0] sm:$0xff]
      %v8053 = vld [vmem:[%s2205 + $0x108] sm:$0xff]
      %v8054 = vld [vmem:[%s2205 + $0x110] sm:$0xff]
      %v8055 = vld [vmem:[%s2205 + $0x128] sm:$0xff]
      %v8056 = vld [vmem:[%s2205 + $0x130] sm:$0xff]
      %v8057 = vld [vmem:[%s2205 + $0x148] sm:$0xff]
      %v8058 = vld [vmem:[%s2205 + $0x150] sm:$0xff]
      %v8059 = vld [vmem:[%s2205 + $0x168] sm:$0xff]
      %v8060 = vld [vmem:[%s2205 + $0x170] sm:$0xff]
      %v8061 = vld [vmem:[%s2205 + $0x188] sm:$0xff]
      %v8062 = vld [vmem:[%s2205 + $0x190] sm:$0xff]
      %v8063 = vld [vmem:[%s2205 + $0x1a8] sm:$0xff]
      %v8064 = vld [vmem:[%s2205 + $0x1b0] sm:$0xff]
      %v8065 = vld [vmem:[%s2205 + $0x1c8] sm:$0xff]
      %v8066 = vld [vmem:[%s2205 + $0x1d0] sm:$0xff]
      %v8067 = vld [vmem:[%s2205 + $0x1e8] sm:$0xff]
      %v8068 = vld [vmem:[%s2205 + $0x1f0] sm:$0xff]
      %s8069 = scalar_lea.vmem %s1, 3200
      %v8070 = vld [vmem:[%s8069] sm:$0xff]
      %v8071 = vld [vmem:[%s8069 + $0x8] sm:$0xff]
      %v8072 = vld [vmem:[%s8069 + $0x10] sm:$0xff]
      %v8073 = vld [vmem:[%s8069 + $0x18] sm:$0xff]
      %v8074 = vld [vmem:[%s8069 + $0x20] sm:$0xff]
      %v8075 = vld [vmem:[%s8069 + $0x28] sm:$0xff]
      %v8076 = vld [vmem:[%s8069 + $0x30] sm:$0xff]
      %v8077 = vld [vmem:[%s8069 + $0x38] sm:$0xff]
      %v8078 = vld [vmem:[%s8069 + $0x40] sm:$0xff]
      %v8079 = vld [vmem:[%s8069 + $0x48] sm:$0xff]
      %v8080 = vld [vmem:[%s8069 + $0x50] sm:$0xff]
      %v8081 = vld [vmem:[%s8069 + $0x58] sm:$0xff]
      %v8082 = vld [vmem:[%s8069 + $0x60] sm:$0xff]
      %v8083 = vld [vmem:[%s8069 + $0x68] sm:$0xff]
      %v8084 = vld [vmem:[%s8069 + $0x70] sm:$0xff]
      %v8085 = vld [vmem:[%s8069 + $0x78] sm:$0xff]
      %8086 = vmatprep.subr.mxu0 0.0
      %8087 = vmatpush1.msra.mxu0 %v8070
      %8088 = vmatprep.subr.mxu0 0.0
      %8089 = vmatpush1.msra.mxu0 %v8071
      %8090 = vmatprep.subr.mxu0 0.0
      %8091 = vmatpush1.msra.mxu0 %v8072
      %8092 = vmatprep.subr.mxu0 0.0
      %8093 = vmatpush1.msra.mxu0 %v8073
      %8094 = vmatprep.subr.mxu0 0.0
      %8095 = vmatpush1.msra.mxu0 %v8074
      %8096 = vmatprep.subr.mxu0 0.0
      %8097 = vmatpush1.msra.mxu0 %v8075
      %8098 = vmatprep.subr.mxu0 0.0
      %8099 = vmatpush1.msra.mxu0 %v8076
      %8100 = vmatprep.subr.mxu0 0.0
      %8101 = vmatpush1.msra.mxu0 %v8077
      %8102 = vmatprep.subr.mxu0 0.0
      %8103 = vmatpush1.msra.mxu0 %v8078
      %8104 = vmatprep.subr.mxu0 0.0
      %8105 = vmatpush1.msra.mxu0 %v8079
      %8106 = vmatprep.subr.mxu0 0.0
      %8107 = vmatpush1.msra.mxu0 %v8080
      %8108 = vmatprep.subr.mxu0 0.0
      %8109 = vmatpush1.msra.mxu0 %v8081
      %8110 = vmatprep.subr.mxu0 0.0
      %8111 = vmatpush1.msra.mxu0 %v8082
      %8112 = vmatprep.subr.mxu0 0.0
      %8113 = vmatpush1.msra.mxu0 %v8083
      %8114 = vmatprep.subr.mxu0 0.0
      %8115 = vmatpush1.msra.mxu0 %v8084
      %8116 = vmatprep.subr.mxu0 0.0
      %8117 = vmatpush1.msra.mxu0 %v8085
      %8118 = vmatprep.subr.mxu0 0.0
      %8119 = vmatpush1.msra.mxu0 0.0
      %8120 = vmatprep.subr.mxu0 0.0
      %8121 = vmatpush1.msra.mxu0 0.0
      %8122 = vmatprep.subr.mxu0 0.0
      %8123 = vmatpush1.msra.mxu0 0.0
      %8124 = vmatprep.subr.mxu0 0.0
      %8125 = vmatpush1.msra.mxu0 0.0
      %8126 = vmatprep.subr.mxu0 0.0
      %8127 = vmatpush1.msra.mxu0 0.0
      %8128 = vmatprep.subr.mxu0 0.0
      %8129 = vmatpush1.msra.mxu0 0.0
      %8130 = vmatprep.subr.mxu0 0.0
      %8131 = vmatpush1.msra.mxu0 0.0
      %8132 = vmatprep.subr.mxu0 0.0
      %8133 = vmatpush1.msra.mxu0 0.0
      %8134 = vmatprep.subr.mxu0 0.0
      %8135 = vmatpush1.msra.mxu0 0.0
      %8136 = vmatprep.subr.mxu0 0.0
      %8137 = vmatpush1.msra.mxu0 0.0
      %8138 = vmatprep.subr.mxu0 0.0
      %8139 = vmatpush1.msra.mxu0 0.0
      %8140 = vmatprep.subr.mxu0 0.0
      %8141 = vmatpush1.msra.mxu0 0.0
      %8142 = vmatprep.subr.mxu0 0.0
      %8143 = vmatpush1.msra.mxu0 0.0
      %8144 = vmatprep.subr.mxu0 0.0
      %8145 = vmatpush1.msra.mxu0 0.0
      %8146 = vmatprep.subr.mxu0 0.0
      %8147 = vmatpush1.msra.mxu0 0.0
      %8148 = vmatprep.subr.mxu0 0.0
      %8149 = vmatpush1.msra.mxu0 0.0
      %8150 = vmatprep.mubr.f32.mxu0 0.0
      %8151 = vmatmul.mubr.f32.gmra.mrb[0].mxu0 %v8037
      %v8152 = vpop.f32.mrb[0].mxu0
      %v8153 = vadd.f32 0.0, %v8152
      %v8154 = vpop.f32.mrb[0].mxu0
      %8155 = vmatprep.mubr.f32.mxu0 0.0
      %8156 = vmatmul.mubr.f32.gmra.mrb[0].mxu0 %v8038
      %v8157 = vpop.f32.mrb[0].mxu0
      %v8158 = vadd.f32 0.0, %v8157
      %v8159 = vpop.f32.mrb[0].mxu0
      %8160 = vmatprep.mubr.f32.mxu0 0.0
      %8161 = vmatmul.mubr.f32.gmra.mrb[0].mxu0 %v8039
      %v8162 = vpop.f32.mrb[0].mxu0
      %v8163 = vadd.f32 0.0, %v8162
      %v8164 = vpop.f32.mrb[0].mxu0
      %8165 = vmatprep.mubr.f32.mxu0 0.0
      %8166 = vmatmul.mubr.f32.gmra.mrb[0].mxu0 %v8040
      %v8167 = vpop.f32.mrb[0].mxu0
      %v8168 = vadd.f32 0.0, %v8167
      %v8169 = vpop.f32.mrb[0].mxu0
      %8170 = vmatprep.mubr.f32.mxu0 0.0
      %8171 = vmatmul.mubr.f32.gmra.mrb[0].mxu0 %v8041
      %v8172 = vpop.f32.mrb[0].mxu0
      %v8173 = vadd.f32 0.0, %v8172
      %v8174 = vpop.f32.mrb[0].mxu0
      %8175 = vmatprep.mubr.f32.mxu0 0.0
      %8176 = vmatmul.mubr.f32.gmra.mrb[0].mxu0 %v8042
      %v8177 = vpop.f32.mrb[0].mxu0
      %v8178 = vadd.f32 0.0, %v8177
      %v8179 = vpop.f32.mrb[0].mxu0
      %8180 = vmatprep.mubr.f32.mxu0 0.0
      %8181 = vmatmul.mubr.f32.gmra.mrb[0].mxu0 %v8043
      %v8182 = vpop.f32.mrb[0].mxu0
      %v8183 = vadd.f32 0.0, %v8182
      %v8184 = vpop.f32.mrb[0].mxu0
      %8185 = vmatprep.mubr.f32.mxu0 0.0
      %8186 = vmatmul.mubr.f32.gmra.mrb[0].mxu0 %v8044
      %v8187 = vpop.f32.mrb[0].mxu0
      %v8188 = vadd.f32 0.0, %v8187
      %v8189 = vpop.f32.mrb[0].mxu0
      %8190 = vmatprep.mubr.f32.mxu0 0.0
      %8191 = vmatmul.mubr.f32.gmra.mrb[0].mxu0 %v8045
      %v8192 = vpop.f32.mrb[0].mxu0
      %v8193 = vadd.f32 0.0, %v8192
      %v8194 = vpop.f32.mrb[0].mxu0
      %8195 = vmatprep.mubr.f32.mxu0 0.0
      %8196 = vmatmul.mubr.f32.gmra.mrb[0].mxu0 %v8046
      %v8197 = vpop.f32.mrb[0].mxu0
      %v8198 = vadd.f32 0.0, %v8197
      %v8199 = vpop.f32.mrb[0].mxu0
      %8200 = vmatprep.mubr.f32.mxu0 0.0
      %8201 = vmatmul.mubr.f32.gmra.mrb[0].mxu0 %v8047
      %v8202 = vpop.f32.mrb[0].mxu0
      %v8203 = vadd.f32 0.0, %v8202
      %v8204 = vpop.f32.mrb[0].mxu0
      %8205 = vmatprep.mubr.f32.mxu0 0.0
      %8206 = vmatmul.mubr.f32.gmra.mrb[0].mxu0 %v8048
      %v8207 = vpop.f32.mrb[0].mxu0
      %v8208 = vadd.f32 0.0, %v8207
      %v8209 = vpop.f32.mrb[0].mxu0
      %8210 = vmatprep.mubr.f32.mxu0 0.0
      %8211 = vmatmul.mubr.f32.gmra.mrb[0].mxu0 %v8049
      %v8212 = vpop.f32.mrb[0].mxu0
      %v8213 = vadd.f32 0.0, %v8212
      %v8214 = vpop.f32.mrb[0].mxu0
      %8215 = vmatprep.mubr.f32.mxu0 0.0
      %8216 = vmatmul.mubr.f32.gmra.mrb[0].mxu0 %v8050
      %v8217 = vpop.f32.mrb[0].mxu0
      %v8218 = vadd.f32 0.0, %v8217
      %v8219 = vpop.f32.mrb[0].mxu0
      %8220 = vmatprep.mubr.f32.mxu0 0.0
      %8221 = vmatmul.mubr.f32.gmra.mrb[0].mxu0 %v8051
      %v8222 = vpop.f32.mrb[0].mxu0
      %v8223 = vadd.f32 0.0, %v8222
      %v8224 = vpop.f32.mrb[0].mxu0
      %8225 = vmatprep.mubr.f32.mxu0 0.0
      %8226 = vmatmul.mubr.f32.gmra.mrb[0].mxu0 %v8052
      %v8227 = vpop.f32.mrb[0].mxu0
      %v8228 = vadd.f32 0.0, %v8227
      %v8229 = vpop.f32.mrb[0].mxu0
      %8230 = vmatprep.mubr.f32.mxu0 0.0
      %8231 = vmatmul.mubr.f32.gmra.mrb[0].mxu0 %v8053
      %v8232 = vpop.f32.mrb[0].mxu0
      %v8233 = vadd.f32 0.0, %v8232
      %v8234 = vpop.f32.mrb[0].mxu0
      %8235 = vmatprep.mubr.f32.mxu0 0.0
      %8236 = vmatmul.mubr.f32.gmra.mrb[0].mxu0 %v8054
      %v8237 = vpop.f32.mrb[0].mxu0
      %v8238 = vadd.f32 0.0, %v8237
      %v8239 = vpop.f32.mrb[0].mxu0
      %8240 = vmatprep.mubr.f32.mxu0 0.0
      %8241 = vmatmul.mubr.f32.gmra.mrb[0].mxu0 %v8055
      %v8242 = vpop.f32.mrb[0].mxu0
      %v8243 = vadd.f32 0.0, %v8242
      %v8244 = vpop.f32.mrb[0].mxu0
      %8245 = vmatprep.mubr.f32.mxu0 0.0
      %8246 = vmatmul.mubr.f32.gmra.mrb[0].mxu0 %v8056
      %v8247 = vpop.f32.mrb[0].mxu0
      %v8248 = vadd.f32 0.0, %v8247
      %v8249 = vpop.f32.mrb[0].mxu0
      %8250 = vmatprep.mubr.f32.mxu0 0.0
      %8251 = vmatmul.mubr.f32.gmra.mrb[0].mxu0 %v8057
      %v8252 = vpop.f32.mrb[0].mxu0
      %v8253 = vadd.f32 0.0, %v8252
      %v8254 = vpop.f32.mrb[0].mxu0
      %8255 = vmatprep.mubr.f32.mxu0 0.0
      %8256 = vmatmul.mubr.f32.gmra.mrb[0].mxu0 %v8058
      %v8257 = vpop.f32.mrb[0].mxu0
      %v8258 = vadd.f32 0.0, %v8257
      %v8259 = vpop.f32.mrb[0].mxu0
      %8260 = vmatprep.mubr.f32.mxu0 0.0
      %8261 = vmatmul.mubr.f32.gmra.mrb[0].mxu0 %v8059
      %v8262 = vpop.f32.mrb[0].mxu0
      %v8263 = vadd.f32 0.0, %v8262
      %v8264 = vpop.f32.mrb[0].mxu0
      %8265 = vmatprep.mubr.f32.mxu0 0.0
      %8266 = vmatmul.mubr.f32.gmra.mrb[0].mxu0 %v8060
      %v8267 = vpop.f32.mrb[0].mxu0
      %v8268 = vadd.f32 0.0, %v8267
      %v8269 = vpop.f32.mrb[0].mxu0
      %8270 = vmatprep.mubr.f32.mxu0 0.0
      %8271 = vmatmul.mubr.f32.gmra.mrb[0].mxu0 %v8061
      %v8272 = vpop.f32.mrb[0].mxu0
      %v8273 = vadd.f32 0.0, %v8272
      %v8274 = vpop.f32.mrb[0].mxu0
      %8275 = vmatprep.mubr.f32.mxu0 0.0
      %8276 = vmatmul.mubr.f32.gmra.mrb[0].mxu0 %v8062
      %v8277 = vpop.f32.mrb[0].mxu0
      %v8278 = vadd.f32 0.0, %v8277
      %v8279 = vpop.f32.mrb[0].mxu0
      %8280 = vmatprep.mubr.f32.mxu0 0.0
      %8281 = vmatmul.mubr.f32.gmra.mrb[0].mxu0 %v8063
      %v8282 = vpop.f32.mrb[0].mxu0
      %v8283 = vadd.f32 0.0, %v8282
      %v8284 = vpop.f32.mrb[0].mxu0
      %8285 = vmatprep.mubr.f32.mxu0 0.0
      %8286 = vmatmul.mubr.f32.gmra.mrb[0].mxu0 %v8064
      %v8287 = vpop.f32.mrb[0].mxu0
      %v8288 = vadd.f32 0.0, %v8287
      %v8289 = vpop.f32.mrb[0].mxu0
      %8290 = vmatprep.mubr.f32.mxu0 0.0
      %8291 = vmatmul.mubr.f32.gmra.mrb[0].mxu0 %v8065
      %v8292 = vpop.f32.mrb[0].mxu0
      %v8293 = vadd.f32 0.0, %v8292
      %v8294 = vpop.f32.mrb[0].mxu0
      %8295 = vmatprep.mubr.f32.mxu0 0.0
      %8296 = vmatmul.mubr.f32.gmra.mrb[0].mxu0 %v8066
      %v8297 = vpop.f32.mrb[0].mxu0
      %v8298 = vadd.f32 0.0, %v8297
      %v8299 = vpop.f32.mrb[0].mxu0
      %8300 = vmatprep.mubr.f32.mxu0 0.0
      %8301 = vmatmul.mubr.f32.gmra.mrb[0].mxu0 %v8067
      %v8302 = vpop.f32.mrb[0].mxu0
      %v8303 = vadd.f32 0.0, %v8302
      %v8304 = vpop.f32.mrb[0].mxu0
      %8305 = vmatprep.mubr.f32.mxu0 0.0
      %8306 = vmatmul.mubr.f32.gmra.mrb[0].mxu0 %v8068
      %v8307 = vpop.f32.mrb[0].mxu0
      %v8308 = vadd.f32 0.0, %v8307
      %v8309 = vpop.f32.mrb[0].mxu0
      %8310 = vdwg.mxu0
      %v8311 = vadd.f32 %v8005, %v8153
      %v8312 = vadd.f32 %v8006, %v8158
      %v8313 = vadd.f32 %v8007, %v8163
      %v8314 = vadd.f32 %v8008, %v8168
      %v8315 = vadd.f32 %v8009, %v8173
      %v8316 = vadd.f32 %v8010, %v8178
      %v8317 = vadd.f32 %v8011, %v8183
      %v8318 = vadd.f32 %v8012, %v8188
      %v8319 = vadd.f32 %v8013, %v8193
      %v8320 = vadd.f32 %v8014, %v8198
      %v8321 = vadd.f32 %v8015, %v8203
      %v8322 = vadd.f32 %v8016, %v8208
      %v8323 = vadd.f32 %v8017, %v8213
      %v8324 = vadd.f32 %v8018, %v8218
      %v8325 = vadd.f32 %v8019, %v8223
      %v8326 = vadd.f32 %v8020, %v8228
      %v8327 = vadd.f32 %v8021, %v8233
      %v8328 = vadd.f32 %v8022, %v8238
      %v8329 = vadd.f32 %v8023, %v8243
      %v8330 = vadd.f32 %v8024, %v8248
      %v8331 = vadd.f32 %v8025, %v8253
      %v8332 = vadd.f32 %v8026, %v8258
      %v8333 = vadd.f32 %v8027, %v8263
      %v8334 = vadd.f32 %v8028, %v8268
      %v8335 = vadd.f32 %v8029, %v8273
      %v8336 = vadd.f32 %v8030, %v8278
      %v8337 = vadd.f32 %v8031, %v8283
      %v8338 = vadd.f32 %v8032, %v8288
      %v8339 = vadd.f32 %v8033, %v8293
      %v8340 = vadd.f32 %v8034, %v8298
      %v8341 = vadd.f32 %v8035, %v8303
      %v8342 = vadd.f32 %v8036, %v8308
      %v8343 = vld [vmem:[%s2205 + $0x9] sm:$0xff]
      %v8344 = vld [vmem:[%s2205 + $0x11] sm:$0xff]
      %v8345 = vld [vmem:[%s2205 + $0x29] sm:$0xff]
      %v8346 = vld [vmem:[%s2205 + $0x31] sm:$0xff]
      %v8347 = vld [vmem:[%s2205 + $0x49] sm:$0xff]
      %v8348 = vld [vmem:[%s2205 + $0x51] sm:$0xff]
      %v8349 = vld [vmem:[%s2205 + $0x69] sm:$0xff]
      %v8350 = vld [vmem:[%s2205 + $0x71] sm:$0xff]
      %v8351 = vld [vmem:[%s2205 + $0x89] sm:$0xff]
      %v8352 = vld [vmem:[%s2205 + $0x91] sm:$0xff]
      %v8353 = vld [vmem:[%s2205 + $0xa9] sm:$0xff]
      %v8354 = vld [vmem:[%s2205 + $0xb1] sm:$0xff]
      %v8355 = vld [vmem:[%s2205 + $0xc9] sm:$0xff]
      %v8356 = vld [vmem:[%s2205 + $0xd1] sm:$0xff]
      %v8357 = vld [vmem:[%s2205 + $0xe9] sm:$0xff]
      %v8358 = vld [vmem:[%s2205 + $0xf1] sm:$0xff]
      %v8359 = vld [vmem:[%s2205 + $0x109] sm:$0xff]
      %v8360 = vld [vmem:[%s2205 + $0x111] sm:$0xff]
      %v8361 = vld [vmem:[%s2205 + $0x129] sm:$0xff]
      %v8362 = vld [vmem:[%s2205 + $0x131] sm:$0xff]
      %v8363 = vld [vmem:[%s2205 + $0x149] sm:$0xff]
      %v8364 = vld [vmem:[%s2205 + $0x151] sm:$0xff]
      %v8365 = vld [vmem:[%s2205 + $0x169] sm:$0xff]
      %v8366 = vld [vmem:[%s2205 + $0x171] sm:$0xff]
      %v8367 = vld [vmem:[%s2205 + $0x189] sm:$0xff]
      %v8368 = vld [vmem:[%s2205 + $0x191] sm:$0xff]
      %v8369 = vld [vmem:[%s2205 + $0x1a9] sm:$0xff]
      %v8370 = vld [vmem:[%s2205 + $0x1b1] sm:$0xff]
      %v8371 = vld [vmem:[%s2205 + $0x1c9] sm:$0xff]
      %v8372 = vld [vmem:[%s2205 + $0x1d1] sm:$0xff]
      %v8373 = vld [vmem:[%s2205 + $0x1e9] sm:$0xff]
      %v8374 = vld [vmem:[%s2205 + $0x1f1] sm:$0xff]
      %s8375 = scalar_lea.vmem %s1, 3328
      %v8376 = vld [vmem:[%s8375] sm:$0xff]
      %v8377 = vld [vmem:[%s8375 + $0x8] sm:$0xff]
      %v8378 = vld [vmem:[%s8375 + $0x10] sm:$0xff]
      %v8379 = vld [vmem:[%s8375 + $0x18] sm:$0xff]
      %v8380 = vld [vmem:[%s8375 + $0x20] sm:$0xff]
      %v8381 = vld [vmem:[%s8375 + $0x28] sm:$0xff]
      %v8382 = vld [vmem:[%s8375 + $0x30] sm:$0xff]
      %v8383 = vld [vmem:[%s8375 + $0x38] sm:$0xff]
      %v8384 = vld [vmem:[%s8375 + $0x40] sm:$0xff]
      %v8385 = vld [vmem:[%s8375 + $0x48] sm:$0xff]
      %v8386 = vld [vmem:[%s8375 + $0x50] sm:$0xff]
      %v8387 = vld [vmem:[%s8375 + $0x58] sm:$0xff]
      %v8388 = vld [vmem:[%s8375 + $0x60] sm:$0xff]
      %v8389 = vld [vmem:[%s8375 + $0x68] sm:$0xff]
      %v8390 = vld [vmem:[%s8375 + $0x70] sm:$0xff]
      %v8391 = vld [vmem:[%s8375 + $0x78] sm:$0xff]
      %8392 = vmatprep.subr.mxu0 0.0
      %8393 = vmatpush1.msra.mxu0 %v8376
      %8394 = vmatprep.subr.mxu0 0.0
      %8395 = vmatpush1.msra.mxu0 %v8377
      %8396 = vmatprep.subr.mxu0 0.0
      %8397 = vmatpush1.msra.mxu0 %v8378
      %8398 = vmatprep.subr.mxu0 0.0
      %8399 = vmatpush1.msra.mxu0 %v8379
      %8400 = vmatprep.subr.mxu0 0.0
      %8401 = vmatpush1.msra.mxu0 %v8380
      %8402 = vmatprep.subr.mxu0 0.0
      %8403 = vmatpush1.msra.mxu0 %v8381
      %8404 = vmatprep.subr.mxu0 0.0
      %8405 = vmatpush1.msra.mxu0 %v8382
      %8406 = vmatprep.subr.mxu0 0.0
      %8407 = vmatpush1.msra.mxu0 %v8383
      %8408 = vmatprep.subr.mxu0 0.0
      %8409 = vmatpush1.msra.mxu0 %v8384
      %8410 = vmatprep.subr.mxu0 0.0
      %8411 = vmatpush1.msra.mxu0 %v8385
      %8412 = vmatprep.subr.mxu0 0.0
      %8413 = vmatpush1.msra.mxu0 %v8386
      %8414 = vmatprep.subr.mxu0 0.0
      %8415 = vmatpush1.msra.mxu0 %v8387
      %8416 = vmatprep.subr.mxu0 0.0
      %8417 = vmatpush1.msra.mxu0 %v8388
      %8418 = vmatprep.subr.mxu0 0.0
      %8419 = vmatpush1.msra.mxu0 %v8389
      %8420 = vmatprep.subr.mxu0 0.0
      %8421 = vmatpush1.msra.mxu0 %v8390
      %8422 = vmatprep.subr.mxu0 0.0
      %8423 = vmatpush1.msra.mxu0 %v8391
      %8424 = vmatprep.subr.mxu0 0.0
      %8425 = vmatpush1.msra.mxu0 0.0
      %8426 = vmatprep.subr.mxu0 0.0
      %8427 = vmatpush1.msra.mxu0 0.0
      %8428 = vmatprep.subr.mxu0 0.0
      %8429 = vmatpush1.msra.mxu0 0.0
      %8430 = vmatprep.subr.mxu0 0.0
      %8431 = vmatpush1.msra.mxu0 0.0
      %8432 = vmatprep.subr.mxu0 0.0
      %8433 = vmatpush1.msra.mxu0 0.0
      %8434 = vmatprep.subr.mxu0 0.0
      %8435 = vmatpush1.msra.mxu0 0.0
      %8436 = vmatprep.subr.mxu0 0.0
      %8437 = vmatpush1.msra.mxu0 0.0
      %8438 = vmatprep.subr.mxu0 0.0
      %8439 = vmatpush1.msra.mxu0 0.0
      %8440 = vmatprep.subr.mxu0 0.0
      %8441 = vmatpush1.msra.mxu0 0.0
      %8442 = vmatprep.subr.mxu0 0.0
      %8443 = vmatpush1.msra.mxu0 0.0
      %8444 = vmatprep.subr.mxu0 0.0
      %8445 = vmatpush1.msra.mxu0 0.0
      %8446 = vmatprep.subr.mxu0 0.0
      %8447 = vmatpush1.msra.mxu0 0.0
      %8448 = vmatprep.subr.mxu0 0.0
      %8449 = vmatpush1.msra.mxu0 0.0
      %8450 = vmatprep.subr.mxu0 0.0
      %8451 = vmatpush1.msra.mxu0 0.0
      %8452 = vmatprep.subr.mxu0 0.0
      %8453 = vmatpush1.msra.mxu0 0.0
      %8454 = vmatprep.subr.mxu0 0.0
      %8455 = vmatpush1.msra.mxu0 0.0
      %8456 = vmatprep.mubr.f32.mxu0 0.0
      %8457 = vmatmul.mubr.f32.gmra.mrb[0].mxu0 %v8343
      %v8458 = vpop.f32.mrb[0].mxu0
      %v8459 = vadd.f32 0.0, %v8458
      %v8460 = vpop.f32.mrb[0].mxu0
      %8461 = vmatprep.mubr.f32.mxu0 0.0
      %8462 = vmatmul.mubr.f32.gmra.mrb[0].mxu0 %v8344
      %v8463 = vpop.f32.mrb[0].mxu0
      %v8464 = vadd.f32 0.0, %v8463
      %v8465 = vpop.f32.mrb[0].mxu0
      %8466 = vmatprep.mubr.f32.mxu0 0.0
      %8467 = vmatmul.mubr.f32.gmra.mrb[0].mxu0 %v8345
      %v8468 = vpop.f32.mrb[0].mxu0
      %v8469 = vadd.f32 0.0, %v8468
      %v8470 = vpop.f32.mrb[0].mxu0
      %8471 = vmatprep.mubr.f32.mxu0 0.0
      %8472 = vmatmul.mubr.f32.gmra.mrb[0].mxu0 %v8346
      %v8473 = vpop.f32.mrb[0].mxu0
      %v8474 = vadd.f32 0.0, %v8473
      %v8475 = vpop.f32.mrb[0].mxu0
      %8476 = vmatprep.mubr.f32.mxu0 0.0
      %8477 = vmatmul.mubr.f32.gmra.mrb[0].mxu0 %v8347
      %v8478 = vpop.f32.mrb[0].mxu0
      %v8479 = vadd.f32 0.0, %v8478
      %v8480 = vpop.f32.mrb[0].mxu0
      %8481 = vmatprep.mubr.f32.mxu0 0.0
      %8482 = vmatmul.mubr.f32.gmra.mrb[0].mxu0 %v8348
      %v8483 = vpop.f32.mrb[0].mxu0
      %v8484 = vadd.f32 0.0, %v8483
      %v8485 = vpop.f32.mrb[0].mxu0
      %8486 = vmatprep.mubr.f32.mxu0 0.0
      %8487 = vmatmul.mubr.f32.gmra.mrb[0].mxu0 %v8349
      %v8488 = vpop.f32.mrb[0].mxu0
      %v8489 = vadd.f32 0.0, %v8488
      %v8490 = vpop.f32.mrb[0].mxu0
      %8491 = vmatprep.mubr.f32.mxu0 0.0
      %8492 = vmatmul.mubr.f32.gmra.mrb[0].mxu0 %v8350
      %v8493 = vpop.f32.mrb[0].mxu0
      %v8494 = vadd.f32 0.0, %v8493
      %v8495 = vpop.f32.mrb[0].mxu0
      %8496 = vmatprep.mubr.f32.mxu0 0.0
      %8497 = vmatmul.mubr.f32.gmra.mrb[0].mxu0 %v8351
      %v8498 = vpop.f32.mrb[0].mxu0
      %v8499 = vadd.f32 0.0, %v8498
      %v8500 = vpop.f32.mrb[0].mxu0
      %8501 = vmatprep.mubr.f32.mxu0 0.0
      %8502 = vmatmul.mubr.f32.gmra.mrb[0].mxu0 %v8352
      %v8503 = vpop.f32.mrb[0].mxu0
      %v8504 = vadd.f32 0.0, %v8503
      %v8505 = vpop.f32.mrb[0].mxu0
      %8506 = vmatprep.mubr.f32.mxu0 0.0
      %8507 = vmatmul.mubr.f32.gmra.mrb[0].mxu0 %v8353
      %v8508 = vpop.f32.mrb[0].mxu0
      %v8509 = vadd.f32 0.0, %v8508
      %v8510 = vpop.f32.mrb[0].mxu0
      %8511 = vmatprep.mubr.f32.mxu0 0.0
      %8512 = vmatmul.mubr.f32.gmra.mrb[0].mxu0 %v8354
      %v8513 = vpop.f32.mrb[0].mxu0
      %v8514 = vadd.f32 0.0, %v8513
      %v8515 = vpop.f32.mrb[0].mxu0
      %8516 = vmatprep.mubr.f32.mxu0 0.0
      %8517 = vmatmul.mubr.f32.gmra.mrb[0].mxu0 %v8355
      %v8518 = vpop.f32.mrb[0].mxu0
      %v8519 = vadd.f32 0.0, %v8518
      %v8520 = vpop.f32.mrb[0].mxu0
      %8521 = vmatprep.mubr.f32.mxu0 0.0
      %8522 = vmatmul.mubr.f32.gmra.mrb[0].mxu0 %v8356
      %v8523 = vpop.f32.mrb[0].mxu0
      %v8524 = vadd.f32 0.0, %v8523
      %v8525 = vpop.f32.mrb[0].mxu0
      %8526 = vmatprep.mubr.f32.mxu0 0.0
      %8527 = vmatmul.mubr.f32.gmra.mrb[0].mxu0 %v8357
      %v8528 = vpop.f32.mrb[0].mxu0
      %v8529 = vadd.f32 0.0, %v8528
      %v8530 = vpop.f32.mrb[0].mxu0
      %8531 = vmatprep.mubr.f32.mxu0 0.0
      %8532 = vmatmul.mubr.f32.gmra.mrb[0].mxu0 %v8358
      %v8533 = vpop.f32.mrb[0].mxu0
      %v8534 = vadd.f32 0.0, %v8533
      %v8535 = vpop.f32.mrb[0].mxu0
      %8536 = vmatprep.mubr.f32.mxu0 0.0
      %8537 = vmatmul.mubr.f32.gmra.mrb[0].mxu0 %v8359
      %v8538 = vpop.f32.mrb[0].mxu0
      %v8539 = vadd.f32 0.0, %v8538
      %v8540 = vpop.f32.mrb[0].mxu0
      %8541 = vmatprep.mubr.f32.mxu0 0.0
      %8542 = vmatmul.mubr.f32.gmra.mrb[0].mxu0 %v8360
      %v8543 = vpop.f32.mrb[0].mxu0
      %v8544 = vadd.f32 0.0, %v8543
      %v8545 = vpop.f32.mrb[0].mxu0
      %8546 = vmatprep.mubr.f32.mxu0 0.0
      %8547 = vmatmul.mubr.f32.gmra.mrb[0].mxu0 %v8361
      %v8548 = vpop.f32.mrb[0].mxu0
      %v8549 = vadd.f32 0.0, %v8548
      %v8550 = vpop.f32.mrb[0].mxu0
      %8551 = vmatprep.mubr.f32.mxu0 0.0
      %8552 = vmatmul.mubr.f32.gmra.mrb[0].mxu0 %v8362
      %v8553 = vpop.f32.mrb[0].mxu0
      %v8554 = vadd.f32 0.0, %v8553
      %v8555 = vpop.f32.mrb[0].mxu0
      %8556 = vmatprep.mubr.f32.mxu0 0.0
      %8557 = vmatmul.mubr.f32.gmra.mrb[0].mxu0 %v8363
      %v8558 = vpop.f32.mrb[0].mxu0
      %v8559 = vadd.f32 0.0, %v8558
      %v8560 = vpop.f32.mrb[0].mxu0
      %8561 = vmatprep.mubr.f32.mxu0 0.0
      %8562 = vmatmul.mubr.f32.gmra.mrb[0].mxu0 %v8364
      %v8563 = vpop.f32.mrb[0].mxu0
      %v8564 = vadd.f32 0.0, %v8563
      %v8565 = vpop.f32.mrb[0].mxu0
      %8566 = vmatprep.mubr.f32.mxu0 0.0
      %8567 = vmatmul.mubr.f32.gmra.mrb[0].mxu0 %v8365
      %v8568 = vpop.f32.mrb[0].mxu0
      %v8569 = vadd.f32 0.0, %v8568
      %v8570 = vpop.f32.mrb[0].mxu0
      %8571 = vmatprep.mubr.f32.mxu0 0.0
      %8572 = vmatmul.mubr.f32.gmra.mrb[0].mxu0 %v8366
      %v8573 = vpop.f32.mrb[0].mxu0
      %v8574 = vadd.f32 0.0, %v8573
      %v8575 = vpop.f32.mrb[0].mxu0
      %8576 = vmatprep.mubr.f32.mxu0 0.0
      %8577 = vmatmul.mubr.f32.gmra.mrb[0].mxu0 %v8367
      %v8578 = vpop.f32.mrb[0].mxu0
      %v8579 = vadd.f32 0.0, %v8578
      %v8580 = vpop.f32.mrb[0].mxu0
      %8581 = vmatprep.mubr.f32.mxu0 0.0
      %8582 = vmatmul.mubr.f32.gmra.mrb[0].mxu0 %v8368
      %v8583 = vpop.f32.mrb[0].mxu0
      %v8584 = vadd.f32 0.0, %v8583
      %v8585 = vpop.f32.mrb[0].mxu0
      %8586 = vmatprep.mubr.f32.mxu0 0.0
      %8587 = vmatmul.mubr.f32.gmra.mrb[0].mxu0 %v8369
      %v8588 = vpop.f32.mrb[0].mxu0
      %v8589 = vadd.f32 0.0, %v8588
      %v8590 = vpop.f32.mrb[0].mxu0
      %8591 = vmatprep.mubr.f32.mxu0 0.0
      %8592 = vmatmul.mubr.f32.gmra.mrb[0].mxu0 %v8370
      %v8593 = vpop.f32.mrb[0].mxu0
      %v8594 = vadd.f32 0.0, %v8593
      %v8595 = vpop.f32.mrb[0].mxu0
      %8596 = vmatprep.mubr.f32.mxu0 0.0
      %8597 = vmatmul.mubr.f32.gmra.mrb[0].mxu0 %v8371
      %v8598 = vpop.f32.mrb[0].mxu0
      %v8599 = vadd.f32 0.0, %v8598
      %v8600 = vpop.f32.mrb[0].mxu0
      %8601 = vmatprep.mubr.f32.mxu0 0.0
      %8602 = vmatmul.mubr.f32.gmra.mrb[0].mxu0 %v8372
      %v8603 = vpop.f32.mrb[0].mxu0
      %v8604 = vadd.f32 0.0, %v8603
      %v8605 = vpop.f32.mrb[0].mxu0
      %8606 = vmatprep.mubr.f32.mxu0 0.0
      %8607 = vmatmul.mubr.f32.gmra.mrb[0].mxu0 %v8373
      %v8608 = vpop.f32.mrb[0].mxu0
      %v8609 = vadd.f32 0.0, %v8608
      %v8610 = vpop.f32.mrb[0].mxu0
      %8611 = vmatprep.mubr.f32.mxu0 0.0
      %8612 = vmatmul.mubr.f32.gmra.mrb[0].mxu0 %v8374
      %v8613 = vpop.f32.mrb[0].mxu0
      %v8614 = vadd.f32 0.0, %v8613
      %v8615 = vpop.f32.mrb[0].mxu0
      %8616 = vdwg.mxu0
      %v8617 = vadd.f32 %v8311, %v8459
      %v8618 = vadd.f32 %v8312, %v8464
      %v8619 = vadd.f32 %v8313, %v8469
      %v8620 = vadd.f32 %v8314, %v8474
      %v8621 = vadd.f32 %v8315, %v8479
      %v8622 = vadd.f32 %v8316, %v8484
      %v8623 = vadd.f32 %v8317, %v8489
      %v8624 = vadd.f32 %v8318, %v8494
      %v8625 = vadd.f32 %v8319, %v8499
      %v8626 = vadd.f32 %v8320, %v8504
      %v8627 = vadd.f32 %v8321, %v8509
      %v8628 = vadd.f32 %v8322, %v8514
      %v8629 = vadd.f32 %v8323, %v8519
      %v8630 = vadd.f32 %v8324, %v8524
      %v8631 = vadd.f32 %v8325, %v8529
      %v8632 = vadd.f32 %v8326, %v8534
      %v8633 = vadd.f32 %v8327, %v8539
      %v8634 = vadd.f32 %v8328, %v8544
      %v8635 = vadd.f32 %v8329, %v8549
      %v8636 = vadd.f32 %v8330, %v8554
      %v8637 = vadd.f32 %v8331, %v8559
      %v8638 = vadd.f32 %v8332, %v8564
      %v8639 = vadd.f32 %v8333, %v8569
      %v8640 = vadd.f32 %v8334, %v8574
      %v8641 = vadd.f32 %v8335, %v8579
      %v8642 = vadd.f32 %v8336, %v8584
      %v8643 = vadd.f32 %v8337, %v8589
      %v8644 = vadd.f32 %v8338, %v8594
      %v8645 = vadd.f32 %v8339, %v8599
      %v8646 = vadd.f32 %v8340, %v8604
      %v8647 = vadd.f32 %v8341, %v8609
      %v8648 = vadd.f32 %v8342, %v8614
      %s8649 = scalar_lea.vmem %s2, 2
      %v8650 = vld [vmem:[%s8649] sm:$0x1]
      %v8652 = vlaneseq
      %v8653 = vshrl.u32 %v8652, 7
      %v8654 = vsub.s32 0, %v8653
      %v8655 = vrot.slane %v8650, %v8654
      %v8657 = vadd.f32 %v8617, %v8655
      %v8658 = vadd.f32 %v8618, %v8655
      %v8659 = vadd.f32 %v8619, %v8655
      %v8660 = vadd.f32 %v8620, %v8655
      %v8661 = vadd.f32 %v8621, %v8655
      %v8662 = vadd.f32 %v8622, %v8655
      %v8663 = vadd.f32 %v8623, %v8655
      %v8664 = vadd.f32 %v8624, %v8655
      %v8665 = vadd.f32 %v8625, %v8655
      %v8666 = vadd.f32 %v8626, %v8655
      %v8667 = vadd.f32 %v8627, %v8655
      %v8668 = vadd.f32 %v8628, %v8655
      %v8669 = vadd.f32 %v8629, %v8655
      %v8670 = vadd.f32 %v8630, %v8655
      %v8671 = vadd.f32 %v8631, %v8655
      %v8672 = vadd.f32 %v8632, %v8655
      %v8673 = vadd.f32 %v8633, %v8655
      %v8674 = vadd.f32 %v8634, %v8655
      %v8675 = vadd.f32 %v8635, %v8655
      %v8676 = vadd.f32 %v8636, %v8655
      %v8677 = vadd.f32 %v8637, %v8655
      %v8678 = vadd.f32 %v8638, %v8655
      %v8679 = vadd.f32 %v8639, %v8655
      %v8680 = vadd.f32 %v8640, %v8655
      %v8681 = vadd.f32 %v8641, %v8655
      %v8682 = vadd.f32 %v8642, %v8655
      %v8683 = vadd.f32 %v8643, %v8655
      %v8684 = vadd.f32 %v8644, %v8655
      %v8685 = vadd.f32 %v8645, %v8655
      %v8686 = vadd.f32 %v8646, %v8655
      %v8687 = vadd.f32 %v8647, %v8655
      %v8688 = vadd.f32 %v8648, %v8655
      %v8689 = vld [vmem:[%s3] sm:$0xff]
      %v8690 = vld [vmem:[%s3 + $0x8] sm:$0xff]
      %v8691 = vld [vmem:[%s3 + $0x10] sm:$0xff]
      %v8692 = vld [vmem:[%s3 + $0x18] sm:$0xff]
      %v8693 = vld [vmem:[%s3 + $0x20] sm:$0xff]
      %v8694 = vld [vmem:[%s3 + $0x28] sm:$0xff]
      %v8695 = vld [vmem:[%s3 + $0x30] sm:$0xff]
      %v8696 = vld [vmem:[%s3 + $0x38] sm:$0xff]
      %v8697 = vld [vmem:[%s3 + $0x40] sm:$0xff]
      %v8698 = vld [vmem:[%s3 + $0x48] sm:$0xff]
      %v8699 = vld [vmem:[%s3 + $0x50] sm:$0xff]
      %v8700 = vld [vmem:[%s3 + $0x58] sm:$0xff]
      %v8701 = vld [vmem:[%s3 + $0x60] sm:$0xff]
      %v8702 = vld [vmem:[%s3 + $0x68] sm:$0xff]
      %v8703 = vld [vmem:[%s3 + $0x70] sm:$0xff]
      %v8704 = vld [vmem:[%s3 + $0x78] sm:$0xff]
      %v8705 = vld [vmem:[%s4] sm:$0x1]
      %v8707 = vlaneseq
      %v8708 = vshrl.u32 %v8707, 7
      %v8709 = vsub.s32 0, %v8708
      %v8710 = vrot.slane %v8705, %v8709
      %8712 = vmatprep.subr.mxu0 0.0
      %8713 = vmatpush1.msra.mxu0 %v8689
      %8714 = vmatprep.subr.mxu0 0.0
      %8715 = vmatpush1.msra.mxu0 %v8690
      %8716 = vmatprep.subr.mxu0 0.0
      %8717 = vmatpush1.msra.mxu0 %v8691
      %8718 = vmatprep.subr.mxu0 0.0
      %8719 = vmatpush1.msra.mxu0 %v8692
      %8720 = vmatprep.subr.mxu0 0.0
      %8721 = vmatpush1.msra.mxu0 %v8693
      %8722 = vmatprep.subr.mxu0 0.0
      %8723 = vmatpush1.msra.mxu0 %v8694
      %8724 = vmatprep.subr.mxu0 0.0
      %8725 = vmatpush1.msra.mxu0 %v8695
      %8726 = vmatprep.subr.mxu0 0.0
      %8727 = vmatpush1.msra.mxu0 %v8696
      %8728 = vmatprep.subr.mxu0 0.0
      %8729 = vmatpush1.msra.mxu0 %v8697
      %8730 = vmatprep.subr.mxu0 0.0
      %8731 = vmatpush1.msra.mxu0 %v8698
      %8732 = vmatprep.subr.mxu0 0.0
      %8733 = vmatpush1.msra.mxu0 %v8699
      %8734 = vmatprep.subr.mxu0 0.0
      %8735 = vmatpush1.msra.mxu0 %v8700
      %8736 = vmatprep.subr.mxu0 0.0
      %8737 = vmatpush1.msra.mxu0 %v8701
      %8738 = vmatprep.subr.mxu0 0.0
      %8739 = vmatpush1.msra.mxu0 %v8702
      %8740 = vmatprep.subr.mxu0 0.0
      %8741 = vmatpush1.msra.mxu0 %v8703
      %8742 = vmatprep.subr.mxu0 0.0
      %8743 = vmatpush1.msra.mxu0 %v8704
      %8744 = vmatprep.subr.mxu0 0.0
      %8745 = vmatpush1.msra.mxu0 0.0
      %8746 = vmatprep.subr.mxu0 0.0
      %8747 = vmatpush1.msra.mxu0 0.0
      %8748 = vmatprep.subr.mxu0 0.0
      %8749 = vmatpush1.msra.mxu0 0.0
      %8750 = vmatprep.subr.mxu0 0.0
      %8751 = vmatpush1.msra.mxu0 0.0
      %8752 = vmatprep.subr.mxu0 0.0
      %8753 = vmatpush1.msra.mxu0 0.0
      %8754 = vmatprep.subr.mxu0 0.0
      %8755 = vmatpush1.msra.mxu0 0.0
      %8756 = vmatprep.subr.mxu0 0.0
      %8757 = vmatpush1.msra.mxu0 0.0
      %8758 = vmatprep.subr.mxu0 0.0
      %8759 = vmatpush1.msra.mxu0 0.0
      %8760 = vmatprep.subr.mxu0 0.0
      %8761 = vmatpush1.msra.mxu0 0.0
      %8762 = vmatprep.subr.mxu0 0.0
      %8763 = vmatpush1.msra.mxu0 0.0
      %8764 = vmatprep.subr.mxu0 0.0
      %8765 = vmatpush1.msra.mxu0 0.0
      %8766 = vmatprep.subr.mxu0 0.0
      %8767 = vmatpush1.msra.mxu0 0.0
      %8768 = vmatprep.subr.mxu0 0.0
      %8769 = vmatpush1.msra.mxu0 0.0
      %8770 = vmatprep.subr.mxu0 0.0
      %8771 = vmatpush1.msra.mxu0 0.0
      %8772 = vmatprep.subr.mxu0 0.0
      %8773 = vmatpush1.msra.mxu0 0.0
      %8774 = vmatprep.subr.mxu0 0.0
      %8775 = vmatpush1.msra.mxu0 0.0
      %8776 = vmatprep.mubr.f32.mxu0 0.0
      %8777 = vmatmul.mubr.f32.gmra.mrb[0].mxu0 %v8657
      %v8778 = vpop.f32.mrb[0].mxu0
      %v8779 = vadd.f32 %v8710, %v8778
      %v8780 = vpop.f32.mrb[0].mxu0
      %8781 = vmatprep.mubr.f32.mxu0 0.0
      %8782 = vmatmul.mubr.f32.gmra.mrb[0].mxu0 %v8658
      %v8783 = vpop.f32.mrb[0].mxu0
      %v8784 = vadd.f32 %v8710, %v8783
      %v8785 = vpop.f32.mrb[0].mxu0
      %8786 = vmatprep.mubr.f32.mxu0 0.0
      %8787 = vmatmul.mubr.f32.gmra.mrb[0].mxu0 %v8659
      %v8788 = vpop.f32.mrb[0].mxu0
      %v8789 = vadd.f32 %v8710, %v8788
      %v8790 = vpop.f32.mrb[0].mxu0
      %8791 = vmatprep.mubr.f32.mxu0 0.0
      %8792 = vmatmul.mubr.f32.gmra.mrb[0].mxu0 %v8660
      %v8793 = vpop.f32.mrb[0].mxu0
      %v8794 = vadd.f32 %v8710, %v8793
      %v8795 = vpop.f32.mrb[0].mxu0
      %8796 = vmatprep.mubr.f32.mxu0 0.0
      %8797 = vmatmul.mubr.f32.gmra.mrb[0].mxu0 %v8661
      %v8798 = vpop.f32.mrb[0].mxu0
      %v8799 = vadd.f32 %v8710, %v8798
      %v8800 = vpop.f32.mrb[0].mxu0
      %8801 = vmatprep.mubr.f32.mxu0 0.0
      %8802 = vmatmul.mubr.f32.gmra.mrb[0].mxu0 %v8662
      %v8803 = vpop.f32.mrb[0].mxu0
      %v8804 = vadd.f32 %v8710, %v8803
      %v8805 = vpop.f32.mrb[0].mxu0
      %8806 = vmatprep.mubr.f32.mxu0 0.0
      %8807 = vmatmul.mubr.f32.gmra.mrb[0].mxu0 %v8663
      %v8808 = vpop.f32.mrb[0].mxu0
      %v8809 = vadd.f32 %v8710, %v8808
      %v8810 = vpop.f32.mrb[0].mxu0
      %8811 = vmatprep.mubr.f32.mxu0 0.0
      %8812 = vmatmul.mubr.f32.gmra.mrb[0].mxu0 %v8664
      %v8813 = vpop.f32.mrb[0].mxu0
      %v8814 = vadd.f32 %v8710, %v8813
      %v8815 = vpop.f32.mrb[0].mxu0
      %8816 = vmatprep.mubr.f32.mxu0 0.0
      %8817 = vmatmul.mubr.f32.gmra.mrb[0].mxu0 %v8665
      %v8818 = vpop.f32.mrb[0].mxu0
      %v8819 = vadd.f32 %v8710, %v8818
      %v8820 = vpop.f32.mrb[0].mxu0
      %8821 = vmatprep.mubr.f32.mxu0 0.0
      %8822 = vmatmul.mubr.f32.gmra.mrb[0].mxu0 %v8666
      %v8823 = vpop.f32.mrb[0].mxu0
      %v8824 = vadd.f32 %v8710, %v8823
      %v8825 = vpop.f32.mrb[0].mxu0
      %8826 = vmatprep.mubr.f32.mxu0 0.0
      %8827 = vmatmul.mubr.f32.gmra.mrb[0].mxu0 %v8667
      %v8828 = vpop.f32.mrb[0].mxu0
      %v8829 = vadd.f32 %v8710, %v8828
      %v8830 = vpop.f32.mrb[0].mxu0
      %8831 = vmatprep.mubr.f32.mxu0 0.0
      %8832 = vmatmul.mubr.f32.gmra.mrb[0].mxu0 %v8668
      %v8833 = vpop.f32.mrb[0].mxu0
      %v8834 = vadd.f32 %v8710, %v8833
      %v8835 = vpop.f32.mrb[0].mxu0
      %8836 = vmatprep.mubr.f32.mxu0 0.0
      %8837 = vmatmul.mubr.f32.gmra.mrb[0].mxu0 %v8669
      %v8838 = vpop.f32.mrb[0].mxu0
      %v8839 = vadd.f32 %v8710, %v8838
      %v8840 = vpop.f32.mrb[0].mxu0
      %8841 = vmatprep.mubr.f32.mxu0 0.0
      %8842 = vmatmul.mubr.f32.gmra.mrb[0].mxu0 %v8670
      %v8843 = vpop.f32.mrb[0].mxu0
      %v8844 = vadd.f32 %v8710, %v8843
      %v8845 = vpop.f32.mrb[0].mxu0
      %8846 = vmatprep.mubr.f32.mxu0 0.0
      %8847 = vmatmul.mubr.f32.gmra.mrb[0].mxu0 %v8671
      %v8848 = vpop.f32.mrb[0].mxu0
      %v8849 = vadd.f32 %v8710, %v8848
      %v8850 = vpop.f32.mrb[0].mxu0
      %8851 = vmatprep.mubr.f32.mxu0 0.0
      %8852 = vmatmul.mubr.f32.gmra.mrb[0].mxu0 %v8672
      %v8853 = vpop.f32.mrb[0].mxu0
      %v8854 = vadd.f32 %v8710, %v8853
      %v8855 = vpop.f32.mrb[0].mxu0
      %8856 = vmatprep.mubr.f32.mxu0 0.0
      %8857 = vmatmul.mubr.f32.gmra.mrb[0].mxu0 %v8673
      %v8858 = vpop.f32.mrb[0].mxu0
      %v8859 = vadd.f32 %v8710, %v8858
      %v8860 = vpop.f32.mrb[0].mxu0
      %8861 = vmatprep.mubr.f32.mxu0 0.0
      %8862 = vmatmul.mubr.f32.gmra.mrb[0].mxu0 %v8674
      %v8863 = vpop.f32.mrb[0].mxu0
      %v8864 = vadd.f32 %v8710, %v8863
      %v8865 = vpop.f32.mrb[0].mxu0
      %8866 = vmatprep.mubr.f32.mxu0 0.0
      %8867 = vmatmul.mubr.f32.gmra.mrb[0].mxu0 %v8675
      %v8868 = vpop.f32.mrb[0].mxu0
      %v8869 = vadd.f32 %v8710, %v8868
      %v8870 = vpop.f32.mrb[0].mxu0
      %8871 = vmatprep.mubr.f32.mxu0 0.0
      %8872 = vmatmul.mubr.f32.gmra.mrb[0].mxu0 %v8676
      %v8873 = vpop.f32.mrb[0].mxu0
      %v8874 = vadd.f32 %v8710, %v8873
      %v8875 = vpop.f32.mrb[0].mxu0
      %8876 = vmatprep.mubr.f32.mxu0 0.0
      %8877 = vmatmul.mubr.f32.gmra.mrb[0].mxu0 %v8677
      %v8878 = vpop.f32.mrb[0].mxu0
      %v8879 = vadd.f32 %v8710, %v8878
      %v8880 = vpop.f32.mrb[0].mxu0
      %8881 = vmatprep.mubr.f32.mxu0 0.0
      %8882 = vmatmul.mubr.f32.gmra.mrb[0].mxu0 %v8678
      %v8883 = vpop.f32.mrb[0].mxu0
      %v8884 = vadd.f32 %v8710, %v8883
      %v8885 = vpop.f32.mrb[0].mxu0
      %8886 = vmatprep.mubr.f32.mxu0 0.0
      %8887 = vmatmul.mubr.f32.gmra.mrb[0].mxu0 %v8679
      %v8888 = vpop.f32.mrb[0].mxu0
      %v8889 = vadd.f32 %v8710, %v8888
      %v8890 = vpop.f32.mrb[0].mxu0
      %8891 = vmatprep.mubr.f32.mxu0 0.0
      %8892 = vmatmul.mubr.f32.gmra.mrb[0].mxu0 %v8680
      %v8893 = vpop.f32.mrb[0].mxu0
      %v8894 = vadd.f32 %v8710, %v8893
      %v8895 = vpop.f32.mrb[0].mxu0
      %8896 = vmatprep.mubr.f32.mxu0 0.0
      %8897 = vmatmul.mubr.f32.gmra.mrb[0].mxu0 %v8681
      %v8898 = vpop.f32.mrb[0].mxu0
      %v8899 = vadd.f32 %v8710, %v8898
      %v8900 = vpop.f32.mrb[0].mxu0
      %8901 = vmatprep.mubr.f32.mxu0 0.0
      %8902 = vmatmul.mubr.f32.gmra.mrb[0].mxu0 %v8682
      %v8903 = vpop.f32.mrb[0].mxu0
      %v8904 = vadd.f32 %v8710, %v8903
      %v8905 = vpop.f32.mrb[0].mxu0
      %8906 = vmatprep.mubr.f32.mxu0 0.0
      %8907 = vmatmul.mubr.f32.gmra.mrb[0].mxu0 %v8683
      %v8908 = vpop.f32.mrb[0].mxu0
      %v8909 = vadd.f32 %v8710, %v8908
      %v8910 = vpop.f32.mrb[0].mxu0
      %8911 = vmatprep.mubr.f32.mxu0 0.0
      %8912 = vmatmul.mubr.f32.gmra.mrb[0].mxu0 %v8684
      %v8913 = vpop.f32.mrb[0].mxu0
      %v8914 = vadd.f32 %v8710, %v8913
      %v8915 = vpop.f32.mrb[0].mxu0
      %8916 = vmatprep.mubr.f32.mxu0 0.0
      %8917 = vmatmul.mubr.f32.gmra.mrb[0].mxu0 %v8685
      %v8918 = vpop.f32.mrb[0].mxu0
      %v8919 = vadd.f32 %v8710, %v8918
      %v8920 = vpop.f32.mrb[0].mxu0
      %8921 = vmatprep.mubr.f32.mxu0 0.0
      %8922 = vmatmul.mubr.f32.gmra.mrb[0].mxu0 %v8686
      %v8923 = vpop.f32.mrb[0].mxu0
      %v8924 = vadd.f32 %v8710, %v8923
      %v8925 = vpop.f32.mrb[0].mxu0
      %8926 = vmatprep.mubr.f32.mxu0 0.0
      %8927 = vmatmul.mubr.f32.gmra.mrb[0].mxu0 %v8687
      %v8928 = vpop.f32.mrb[0].mxu0
      %v8929 = vadd.f32 %v8710, %v8928
      %v8930 = vpop.f32.mrb[0].mxu0
      %8931 = vmatprep.mubr.f32.mxu0 0.0
      %8932 = vmatmul.mubr.f32.gmra.mrb[0].mxu0 %v8688
      %v8933 = vpop.f32.mrb[0].mxu0
      %v8934 = vadd.f32 %v8710, %v8933
      %v8935 = vpop.f32.mrb[0].mxu0
      %8936 = vdwg.mxu0
      %8937 = vst [vmem:[%s224] sm:$0xff] %v8779
      %8938 = vst [vmem:[%s224 + $0x8] sm:$0xff] %v8784
      %8939 = vst [vmem:[%s224 + $0x10] sm:$0xff] %v8789
      %8940 = vst [vmem:[%s224 + $0x18] sm:$0xff] %v8794
      %8941 = vst [vmem:[%s224 + $0x20] sm:$0xff] %v8799
      %8942 = vst [vmem:[%s224 + $0x28] sm:$0xff] %v8804
      %8943 = vst [vmem:[%s224 + $0x30] sm:$0xff] %v8809
      %8944 = vst [vmem:[%s224 + $0x38] sm:$0xff] %v8814
      %8945 = vst [vmem:[%s224 + $0x40] sm:$0xff] %v8819
      %8946 = vst [vmem:[%s224 + $0x48] sm:$0xff] %v8824
      %8947 = vst [vmem:[%s224 + $0x50] sm:$0xff] %v8829
      %8948 = vst [vmem:[%s224 + $0x58] sm:$0xff] %v8834
      %8949 = vst [vmem:[%s224 + $0x60] sm:$0xff] %v8839
      %8950 = vst [vmem:[%s224 + $0x68] sm:$0xff] %v8844
      %8951 = vst [vmem:[%s224 + $0x70] sm:$0xff] %v8849
      %8952 = vst [vmem:[%s224 + $0x78] sm:$0xff] %v8854
      %8953 = vst [vmem:[%s224 + $0x80] sm:$0xff] %v8859
      %8954 = vst [vmem:[%s224 + $0x88] sm:$0xff] %v8864
      %8955 = vst [vmem:[%s224 + $0x90] sm:$0xff] %v8869
      %8956 = vst [vmem:[%s224 + $0x98] sm:$0xff] %v8874
      %8957 = vst [vmem:[%s224 + $0xa0] sm:$0xff] %v8879
      %8958 = vst [vmem:[%s224 + $0xa8] sm:$0xff] %v8884
      %8959 = vst [vmem:[%s224 + $0xb0] sm:$0xff] %v8889
      %8960 = vst [vmem:[%s224 + $0xb8] sm:$0xff] %v8894
      %8961 = vst [vmem:[%s224 + $0xc0] sm:$0xff] %v8899
      %8962 = vst [vmem:[%s224 + $0xc8] sm:$0xff] %v8904
      %8963 = vst [vmem:[%s224 + $0xd0] sm:$0xff] %v8909
      %8964 = vst [vmem:[%s224 + $0xd8] sm:$0xff] %v8914
      %8965 = vst [vmem:[%s224 + $0xe0] sm:$0xff] %v8919
      %8966 = vst [vmem:[%s224 + $0xe8] sm:$0xff] %v8924
      %8967 = vst [vmem:[%s224 + $0xf0] sm:$0xff] %v8929
      %8968 = vst [vmem:[%s224 + $0xf8] sm:$0xff] %v8934
      %p8969 = scmp.lt.s32.totalorder %s16, 1
      %s8970 = scalar_select %p8969, %s16, 1
      %s8971 = smul.addr %s8970, 32
      %s8972 = smul.addr %s8971, 8
      %s8973 = scalar_lea.vmem %s5, %s8972
      // Predicated region
      $region41: #{convnet_coupling_forward.1} parent=39 // pred_check
        %p8974 = pneg %p144
      $region42: #{convnet_coupling_forward.1} parent=39 // pred_check_branch
        %8976 = sbr.rel (%p8974) target = $region44
      $region43: #{convnet_coupling_forward.1} parent=39 // pred_region
        _
      $region44: #{convnet_coupling_forward.1} parent=39 // pred_fallthru
        _
    $region40: #{convnet_coupling_forward.1} parent=5 // pred_fallthru
      _
    %p8977 = scmp.le.s32.totalorder 2, %s11
    // Predicated region
    $region45: #{convnet_coupling_forward.1} parent=5 // pred_check
      %p8978 = pneg %p8977
    $region46: #{convnet_coupling_forward.1} parent=5 // pred_check_branch
      %8980 = sbr.rel (%p8978) target = $region48
    $region47: #{convnet_coupling_forward.1} parent=5 // pred_region
      %s8981 = ssub.s32 %s11, 2
      // Predicated region
      $region49: #{convnet_coupling_forward.1} parent=47 // pred_check
        %p8982 = pneg %p150
      $region50: #{convnet_coupling_forward.1} parent=47 // pred_check_branch
        %8984 = sbr.rel (%p8982) target = $region52
      $region51: #{convnet_coupling_forward.1} parent=47 // pred_region
        %p8985 = scmp.lt.s32.totalorder %s17, 1
        %s8986 = scalar_select %p8985, %s17, 1
        %s8987 = smul.addr %s8986, 32
        %s8988 = smul.addr %s8987, 8
        %s8989 = scalar_lea.vmem %s5, %s8988
      $region52: #{convnet_coupling_forward.1} parent=47 // pred_fallthru
        _
    $region48: #{convnet_coupling_forward.1} parent=5 // pred_fallthru
      _
  $region6: #{convnet_coupling_forward.1} parent=0 // loop_footer
    %s15 = sadd.s32 1, %s11
  $region7: #{convnet_coupling_forward.1} parent=0 // loop_footer_branch
    %10 = sbr.rel target = $region3
  $region8: #{convnet_coupling_forward.1} parent=0 // loop_exit
    _

</llo_original>
